<compile_context>
chip_gen: v7x
topology: tpu7x:2x2x1
jax: 0.10.0
libtpu: 0.0.40
codegen_flags: <defaults>
</compile_context>

<pallas_src>
import numpy as np
import jax
import jax.numpy as jnp
from jax import lax
from jax.experimental import pallas as pl
from jax.experimental.pallas import tpu as pltpu


# ---------------------------------------------------------------------------
# 3x3 "valid" conv on an already zero-padded (H+2, W+2, Ci) VMEM scratch.
# w_ref: (9, Ci, Co) VMEM ref (leading-axis tap index), b_ref: (1, 1, Co).
# Returns (H, W, Co) f32 value.
# ---------------------------------------------------------------------------
def _conv3x3(pad_ref, w_ref, b_ref):
    hp, wp, ci = pad_ref.shape
    co = w_ref.shape[-1]
    h, w = hp - 2, wp - 2
    # Fold the bias into the accumulator init (one fewer full-tile VPU add).
    acc = jnp.broadcast_to(b_ref[...].reshape(1, co), (h * w, co)).astype(jnp.float32)
    for dh in range(3):
        for dw in range(3):
            patch = pad_ref[dh:dh + h, dw:dw + w, :].reshape(h * w, ci)
            acc = acc + jnp.dot(patch, w_ref[dh * 3 + dw],
                                preferred_element_type=jnp.float32)
    return acc.reshape(h, w, co)


def _resblock_kernel(x_ref, w1_ref, b1_ref, w2_ref, b2_ref, out_ref, pad_s):
    # x_ref / out_ref: (H, W, C) block for one batch element (N squeezed).
    # pad_s:           (H+2, W+2, C) VMEM scratch, reused for BOTH conv stages:
    #                  it holds the zero-padded relu(x), then zero-padded
    #                  relu(conv1).  Neither intermediate ever hits HBM.
    H, W, C = x_ref.shape

    # Zero the halo once per image; interiors are fully overwritten below
    # before each conv reads them, so the border stays zero for both stages.
    pad_s[...] = jnp.zeros_like(pad_s)

    x = x_ref[...]

    # stage 1: zero-padded relu(x) -> conv1 + bias
    pad_s[1:H + 1, 1:W + 1, :] = jnp.maximum(x, 0.0)
    y1 = _conv3x3(pad_s, w1_ref, b1_ref)

    # stage 2: zero-padded relu(conv1) -> conv2 + bias (scratch reused in place;
    # y1 is already materialized, so the overwrite is safe)
    pad_s[1:H + 1, 1:W + 1, :] = jnp.maximum(y1, 0.0)

    # stage 3: conv2 + residual add of the original (un-relu'd) input
    out_ref[...] = _conv3x3(pad_s, w2_ref, b2_ref) + x


def residual_block_forward(x_nchw, w1_hwio, b1, w2_hwio, b2):
    """x_nchw: (N, C, H, W) f32; weights HWIO (3, 3, Cin, Cout); biases (Cout,)."""
    x = jnp.transpose(x_nchw, (0, 2, 3, 1)).astype(jnp.float32)   # NHWC
    n, h, w, ci = x.shape
    co = w1_hwio.shape[-1]
    assert ci == co, "ResidualBlock requires i_channel == o_channel"
    assert w1_hwio.shape == (3, 3, ci, co) and w2_hwio.shape == (3, 3, co, co)

    # (3, 3, Ci, Co) -> (9, Ci, Co): tap index = dh*3 + dw (leading-axis lookup)
    w1t = w1_hwio.reshape(9, ci, co).astype(jnp.float32)
    w2t = w2_hwio.reshape(9, co, co).astype(jnp.float32)
    b1r = b1.reshape(1, 1, co).astype(jnp.float32)
    b2r = b2.reshape(1, 1, co).astype(jnp.float32)

    # VMEM budget: double-buffered in/out tiles + 1 shared padded scratch +
    # weights, with 2x headroom; clipped to v7x's 64 MiB physical VMEM.
    elt = 4
    tile = h * w * ci * elt
    pad_tile = (h + 2) * (w + 2) * ci * elt
    wbytes = (w1t.size + w2t.size + b1r.size + b2r.size) * elt
    vmem_need = 2 * (tile + tile) + pad_tile + 2 * wbytes
    vmem_limit = int(min(max(2 * vmem_need, 16 << 20), 64 << 20))

    # TODO(synk): for large H*W*C, add an H-row grid axis with a 2-row halo so
    # per-image tiles stay within the v7x VMEM budget.
    out_nhwc = pl.pallas_call(
        _resblock_kernel,
        out_shape=jax.ShapeDtypeStruct((n, h, w, co), jnp.float32),
        grid_spec=pltpu.PrefetchScalarGridSpec(
            num_scalar_prefetch=0,
            grid=(n,),
            in_specs=[
                pl.BlockSpec((pl.Squeezed(), h, w, ci),
                             lambda i: (i, 0, 0, 0)),
                pl.BlockSpec((9, ci, co), lambda i: (0, 0, 0)),
                pl.BlockSpec((1, 1, co), lambda i: (0, 0, 0)),
                pl.BlockSpec((9, co, co), lambda i: (0, 0, 0)),
                pl.BlockSpec((1, 1, co), lambda i: (0, 0, 0)),
            ],
            out_specs=pl.BlockSpec((pl.Squeezed(), h, w, co),
                                   lambda i: (i, 0, 0, 0)),
            scratch_shapes=[
                pltpu.VMEM((h + 2, w + 2, ci), jnp.float32),
            ],
        ),
        compiler_params=pltpu.CompilerParams(
            dimension_semantics=("parallel",),
            vmem_limit_bytes=vmem_limit,
        ),
    )(x, w1t, b1r, w2t, b2r)

    return jnp.transpose(out_nhwc, (0, 3, 1, 2))   # back to NCHW


if __name__ == "__main__":
    key = jax.random.PRNGKey(0)
    N, C, H, W = 2, 4, 16, 16                      # i_channel == o_channel == 4
    k_x, k_w1, k_w2 = jax.random.split(key, 3)

    x = jax.random.normal(k_x, (N, C, H, W), jnp.float32)

    # xavier_uniform: bound = sqrt(6 / (fan_in + fan_out)), fan = C * 3 * 3
    fan_in = fan_out = C * 3 * 3
    bound = float(np.sqrt(6.0 / (fan_in + fan_out)))
    w1 = jax.random.uniform(k_w1, (3, 3, C, C), jnp.float32, -bound, bound)  # HWIO
    w2 = jax.random.uniform(k_w2, (3, 3, C, C), jnp.float32, -bound, bound)  # HWIO
    b1 = jnp.zeros((C,), jnp.float32)              # nn.init.constant_(bias, 0)
    b2 = jnp.zeros((C,), jnp.float32)

    out = jax.block_until_ready(residual_block_forward(x, w1, b1, w2, b2))

    # Pure-JAX reference (same math as the PyTorch module).
    def conv_same(z, w_hwio, b):
        y = lax.conv_general_dilated(
            z, w_hwio, window_strides=(1, 1), padding=((1, 1), (1, 1)),
            dimension_numbers=("NCHW", "HWIO", "NCHW"))
        return y + b[None, :, None, None]

    ref = jax.nn.relu(x)
    ref = conv_same(ref, w1, b1)
    ref = jax.nn.relu(ref)
    ref = conv_same(ref, w2, b2)
    ref = ref + x

    assert out.shape == x.shape
    np.testing.assert_allclose(np.asarray(out), np.asarray(ref),
                               rtol=1e-4, atol=1e-4)
    print("KERNEL_OK")
</pallas_src>

<mosaic_0001>
module attributes {stable_mosaic.version = 11 : i64} {
  func.func @_resblock_kernel(%arg0: i32, %arg1: memref<1x16x16x4xf32, #tpu.memory_space<vmem>>, %arg2: memref<9x4x4xf32, #tpu.memory_space<vmem>>, %arg3: memref<1x1x4xf32, #tpu.memory_space<vmem>>, %arg4: memref<9x4x4xf32, #tpu.memory_space<vmem>>, %arg5: memref<1x1x4xf32, #tpu.memory_space<vmem>>, %arg6: memref<1x16x16x4xf32, #tpu.memory_space<vmem>>, %arg7: memref<18x18x4xf32, #tpu.memory_space<vmem>>) attributes {dimension_semantics = [#tpu.dimension_semantics<parallel>], iteration_bounds = array<i64: 2>, scalar_prefetch = 0 : i64, scratch_operands = 1 : i64, tpu.core_type = #tpu.core_type<tc>, window_params = [{transform_indices = @transform_0, window_bounds = array<i64: 1, 16, 16, 4>}, {pipeline_mode = #tpu.pipeline_mode<synchronous>, transform_indices = @transform_1, window_bounds = array<i64: 9, 4, 4>}, {pipeline_mode = #tpu.pipeline_mode<synchronous>, transform_indices = @transform_2, window_bounds = array<i64: 1, 1, 4>}, {pipeline_mode = #tpu.pipeline_mode<synchronous>, transform_indices = @transform_3, window_bounds = array<i64: 9, 4, 4>}, {pipeline_mode = #tpu.pipeline_mode<synchronous>, transform_indices = @transform_4, window_bounds = array<i64: 1, 1, 4>}, {transform_indices = @transform_5, window_bounds = array<i64: 1, 16, 16, 4>}]} {
    %cst = arith.constant 0.000000e+00 : f32
    %0 = vector.broadcast %cst : f32 to vector<18x18x4xf32>
    %c0 = arith.constant 0 : index
    %c0_0 = arith.constant 0 : index
    %c0_1 = arith.constant 0 : index
    %1 = vector.load %arg7[%c0, %c0_0, %c0_1] : memref<18x18x4xf32, #tpu.memory_space<vmem>>, vector<18x18x4xf32>
    tpu.vector_store %arg7[%c0, %c0_0, %c0_1], %0 {strides = array<i32>} : memref<18x18x4xf32, #tpu.memory_space<vmem>>, vector<18x18x4xf32>,
    %c0_2 = arith.constant 0 : index
    %c0_3 = arith.constant 0 : index
    %c0_4 = arith.constant 0 : index
    %c0_5 = arith.constant 0 : index
    %2 = vector.load %arg1[%c0_2, %c0_3, %c0_4, %c0_5] : memref<1x16x16x4xf32, #tpu.memory_space<vmem>>, vector<1x16x16x4xf32>
    %3 = vector.shape_cast %2 : vector<1x16x16x4xf32> to vector<16x16x4xf32>
    %cst_6 = arith.constant 0.000000e+00 : f32
    %4 = vector.broadcast %cst_6 : f32 to vector<16x16x4xf32>
    %5 = arith.maximumf %3, %4 : vector<16x16x4xf32>
    %c1 = arith.constant 1 : index
    %c1_7 = arith.constant 1 : index
    %c0_8 = arith.constant 0 : index
    %6 = vector.load %arg7[%c1, %c1_7, %c0_8] : memref<18x18x4xf32, #tpu.memory_space<vmem>>, vector<16x16x4xf32>
    tpu.vector_store %arg7[%c1, %c1_7, %c0_8], %5 {strides = array<i32>} : memref<18x18x4xf32, #tpu.memory_space<vmem>>, vector<16x16x4xf32>,
    %c0_9 = arith.constant 0 : index
    %c0_10 = arith.constant 0 : index
    %c0_11 = arith.constant 0 : index
    %7 = vector.load %arg3[%c0_9, %c0_10, %c0_11] : memref<1x1x4xf32, #tpu.memory_space<vmem>>, vector<1x1x4xf32>
    %8 = vector.shape_cast %7 : vector<1x1x4xf32> to vector<1x4xf32>
    %9 = vector.shape_cast %8 : vector<1x4xf32> to vector<1x4xf32>
    %10 = vector.broadcast %9 : vector<1x4xf32> to vector<256x4xf32>
    %c0_12 = arith.constant 0 : index
    %c0_13 = arith.constant 0 : index
    %c0_14 = arith.constant 0 : index
    %11 = vector.load %arg7[%c0_12, %c0_13, %c0_14] : memref<18x18x4xf32, #tpu.memory_space<vmem>>, vector<16x16x4xf32>
    %12 = vector.shape_cast %11 : vector<16x16x4xf32> to vector<256x4xf32>
    %c0_15 = arith.constant 0 : index
    %c0_16 = arith.constant 0 : index
    %c0_17 = arith.constant 0 : index
    %13 = vector.load %arg2[%c0_15, %c0_16, %c0_17] : memref<9x4x4xf32, #tpu.memory_space<vmem>>, vector<1x4x4xf32>
    %14 = vector.shape_cast %13 : vector<1x4x4xf32> to vector<4x4xf32>
    %cst_18 = arith.constant dense<0.000000e+00> : vector<256x4xf32>
    %15 = tpu.matmul %12, %14, %cst_18 {dimension_numbers = #tpu.dot_dimension_numbers<[1], [0], [0], [1], [0, 0, 1, 1], [], []>} : vector<256x4xf32>, vector<4x4xf32>, vector<256x4xf32> -> vector<256x4xf32>
    %16 = arith.addf %10, %15 : vector<256x4xf32>
    %c0_19 = arith.constant 0 : index
    %c1_20 = arith.constant 1 : index
    %c0_21 = arith.constant 0 : index
    %17 = vector.load %arg7[%c0_19, %c1_20, %c0_21] : memref<18x18x4xf32, #tpu.memory_space<vmem>>, vector<16x16x4xf32>
    %18 = vector.shape_cast %17 : vector<16x16x4xf32> to vector<256x4xf32>
    %c1_22 = arith.constant 1 : index
    %c0_23 = arith.constant 0 : index
    %c0_24 = arith.constant 0 : index
    %19 = vector.load %arg2[%c1_22, %c0_23, %c0_24] : memref<9x4x4xf32, #tpu.memory_space<vmem>>, vector<1x4x4xf32>
    %20 = vector.shape_cast %19 : vector<1x4x4xf32> to vector<4x4xf32>
    %cst_25 = arith.constant dense<0.000000e+00> : vector<256x4xf32>
    %21 = tpu.matmul %18, %20, %cst_25 {dimension_numbers = #tpu.dot_dimension_numbers<[1], [0], [0], [1], [0, 0, 1, 1], [], []>} : vector<256x4xf32>, vector<4x4xf32>, vector<256x4xf32> -> vector<256x4xf32>
    %22 = arith.addf %16, %21 : vector<256x4xf32>
    %c0_26 = arith.constant 0 : index
    %c2 = arith.constant 2 : index
    %c0_27 = arith.constant 0 : index
    %23 = vector.load %arg7[%c0_26, %c2, %c0_27] : memref<18x18x4xf32, #tpu.memory_space<vmem>>, vector<16x16x4xf32>
    %24 = vector.shape_cast %23 : vector<16x16x4xf32> to vector<256x4xf32>
    %c2_28 = arith.constant 2 : index
    %c0_29 = arith.constant 0 : index
    %c0_30 = arith.constant 0 : index
    %25 = vector.load %arg2[%c2_28, %c0_29, %c0_30] : memref<9x4x4xf32, #tpu.memory_space<vmem>>, vector<1x4x4xf32>
    %26 = vector.shape_cast %25 : vector<1x4x4xf32> to vector<4x4xf32>
    %cst_31 = arith.constant dense<0.000000e+00> : vector<256x4xf32>
    %27 = tpu.matmul %24, %26, %cst_31 {dimension_numbers = #tpu.dot_dimension_numbers<[1], [0], [0], [1], [0, 0, 1, 1], [], []>} : vector<256x4xf32>, vector<4x4xf32>, vector<256x4xf32> -> vector<256x4xf32>
    %28 = arith.addf %22, %27 : vector<256x4xf32>
    %c1_32 = arith.constant 1 : index
    %c0_33 = arith.constant 0 : index
    %c0_34 = arith.constant 0 : index
    %29 = vector.load %arg7[%c1_32, %c0_33, %c0_34] : memref<18x18x4xf32, #tpu.memory_space<vmem>>, vector<16x16x4xf32>
    %30 = vector.shape_cast %29 : vector<16x16x4xf32> to vector<256x4xf32>
    %c3 = arith.constant 3 : index
    %c0_35 = arith.constant 0 : index
    %c0_36 = arith.constant 0 : index
    %31 = vector.load %arg2[%c3, %c0_35, %c0_36] : memref<9x4x4xf32, #tpu.memory_space<vmem>>, vector<1x4x4xf32>
    %32 = vector.shape_cast %31 : vector<1x4x4xf32> to vector<4x4xf32>
    %cst_37 = arith.constant dense<0.000000e+00> : vector<256x4xf32>
    %33 = tpu.matmul %30, %32, %cst_37 {dimension_numbers = #tpu.dot_dimension_numbers<[1], [0], [0], [1], [0, 0, 1, 1], [], []>} : vector<256x4xf32>, vector<4x4xf32>, vector<256x4xf32> -> vector<256x4xf32>
    %34 = arith.addf %28, %33 : vector<256x4xf32>
    %c1_38 = arith.constant 1 : index
    %c1_39 = arith.constant 1 : index
    %c0_40 = arith.constant 0 : index
    %35 = vector.load %arg7[%c1_38, %c1_39, %c0_40] : memref<18x18x4xf32, #tpu.memory_space<vmem>>, vector<16x16x4xf32>
    %36 = vector.shape_cast %35 : vector<16x16x4xf32> to vector<256x4xf32>
    %c4 = arith.constant 4 : index
    %c0_41 = arith.constant 0 : index
    %c0_42 = arith.constant 0 : index
    %37 = vector.load %arg2[%c4, %c0_41, %c0_42] : memref<9x4x4xf32, #tpu.memory_space<vmem>>, vector<1x4x4xf32>
    %38 = vector.shape_cast %37 : vector<1x4x4xf32> to vector<4x4xf32>
    %cst_43 = arith.constant dense<0.000000e+00> : vector<256x4xf32>
    %39 = tpu.matmul %36, %38, %cst_43 {dimension_numbers = #tpu.dot_dimension_numbers<[1], [0], [0], [1], [0, 0, 1, 1], [], []>} : vector<256x4xf32>, vector<4x4xf32>, vector<256x4xf32> -> vector<256x4xf32>
    %40 = arith.addf %34, %39 : vector<256x4xf32>
    %c1_44 = arith.constant 1 : index
    %c2_45 = arith.constant 2 : index
    %c0_46 = arith.constant 0 : index
    %41 = vector.load %arg7[%c1_44, %c2_45, %c0_46] : memref<18x18x4xf32, #tpu.memory_space<vmem>>, vector<16x16x4xf32>
    %42 = vector.shape_cast %41 : vector<16x16x4xf32> to vector<256x4xf32>
    %c5 = arith.constant 5 : index
    %c0_47 = arith.constant 0 : index
    %c0_48 = arith.constant 0 : index
    %43 = vector.load %arg2[%c5, %c0_47, %c0_48] : memref<9x4x4xf32, #tpu.memory_space<vmem>>, vector<1x4x4xf32>
    %44 = vector.shape_cast %43 : vector<1x4x4xf32> to vector<4x4xf32>
    %cst_49 = arith.constant dense<0.000000e+00> : vector<256x4xf32>
    %45 = tpu.matmul %42, %44, %cst_49 {dimension_numbers = #tpu.dot_dimension_numbers<[1], [0], [0], [1], [0, 0, 1, 1], [], []>} : vector<256x4xf32>, vector<4x4xf32>, vector<256x4xf32> -> vector<256x4xf32>
    %46 = arith.addf %40, %45 : vector<256x4xf32>
    %c2_50 = arith.constant 2 : index
    %c0_51 = arith.constant 0 : index
    %c0_52 = arith.constant 0 : index
    %47 = vector.load %arg7[%c2_50, %c0_51, %c0_52] : memref<18x18x4xf32, #tpu.memory_space<vmem>>, vector<16x16x4xf32>
    %48 = vector.shape_cast %47 : vector<16x16x4xf32> to vector<256x4xf32>
    %c6 = arith.constant 6 : index
    %c0_53 = arith.constant 0 : index
    %c0_54 = arith.constant 0 : index
    %49 = vector.load %arg2[%c6, %c0_53, %c0_54] : memref<9x4x4xf32, #tpu.memory_space<vmem>>, vector<1x4x4xf32>
    %50 = vector.shape_cast %49 : vector<1x4x4xf32> to vector<4x4xf32>
    %cst_55 = arith.constant dense<0.000000e+00> : vector<256x4xf32>
    %51 = tpu.matmul %48, %50, %cst_55 {dimension_numbers = #tpu.dot_dimension_numbers<[1], [0], [0], [1], [0, 0, 1, 1], [], []>} : vector<256x4xf32>, vector<4x4xf32>, vector<256x4xf32> -> vector<256x4xf32>
    %52 = arith.addf %46, %51 : vector<256x4xf32>
    %c2_56 = arith.constant 2 : index
    %c1_57 = arith.constant 1 : index
    %c0_58 = arith.constant 0 : index
    %53 = vector.load %arg7[%c2_56, %c1_57, %c0_58] : memref<18x18x4xf32, #tpu.memory_space<vmem>>, vector<16x16x4xf32>
    %54 = vector.shape_cast %53 : vector<16x16x4xf32> to vector<256x4xf32>
    %c7 = arith.constant 7 : index
    %c0_59 = arith.constant 0 : index
    %c0_60 = arith.constant 0 : index
    %55 = vector.load %arg2[%c7, %c0_59, %c0_60] : memref<9x4x4xf32, #tpu.memory_space<vmem>>, vector<1x4x4xf32>
    %56 = vector.shape_cast %55 : vector<1x4x4xf32> to vector<4x4xf32>
    %cst_61 = arith.constant dense<0.000000e+00> : vector<256x4xf32>
    %57 = tpu.matmul %54, %56, %cst_61 {dimension_numbers = #tpu.dot_dimension_numbers<[1], [0], [0], [1], [0, 0, 1, 1], [], []>} : vector<256x4xf32>, vector<4x4xf32>, vector<256x4xf32> -> vector<256x4xf32>
    %58 = arith.addf %52, %57 : vector<256x4xf32>
    %c2_62 = arith.constant 2 : index
    %c2_63 = arith.constant 2 : index
    %c0_64 = arith.constant 0 : index
    %59 = vector.load %arg7[%c2_62, %c2_63, %c0_64] : memref<18x18x4xf32, #tpu.memory_space<vmem>>, vector<16x16x4xf32>
    %60 = vector.shape_cast %59 : vector<16x16x4xf32> to vector<256x4xf32>
    %c8 = arith.constant 8 : index
    %c0_65 = arith.constant 0 : index
    %c0_66 = arith.constant 0 : index
    %61 = vector.load %arg2[%c8, %c0_65, %c0_66] : memref<9x4x4xf32, #tpu.memory_space<vmem>>, vector<1x4x4xf32>
    %62 = vector.shape_cast %61 : vector<1x4x4xf32> to vector<4x4xf32>
    %cst_67 = arith.constant dense<0.000000e+00> : vector<256x4xf32>
    %63 = tpu.matmul %60, %62, %cst_67 {dimension_numbers = #tpu.dot_dimension_numbers<[1], [0], [0], [1], [0, 0, 1, 1], [], []>} : vector<256x4xf32>, vector<4x4xf32>, vector<256x4xf32> -> vector<256x4xf32>
    %64 = arith.addf %58, %63 : vector<256x4xf32>
    %65 = vector.shape_cast %64 : vector<256x4xf32> to vector<16x16x4xf32>
    %cst_68 = arith.constant 0.000000e+00 : f32
    %66 = vector.broadcast %cst_68 : f32 to vector<16x16x4xf32>
    %67 = arith.maximumf %65, %66 : vector<16x16x4xf32>
    %c1_69 = arith.constant 1 : index
    %c1_70 = arith.constant 1 : index
    %c0_71 = arith.constant 0 : index
    %68 = vector.load %arg7[%c1_69, %c1_70, %c0_71] : memref<18x18x4xf32, #tpu.memory_space<vmem>>, vector<16x16x4xf32>
    tpu.vector_store %arg7[%c1_69, %c1_70, %c0_71], %67 {strides = array<i32>} : memref<18x18x4xf32, #tpu.memory_space<vmem>>, vector<16x16x4xf32>,
    %c0_72 = arith.constant 0 : index
    %c0_73 = arith.constant 0 : index
    %c0_74 = arith.constant 0 : index
    %69 = vector.load %arg5[%c0_72, %c0_73, %c0_74] : memref<1x1x4xf32, #tpu.memory_space<vmem>>, vector<1x1x4xf32>
    %70 = vector.shape_cast %69 : vector<1x1x4xf32> to vector<1x4xf32>
    %71 = vector.shape_cast %70 : vector<1x4xf32> to vector<1x4xf32>
    %72 = vector.broadcast %71 : vector<1x4xf32> to vector<256x4xf32>
    %c0_75 = arith.constant 0 : index
    %c0_76 = arith.constant 0 : index
    %c0_77 = arith.constant 0 : index
    %73 = vector.load %arg7[%c0_75, %c0_76, %c0_77] : memref<18x18x4xf32, #tpu.memory_space<vmem>>, vector<16x16x4xf32>
    %74 = vector.shape_cast %73 : vector<16x16x4xf32> to vector<256x4xf32>
    %c0_78 = arith.constant 0 : index
    %c0_79 = arith.constant 0 : index
    %c0_80 = arith.constant 0 : index
    %75 = vector.load %arg4[%c0_78, %c0_79, %c0_80] : memref<9x4x4xf32, #tpu.memory_space<vmem>>, vector<1x4x4xf32>
    %76 = vector.shape_cast %75 : vector<1x4x4xf32> to vector<4x4xf32>
    %cst_81 = arith.constant dense<0.000000e+00> : vector<256x4xf32>
    %77 = tpu.matmul %74, %76, %cst_81 {dimension_numbers = #tpu.dot_dimension_numbers<[1], [0], [0], [1], [0, 0, 1, 1], [], []>} : vector<256x4xf32>, vector<4x4xf32>, vector<256x4xf32> -> vector<256x4xf32>
    %78 = arith.addf %72, %77 : vector<256x4xf32>
    %c0_82 = arith.constant 0 : index
    %c1_83 = arith.constant 1 : index
    %c0_84 = arith.constant 0 : index
    %79 = vector.load %arg7[%c0_82, %c1_83, %c0_84] : memref<18x18x4xf32, #tpu.memory_space<vmem>>, vector<16x16x4xf32>
    %80 = vector.shape_cast %79 : vector<16x16x4xf32> to vector<256x4xf32>
    %c1_85 = arith.constant 1 : index
    %c0_86 = arith.constant 0 : index
    %c0_87 = arith.constant 0 : index
    %81 = vector.load %arg4[%c1_85, %c0_86, %c0_87] : memref<9x4x4xf32, #tpu.memory_space<vmem>>, vector<1x4x4xf32>
    %82 = vector.shape_cast %81 : vector<1x4x4xf32> to vector<4x4xf32>
    %cst_88 = arith.constant dense<0.000000e+00> : vector<256x4xf32>
    %83 = tpu.matmul %80, %82, %cst_88 {dimension_numbers = #tpu.dot_dimension_numbers<[1], [0], [0], [1], [0, 0, 1, 1], [], []>} : vector<256x4xf32>, vector<4x4xf32>, vector<256x4xf32> -> vector<256x4xf32>
    %84 = arith.addf %78, %83 : vector<256x4xf32>
    %c0_89 = arith.constant 0 : index
    %c2_90 = arith.constant 2 : index
    %c0_91 = arith.constant 0 : index
    %85 = vector.load %arg7[%c0_89, %c2_90, %c0_91] : memref<18x18x4xf32, #tpu.memory_space<vmem>>, vector<16x16x4xf32>
    %86 = vector.shape_cast %85 : vector<16x16x4xf32> to vector<256x4xf32>
    %c2_92 = arith.constant 2 : index
    %c0_93 = arith.constant 0 : index
    %c0_94 = arith.constant 0 : index
    %87 = vector.load %arg4[%c2_92, %c0_93, %c0_94] : memref<9x4x4xf32, #tpu.memory_space<vmem>>, vector<1x4x4xf32>
    %88 = vector.shape_cast %87 : vector<1x4x4xf32> to vector<4x4xf32>
    %cst_95 = arith.constant dense<0.000000e+00> : vector<256x4xf32>
    %89 = tpu.matmul %86, %88, %cst_95 {dimension_numbers = #tpu.dot_dimension_numbers<[1], [0], [0], [1], [0, 0, 1, 1], [], []>} : vector<256x4xf32>, vector<4x4xf32>, vector<256x4xf32> -> vector<256x4xf32>
    %90 = arith.addf %84, %89 : vector<256x4xf32>
    %c1_96 = arith.constant 1 : index
    %c0_97 = arith.constant 0 : index
    %c0_98 = arith.constant 0 : index
    %91 = vector.load %arg7[%c1_96, %c0_97, %c0_98] : memref<18x18x4xf32, #tpu.memory_space<vmem>>, vector<16x16x4xf32>
    %92 = vector.shape_cast %91 : vector<16x16x4xf32> to vector<256x4xf32>
    %c3_99 = arith.constant 3 : index
    %c0_100 = arith.constant 0 : index
    %c0_101 = arith.constant 0 : index
    %93 = vector.load %arg4[%c3_99, %c0_100, %c0_101] : memref<9x4x4xf32, #tpu.memory_space<vmem>>, vector<1x4x4xf32>
    %94 = vector.shape_cast %93 : vector<1x4x4xf32> to vector<4x4xf32>
    %cst_102 = arith.constant dense<0.000000e+00> : vector<256x4xf32>
    %95 = tpu.matmul %92, %94, %cst_102 {dimension_numbers = #tpu.dot_dimension_numbers<[1], [0], [0], [1], [0, 0, 1, 1], [], []>} : vector<256x4xf32>, vector<4x4xf32>, vector<256x4xf32> -> vector<256x4xf32>
    %96 = arith.addf %90, %95 : vector<256x4xf32>
    %c1_103 = arith.constant 1 : index
    %c1_104 = arith.constant 1 : index
    %c0_105 = arith.constant 0 : index
    %97 = vector.load %arg7[%c1_103, %c1_104, %c0_105] : memref<18x18x4xf32, #tpu.memory_space<vmem>>, vector<16x16x4xf32>
    %98 = vector.shape_cast %97 : vector<16x16x4xf32> to vector<256x4xf32>
    %c4_106 = arith.constant 4 : index
    %c0_107 = arith.constant 0 : index
    %c0_108 = arith.constant 0 : index
    %99 = vector.load %arg4[%c4_106, %c0_107, %c0_108] : memref<9x4x4xf32, #tpu.memory_space<vmem>>, vector<1x4x4xf32>
    %100 = vector.shape_cast %99 : vector<1x4x4xf32> to vector<4x4xf32>
    %cst_109 = arith.constant dense<0.000000e+00> : vector<256x4xf32>
    %101 = tpu.matmul %98, %100, %cst_109 {dimension_numbers = #tpu.dot_dimension_numbers<[1], [0], [0], [1], [0, 0, 1, 1], [], []>} : vector<256x4xf32>, vector<4x4xf32>, vector<256x4xf32> -> vector<256x4xf32>
    %102 = arith.addf %96, %101 : vector<256x4xf32>
    %c1_110 = arith.constant 1 : index
    %c2_111 = arith.constant 2 : index
    %c0_112 = arith.constant 0 : index
    %103 = vector.load %arg7[%c1_110, %c2_111, %c0_112] : memref<18x18x4xf32, #tpu.memory_space<vmem>>, vector<16x16x4xf32>
    %104 = vector.shape_cast %103 : vector<16x16x4xf32> to vector<256x4xf32>
    %c5_113 = arith.constant 5 : index
    %c0_114 = arith.constant 0 : index
    %c0_115 = arith.constant 0 : index
    %105 = vector.load %arg4[%c5_113, %c0_114, %c0_115] : memref<9x4x4xf32, #tpu.memory_space<vmem>>, vector<1x4x4xf32>
    %106 = vector.shape_cast %105 : vector<1x4x4xf32> to vector<4x4xf32>
    %cst_116 = arith.constant dense<0.000000e+00> : vector<256x4xf32>
    %107 = tpu.matmul %104, %106, %cst_116 {dimension_numbers = #tpu.dot_dimension_numbers<[1], [0], [0], [1], [0, 0, 1, 1], [], []>} : vector<256x4xf32>, vector<4x4xf32>, vector<256x4xf32> -> vector<256x4xf32>
    %108 = arith.addf %102, %107 : vector<256x4xf32>
    %c2_117 = arith.constant 2 : index
    %c0_118 = arith.constant 0 : index
    %c0_119 = arith.constant 0 : index
    %109 = vector.load %arg7[%c2_117, %c0_118, %c0_119] : memref<18x18x4xf32, #tpu.memory_space<vmem>>, vector<16x16x4xf32>
    %110 = vector.shape_cast %109 : vector<16x16x4xf32> to vector<256x4xf32>
    %c6_120 = arith.constant 6 : index
    %c0_121 = arith.constant 0 : index
    %c0_122 = arith.constant 0 : index
    %111 = vector.load %arg4[%c6_120, %c0_121, %c0_122] : memref<9x4x4xf32, #tpu.memory_space<vmem>>, vector<1x4x4xf32>
    %112 = vector.shape_cast %111 : vector<1x4x4xf32> to vector<4x4xf32>
    %cst_123 = arith.constant dense<0.000000e+00> : vector<256x4xf32>
    %113 = tpu.matmul %110, %112, %cst_123 {dimension_numbers = #tpu.dot_dimension_numbers<[1], [0], [0], [1], [0, 0, 1, 1], [], []>} : vector<256x4xf32>, vector<4x4xf32>, vector<256x4xf32> -> vector<256x4xf32>
    %114 = arith.addf %108, %113 : vector<256x4xf32>
    %c2_124 = arith.constant 2 : index
    %c1_125 = arith.constant 1 : index
    %c0_126 = arith.constant 0 : index
    %115 = vector.load %arg7[%c2_124, %c1_125, %c0_126] : memref<18x18x4xf32, #tpu.memory_space<vmem>>, vector<16x16x4xf32>
    %116 = vector.shape_cast %115 : vector<16x16x4xf32> to vector<256x4xf32>
    %c7_127 = arith.constant 7 : index
    %c0_128 = arith.constant 0 : index
    %c0_129 = arith.constant 0 : index
    %117 = vector.load %arg4[%c7_127, %c0_128, %c0_129] : memref<9x4x4xf32, #tpu.memory_space<vmem>>, vector<1x4x4xf32>
    %118 = vector.shape_cast %117 : vector<1x4x4xf32> to vector<4x4xf32>
    %cst_130 = arith.constant dense<0.000000e+00> : vector<256x4xf32>
    %119 = tpu.matmul %116, %118, %cst_130 {dimension_numbers = #tpu.dot_dimension_numbers<[1], [0], [0], [1], [0, 0, 1, 1], [], []>} : vector<256x4xf32>, vector<4x4xf32>, vector<256x4xf32> -> vector<256x4xf32>
    %120 = arith.addf %114, %119 : vector<256x4xf32>
    %c2_131 = arith.constant 2 : index
    %c2_132 = arith.constant 2 : index
    %c0_133 = arith.constant 0 : index
    %121 = vector.load %arg7[%c2_131, %c2_132, %c0_133] : memref<18x18x4xf32, #tpu.memory_space<vmem>>, vector<16x16x4xf32>
    %122 = vector.shape_cast %121 : vector<16x16x4xf32> to vector<256x4xf32>
    %c8_134 = arith.constant 8 : index
    %c0_135 = arith.constant 0 : index
    %c0_136 = arith.constant 0 : index
    %123 = vector.load %arg4[%c8_134, %c0_135, %c0_136] : memref<9x4x4xf32, #tpu.memory_space<vmem>>, vector<1x4x4xf32>
    %124 = vector.shape_cast %123 : vector<1x4x4xf32> to vector<4x4xf32>
    %cst_137 = arith.constant dense<0.000000e+00> : vector<256x4xf32>
    %125 = tpu.matmul %122, %124, %cst_137 {dimension_numbers = #tpu.dot_dimension_numbers<[1], [0], [0], [1], [0, 0, 1, 1], [], []>} : vector<256x4xf32>, vector<4x4xf32>, vector<256x4xf32> -> vector<256x4xf32>
    %126 = arith.addf %120, %125 : vector<256x4xf32>
    %127 = vector.shape_cast %126 : vector<256x4xf32> to vector<16x16x4xf32>
    %128 = arith.addf %127, %3 : vector<16x16x4xf32>
    %c0_138 = arith.constant 0 : index
    %c0_139 = arith.constant 0 : index
    %c0_140 = arith.constant 0 : index
    %c0_141 = arith.constant 0 : index
    %129 = vector.load %arg6[%c0_138, %c0_139, %c0_140, %c0_141] : memref<1x16x16x4xf32, #tpu.memory_space<vmem>>, vector<1x16x16x4xf32>
    %130 = vector.shape_cast %129 : vector<1x16x16x4xf32> to vector<16x16x4xf32>
    %131 = vector.shape_cast %128 : vector<16x16x4xf32> to vector<1x16x16x4xf32>
    tpu.vector_store %arg6[%c0_138, %c0_139, %c0_140, %c0_141], %131 {strides = array<i32>} : memref<1x16x16x4xf32, #tpu.memory_space<vmem>>, vector<1x16x16x4xf32>,
    return
  }
  func.func @transform_0(%arg0: i32) -> (i32, i32, i32, i32) {
    %c0_i32 = arith.constant 0 : i32
    %c0_i32_0 = arith.constant 0 : i32
    %c0_i32_1 = arith.constant 0 : i32
    %c0_i32_2 = arith.constant 0 : i32
    return %arg0, %c0_i32, %c0_i32_0, %c0_i32_1 : i32, i32, i32, i32
  }
  func.func @transform_1(%arg0: i32) -> (i32, i32, i32) {
    %c0_i32 = arith.constant 0 : i32
    %c0_i32_0 = arith.constant 0 : i32
    %c0_i32_1 = arith.constant 0 : i32
    %c0_i32_2 = arith.constant 0 : i32
    return %c0_i32, %c0_i32_0, %c0_i32_1 : i32, i32, i32
  }
  func.func @transform_2(%arg0: i32) -> (i32, i32, i32) {
    %c0_i32 = arith.constant 0 : i32
    %c0_i32_0 = arith.constant 0 : i32
    %c0_i32_1 = arith.constant 0 : i32
    %c0_i32_2 = arith.constant 0 : i32
    return %c0_i32, %c0_i32_0, %c0_i32_1 : i32, i32, i32
  }
  func.func @transform_3(%arg0: i32) -> (i32, i32, i32) {
    %c0_i32 = arith.constant 0 : i32
    %c0_i32_0 = arith.constant 0 : i32
    %c0_i32_1 = arith.constant 0 : i32
    %c0_i32_2 = arith.constant 0 : i32
    return %c0_i32, %c0_i32_0, %c0_i32_1 : i32, i32, i32
  }
  func.func @transform_4(%arg0: i32) -> (i32, i32, i32) {
    %c0_i32 = arith.constant 0 : i32
    %c0_i32_0 = arith.constant 0 : i32
    %c0_i32_1 = arith.constant 0 : i32
    %c0_i32_2 = arith.constant 0 : i32
    return %c0_i32, %c0_i32_0, %c0_i32_1 : i32, i32, i32
  }
  func.func @transform_5(%arg0: i32) -> (i32, i32, i32, i32) {
    %c0_i32 = arith.constant 0 : i32
    %c0_i32_0 = arith.constant 0 : i32
    %c0_i32_1 = arith.constant 0 : i32
    %c0_i32_2 = arith.constant 0 : i32
    return %arg0, %c0_i32, %c0_i32_0, %c0_i32_1 : i32, i32, i32, i32
  }
}

</mosaic_0001>

<llo_original>
// kernel: tpu_custom_call.1
$region0: #{tpu_custom_call.1}
  #allocation0 [shape = 'u32[]', space=smem, size = 0x4, offset = 0x4, fixed_abs, tag = 'smem constant byte address 0x4 - core index']
  #allocation1 [shape = 'u32[144,128]{1,0:T(1,128)}', space=vmem, size = 0x12000, scoped, tag = 'internal scratch']
  #allocation2 [shape = 'f32[18,18,4]{2,1,0:T(8,128)}', space=vmem, size = 0x36000, scoped, tag = 'scratch operand']
  %s0 = inlined_call_operand.vmem [shape: f32[2,16,16,4], index: 0, kind: input, shape index: {}]
  %s1 = inlined_call_operand.vmem [shape: f32[9,4,4], index: 1, kind: input, shape index: {}]
  %s2 = inlined_call_operand.vmem [shape: f32[1,1,4], index: 2, kind: input, shape index: {}]
  %s3 = inlined_call_operand.vmem [shape: f32[9,4,4], index: 3, kind: input, shape index: {}]
  %s4 = inlined_call_operand.vmem [shape: f32[1,1,4], index: 4, kind: input, shape index: {}]
  %s5 = inlined_call_operand.vmem [shape: f32[2,16,16,4], index: 5, kind: output, shape index: {}]
  %s6 = sld [smem:[#allocation0]]
  $region53: #{tpu_custom_call.1} parent=0
    _
  %s8 = ssub.s32 1, %s6
  %s9 = scalar_select 0, %s8, %s6
  loop: start=0, step=1, limit=4
  $region2: #{tpu_custom_call.1} parent=0 // loop_pre_header
    _
  $region3: #{tpu_custom_call.1} parent=0 // loop_header
    %s11 = sphi 0, %s15
    %p12 = scmp.ge.s32.totalorder %s11, 4
    %s21 = sphi 0, %s23
    %s24 = sphi 0, %s21
    %s25 = sphi 0, %s24
    %s41 = sphi 0, %s25
    %s45 = sphi 0, %s45
    %s47 = sphi 0, %s45
    %s48 = sphi 0, %s47
    %s62 = sphi 0, %s48
    %s66 = sphi 0, %s66
    %s68 = sphi 0, %s66
    %s69 = sphi 0, %s68
    %s83 = sphi 0, %s69
    %s87 = sphi 0, %s87
    %s89 = sphi 0, %s87
    %s90 = sphi 0, %s89
    %s104 = sphi 0, %s90
    %s108 = sphi 0, %s108
    %s110 = sphi 0, %s108
    %s111 = sphi 0, %s110
    %s125 = sphi 0, %s111
    %s131 = sphi 0, %s133
    %s134 = sphi 0, %s131
    %s135 = sphi 0, %s134
    %s151 = sphi 0, %s135
  $region4: #{tpu_custom_call.1} parent=0 // loop_header_branch
    %14 = sbr.rel (%p12) target = $region8
  $region5: #{tpu_custom_call.1} parent=0 // loop_body
    %s16 = ssub.s32 %s11, 1
    %s17 = ssub.s32 %s11, 2
    %s18 = sadd.s32 %s11, 1
    %s19 = ssub.s32 %s11, %s18
    %p20 = scmp.eq.s32.totalorder %s19, 0
    %s22 = sadd.s32 %s21, 1
    %s23 = scalar_select %p20, %s21, %s22
    %p26 = pneg %p20
    %p27 = scmp.eq.s32.totalorder %s11, 1
    %p28 = por %p26, %p27
    %p29 = scmp.ne.s32.totalorder %s21, %s24
    %p30 = scmp.eq.s32.totalorder %s11, 0
    %p31 = por %p29, %p30
    %p32 = scmp.ne.s32.totalorder %s21, %s24
    %p33 = scmp.eq.s32.totalorder %s16, 1
    %p34 = por %p32, %p33
    %p35 = scmp.ne.s32.totalorder %s24, %s25
    %p36 = scmp.eq.s32.totalorder %s16, 0
    %p37 = por %p35, %p36
    %p38 = scmp.ne.s32.totalorder %s24, %s25
    %p39 = scmp.eq.s32.totalorder %s17, 1
    %p40 = por %p38, %p39
    %p42 = scmp.ne.s32.totalorder %s25, %s41
    %p43 = scmp.eq.s32.totalorder %s17, 0
    %p44 = por %p42, %p43
    %s46 = sadd.s32 %s45, 1
    %p49 = scmp.eq.s32.totalorder %s11, 1
    %p50 = scmp.ne.s32.totalorder %s45, %s47
    %p51 = scmp.eq.s32.totalorder %s11, 0
    %p52 = por %p50, %p51
    %p53 = scmp.ne.s32.totalorder %s45, %s47
    %p54 = scmp.eq.s32.totalorder %s16, 1
    %p55 = por %p53, %p54
    %p56 = scmp.ne.s32.totalorder %s47, %s48
    %p57 = scmp.eq.s32.totalorder %s16, 0
    %p58 = por %p56, %p57
    %p59 = scmp.ne.s32.totalorder %s47, %s48
    %p60 = scmp.eq.s32.totalorder %s17, 1
    %p61 = por %p59, %p60
    %p63 = scmp.ne.s32.totalorder %s48, %s62
    %p64 = scmp.eq.s32.totalorder %s17, 0
    %p65 = por %p63, %p64
    %s67 = sadd.s32 %s66, 1
    %p70 = scmp.eq.s32.totalorder %s11, 1
    %p71 = scmp.ne.s32.totalorder %s66, %s68
    %p72 = scmp.eq.s32.totalorder %s11, 0
    %p73 = por %p71, %p72
    %p74 = scmp.ne.s32.totalorder %s66, %s68
    %p75 = scmp.eq.s32.totalorder %s16, 1
    %p76 = por %p74, %p75
    %p77 = scmp.ne.s32.totalorder %s68, %s69
    %p78 = scmp.eq.s32.totalorder %s16, 0
    %p79 = por %p77, %p78
    %p80 = scmp.ne.s32.totalorder %s68, %s69
    %p81 = scmp.eq.s32.totalorder %s17, 1
    %p82 = por %p80, %p81
    %p84 = scmp.ne.s32.totalorder %s69, %s83
    %p85 = scmp.eq.s32.totalorder %s17, 0
    %p86 = por %p84, %p85
    %s88 = sadd.s32 %s87, 1
    %p91 = scmp.eq.s32.totalorder %s11, 1
    %p92 = scmp.ne.s32.totalorder %s87, %s89
    %p93 = scmp.eq.s32.totalorder %s11, 0
    %p94 = por %p92, %p93
    %p95 = scmp.ne.s32.totalorder %s87, %s89
    %p96 = scmp.eq.s32.totalorder %s16, 1
    %p97 = por %p95, %p96
    %p98 = scmp.ne.s32.totalorder %s89, %s90
    %p99 = scmp.eq.s32.totalorder %s16, 0
    %p100 = por %p98, %p99
    %p101 = scmp.ne.s32.totalorder %s89, %s90
    %p102 = scmp.eq.s32.totalorder %s17, 1
    %p103 = por %p101, %p102
    %p105 = scmp.ne.s32.totalorder %s90, %s104
    %p106 = scmp.eq.s32.totalorder %s17, 0
    %p107 = por %p105, %p106
    %s109 = sadd.s32 %s108, 1
    %p112 = scmp.eq.s32.totalorder %s11, 1
    %p113 = scmp.ne.s32.totalorder %s108, %s110
    %p114 = scmp.eq.s32.totalorder %s11, 0
    %p115 = por %p113, %p114
    %p116 = scmp.ne.s32.totalorder %s108, %s110
    %p117 = scmp.eq.s32.totalorder %s16, 1
    %p118 = por %p116, %p117
    %p119 = scmp.ne.s32.totalorder %s110, %s111
    %p120 = scmp.eq.s32.totalorder %s16, 0
    %p121 = por %p119, %p120
    %p122 = scmp.ne.s32.totalorder %s110, %s111
    %p123 = scmp.eq.s32.totalorder %s17, 1
    %p124 = por %p122, %p123
    %p126 = scmp.ne.s32.totalorder %s111, %s125
    %p127 = scmp.eq.s32.totalorder %s17, 0
    %p128 = por %p126, %p127
    %s129 = ssub.s32 %s11, %s18
    %p130 = scmp.eq.s32.totalorder %s129, 0
    %s132 = sadd.s32 %s131, 1
    %s133 = scalar_select %p130, %s131, %s132
    %p136 = pneg %p130
    %p137 = scmp.eq.s32.totalorder %s11, 1
    %p138 = por %p136, %p137
    %p139 = scmp.ne.s32.totalorder %s131, %s134
    %p140 = scmp.eq.s32.totalorder %s11, 0
    %p141 = por %p139, %p140
    %p142 = scmp.ne.s32.totalorder %s131, %s134
    %p143 = scmp.eq.s32.totalorder %s16, 1
    %p144 = por %p142, %p143
    %p145 = scmp.ne.s32.totalorder %s134, %s135
    %p146 = scmp.eq.s32.totalorder %s16, 0
    %p147 = por %p145, %p146
    %p148 = scmp.ne.s32.totalorder %s134, %s135
    %p149 = scmp.eq.s32.totalorder %s17, 1
    %p150 = por %p148, %p149
    %p152 = scmp.ne.s32.totalorder %s135, %s151
    %p153 = scmp.eq.s32.totalorder %s17, 0
    %p154 = por %p152, %p153
    %p155 = scmp.le.s32.totalorder 1, %s11
    %p156 = scmp.lt.s32.totalorder %s11, 3
    %p157 = pnand %p155, %p156
    %p158 = pneg %p157
    // Predicated region
    $region9: #{tpu_custom_call.1} parent=5 // pred_check
      _
    $region10: #{tpu_custom_call.1} parent=5 // pred_check_branch
      %160 = sbr.rel (%p157) target = $region12
    $region11: #{tpu_custom_call.1} parent=5 // pred_region
      %s161 = ssub.s32 %s11, 1
      // Predicated region
      $region13: #{tpu_custom_call.1} parent=11 // pred_check
        %p162 = pneg %p58
      $region14: #{tpu_custom_call.1} parent=11 // pred_check_branch
        %164 = sbr.rel (%p162) target = $region16
      $region15: #{tpu_custom_call.1} parent=11 // pred_region
        _
      $region16: #{tpu_custom_call.1} parent=11 // pred_fallthru
        _
      // Predicated region
      $region17: #{tpu_custom_call.1} parent=11 // pred_check
        %p165 = pneg %p79
      $region18: #{tpu_custom_call.1} parent=11 // pred_check_branch
        %167 = sbr.rel (%p165) target = $region20
      $region19: #{tpu_custom_call.1} parent=11 // pred_region
        _
      $region20: #{tpu_custom_call.1} parent=11 // pred_fallthru
        _
      // Predicated region
      $region21: #{tpu_custom_call.1} parent=11 // pred_check
        %p168 = pneg %p100
      $region22: #{tpu_custom_call.1} parent=11 // pred_check_branch
        %170 = sbr.rel (%p168) target = $region24
      $region23: #{tpu_custom_call.1} parent=11 // pred_region
        _
      $region24: #{tpu_custom_call.1} parent=11 // pred_fallthru
        _
      // Predicated region
      $region25: #{tpu_custom_call.1} parent=11 // pred_check
        %p171 = pneg %p121
      $region26: #{tpu_custom_call.1} parent=11 // pred_check_branch
        %173 = sbr.rel (%p171) target = $region28
      $region27: #{tpu_custom_call.1} parent=11 // pred_region
        _
      $region28: #{tpu_custom_call.1} parent=11 // pred_fallthru
        _
    $region12: #{tpu_custom_call.1} parent=5 // pred_fallthru
      _
    %p174 = scmp.lt.s32.totalorder %s11, 2
    // Predicated region
    $region29: #{tpu_custom_call.1} parent=5 // pred_check
      %p175 = pneg %p174
    $region30: #{tpu_custom_call.1} parent=5 // pred_check_branch
      %177 = sbr.rel (%p175) target = $region32
    $region31: #{tpu_custom_call.1} parent=5 // pred_region
      // Predicated region
      $region33: #{tpu_custom_call.1} parent=31 // pred_check
        %p178 = pneg %p31
      $region34: #{tpu_custom_call.1} parent=31 // pred_check_branch
        %180 = sbr.rel (%p178) target = $region36
      $region35: #{tpu_custom_call.1} parent=31 // pred_region
        %p181 = scmp.lt.s32.totalorder %s11, 1
        %s182 = scalar_select %p181, %s11, 1
        %s183 = smul.addr %s182, 32
        %s184 = smul.addr %s183, 8
        %s185 = scalar_lea.vmem %s0, %s184
      $region36: #{tpu_custom_call.1} parent=31 // pred_fallthru
        _
    $region32: #{tpu_custom_call.1} parent=5 // pred_fallthru
      _
    %p186 = scmp.le.s32.totalorder 1, %s11
    %p187 = scmp.lt.s32.totalorder %s11, 3
    %p188 = pnand %p186, %p187
    %p189 = pneg %p188
    // Predicated region
    $region37: #{tpu_custom_call.1} parent=5 // pred_check
      _
    $region38: #{tpu_custom_call.1} parent=5 // pred_check_branch
      %191 = sbr.rel (%p188) target = $region40
    $region39: #{tpu_custom_call.1} parent=5 // pred_region
      %s192 = ssub.s32 %s11, 1
      %p193 = scmp.lt.s32.totalorder %s16, 1
      %s194 = scalar_select %p193, %s16, 1
      %s195 = smul.addr %s194, 32
      %s196 = smul.addr %s195, 8
      %s197 = scalar_lea.vmem %s0, %s196
      %p198 = pneg %p37
      %p199 = pneg %p34
      %p200 = pneg %p58
      %p201 = pneg %p55
      %p202 = pneg %p79
      %p203 = pneg %p76
      %p204 = pneg %p100
      %p205 = pneg %p97
      %p206 = pneg %p121
      %p207 = pneg %p118
      %p208 = pneg %p147
      %p209 = pneg %p144
      %p210 = scmp.lt.s32.totalorder %s16, 1
      %s211 = scalar_select %p210, %s16, 1
      %s212 = smul.addr %s211, 32
      %s213 = smul.addr %s212, 8
      %s214 = scalar_lea.vmem %s5, %s213
      %p215 = scmp.lt.s32.totalorder %s16, 1
      %s216 = scalar_select %p215, %s16, 1
      %s217 = smul.addr %s216, 32
      %s218 = smul.addr %s217, 8
      %s219 = scalar_lea.vmem %s0, %s218
      %p220 = scmp.lt.s32.totalorder %s16, 1
      %s221 = scalar_select %p220, %s16, 1
      %s222 = smul.addr %s221, 32
      %s223 = smul.addr %s222, 8
      %s224 = scalar_lea.vmem %s5, %s223
      %vm225 = vcmask 31744
      %226 = vst.msk [vmem:[#allocation2] sm:$0xff] %vm225, 0.0
      %227 = vst.msk [vmem:[#allocation2 + $0x8] sm:$0xff] %vm225, 0.0
      %vm228 = vcmask 25600
      %229 = vst.msk [vmem:[#allocation2 + $0x10] sm:$0x3] %vm228, 0.0
      %230 = vst.msk [vmem:[#allocation2 + $0x18] sm:$0xff] %vm225, 0.0
      %231 = vst.msk [vmem:[#allocation2 + $0x20] sm:$0xff] %vm225, 0.0
      %232 = vst.msk [vmem:[#allocation2 + $0x28] sm:$0x3] %vm228, 0.0
      %233 = vst.msk [vmem:[#allocation2 + $0x30] sm:$0xff] %vm225, 0.0
      %234 = vst.msk [vmem:[#allocation2 + $0x38] sm:$0xff] %vm225, 0.0
      %235 = vst.msk [vmem:[#allocation2 + $0x40] sm:$0x3] %vm228, 0.0
      %236 = vst.msk [vmem:[#allocation2 + $0x48] sm:$0xff] %vm225, 0.0
      %237 = vst.msk [vmem:[#allocation2 + $0x50] sm:$0xff] %vm225, 0.0
      %238 = vst.msk [vmem:[#allocation2 + $0x58] sm:$0x3] %vm228, 0.0
      %239 = vst.msk [vmem:[#allocation2 + $0x60] sm:$0xff] %vm225, 0.0
      %240 = vst.msk [vmem:[#allocation2 + $0x68] sm:$0xff] %vm225, 0.0
      %241 = vst.msk [vmem:[#allocation2 + $0x70] sm:$0x3] %vm228, 0.0
      %242 = vst.msk [vmem:[#allocation2 + $0x78] sm:$0xff] %vm225, 0.0
      %243 = vst.msk [vmem:[#allocation2 + $0x80] sm:$0xff] %vm225, 0.0
      %244 = vst.msk [vmem:[#allocation2 + $0x88] sm:$0x3] %vm228, 0.0
      %245 = vst.msk [vmem:[#allocation2 + $0x90] sm:$0xff] %vm225, 0.0
      %246 = vst.msk [vmem:[#allocation2 + $0x98] sm:$0xff] %vm225, 0.0
      %247 = vst.msk [vmem:[#allocation2 + $0xa0] sm:$0x3] %vm228, 0.0
      %248 = vst.msk [vmem:[#allocation2 + $0xa8] sm:$0xff] %vm225, 0.0
      %249 = vst.msk [vmem:[#allocation2 + $0xb0] sm:$0xff] %vm225, 0.0
      %250 = vst.msk [vmem:[#allocation2 + $0xb8] sm:$0x3] %vm228, 0.0
      %251 = vst.msk [vmem:[#allocation2 + $0xc0] sm:$0xff] %vm225, 0.0
      %252 = vst.msk [vmem:[#allocation2 + $0xc8] sm:$0xff] %vm225, 0.0
      %253 = vst.msk [vmem:[#allocation2 + $0xd0] sm:$0x3] %vm228, 0.0
      %254 = vst.msk [vmem:[#allocation2 + $0xd8] sm:$0xff] %vm225, 0.0
      %255 = vst.msk [vmem:[#allocation2 + $0xe0] sm:$0xff] %vm225, 0.0
      %256 = vst.msk [vmem:[#allocation2 + $0xe8] sm:$0x3] %vm228, 0.0
      %257 = vst.msk [vmem:[#allocation2 + $0xf0] sm:$0xff] %vm225, 0.0
      %258 = vst.msk [vmem:[#allocation2 + $0xf8] sm:$0xff] %vm225, 0.0
      %259 = vst.msk [vmem:[#allocation2 + $0x100] sm:$0x3] %vm228, 0.0
      %260 = vst.msk [vmem:[#allocation2 + $0x108] sm:$0xff] %vm225, 0.0
      %261 = vst.msk [vmem:[#allocation2 + $0x110] sm:$0xff] %vm225, 0.0
      %262 = vst.msk [vmem:[#allocation2 + $0x118] sm:$0x3] %vm228, 0.0
      %263 = vst.msk [vmem:[#allocation2 + $0x120] sm:$0xff] %vm225, 0.0
      %264 = vst.msk [vmem:[#allocation2 + $0x128] sm:$0xff] %vm225, 0.0
      %265 = vst.msk [vmem:[#allocation2 + $0x130] sm:$0x3] %vm228, 0.0
      %266 = vst.msk [vmem:[#allocation2 + $0x138] sm:$0xff] %vm225, 0.0
      %267 = vst.msk [vmem:[#allocation2 + $0x140] sm:$0xff] %vm225, 0.0
      %268 = vst.msk [vmem:[#allocation2 + $0x148] sm:$0x3] %vm228, 0.0
      %269 = vst.msk [vmem:[#allocation2 + $0x150] sm:$0xff] %vm225, 0.0
      %270 = vst.msk [vmem:[#allocation2 + $0x158] sm:$0xff] %vm225, 0.0
      %271 = vst.msk [vmem:[#allocation2 + $0x160] sm:$0x3] %vm228, 0.0
      %272 = vst.msk [vmem:[#allocation2 + $0x168] sm:$0xff] %vm225, 0.0
      %273 = vst.msk [vmem:[#allocation2 + $0x170] sm:$0xff] %vm225, 0.0
      %274 = vst.msk [vmem:[#allocation2 + $0x178] sm:$0x3] %vm228, 0.0
      %275 = vst.msk [vmem:[#allocation2 + $0x180] sm:$0xff] %vm225, 0.0
      %276 = vst.msk [vmem:[#allocation2 + $0x188] sm:$0xff] %vm225, 0.0
      %277 = vst.msk [vmem:[#allocation2 + $0x190] sm:$0x3] %vm228, 0.0
      %278 = vst.msk [vmem:[#allocation2 + $0x198] sm:$0xff] %vm225, 0.0
      %279 = vst.msk [vmem:[#allocation2 + $0x1a0] sm:$0xff] %vm225, 0.0
      %280 = vst.msk [vmem:[#allocation2 + $0x1a8] sm:$0x3] %vm228, 0.0
      %v281 = vld [vmem:[%s219] sm:$0xff]
      %v282 = vld [vmem:[%s219 + $0x8] sm:$0xff]
      %v283 = vld [vmem:[%s219 + $0x10] sm:$0xff]
      %v284 = vld [vmem:[%s219 + $0x18] sm:$0xff]
      %v285 = vld [vmem:[%s219 + $0x20] sm:$0xff]
      %v286 = vld [vmem:[%s219 + $0x28] sm:$0xff]
      %v287 = vld [vmem:[%s219 + $0x30] sm:$0xff]
      %v288 = vld [vmem:[%s219 + $0x38] sm:$0xff]
      %v289 = vld [vmem:[%s219 + $0x40] sm:$0xff]
      %v290 = vld [vmem:[%s219 + $0x48] sm:$0xff]
      %v291 = vld [vmem:[%s219 + $0x50] sm:$0xff]
      %v292 = vld [vmem:[%s219 + $0x58] sm:$0xff]
      %v293 = vld [vmem:[%s219 + $0x60] sm:$0xff]
      %v294 = vld [vmem:[%s219 + $0x68] sm:$0xff]
      %v295 = vld [vmem:[%s219 + $0x70] sm:$0xff]
      %v296 = vld [vmem:[%s219 + $0x78] sm:$0xff]
      %v297 = vld [vmem:[%s219 + $0x80] sm:$0xff]
      %v298 = vld [vmem:[%s219 + $0x88] sm:$0xff]
      %v299 = vld [vmem:[%s219 + $0x90] sm:$0xff]
      %v300 = vld [vmem:[%s219 + $0x98] sm:$0xff]
      %v301 = vld [vmem:[%s219 + $0xa0] sm:$0xff]
      %v302 = vld [vmem:[%s219 + $0xa8] sm:$0xff]
      %v303 = vld [vmem:[%s219 + $0xb0] sm:$0xff]
      %v304 = vld [vmem:[%s219 + $0xb8] sm:$0xff]
      %v305 = vld [vmem:[%s219 + $0xc0] sm:$0xff]
      %v306 = vld [vmem:[%s219 + $0xc8] sm:$0xff]
      %v307 = vld [vmem:[%s219 + $0xd0] sm:$0xff]
      %v308 = vld [vmem:[%s219 + $0xd8] sm:$0xff]
      %v309 = vld [vmem:[%s219 + $0xe0] sm:$0xff]
      %v310 = vld [vmem:[%s219 + $0xe8] sm:$0xff]
      %v311 = vld [vmem:[%s219 + $0xf0] sm:$0xff]
      %v312 = vld [vmem:[%s219 + $0xf8] sm:$0xff]
      %v313 = vmax.f32 %v281, 0.0
      %v314 = vmax.f32 %v282, 0.0
      %v315 = vmax.f32 %v283, 0.0
      %v316 = vmax.f32 %v284, 0.0
      %v317 = vmax.f32 %v285, 0.0
      %v318 = vmax.f32 %v286, 0.0
      %v319 = vmax.f32 %v287, 0.0
      %v320 = vmax.f32 %v288, 0.0
      %v321 = vmax.f32 %v289, 0.0
      %v322 = vmax.f32 %v290, 0.0
      %v323 = vmax.f32 %v291, 0.0
      %v324 = vmax.f32 %v292, 0.0
      %v325 = vmax.f32 %v293, 0.0
      %v326 = vmax.f32 %v294, 0.0
      %v327 = vmax.f32 %v295, 0.0
      %v328 = vmax.f32 %v296, 0.0
      %v329 = vmax.f32 %v297, 0.0
      %v330 = vmax.f32 %v298, 0.0
      %v331 = vmax.f32 %v299, 0.0
      %v332 = vmax.f32 %v300, 0.0
      %v333 = vmax.f32 %v301, 0.0
      %v334 = vmax.f32 %v302, 0.0
      %v335 = vmax.f32 %v303, 0.0
      %v336 = vmax.f32 %v304, 0.0
      %v337 = vmax.f32 %v305, 0.0
      %v338 = vmax.f32 %v306, 0.0
      %v339 = vmax.f32 %v307, 0.0
      %v340 = vmax.f32 %v308, 0.0
      %v341 = vmax.f32 %v309, 0.0
      %v342 = vmax.f32 %v310, 0.0
      %v343 = vmax.f32 %v311, 0.0
      %v344 = vmax.f32 %v312, 0.0
      %s345 = scalar_lea.vmem [#allocation2], 24
      %346 = vst.msk [vmem:[%s345 + $0x1] sm:$0xff] %vm225, %v313
      %347 = vst.msk [vmem:[%s345 + $0x9] sm:$0xff] %vm225, %v314
      %348 = vst.msk [vmem:[%s345 + $0x19] sm:$0xff] %vm225, %v315
      %349 = vst.msk [vmem:[%s345 + $0x21] sm:$0xff] %vm225, %v316
      %350 = vst.msk [vmem:[%s345 + $0x31] sm:$0xff] %vm225, %v317
      %351 = vst.msk [vmem:[%s345 + $0x39] sm:$0xff] %vm225, %v318
      %352 = vst.msk [vmem:[%s345 + $0x49] sm:$0xff] %vm225, %v319
      %353 = vst.msk [vmem:[%s345 + $0x51] sm:$0xff] %vm225, %v320
      %354 = vst.msk [vmem:[%s345 + $0x61] sm:$0xff] %vm225, %v321
      %355 = vst.msk [vmem:[%s345 + $0x69] sm:$0xff] %vm225, %v322
      %356 = vst.msk [vmem:[%s345 + $0x79] sm:$0xff] %vm225, %v323
      %357 = vst.msk [vmem:[%s345 + $0x81] sm:$0xff] %vm225, %v324
      %358 = vst.msk [vmem:[%s345 + $0x91] sm:$0xff] %vm225, %v325
      %359 = vst.msk [vmem:[%s345 + $0x99] sm:$0xff] %vm225, %v326
      %360 = vst.msk [vmem:[%s345 + $0xa9] sm:$0xff] %vm225, %v327
      %361 = vst.msk [vmem:[%s345 + $0xb1] sm:$0xff] %vm225, %v328
      %362 = vst.msk [vmem:[%s345 + $0xc1] sm:$0xff] %vm225, %v329
      %363 = vst.msk [vmem:[%s345 + $0xc9] sm:$0xff] %vm225, %v330
      %364 = vst.msk [vmem:[%s345 + $0xd9] sm:$0xff] %vm225, %v331
      %365 = vst.msk [vmem:[%s345 + $0xe1] sm:$0xff] %vm225, %v332
      %366 = vst.msk [vmem:[%s345 + $0xf1] sm:$0xff] %vm225, %v333
      %367 = vst.msk [vmem:[%s345 + $0xf9] sm:$0xff] %vm225, %v334
      %368 = vst.msk [vmem:[%s345 + $0x109] sm:$0xff] %vm225, %v335
      %369 = vst.msk [vmem:[%s345 + $0x111] sm:$0xff] %vm225, %v336
      %370 = vst.msk [vmem:[%s345 + $0x121] sm:$0xff] %vm225, %v337
      %371 = vst.msk [vmem:[%s345 + $0x129] sm:$0xff] %vm225, %v338
      %372 = vst.msk [vmem:[%s345 + $0x139] sm:$0xff] %vm225, %v339
      %373 = vst.msk [vmem:[%s345 + $0x141] sm:$0xff] %vm225, %v340
      %374 = vst.msk [vmem:[%s345 + $0x151] sm:$0xff] %vm225, %v341
      %375 = vst.msk [vmem:[%s345 + $0x159] sm:$0xff] %vm225, %v342
      %376 = vst.msk [vmem:[%s345 + $0x169] sm:$0xff] %vm225, %v343
      %377 = vst.msk [vmem:[%s345 + $0x171] sm:$0xff] %vm225, %v344
      %v378 = vld [vmem:[%s2] sm:$0x1]
      %v380 = vlaneseq
      %v381 = vshrl.u32 %v380, 7
      %v382 = vsub.s32 0, %v381
      %v383 = vrot.slane %v378, %v382
      %v385 = vld [vmem:[#allocation2] sm:$0xff]
      %v386 = vld [vmem:[#allocation2 + $0x8] sm:$0xff]
      %v387 = vld [vmem:[#allocation2 + $0x18] sm:$0xff]
      %v388 = vld [vmem:[#allocation2 + $0x20] sm:$0xff]
      %v389 = vld [vmem:[#allocation2 + $0x30] sm:$0xff]
      %v390 = vld [vmem:[#allocation2 + $0x38] sm:$0xff]
      %v391 = vld [vmem:[#allocation2 + $0x48] sm:$0xff]
      %v392 = vld [vmem:[#allocation2 + $0x50] sm:$0xff]
      %v393 = vld [vmem:[#allocation2 + $0x60] sm:$0xff]
      %v394 = vld [vmem:[#allocation2 + $0x68] sm:$0xff]
      %v395 = vld [vmem:[#allocation2 + $0x78] sm:$0xff]
      %v396 = vld [vmem:[#allocation2 + $0x80] sm:$0xff]
      %v397 = vld [vmem:[#allocation2 + $0x90] sm:$0xff]
      %v398 = vld [vmem:[#allocation2 + $0x98] sm:$0xff]
      %v399 = vld [vmem:[#allocation2 + $0xa8] sm:$0xff]
      %v400 = vld [vmem:[#allocation2 + $0xb0] sm:$0xff]
      %v401 = vld [vmem:[#allocation2 + $0xc0] sm:$0xff]
      %v402 = vld [vmem:[#allocation2 + $0xc8] sm:$0xff]
      %v403 = vld [vmem:[#allocation2 + $0xd8] sm:$0xff]
      %v404 = vld [vmem:[#allocation2 + $0xe0] sm:$0xff]
      %v405 = vld [vmem:[#allocation2 + $0xf0] sm:$0xff]
      %v406 = vld [vmem:[#allocation2 + $0xf8] sm:$0xff]
      %v407 = vld [vmem:[#allocation2 + $0x108] sm:$0xff]
      %v408 = vld [vmem:[#allocation2 + $0x110] sm:$0xff]
      %v409 = vld [vmem:[#allocation2 + $0x120] sm:$0xff]
      %v410 = vld [vmem:[#allocation2 + $0x128] sm:$0xff]
      %v411 = vld [vmem:[#allocation2 + $0x138] sm:$0xff]
      %v412 = vld [vmem:[#allocation2 + $0x140] sm:$0xff]
      %v413 = vld [vmem:[#allocation2 + $0x150] sm:$0xff]
      %v414 = vld [vmem:[#allocation2 + $0x158] sm:$0xff]
      %v415 = vld [vmem:[#allocation2 + $0x168] sm:$0xff]
      %v416 = vld [vmem:[#allocation2 + $0x170] sm:$0xff]
      %v417 = vld [vmem:[%s1] sm:$0xf]
      %v419 = vsel %vm225, %v385, 0
      %v422 = vsel %vm225, %v386, 0
      %v425 = vsel %vm225, %v387, 0
      %v428 = vsel %vm225, %v388, 0
      %v431 = vsel %vm225, %v389, 0
      %v434 = vsel %vm225, %v390, 0
      %v437 = vsel %vm225, %v391, 0
      %v440 = vsel %vm225, %v392, 0
      %v443 = vsel %vm225, %v393, 0
      %v446 = vsel %vm225, %v394, 0
      %v449 = vsel %vm225, %v395, 0
      %v452 = vsel %vm225, %v396, 0
      %v455 = vsel %vm225, %v397, 0
      %v458 = vsel %vm225, %v398, 0
      %v461 = vsel %vm225, %v399, 0
      %v464 = vsel %vm225, %v400, 0
      %v467 = vsel %vm225, %v401, 0
      %v470 = vsel %vm225, %v402, 0
      %v473 = vsel %vm225, %v403, 0
      %v476 = vsel %vm225, %v404, 0
      %v479 = vsel %vm225, %v405, 0
      %v482 = vsel %vm225, %v406, 0
      %v485 = vsel %vm225, %v407, 0
      %v488 = vsel %vm225, %v408, 0
      %v491 = vsel %vm225, %v409, 0
      %v494 = vsel %vm225, %v410, 0
      %v497 = vsel %vm225, %v411, 0
      %v500 = vsel %vm225, %v412, 0
      %v503 = vsel %vm225, %v413, 0
      %v506 = vsel %vm225, %v414, 0
      %v509 = vsel %vm225, %v415, 0
      %v512 = vsel %vm225, %v416, 0
      %vm514 = vcmask 1043456
      %v516 = vsel %vm514, %v417, 0
      %518 = vmatprep.subr.mxu0 0.0
      %519 = vmatpush1.msra.mxu0 %v516
      %520 = vmatprep.subr.mxu0 0.0
      %521 = vmatpush1.msra.mxu0 0.0
      %522 = vmatprep.subr.mxu0 0.0
      %523 = vmatpush1.msra.mxu0 0.0
      %524 = vmatprep.subr.mxu0 0.0
      %525 = vmatpush1.msra.mxu0 0.0
      %526 = vmatprep.subr.mxu0 0.0
      %527 = vmatpush1.msra.mxu0 0.0
      %528 = vmatprep.subr.mxu0 0.0
      %529 = vmatpush1.msra.mxu0 0.0
      %530 = vmatprep.subr.mxu0 0.0
      %531 = vmatpush1.msra.mxu0 0.0
      %532 = vmatprep.subr.mxu0 0.0
      %533 = vmatpush1.msra.mxu0 0.0
      %534 = vmatprep.subr.mxu0 0.0
      %535 = vmatpush1.msra.mxu0 0.0
      %536 = vmatprep.subr.mxu0 0.0
      %537 = vmatpush1.msra.mxu0 0.0
      %538 = vmatprep.subr.mxu0 0.0
      %539 = vmatpush1.msra.mxu0 0.0
      %540 = vmatprep.subr.mxu0 0.0
      %541 = vmatpush1.msra.mxu0 0.0
      %542 = vmatprep.subr.mxu0 0.0
      %543 = vmatpush1.msra.mxu0 0.0
      %544 = vmatprep.subr.mxu0 0.0
      %545 = vmatpush1.msra.mxu0 0.0
      %546 = vmatprep.subr.mxu0 0.0
      %547 = vmatpush1.msra.mxu0 0.0
      %548 = vmatprep.subr.mxu0 0.0
      %549 = vmatpush1.msra.mxu0 0.0
      %550 = vmatprep.subr.mxu0 0.0
      %551 = vmatpush1.msra.mxu0 0.0
      %552 = vmatprep.subr.mxu0 0.0
      %553 = vmatpush1.msra.mxu0 0.0
      %554 = vmatprep.subr.mxu0 0.0
      %555 = vmatpush1.msra.mxu0 0.0
      %556 = vmatprep.subr.mxu0 0.0
      %557 = vmatpush1.msra.mxu0 0.0
      %558 = vmatprep.subr.mxu0 0.0
      %559 = vmatpush1.msra.mxu0 0.0
      %560 = vmatprep.subr.mxu0 0.0
      %561 = vmatpush1.msra.mxu0 0.0
      %562 = vmatprep.subr.mxu0 0.0
      %563 = vmatpush1.msra.mxu0 0.0
      %564 = vmatprep.subr.mxu0 0.0
      %565 = vmatpush1.msra.mxu0 0.0
      %566 = vmatprep.subr.mxu0 0.0
      %567 = vmatpush1.msra.mxu0 0.0
      %568 = vmatprep.subr.mxu0 0.0
      %569 = vmatpush1.msra.mxu0 0.0
      %570 = vmatprep.subr.mxu0 0.0
      %571 = vmatpush1.msra.mxu0 0.0
      %572 = vmatprep.subr.mxu0 0.0
      %573 = vmatpush1.msra.mxu0 0.0
      %574 = vmatprep.subr.mxu0 0.0
      %575 = vmatpush1.msra.mxu0 0.0
      %576 = vmatprep.subr.mxu0 0.0
      %577 = vmatpush1.msra.mxu0 0.0
      %578 = vmatprep.subr.mxu0 0.0
      %579 = vmatpush1.msra.mxu0 0.0
      %580 = vmatprep.subr.mxu0 0.0
      %581 = vmatpush1.msra.mxu0 0.0
      %582 = vmatprep.mubr.f32.mxu0 0.0
      %583 = vmatmul.mubr.f32.gmra.mrb[0].mxu0 %v419
      %v584 = vpop.f32.mrb[0].mxu0
      %v585 = vadd.f32 0.0, %v584
      %v586 = vpop.f32.mrb[0].mxu0
      %587 = vmatprep.mubr.f32.mxu0 0.0
      %588 = vmatmul.mubr.f32.gmra.mrb[0].mxu0 %v422
      %v589 = vpop.f32.mrb[0].mxu0
      %v590 = vadd.f32 0.0, %v589
      %v591 = vpop.f32.mrb[0].mxu0
      %592 = vmatprep.mubr.f32.mxu0 0.0
      %593 = vmatmul.mubr.f32.gmra.mrb[0].mxu0 %v425
      %v594 = vpop.f32.mrb[0].mxu0
      %v595 = vadd.f32 0.0, %v594
      %v596 = vpop.f32.mrb[0].mxu0
      %597 = vmatprep.mubr.f32.mxu0 0.0
      %598 = vmatmul.mubr.f32.gmra.mrb[0].mxu0 %v428
      %v599 = vpop.f32.mrb[0].mxu0
      %v600 = vadd.f32 0.0, %v599
      %v601 = vpop.f32.mrb[0].mxu0
      %602 = vmatprep.mubr.f32.mxu0 0.0
      %603 = vmatmul.mubr.f32.gmra.mrb[0].mxu0 %v431
      %v604 = vpop.f32.mrb[0].mxu0
      %v605 = vadd.f32 0.0, %v604
      %v606 = vpop.f32.mrb[0].mxu0
      %607 = vmatprep.mubr.f32.mxu0 0.0
      %608 = vmatmul.mubr.f32.gmra.mrb[0].mxu0 %v434
      %v609 = vpop.f32.mrb[0].mxu0
      %v610 = vadd.f32 0.0, %v609
      %v611 = vpop.f32.mrb[0].mxu0
      %612 = vmatprep.mubr.f32.mxu0 0.0
      %613 = vmatmul.mubr.f32.gmra.mrb[0].mxu0 %v437
      %v614 = vpop.f32.mrb[0].mxu0
      %v615 = vadd.f32 0.0, %v614
      %v616 = vpop.f32.mrb[0].mxu0
      %617 = vmatprep.mubr.f32.mxu0 0.0
      %618 = vmatmul.mubr.f32.gmra.mrb[0].mxu0 %v440
      %v619 = vpop.f32.mrb[0].mxu0
      %v620 = vadd.f32 0.0, %v619
      %v621 = vpop.f32.mrb[0].mxu0
      %622 = vmatprep.mubr.f32.mxu0 0.0
      %623 = vmatmul.mubr.f32.gmra.mrb[0].mxu0 %v443
      %v624 = vpop.f32.mrb[0].mxu0
      %v625 = vadd.f32 0.0, %v624
      %v626 = vpop.f32.mrb[0].mxu0
      %627 = vmatprep.mubr.f32.mxu0 0.0
      %628 = vmatmul.mubr.f32.gmra.mrb[0].mxu0 %v446
      %v629 = vpop.f32.mrb[0].mxu0
      %v630 = vadd.f32 0.0, %v629
      %v631 = vpop.f32.mrb[0].mxu0
      %632 = vmatprep.mubr.f32.mxu0 0.0
      %633 = vmatmul.mubr.f32.gmra.mrb[0].mxu0 %v449
      %v634 = vpop.f32.mrb[0].mxu0
      %v635 = vadd.f32 0.0, %v634
      %v636 = vpop.f32.mrb[0].mxu0
      %637 = vmatprep.mubr.f32.mxu0 0.0
      %638 = vmatmul.mubr.f32.gmra.mrb[0].mxu0 %v452
      %v639 = vpop.f32.mrb[0].mxu0
      %v640 = vadd.f32 0.0, %v639
      %v641 = vpop.f32.mrb[0].mxu0
      %642 = vmatprep.mubr.f32.mxu0 0.0
      %643 = vmatmul.mubr.f32.gmra.mrb[0].mxu0 %v455
      %v644 = vpop.f32.mrb[0].mxu0
      %v645 = vadd.f32 0.0, %v644
      %v646 = vpop.f32.mrb[0].mxu0
      %647 = vmatprep.mubr.f32.mxu0 0.0
      %648 = vmatmul.mubr.f32.gmra.mrb[0].mxu0 %v458
      %v649 = vpop.f32.mrb[0].mxu0
      %v650 = vadd.f32 0.0, %v649
      %v651 = vpop.f32.mrb[0].mxu0
      %652 = vmatprep.mubr.f32.mxu0 0.0
      %653 = vmatmul.mubr.f32.gmra.mrb[0].mxu0 %v461
      %v654 = vpop.f32.mrb[0].mxu0
      %v655 = vadd.f32 0.0, %v654
      %v656 = vpop.f32.mrb[0].mxu0
      %657 = vmatprep.mubr.f32.mxu0 0.0
      %658 = vmatmul.mubr.f32.gmra.mrb[0].mxu0 %v464
      %v659 = vpop.f32.mrb[0].mxu0
      %v660 = vadd.f32 0.0, %v659
      %v661 = vpop.f32.mrb[0].mxu0
      %662 = vmatprep.mubr.f32.mxu0 0.0
      %663 = vmatmul.mubr.f32.gmra.mrb[0].mxu0 %v467
      %v664 = vpop.f32.mrb[0].mxu0
      %v665 = vadd.f32 0.0, %v664
      %v666 = vpop.f32.mrb[0].mxu0
      %667 = vmatprep.mubr.f32.mxu0 0.0
      %668 = vmatmul.mubr.f32.gmra.mrb[0].mxu0 %v470
      %v669 = vpop.f32.mrb[0].mxu0
      %v670 = vadd.f32 0.0, %v669
      %v671 = vpop.f32.mrb[0].mxu0
      %672 = vmatprep.mubr.f32.mxu0 0.0
      %673 = vmatmul.mubr.f32.gmra.mrb[0].mxu0 %v473
      %v674 = vpop.f32.mrb[0].mxu0
      %v675 = vadd.f32 0.0, %v674
      %v676 = vpop.f32.mrb[0].mxu0
      %677 = vmatprep.mubr.f32.mxu0 0.0
      %678 = vmatmul.mubr.f32.gmra.mrb[0].mxu0 %v476
      %v679 = vpop.f32.mrb[0].mxu0
      %v680 = vadd.f32 0.0, %v679
      %v681 = vpop.f32.mrb[0].mxu0
      %682 = vmatprep.mubr.f32.mxu0 0.0
      %683 = vmatmul.mubr.f32.gmra.mrb[0].mxu0 %v479
      %v684 = vpop.f32.mrb[0].mxu0
      %v685 = vadd.f32 0.0, %v684
      %v686 = vpop.f32.mrb[0].mxu0
      %687 = vmatprep.mubr.f32.mxu0 0.0
      %688 = vmatmul.mubr.f32.gmra.mrb[0].mxu0 %v482
      %v689 = vpop.f32.mrb[0].mxu0
      %v690 = vadd.f32 0.0, %v689
      %v691 = vpop.f32.mrb[0].mxu0
      %692 = vmatprep.mubr.f32.mxu0 0.0
      %693 = vmatmul.mubr.f32.gmra.mrb[0].mxu0 %v485
      %v694 = vpop.f32.mrb[0].mxu0
      %v695 = vadd.f32 0.0, %v694
      %v696 = vpop.f32.mrb[0].mxu0
      %697 = vmatprep.mubr.f32.mxu0 0.0
      %698 = vmatmul.mubr.f32.gmra.mrb[0].mxu0 %v488
      %v699 = vpop.f32.mrb[0].mxu0
      %v700 = vadd.f32 0.0, %v699
      %v701 = vpop.f32.mrb[0].mxu0
      %702 = vmatprep.mubr.f32.mxu0 0.0
      %703 = vmatmul.mubr.f32.gmra.mrb[0].mxu0 %v491
      %v704 = vpop.f32.mrb[0].mxu0
      %v705 = vadd.f32 0.0, %v704
      %v706 = vpop.f32.mrb[0].mxu0
      %707 = vmatprep.mubr.f32.mxu0 0.0
      %708 = vmatmul.mubr.f32.gmra.mrb[0].mxu0 %v494
      %v709 = vpop.f32.mrb[0].mxu0
      %v710 = vadd.f32 0.0, %v709
      %v711 = vpop.f32.mrb[0].mxu0
      %712 = vmatprep.mubr.f32.mxu0 0.0
      %713 = vmatmul.mubr.f32.gmra.mrb[0].mxu0 %v497
      %v714 = vpop.f32.mrb[0].mxu0
      %v715 = vadd.f32 0.0, %v714
      %v716 = vpop.f32.mrb[0].mxu0
      %717 = vmatprep.mubr.f32.mxu0 0.0
      %718 = vmatmul.mubr.f32.gmra.mrb[0].mxu0 %v500
      %v719 = vpop.f32.mrb[0].mxu0
      %v720 = vadd.f32 0.0, %v719
      %v721 = vpop.f32.mrb[0].mxu0
      %722 = vmatprep.mubr.f32.mxu0 0.0
      %723 = vmatmul.mubr.f32.gmra.mrb[0].mxu0 %v503
      %v724 = vpop.f32.mrb[0].mxu0
      %v725 = vadd.f32 0.0, %v724
      %v726 = vpop.f32.mrb[0].mxu0
      %727 = vmatprep.mubr.f32.mxu0 0.0
      %728 = vmatmul.mubr.f32.gmra.mrb[0].mxu0 %v506
      %v729 = vpop.f32.mrb[0].mxu0
      %v730 = vadd.f32 0.0, %v729
      %v731 = vpop.f32.mrb[0].mxu0
      %732 = vmatprep.mubr.f32.mxu0 0.0
      %733 = vmatmul.mubr.f32.gmra.mrb[0].mxu0 %v509
      %v734 = vpop.f32.mrb[0].mxu0
      %v735 = vadd.f32 0.0, %v734
      %v736 = vpop.f32.mrb[0].mxu0
      %737 = vmatprep.mubr.f32.mxu0 0.0
      %738 = vmatmul.mubr.f32.gmra.mrb[0].mxu0 %v512
      %v739 = vpop.f32.mrb[0].mxu0
      %v740 = vadd.f32 0.0, %v739
      %v741 = vpop.f32.mrb[0].mxu0
      %742 = vdwg.mxu0
      %v743 = vadd.f32 %v383, %v585
      %v744 = vadd.f32 %v383, %v590
      %v745 = vadd.f32 %v383, %v595
      %v746 = vadd.f32 %v383, %v600
      %v747 = vadd.f32 %v383, %v605
      %v748 = vadd.f32 %v383, %v610
      %v749 = vadd.f32 %v383, %v615
      %v750 = vadd.f32 %v383, %v620
      %v751 = vadd.f32 %v383, %v625
      %v752 = vadd.f32 %v383, %v630
      %v753 = vadd.f32 %v383, %v635
      %v754 = vadd.f32 %v383, %v640
      %v755 = vadd.f32 %v383, %v645
      %v756 = vadd.f32 %v383, %v650
      %v757 = vadd.f32 %v383, %v655
      %v758 = vadd.f32 %v383, %v660
      %v759 = vadd.f32 %v383, %v665
      %v760 = vadd.f32 %v383, %v670
      %v761 = vadd.f32 %v383, %v675
      %v762 = vadd.f32 %v383, %v680
      %v763 = vadd.f32 %v383, %v685
      %v764 = vadd.f32 %v383, %v690
      %v765 = vadd.f32 %v383, %v695
      %v766 = vadd.f32 %v383, %v700
      %v767 = vadd.f32 %v383, %v705
      %v768 = vadd.f32 %v383, %v710
      %v769 = vadd.f32 %v383, %v715
      %v770 = vadd.f32 %v383, %v720
      %v771 = vadd.f32 %v383, %v725
      %v772 = vadd.f32 %v383, %v730
      %v773 = vadd.f32 %v383, %v735
      %v774 = vadd.f32 %v383, %v740
      %v775 = vld [vmem:[#allocation2 + $0x1] sm:$0xff]
      %v776 = vld [vmem:[#allocation2 + $0x9] sm:$0xff]
      %v777 = vld [vmem:[#allocation2 + $0x19] sm:$0xff]
      %v778 = vld [vmem:[#allocation2 + $0x21] sm:$0xff]
      %v779 = vld [vmem:[#allocation2 + $0x31] sm:$0xff]
      %v780 = vld [vmem:[#allocation2 + $0x39] sm:$0xff]
      %v781 = vld [vmem:[#allocation2 + $0x49] sm:$0xff]
      %v782 = vld [vmem:[#allocation2 + $0x51] sm:$0xff]
      %v783 = vld [vmem:[#allocation2 + $0x61] sm:$0xff]
      %v784 = vld [vmem:[#allocation2 + $0x69] sm:$0xff]
      %v785 = vld [vmem:[#allocation2 + $0x79] sm:$0xff]
      %v786 = vld [vmem:[#allocation2 + $0x81] sm:$0xff]
      %v787 = vld [vmem:[#allocation2 + $0x91] sm:$0xff]
      %v788 = vld [vmem:[#allocation2 + $0x99] sm:$0xff]
      %v789 = vld [vmem:[#allocation2 + $0xa9] sm:$0xff]
      %v790 = vld [vmem:[#allocation2 + $0xb1] sm:$0xff]
      %v791 = vld [vmem:[#allocation2 + $0xc1] sm:$0xff]
      %v792 = vld [vmem:[#allocation2 + $0xc9] sm:$0xff]
      %v793 = vld [vmem:[#allocation2 + $0xd9] sm:$0xff]
      %v794 = vld [vmem:[#allocation2 + $0xe1] sm:$0xff]
      %v795 = vld [vmem:[#allocation2 + $0xf1] sm:$0xff]
      %v796 = vld [vmem:[#allocation2 + $0xf9] sm:$0xff]
      %v797 = vld [vmem:[#allocation2 + $0x109] sm:$0xff]
      %v798 = vld [vmem:[#allocation2 + $0x111] sm:$0xff]
      %v799 = vld [vmem:[#allocation2 + $0x121] sm:$0xff]
      %v800 = vld [vmem:[#allocation2 + $0x129] sm:$0xff]
      %v801 = vld [vmem:[#allocation2 + $0x139] sm:$0xff]
      %v802 = vld [vmem:[#allocation2 + $0x141] sm:$0xff]
      %v803 = vld [vmem:[#allocation2 + $0x151] sm:$0xff]
      %v804 = vld [vmem:[#allocation2 + $0x159] sm:$0xff]
      %v805 = vld [vmem:[#allocation2 + $0x169] sm:$0xff]
      %v806 = vld [vmem:[#allocation2 + $0x171] sm:$0xff]
      %s807 = scalar_lea.vmem %s1, 4
      %v808 = vld [vmem:[%s807] sm:$0xf]
      %v810 = vsel %vm225, %v775, 0
      %v813 = vsel %vm225, %v776, 0
      %v816 = vsel %vm225, %v777, 0
      %v819 = vsel %vm225, %v778, 0
      %v822 = vsel %vm225, %v779, 0
      %v825 = vsel %vm225, %v780, 0
      %v828 = vsel %vm225, %v781, 0
      %v831 = vsel %vm225, %v782, 0
      %v834 = vsel %vm225, %v783, 0
      %v837 = vsel %vm225, %v784, 0
      %v840 = vsel %vm225, %v785, 0
      %v843 = vsel %vm225, %v786, 0
      %v846 = vsel %vm225, %v787, 0
      %v849 = vsel %vm225, %v788, 0
      %v852 = vsel %vm225, %v789, 0
      %v855 = vsel %vm225, %v790, 0
      %v858 = vsel %vm225, %v791, 0
      %v861 = vsel %vm225, %v792, 0
      %v864 = vsel %vm225, %v793, 0
      %v867 = vsel %vm225, %v794, 0
      %v870 = vsel %vm225, %v795, 0
      %v873 = vsel %vm225, %v796, 0
      %v876 = vsel %vm225, %v797, 0
      %v879 = vsel %vm225, %v798, 0
      %v882 = vsel %vm225, %v799, 0
      %v885 = vsel %vm225, %v800, 0
      %v888 = vsel %vm225, %v801, 0
      %v891 = vsel %vm225, %v802, 0
      %v894 = vsel %vm225, %v803, 0
      %v897 = vsel %vm225, %v804, 0
      %v900 = vsel %vm225, %v805, 0
      %v903 = vsel %vm225, %v806, 0
      %v906 = vsel %vm514, %v808, 0
      %908 = vmatprep.subr.mxu0 0.0
      %909 = vmatpush1.msra.mxu0 %v906
      %910 = vmatprep.subr.mxu0 0.0
      %911 = vmatpush1.msra.mxu0 0.0
      %912 = vmatprep.subr.mxu0 0.0
      %913 = vmatpush1.msra.mxu0 0.0
      %914 = vmatprep.subr.mxu0 0.0
      %915 = vmatpush1.msra.mxu0 0.0
      %916 = vmatprep.subr.mxu0 0.0
      %917 = vmatpush1.msra.mxu0 0.0
      %918 = vmatprep.subr.mxu0 0.0
      %919 = vmatpush1.msra.mxu0 0.0
      %920 = vmatprep.subr.mxu0 0.0
      %921 = vmatpush1.msra.mxu0 0.0
      %922 = vmatprep.subr.mxu0 0.0
      %923 = vmatpush1.msra.mxu0 0.0
      %924 = vmatprep.subr.mxu0 0.0
      %925 = vmatpush1.msra.mxu0 0.0
      %926 = vmatprep.subr.mxu0 0.0
      %927 = vmatpush1.msra.mxu0 0.0
      %928 = vmatprep.subr.mxu0 0.0
      %929 = vmatpush1.msra.mxu0 0.0
      %930 = vmatprep.subr.mxu0 0.0
      %931 = vmatpush1.msra.mxu0 0.0
      %932 = vmatprep.subr.mxu0 0.0
      %933 = vmatpush1.msra.mxu0 0.0
      %934 = vmatprep.subr.mxu0 0.0
      %935 = vmatpush1.msra.mxu0 0.0
      %936 = vmatprep.subr.mxu0 0.0
      %937 = vmatpush1.msra.mxu0 0.0
      %938 = vmatprep.subr.mxu0 0.0
      %939 = vmatpush1.msra.mxu0 0.0
      %940 = vmatprep.subr.mxu0 0.0
      %941 = vmatpush1.msra.mxu0 0.0
      %942 = vmatprep.subr.mxu0 0.0
      %943 = vmatpush1.msra.mxu0 0.0
      %944 = vmatprep.subr.mxu0 0.0
      %945 = vmatpush1.msra.mxu0 0.0
      %946 = vmatprep.subr.mxu0 0.0
      %947 = vmatpush1.msra.mxu0 0.0
      %948 = vmatprep.subr.mxu0 0.0
      %949 = vmatpush1.msra.mxu0 0.0
      %950 = vmatprep.subr.mxu0 0.0
      %951 = vmatpush1.msra.mxu0 0.0
      %952 = vmatprep.subr.mxu0 0.0
      %953 = vmatpush1.msra.mxu0 0.0
      %954 = vmatprep.subr.mxu0 0.0
      %955 = vmatpush1.msra.mxu0 0.0
      %956 = vmatprep.subr.mxu0 0.0
      %957 = vmatpush1.msra.mxu0 0.0
      %958 = vmatprep.subr.mxu0 0.0
      %959 = vmatpush1.msra.mxu0 0.0
      %960 = vmatprep.subr.mxu0 0.0
      %961 = vmatpush1.msra.mxu0 0.0
      %962 = vmatprep.subr.mxu0 0.0
      %963 = vmatpush1.msra.mxu0 0.0
      %964 = vmatprep.subr.mxu0 0.0
      %965 = vmatpush1.msra.mxu0 0.0
      %966 = vmatprep.subr.mxu0 0.0
      %967 = vmatpush1.msra.mxu0 0.0
      %968 = vmatprep.subr.mxu0 0.0
      %969 = vmatpush1.msra.mxu0 0.0
      %970 = vmatprep.subr.mxu0 0.0
      %971 = vmatpush1.msra.mxu0 0.0
      %972 = vmatprep.mubr.f32.mxu0 0.0
      %973 = vmatmul.mubr.f32.gmra.mrb[0].mxu0 %v810
      %v974 = vpop.f32.mrb[0].mxu0
      %v975 = vadd.f32 0.0, %v974
      %v976 = vpop.f32.mrb[0].mxu0
      %977 = vmatprep.mubr.f32.mxu0 0.0
      %978 = vmatmul.mubr.f32.gmra.mrb[0].mxu0 %v813
      %v979 = vpop.f32.mrb[0].mxu0
      %v980 = vadd.f32 0.0, %v979
      %v981 = vpop.f32.mrb[0].mxu0
      %982 = vmatprep.mubr.f32.mxu0 0.0
      %983 = vmatmul.mubr.f32.gmra.mrb[0].mxu0 %v816
      %v984 = vpop.f32.mrb[0].mxu0
      %v985 = vadd.f32 0.0, %v984
      %v986 = vpop.f32.mrb[0].mxu0
      %987 = vmatprep.mubr.f32.mxu0 0.0
      %988 = vmatmul.mubr.f32.gmra.mrb[0].mxu0 %v819
      %v989 = vpop.f32.mrb[0].mxu0
      %v990 = vadd.f32 0.0, %v989
      %v991 = vpop.f32.mrb[0].mxu0
      %992 = vmatprep.mubr.f32.mxu0 0.0
      %993 = vmatmul.mubr.f32.gmra.mrb[0].mxu0 %v822
      %v994 = vpop.f32.mrb[0].mxu0
      %v995 = vadd.f32 0.0, %v994
      %v996 = vpop.f32.mrb[0].mxu0
      %997 = vmatprep.mubr.f32.mxu0 0.0
      %998 = vmatmul.mubr.f32.gmra.mrb[0].mxu0 %v825
      %v999 = vpop.f32.mrb[0].mxu0
      %v1000 = vadd.f32 0.0, %v999
      %v1001 = vpop.f32.mrb[0].mxu0
      %1002 = vmatprep.mubr.f32.mxu0 0.0
      %1003 = vmatmul.mubr.f32.gmra.mrb[0].mxu0 %v828
      %v1004 = vpop.f32.mrb[0].mxu0
      %v1005 = vadd.f32 0.0, %v1004
      %v1006 = vpop.f32.mrb[0].mxu0
      %1007 = vmatprep.mubr.f32.mxu0 0.0
      %1008 = vmatmul.mubr.f32.gmra.mrb[0].mxu0 %v831
      %v1009 = vpop.f32.mrb[0].mxu0
      %v1010 = vadd.f32 0.0, %v1009
      %v1011 = vpop.f32.mrb[0].mxu0
      %1012 = vmatprep.mubr.f32.mxu0 0.0
      %1013 = vmatmul.mubr.f32.gmra.mrb[0].mxu0 %v834
      %v1014 = vpop.f32.mrb[0].mxu0
      %v1015 = vadd.f32 0.0, %v1014
      %v1016 = vpop.f32.mrb[0].mxu0
      %1017 = vmatprep.mubr.f32.mxu0 0.0
      %1018 = vmatmul.mubr.f32.gmra.mrb[0].mxu0 %v837
      %v1019 = vpop.f32.mrb[0].mxu0
      %v1020 = vadd.f32 0.0, %v1019
      %v1021 = vpop.f32.mrb[0].mxu0
      %1022 = vmatprep.mubr.f32.mxu0 0.0
      %1023 = vmatmul.mubr.f32.gmra.mrb[0].mxu0 %v840
      %v1024 = vpop.f32.mrb[0].mxu0
      %v1025 = vadd.f32 0.0, %v1024
      %v1026 = vpop.f32.mrb[0].mxu0
      %1027 = vmatprep.mubr.f32.mxu0 0.0
      %1028 = vmatmul.mubr.f32.gmra.mrb[0].mxu0 %v843
      %v1029 = vpop.f32.mrb[0].mxu0
      %v1030 = vadd.f32 0.0, %v1029
      %v1031 = vpop.f32.mrb[0].mxu0
      %1032 = vmatprep.mubr.f32.mxu0 0.0
      %1033 = vmatmul.mubr.f32.gmra.mrb[0].mxu0 %v846
      %v1034 = vpop.f32.mrb[0].mxu0
      %v1035 = vadd.f32 0.0, %v1034
      %v1036 = vpop.f32.mrb[0].mxu0
      %1037 = vmatprep.mubr.f32.mxu0 0.0
      %1038 = vmatmul.mubr.f32.gmra.mrb[0].mxu0 %v849
      %v1039 = vpop.f32.mrb[0].mxu0
      %v1040 = vadd.f32 0.0, %v1039
      %v1041 = vpop.f32.mrb[0].mxu0
      %1042 = vmatprep.mubr.f32.mxu0 0.0
      %1043 = vmatmul.mubr.f32.gmra.mrb[0].mxu0 %v852
      %v1044 = vpop.f32.mrb[0].mxu0
      %v1045 = vadd.f32 0.0, %v1044
      %v1046 = vpop.f32.mrb[0].mxu0
      %1047 = vmatprep.mubr.f32.mxu0 0.0
      %1048 = vmatmul.mubr.f32.gmra.mrb[0].mxu0 %v855
      %v1049 = vpop.f32.mrb[0].mxu0
      %v1050 = vadd.f32 0.0, %v1049
      %v1051 = vpop.f32.mrb[0].mxu0
      %1052 = vmatprep.mubr.f32.mxu0 0.0
      %1053 = vmatmul.mubr.f32.gmra.mrb[0].mxu0 %v858
      %v1054 = vpop.f32.mrb[0].mxu0
      %v1055 = vadd.f32 0.0, %v1054
      %v1056 = vpop.f32.mrb[0].mxu0
      %1057 = vmatprep.mubr.f32.mxu0 0.0
      %1058 = vmatmul.mubr.f32.gmra.mrb[0].mxu0 %v861
      %v1059 = vpop.f32.mrb[0].mxu0
      %v1060 = vadd.f32 0.0, %v1059
      %v1061 = vpop.f32.mrb[0].mxu0
      %1062 = vmatprep.mubr.f32.mxu0 0.0
      %1063 = vmatmul.mubr.f32.gmra.mrb[0].mxu0 %v864
      %v1064 = vpop.f32.mrb[0].mxu0
      %v1065 = vadd.f32 0.0, %v1064
      %v1066 = vpop.f32.mrb[0].mxu0
      %1067 = vmatprep.mubr.f32.mxu0 0.0
      %1068 = vmatmul.mubr.f32.gmra.mrb[0].mxu0 %v867
      %v1069 = vpop.f32.mrb[0].mxu0
      %v1070 = vadd.f32 0.0, %v1069
      %v1071 = vpop.f32.mrb[0].mxu0
      %1072 = vmatprep.mubr.f32.mxu0 0.0
      %1073 = vmatmul.mubr.f32.gmra.mrb[0].mxu0 %v870
      %v1074 = vpop.f32.mrb[0].mxu0
      %v1075 = vadd.f32 0.0, %v1074
      %v1076 = vpop.f32.mrb[0].mxu0
      %1077 = vmatprep.mubr.f32.mxu0 0.0
      %1078 = vmatmul.mubr.f32.gmra.mrb[0].mxu0 %v873
      %v1079 = vpop.f32.mrb[0].mxu0
      %v1080 = vadd.f32 0.0, %v1079
      %v1081 = vpop.f32.mrb[0].mxu0
      %1082 = vmatprep.mubr.f32.mxu0 0.0
      %1083 = vmatmul.mubr.f32.gmra.mrb[0].mxu0 %v876
      %v1084 = vpop.f32.mrb[0].mxu0
      %v1085 = vadd.f32 0.0, %v1084
      %v1086 = vpop.f32.mrb[0].mxu0
      %1087 = vmatprep.mubr.f32.mxu0 0.0
      %1088 = vmatmul.mubr.f32.gmra.mrb[0].mxu0 %v879
      %v1089 = vpop.f32.mrb[0].mxu0
      %v1090 = vadd.f32 0.0, %v1089
      %v1091 = vpop.f32.mrb[0].mxu0
      %1092 = vmatprep.mubr.f32.mxu0 0.0
      %1093 = vmatmul.mubr.f32.gmra.mrb[0].mxu0 %v882
      %v1094 = vpop.f32.mrb[0].mxu0
      %v1095 = vadd.f32 0.0, %v1094
      %v1096 = vpop.f32.mrb[0].mxu0
      %1097 = vmatprep.mubr.f32.mxu0 0.0
      %1098 = vmatmul.mubr.f32.gmra.mrb[0].mxu0 %v885
      %v1099 = vpop.f32.mrb[0].mxu0
      %v1100 = vadd.f32 0.0, %v1099
      %v1101 = vpop.f32.mrb[0].mxu0
      %1102 = vmatprep.mubr.f32.mxu0 0.0
      %1103 = vmatmul.mubr.f32.gmra.mrb[0].mxu0 %v888
      %v1104 = vpop.f32.mrb[0].mxu0
      %v1105 = vadd.f32 0.0, %v1104
      %v1106 = vpop.f32.mrb[0].mxu0
      %1107 = vmatprep.mubr.f32.mxu0 0.0
      %1108 = vmatmul.mubr.f32.gmra.mrb[0].mxu0 %v891
      %v1109 = vpop.f32.mrb[0].mxu0
      %v1110 = vadd.f32 0.0, %v1109
      %v1111 = vpop.f32.mrb[0].mxu0
      %1112 = vmatprep.mubr.f32.mxu0 0.0
      %1113 = vmatmul.mubr.f32.gmra.mrb[0].mxu0 %v894
      %v1114 = vpop.f32.mrb[0].mxu0
      %v1115 = vadd.f32 0.0, %v1114
      %v1116 = vpop.f32.mrb[0].mxu0
      %1117 = vmatprep.mubr.f32.mxu0 0.0
      %1118 = vmatmul.mubr.f32.gmra.mrb[0].mxu0 %v897
      %v1119 = vpop.f32.mrb[0].mxu0
      %v1120 = vadd.f32 0.0, %v1119
      %v1121 = vpop.f32.mrb[0].mxu0
      %1122 = vmatprep.mubr.f32.mxu0 0.0
      %1123 = vmatmul.mubr.f32.gmra.mrb[0].mxu0 %v900
      %v1124 = vpop.f32.mrb[0].mxu0
      %v1125 = vadd.f32 0.0, %v1124
      %v1126 = vpop.f32.mrb[0].mxu0
      %1127 = vmatprep.mubr.f32.mxu0 0.0
      %1128 = vmatmul.mubr.f32.gmra.mrb[0].mxu0 %v903
      %v1129 = vpop.f32.mrb[0].mxu0
      %v1130 = vadd.f32 0.0, %v1129
      %v1131 = vpop.f32.mrb[0].mxu0
      %1132 = vdwg.mxu0
      %v1133 = vadd.f32 %v743, %v975
      %v1134 = vadd.f32 %v744, %v980
      %v1135 = vadd.f32 %v745, %v985
      %v1136 = vadd.f32 %v746, %v990
      %v1137 = vadd.f32 %v747, %v995
      %v1138 = vadd.f32 %v748, %v1000
      %v1139 = vadd.f32 %v749, %v1005
      %v1140 = vadd.f32 %v750, %v1010
      %v1141 = vadd.f32 %v751, %v1015
      %v1142 = vadd.f32 %v752, %v1020
      %v1143 = vadd.f32 %v753, %v1025
      %v1144 = vadd.f32 %v754, %v1030
      %v1145 = vadd.f32 %v755, %v1035
      %v1146 = vadd.f32 %v756, %v1040
      %v1147 = vadd.f32 %v757, %v1045
      %v1148 = vadd.f32 %v758, %v1050
      %v1149 = vadd.f32 %v759, %v1055
      %v1150 = vadd.f32 %v760, %v1060
      %v1151 = vadd.f32 %v761, %v1065
      %v1152 = vadd.f32 %v762, %v1070
      %v1153 = vadd.f32 %v763, %v1075
      %v1154 = vadd.f32 %v764, %v1080
      %v1155 = vadd.f32 %v765, %v1085
      %v1156 = vadd.f32 %v766, %v1090
      %v1157 = vadd.f32 %v767, %v1095
      %v1158 = vadd.f32 %v768, %v1100
      %v1159 = vadd.f32 %v769, %v1105
      %v1160 = vadd.f32 %v770, %v1110
      %v1161 = vadd.f32 %v771, %v1115
      %v1162 = vadd.f32 %v772, %v1120
      %v1163 = vadd.f32 %v773, %v1125
      %v1164 = vadd.f32 %v774, %v1130
      %v1165 = vld [vmem:[#allocation2 + $0x2] sm:$0xff]
      %v1166 = vld [vmem:[#allocation2 + $0xa] sm:$0xff]
      %v1167 = vld [vmem:[#allocation2 + $0x1a] sm:$0xff]
      %v1168 = vld [vmem:[#allocation2 + $0x22] sm:$0xff]
      %v1169 = vld [vmem:[#allocation2 + $0x32] sm:$0xff]
      %v1170 = vld [vmem:[#allocation2 + $0x3a] sm:$0xff]
      %v1171 = vld [vmem:[#allocation2 + $0x4a] sm:$0xff]
      %v1172 = vld [vmem:[#allocation2 + $0x52] sm:$0xff]
      %v1173 = vld [vmem:[#allocation2 + $0x62] sm:$0xff]
      %v1174 = vld [vmem:[#allocation2 + $0x6a] sm:$0xff]
      %v1175 = vld [vmem:[#allocation2 + $0x7a] sm:$0xff]
      %v1176 = vld [vmem:[#allocation2 + $0x82] sm:$0xff]
      %v1177 = vld [vmem:[#allocation2 + $0x92] sm:$0xff]
      %v1178 = vld [vmem:[#allocation2 + $0x9a] sm:$0xff]
      %v1179 = vld [vmem:[#allocation2 + $0xaa] sm:$0xff]
      %v1180 = vld [vmem:[#allocation2 + $0xb2] sm:$0xff]
      %v1181 = vld [vmem:[#allocation2 + $0xc2] sm:$0xff]
      %v1182 = vld [vmem:[#allocation2 + $0xca] sm:$0xff]
      %v1183 = vld [vmem:[#allocation2 + $0xda] sm:$0xff]
      %v1184 = vld [vmem:[#allocation2 + $0xe2] sm:$0xff]
      %v1185 = vld [vmem:[#allocation2 + $0xf2] sm:$0xff]
      %v1186 = vld [vmem:[#allocation2 + $0xfa] sm:$0xff]
      %v1187 = vld [vmem:[#allocation2 + $0x10a] sm:$0xff]
      %v1188 = vld [vmem:[#allocation2 + $0x112] sm:$0xff]
      %v1189 = vld [vmem:[#allocation2 + $0x122] sm:$0xff]
      %v1190 = vld [vmem:[#allocation2 + $0x12a] sm:$0xff]
      %v1191 = vld [vmem:[#allocation2 + $0x13a] sm:$0xff]
      %v1192 = vld [vmem:[#allocation2 + $0x142] sm:$0xff]
      %v1193 = vld [vmem:[#allocation2 + $0x152] sm:$0xff]
      %v1194 = vld [vmem:[#allocation2 + $0x15a] sm:$0xff]
      %v1195 = vld [vmem:[#allocation2 + $0x16a] sm:$0xff]
      %v1196 = vld [vmem:[#allocation2 + $0x172] sm:$0xff]
      %s1197 = scalar_lea.vmem %s1, 8
      %v1198 = vld [vmem:[%s1197] sm:$0xf]
      %v1200 = vsel %vm225, %v1165, 0
      %v1203 = vsel %vm225, %v1166, 0
      %v1206 = vsel %vm225, %v1167, 0
      %v1209 = vsel %vm225, %v1168, 0
      %v1212 = vsel %vm225, %v1169, 0
      %v1215 = vsel %vm225, %v1170, 0
      %v1218 = vsel %vm225, %v1171, 0
      %v1221 = vsel %vm225, %v1172, 0
      %v1224 = vsel %vm225, %v1173, 0
      %v1227 = vsel %vm225, %v1174, 0
      %v1230 = vsel %vm225, %v1175, 0
      %v1233 = vsel %vm225, %v1176, 0
      %v1236 = vsel %vm225, %v1177, 0
      %v1239 = vsel %vm225, %v1178, 0
      %v1242 = vsel %vm225, %v1179, 0
      %v1245 = vsel %vm225, %v1180, 0
      %v1248 = vsel %vm225, %v1181, 0
      %v1251 = vsel %vm225, %v1182, 0
      %v1254 = vsel %vm225, %v1183, 0
      %v1257 = vsel %vm225, %v1184, 0
      %v1260 = vsel %vm225, %v1185, 0
      %v1263 = vsel %vm225, %v1186, 0
      %v1266 = vsel %vm225, %v1187, 0
      %v1269 = vsel %vm225, %v1188, 0
      %v1272 = vsel %vm225, %v1189, 0
      %v1275 = vsel %vm225, %v1190, 0
      %v1278 = vsel %vm225, %v1191, 0
      %v1281 = vsel %vm225, %v1192, 0
      %v1284 = vsel %vm225, %v1193, 0
      %v1287 = vsel %vm225, %v1194, 0
      %v1290 = vsel %vm225, %v1195, 0
      %v1293 = vsel %vm225, %v1196, 0
      %v1296 = vsel %vm514, %v1198, 0
      %1298 = vmatprep.subr.mxu0 0.0
      %1299 = vmatpush1.msra.mxu0 %v1296
      %1300 = vmatprep.subr.mxu0 0.0
      %1301 = vmatpush1.msra.mxu0 0.0
      %1302 = vmatprep.subr.mxu0 0.0
      %1303 = vmatpush1.msra.mxu0 0.0
      %1304 = vmatprep.subr.mxu0 0.0
      %1305 = vmatpush1.msra.mxu0 0.0
      %1306 = vmatprep.subr.mxu0 0.0
      %1307 = vmatpush1.msra.mxu0 0.0
      %1308 = vmatprep.subr.mxu0 0.0
      %1309 = vmatpush1.msra.mxu0 0.0
      %1310 = vmatprep.subr.mxu0 0.0
      %1311 = vmatpush1.msra.mxu0 0.0
      %1312 = vmatprep.subr.mxu0 0.0
      %1313 = vmatpush1.msra.mxu0 0.0
      %1314 = vmatprep.subr.mxu0 0.0
      %1315 = vmatpush1.msra.mxu0 0.0
      %1316 = vmatprep.subr.mxu0 0.0
      %1317 = vmatpush1.msra.mxu0 0.0
      %1318 = vmatprep.subr.mxu0 0.0
      %1319 = vmatpush1.msra.mxu0 0.0
      %1320 = vmatprep.subr.mxu0 0.0
      %1321 = vmatpush1.msra.mxu0 0.0
      %1322 = vmatprep.subr.mxu0 0.0
      %1323 = vmatpush1.msra.mxu0 0.0
      %1324 = vmatprep.subr.mxu0 0.0
      %1325 = vmatpush1.msra.mxu0 0.0
      %1326 = vmatprep.subr.mxu0 0.0
      %1327 = vmatpush1.msra.mxu0 0.0
      %1328 = vmatprep.subr.mxu0 0.0
      %1329 = vmatpush1.msra.mxu0 0.0
      %1330 = vmatprep.subr.mxu0 0.0
      %1331 = vmatpush1.msra.mxu0 0.0
      %1332 = vmatprep.subr.mxu0 0.0
      %1333 = vmatpush1.msra.mxu0 0.0
      %1334 = vmatprep.subr.mxu0 0.0
      %1335 = vmatpush1.msra.mxu0 0.0
      %1336 = vmatprep.subr.mxu0 0.0
      %1337 = vmatpush1.msra.mxu0 0.0
      %1338 = vmatprep.subr.mxu0 0.0
      %1339 = vmatpush1.msra.mxu0 0.0
      %1340 = vmatprep.subr.mxu0 0.0
      %1341 = vmatpush1.msra.mxu0 0.0
      %1342 = vmatprep.subr.mxu0 0.0
      %1343 = vmatpush1.msra.mxu0 0.0
      %1344 = vmatprep.subr.mxu0 0.0
      %1345 = vmatpush1.msra.mxu0 0.0
      %1346 = vmatprep.subr.mxu0 0.0
      %1347 = vmatpush1.msra.mxu0 0.0
      %1348 = vmatprep.subr.mxu0 0.0
      %1349 = vmatpush1.msra.mxu0 0.0
      %1350 = vmatprep.subr.mxu0 0.0
      %1351 = vmatpush1.msra.mxu0 0.0
      %1352 = vmatprep.subr.mxu0 0.0
      %1353 = vmatpush1.msra.mxu0 0.0
      %1354 = vmatprep.subr.mxu0 0.0
      %1355 = vmatpush1.msra.mxu0 0.0
      %1356 = vmatprep.subr.mxu0 0.0
      %1357 = vmatpush1.msra.mxu0 0.0
      %1358 = vmatprep.subr.mxu0 0.0
      %1359 = vmatpush1.msra.mxu0 0.0
      %1360 = vmatprep.subr.mxu0 0.0
      %1361 = vmatpush1.msra.mxu0 0.0
      %1362 = vmatprep.mubr.f32.mxu0 0.0
      %1363 = vmatmul.mubr.f32.gmra.mrb[0].mxu0 %v1200
      %v1364 = vpop.f32.mrb[0].mxu0
      %v1365 = vadd.f32 0.0, %v1364
      %v1366 = vpop.f32.mrb[0].mxu0
      %1367 = vmatprep.mubr.f32.mxu0 0.0
      %1368 = vmatmul.mubr.f32.gmra.mrb[0].mxu0 %v1203
      %v1369 = vpop.f32.mrb[0].mxu0
      %v1370 = vadd.f32 0.0, %v1369
      %v1371 = vpop.f32.mrb[0].mxu0
      %1372 = vmatprep.mubr.f32.mxu0 0.0
      %1373 = vmatmul.mubr.f32.gmra.mrb[0].mxu0 %v1206
      %v1374 = vpop.f32.mrb[0].mxu0
      %v1375 = vadd.f32 0.0, %v1374
      %v1376 = vpop.f32.mrb[0].mxu0
      %1377 = vmatprep.mubr.f32.mxu0 0.0
      %1378 = vmatmul.mubr.f32.gmra.mrb[0].mxu0 %v1209
      %v1379 = vpop.f32.mrb[0].mxu0
      %v1380 = vadd.f32 0.0, %v1379
      %v1381 = vpop.f32.mrb[0].mxu0
      %1382 = vmatprep.mubr.f32.mxu0 0.0
      %1383 = vmatmul.mubr.f32.gmra.mrb[0].mxu0 %v1212
      %v1384 = vpop.f32.mrb[0].mxu0
      %v1385 = vadd.f32 0.0, %v1384
      %v1386 = vpop.f32.mrb[0].mxu0
      %1387 = vmatprep.mubr.f32.mxu0 0.0
      %1388 = vmatmul.mubr.f32.gmra.mrb[0].mxu0 %v1215
      %v1389 = vpop.f32.mrb[0].mxu0
      %v1390 = vadd.f32 0.0, %v1389
      %v1391 = vpop.f32.mrb[0].mxu0
      %1392 = vmatprep.mubr.f32.mxu0 0.0
      %1393 = vmatmul.mubr.f32.gmra.mrb[0].mxu0 %v1218
      %v1394 = vpop.f32.mrb[0].mxu0
      %v1395 = vadd.f32 0.0, %v1394
      %v1396 = vpop.f32.mrb[0].mxu0
      %1397 = vmatprep.mubr.f32.mxu0 0.0
      %1398 = vmatmul.mubr.f32.gmra.mrb[0].mxu0 %v1221
      %v1399 = vpop.f32.mrb[0].mxu0
      %v1400 = vadd.f32 0.0, %v1399
      %v1401 = vpop.f32.mrb[0].mxu0
      %1402 = vmatprep.mubr.f32.mxu0 0.0
      %1403 = vmatmul.mubr.f32.gmra.mrb[0].mxu0 %v1224
      %v1404 = vpop.f32.mrb[0].mxu0
      %v1405 = vadd.f32 0.0, %v1404
      %v1406 = vpop.f32.mrb[0].mxu0
      %1407 = vmatprep.mubr.f32.mxu0 0.0
      %1408 = vmatmul.mubr.f32.gmra.mrb[0].mxu0 %v1227
      %v1409 = vpop.f32.mrb[0].mxu0
      %v1410 = vadd.f32 0.0, %v1409
      %v1411 = vpop.f32.mrb[0].mxu0
      %1412 = vmatprep.mubr.f32.mxu0 0.0
      %1413 = vmatmul.mubr.f32.gmra.mrb[0].mxu0 %v1230
      %v1414 = vpop.f32.mrb[0].mxu0
      %v1415 = vadd.f32 0.0, %v1414
      %v1416 = vpop.f32.mrb[0].mxu0
      %1417 = vmatprep.mubr.f32.mxu0 0.0
      %1418 = vmatmul.mubr.f32.gmra.mrb[0].mxu0 %v1233
      %v1419 = vpop.f32.mrb[0].mxu0
      %v1420 = vadd.f32 0.0, %v1419
      %v1421 = vpop.f32.mrb[0].mxu0
      %1422 = vmatprep.mubr.f32.mxu0 0.0
      %1423 = vmatmul.mubr.f32.gmra.mrb[0].mxu0 %v1236
      %v1424 = vpop.f32.mrb[0].mxu0
      %v1425 = vadd.f32 0.0, %v1424
      %v1426 = vpop.f32.mrb[0].mxu0
      %1427 = vmatprep.mubr.f32.mxu0 0.0
      %1428 = vmatmul.mubr.f32.gmra.mrb[0].mxu0 %v1239
      %v1429 = vpop.f32.mrb[0].mxu0
      %v1430 = vadd.f32 0.0, %v1429
      %v1431 = vpop.f32.mrb[0].mxu0
      %1432 = vmatprep.mubr.f32.mxu0 0.0
      %1433 = vmatmul.mubr.f32.gmra.mrb[0].mxu0 %v1242
      %v1434 = vpop.f32.mrb[0].mxu0
      %v1435 = vadd.f32 0.0, %v1434
      %v1436 = vpop.f32.mrb[0].mxu0
      %1437 = vmatprep.mubr.f32.mxu0 0.0
      %1438 = vmatmul.mubr.f32.gmra.mrb[0].mxu0 %v1245
      %v1439 = vpop.f32.mrb[0].mxu0
      %v1440 = vadd.f32 0.0, %v1439
      %v1441 = vpop.f32.mrb[0].mxu0
      %1442 = vmatprep.mubr.f32.mxu0 0.0
      %1443 = vmatmul.mubr.f32.gmra.mrb[0].mxu0 %v1248
      %v1444 = vpop.f32.mrb[0].mxu0
      %v1445 = vadd.f32 0.0, %v1444
      %v1446 = vpop.f32.mrb[0].mxu0
      %1447 = vmatprep.mubr.f32.mxu0 0.0
      %1448 = vmatmul.mubr.f32.gmra.mrb[0].mxu0 %v1251
      %v1449 = vpop.f32.mrb[0].mxu0
      %v1450 = vadd.f32 0.0, %v1449
      %v1451 = vpop.f32.mrb[0].mxu0
      %1452 = vmatprep.mubr.f32.mxu0 0.0
      %1453 = vmatmul.mubr.f32.gmra.mrb[0].mxu0 %v1254
      %v1454 = vpop.f32.mrb[0].mxu0
      %v1455 = vadd.f32 0.0, %v1454
      %v1456 = vpop.f32.mrb[0].mxu0
      %1457 = vmatprep.mubr.f32.mxu0 0.0
      %1458 = vmatmul.mubr.f32.gmra.mrb[0].mxu0 %v1257
      %v1459 = vpop.f32.mrb[0].mxu0
      %v1460 = vadd.f32 0.0, %v1459
      %v1461 = vpop.f32.mrb[0].mxu0
      %1462 = vmatprep.mubr.f32.mxu0 0.0
      %1463 = vmatmul.mubr.f32.gmra.mrb[0].mxu0 %v1260
      %v1464 = vpop.f32.mrb[0].mxu0
      %v1465 = vadd.f32 0.0, %v1464
      %v1466 = vpop.f32.mrb[0].mxu0
      %1467 = vmatprep.mubr.f32.mxu0 0.0
      %1468 = vmatmul.mubr.f32.gmra.mrb[0].mxu0 %v1263
      %v1469 = vpop.f32.mrb[0].mxu0
      %v1470 = vadd.f32 0.0, %v1469
      %v1471 = vpop.f32.mrb[0].mxu0
      %1472 = vmatprep.mubr.f32.mxu0 0.0
      %1473 = vmatmul.mubr.f32.gmra.mrb[0].mxu0 %v1266
      %v1474 = vpop.f32.mrb[0].mxu0
      %v1475 = vadd.f32 0.0, %v1474
      %v1476 = vpop.f32.mrb[0].mxu0
      %1477 = vmatprep.mubr.f32.mxu0 0.0
      %1478 = vmatmul.mubr.f32.gmra.mrb[0].mxu0 %v1269
      %v1479 = vpop.f32.mrb[0].mxu0
      %v1480 = vadd.f32 0.0, %v1479
      %v1481 = vpop.f32.mrb[0].mxu0
      %1482 = vmatprep.mubr.f32.mxu0 0.0
      %1483 = vmatmul.mubr.f32.gmra.mrb[0].mxu0 %v1272
      %v1484 = vpop.f32.mrb[0].mxu0
      %v1485 = vadd.f32 0.0, %v1484
      %v1486 = vpop.f32.mrb[0].mxu0
      %1487 = vmatprep.mubr.f32.mxu0 0.0
      %1488 = vmatmul.mubr.f32.gmra.mrb[0].mxu0 %v1275
      %v1489 = vpop.f32.mrb[0].mxu0
      %v1490 = vadd.f32 0.0, %v1489
      %v1491 = vpop.f32.mrb[0].mxu0
      %1492 = vmatprep.mubr.f32.mxu0 0.0
      %1493 = vmatmul.mubr.f32.gmra.mrb[0].mxu0 %v1278
      %v1494 = vpop.f32.mrb[0].mxu0
      %v1495 = vadd.f32 0.0, %v1494
      %v1496 = vpop.f32.mrb[0].mxu0
      %1497 = vmatprep.mubr.f32.mxu0 0.0
      %1498 = vmatmul.mubr.f32.gmra.mrb[0].mxu0 %v1281
      %v1499 = vpop.f32.mrb[0].mxu0
      %v1500 = vadd.f32 0.0, %v1499
      %v1501 = vpop.f32.mrb[0].mxu0
      %1502 = vmatprep.mubr.f32.mxu0 0.0
      %1503 = vmatmul.mubr.f32.gmra.mrb[0].mxu0 %v1284
      %v1504 = vpop.f32.mrb[0].mxu0
      %v1505 = vadd.f32 0.0, %v1504
      %v1506 = vpop.f32.mrb[0].mxu0
      %1507 = vmatprep.mubr.f32.mxu0 0.0
      %1508 = vmatmul.mubr.f32.gmra.mrb[0].mxu0 %v1287
      %v1509 = vpop.f32.mrb[0].mxu0
      %v1510 = vadd.f32 0.0, %v1509
      %v1511 = vpop.f32.mrb[0].mxu0
      %1512 = vmatprep.mubr.f32.mxu0 0.0
      %1513 = vmatmul.mubr.f32.gmra.mrb[0].mxu0 %v1290
      %v1514 = vpop.f32.mrb[0].mxu0
      %v1515 = vadd.f32 0.0, %v1514
      %v1516 = vpop.f32.mrb[0].mxu0
      %1517 = vmatprep.mubr.f32.mxu0 0.0
      %1518 = vmatmul.mubr.f32.gmra.mrb[0].mxu0 %v1293
      %v1519 = vpop.f32.mrb[0].mxu0
      %v1520 = vadd.f32 0.0, %v1519
      %v1521 = vpop.f32.mrb[0].mxu0
      %1522 = vdwg.mxu0
      %v1523 = vadd.f32 %v1133, %v1365
      %v1524 = vadd.f32 %v1134, %v1370
      %v1525 = vadd.f32 %v1135, %v1375
      %v1526 = vadd.f32 %v1136, %v1380
      %v1527 = vadd.f32 %v1137, %v1385
      %v1528 = vadd.f32 %v1138, %v1390
      %v1529 = vadd.f32 %v1139, %v1395
      %v1530 = vadd.f32 %v1140, %v1400
      %v1531 = vadd.f32 %v1141, %v1405
      %v1532 = vadd.f32 %v1142, %v1410
      %v1533 = vadd.f32 %v1143, %v1415
      %v1534 = vadd.f32 %v1144, %v1420
      %v1535 = vadd.f32 %v1145, %v1425
      %v1536 = vadd.f32 %v1146, %v1430
      %v1537 = vadd.f32 %v1147, %v1435
      %v1538 = vadd.f32 %v1148, %v1440
      %v1539 = vadd.f32 %v1149, %v1445
      %v1540 = vadd.f32 %v1150, %v1450
      %v1541 = vadd.f32 %v1151, %v1455
      %v1542 = vadd.f32 %v1152, %v1460
      %v1543 = vadd.f32 %v1153, %v1465
      %v1544 = vadd.f32 %v1154, %v1470
      %v1545 = vadd.f32 %v1155, %v1475
      %v1546 = vadd.f32 %v1156, %v1480
      %v1547 = vadd.f32 %v1157, %v1485
      %v1548 = vadd.f32 %v1158, %v1490
      %v1549 = vadd.f32 %v1159, %v1495
      %v1550 = vadd.f32 %v1160, %v1500
      %v1551 = vadd.f32 %v1161, %v1505
      %v1552 = vadd.f32 %v1162, %v1510
      %v1553 = vadd.f32 %v1163, %v1515
      %v1554 = vadd.f32 %v1164, %v1520
      %v1555 = vld [vmem:[%s345] sm:$0xff]
      %v1556 = vld [vmem:[%s345 + $0x8] sm:$0xff]
      %v1557 = vld [vmem:[%s345 + $0x18] sm:$0xff]
      %v1558 = vld [vmem:[%s345 + $0x20] sm:$0xff]
      %v1559 = vld [vmem:[%s345 + $0x30] sm:$0xff]
      %v1560 = vld [vmem:[%s345 + $0x38] sm:$0xff]
      %v1561 = vld [vmem:[%s345 + $0x48] sm:$0xff]
      %v1562 = vld [vmem:[%s345 + $0x50] sm:$0xff]
      %v1563 = vld [vmem:[%s345 + $0x60] sm:$0xff]
      %v1564 = vld [vmem:[%s345 + $0x68] sm:$0xff]
      %v1565 = vld [vmem:[%s345 + $0x78] sm:$0xff]
      %v1566 = vld [vmem:[%s345 + $0x80] sm:$0xff]
      %v1567 = vld [vmem:[%s345 + $0x90] sm:$0xff]
      %v1568 = vld [vmem:[%s345 + $0x98] sm:$0xff]
      %v1569 = vld [vmem:[%s345 + $0xa8] sm:$0xff]
      %v1570 = vld [vmem:[%s345 + $0xb0] sm:$0xff]
      %v1571 = vld [vmem:[%s345 + $0xc0] sm:$0xff]
      %v1572 = vld [vmem:[%s345 + $0xc8] sm:$0xff]
      %v1573 = vld [vmem:[%s345 + $0xd8] sm:$0xff]
      %v1574 = vld [vmem:[%s345 + $0xe0] sm:$0xff]
      %v1575 = vld [vmem:[%s345 + $0xf0] sm:$0xff]
      %v1576 = vld [vmem:[%s345 + $0xf8] sm:$0xff]
      %v1577 = vld [vmem:[%s345 + $0x108] sm:$0xff]
      %v1578 = vld [vmem:[%s345 + $0x110] sm:$0xff]
      %v1579 = vld [vmem:[%s345 + $0x120] sm:$0xff]
      %v1580 = vld [vmem:[%s345 + $0x128] sm:$0xff]
      %v1581 = vld [vmem:[%s345 + $0x138] sm:$0xff]
      %v1582 = vld [vmem:[%s345 + $0x140] sm:$0xff]
      %v1583 = vld [vmem:[%s345 + $0x150] sm:$0xff]
      %v1584 = vld [vmem:[%s345 + $0x158] sm:$0xff]
      %v1585 = vld [vmem:[%s345 + $0x168] sm:$0xff]
      %v1586 = vld [vmem:[%s345 + $0x170] sm:$0xff]
      %s1587 = scalar_lea.vmem %s1, 12
      %v1588 = vld [vmem:[%s1587] sm:$0xf]
      %v1590 = vsel %vm225, %v1555, 0
      %v1593 = vsel %vm225, %v1556, 0
      %v1596 = vsel %vm225, %v1557, 0
      %v1599 = vsel %vm225, %v1558, 0
      %v1602 = vsel %vm225, %v1559, 0
      %v1605 = vsel %vm225, %v1560, 0
      %v1608 = vsel %vm225, %v1561, 0
      %v1611 = vsel %vm225, %v1562, 0
      %v1614 = vsel %vm225, %v1563, 0
      %v1617 = vsel %vm225, %v1564, 0
      %v1620 = vsel %vm225, %v1565, 0
      %v1623 = vsel %vm225, %v1566, 0
      %v1626 = vsel %vm225, %v1567, 0
      %v1629 = vsel %vm225, %v1568, 0
      %v1632 = vsel %vm225, %v1569, 0
      %v1635 = vsel %vm225, %v1570, 0
      %v1638 = vsel %vm225, %v1571, 0
      %v1641 = vsel %vm225, %v1572, 0
      %v1644 = vsel %vm225, %v1573, 0
      %v1647 = vsel %vm225, %v1574, 0
      %v1650 = vsel %vm225, %v1575, 0
      %v1653 = vsel %vm225, %v1576, 0
      %v1656 = vsel %vm225, %v1577, 0
      %v1659 = vsel %vm225, %v1578, 0
      %v1662 = vsel %vm225, %v1579, 0
      %v1665 = vsel %vm225, %v1580, 0
      %v1668 = vsel %vm225, %v1581, 0
      %v1671 = vsel %vm225, %v1582, 0
      %v1674 = vsel %vm225, %v1583, 0
      %v1677 = vsel %vm225, %v1584, 0
      %v1680 = vsel %vm225, %v1585, 0
      %v1683 = vsel %vm225, %v1586, 0
      %v1686 = vsel %vm514, %v1588, 0
      %1688 = vmatprep.subr.mxu0 0.0
      %1689 = vmatpush1.msra.mxu0 %v1686
      %1690 = vmatprep.subr.mxu0 0.0
      %1691 = vmatpush1.msra.mxu0 0.0
      %1692 = vmatprep.subr.mxu0 0.0
      %1693 = vmatpush1.msra.mxu0 0.0
      %1694 = vmatprep.subr.mxu0 0.0
      %1695 = vmatpush1.msra.mxu0 0.0
      %1696 = vmatprep.subr.mxu0 0.0
      %1697 = vmatpush1.msra.mxu0 0.0
      %1698 = vmatprep.subr.mxu0 0.0
      %1699 = vmatpush1.msra.mxu0 0.0
      %1700 = vmatprep.subr.mxu0 0.0
      %1701 = vmatpush1.msra.mxu0 0.0
      %1702 = vmatprep.subr.mxu0 0.0
      %1703 = vmatpush1.msra.mxu0 0.0
      %1704 = vmatprep.subr.mxu0 0.0
      %1705 = vmatpush1.msra.mxu0 0.0
      %1706 = vmatprep.subr.mxu0 0.0
      %1707 = vmatpush1.msra.mxu0 0.0
      %1708 = vmatprep.subr.mxu0 0.0
      %1709 = vmatpush1.msra.mxu0 0.0
      %1710 = vmatprep.subr.mxu0 0.0
      %1711 = vmatpush1.msra.mxu0 0.0
      %1712 = vmatprep.subr.mxu0 0.0
      %1713 = vmatpush1.msra.mxu0 0.0
      %1714 = vmatprep.subr.mxu0 0.0
      %1715 = vmatpush1.msra.mxu0 0.0
      %1716 = vmatprep.subr.mxu0 0.0
      %1717 = vmatpush1.msra.mxu0 0.0
      %1718 = vmatprep.subr.mxu0 0.0
      %1719 = vmatpush1.msra.mxu0 0.0
      %1720 = vmatprep.subr.mxu0 0.0
      %1721 = vmatpush1.msra.mxu0 0.0
      %1722 = vmatprep.subr.mxu0 0.0
      %1723 = vmatpush1.msra.mxu0 0.0
      %1724 = vmatprep.subr.mxu0 0.0
      %1725 = vmatpush1.msra.mxu0 0.0
      %1726 = vmatprep.subr.mxu0 0.0
      %1727 = vmatpush1.msra.mxu0 0.0
      %1728 = vmatprep.subr.mxu0 0.0
      %1729 = vmatpush1.msra.mxu0 0.0
      %1730 = vmatprep.subr.mxu0 0.0
      %1731 = vmatpush1.msra.mxu0 0.0
      %1732 = vmatprep.subr.mxu0 0.0
      %1733 = vmatpush1.msra.mxu0 0.0
      %1734 = vmatprep.subr.mxu0 0.0
      %1735 = vmatpush1.msra.mxu0 0.0
      %1736 = vmatprep.subr.mxu0 0.0
      %1737 = vmatpush1.msra.mxu0 0.0
      %1738 = vmatprep.subr.mxu0 0.0
      %1739 = vmatpush1.msra.mxu0 0.0
      %1740 = vmatprep.subr.mxu0 0.0
      %1741 = vmatpush1.msra.mxu0 0.0
      %1742 = vmatprep.subr.mxu0 0.0
      %1743 = vmatpush1.msra.mxu0 0.0
      %1744 = vmatprep.subr.mxu0 0.0
      %1745 = vmatpush1.msra.mxu0 0.0
      %1746 = vmatprep.subr.mxu0 0.0
      %1747 = vmatpush1.msra.mxu0 0.0
      %1748 = vmatprep.subr.mxu0 0.0
      %1749 = vmatpush1.msra.mxu0 0.0
      %1750 = vmatprep.subr.mxu0 0.0
      %1751 = vmatpush1.msra.mxu0 0.0
      %1752 = vmatprep.mubr.f32.mxu0 0.0
      %1753 = vmatmul.mubr.f32.gmra.mrb[0].mxu0 %v1590
      %v1754 = vpop.f32.mrb[0].mxu0
      %v1755 = vadd.f32 0.0, %v1754
      %v1756 = vpop.f32.mrb[0].mxu0
      %1757 = vmatprep.mubr.f32.mxu0 0.0
      %1758 = vmatmul.mubr.f32.gmra.mrb[0].mxu0 %v1593
      %v1759 = vpop.f32.mrb[0].mxu0
      %v1760 = vadd.f32 0.0, %v1759
      %v1761 = vpop.f32.mrb[0].mxu0
      %1762 = vmatprep.mubr.f32.mxu0 0.0
      %1763 = vmatmul.mubr.f32.gmra.mrb[0].mxu0 %v1596
      %v1764 = vpop.f32.mrb[0].mxu0
      %v1765 = vadd.f32 0.0, %v1764
      %v1766 = vpop.f32.mrb[0].mxu0
      %1767 = vmatprep.mubr.f32.mxu0 0.0
      %1768 = vmatmul.mubr.f32.gmra.mrb[0].mxu0 %v1599
      %v1769 = vpop.f32.mrb[0].mxu0
      %v1770 = vadd.f32 0.0, %v1769
      %v1771 = vpop.f32.mrb[0].mxu0
      %1772 = vmatprep.mubr.f32.mxu0 0.0
      %1773 = vmatmul.mubr.f32.gmra.mrb[0].mxu0 %v1602
      %v1774 = vpop.f32.mrb[0].mxu0
      %v1775 = vadd.f32 0.0, %v1774
      %v1776 = vpop.f32.mrb[0].mxu0
      %1777 = vmatprep.mubr.f32.mxu0 0.0
      %1778 = vmatmul.mubr.f32.gmra.mrb[0].mxu0 %v1605
      %v1779 = vpop.f32.mrb[0].mxu0
      %v1780 = vadd.f32 0.0, %v1779
      %v1781 = vpop.f32.mrb[0].mxu0
      %1782 = vmatprep.mubr.f32.mxu0 0.0
      %1783 = vmatmul.mubr.f32.gmra.mrb[0].mxu0 %v1608
      %v1784 = vpop.f32.mrb[0].mxu0
      %v1785 = vadd.f32 0.0, %v1784
      %v1786 = vpop.f32.mrb[0].mxu0
      %1787 = vmatprep.mubr.f32.mxu0 0.0
      %1788 = vmatmul.mubr.f32.gmra.mrb[0].mxu0 %v1611
      %v1789 = vpop.f32.mrb[0].mxu0
      %v1790 = vadd.f32 0.0, %v1789
      %v1791 = vpop.f32.mrb[0].mxu0
      %1792 = vmatprep.mubr.f32.mxu0 0.0
      %1793 = vmatmul.mubr.f32.gmra.mrb[0].mxu0 %v1614
      %v1794 = vpop.f32.mrb[0].mxu0
      %v1795 = vadd.f32 0.0, %v1794
      %v1796 = vpop.f32.mrb[0].mxu0
      %1797 = vmatprep.mubr.f32.mxu0 0.0
      %1798 = vmatmul.mubr.f32.gmra.mrb[0].mxu0 %v1617
      %v1799 = vpop.f32.mrb[0].mxu0
      %v1800 = vadd.f32 0.0, %v1799
      %v1801 = vpop.f32.mrb[0].mxu0
      %1802 = vmatprep.mubr.f32.mxu0 0.0
      %1803 = vmatmul.mubr.f32.gmra.mrb[0].mxu0 %v1620
      %v1804 = vpop.f32.mrb[0].mxu0
      %v1805 = vadd.f32 0.0, %v1804
      %v1806 = vpop.f32.mrb[0].mxu0
      %1807 = vmatprep.mubr.f32.mxu0 0.0
      %1808 = vmatmul.mubr.f32.gmra.mrb[0].mxu0 %v1623
      %v1809 = vpop.f32.mrb[0].mxu0
      %v1810 = vadd.f32 0.0, %v1809
      %v1811 = vpop.f32.mrb[0].mxu0
      %1812 = vmatprep.mubr.f32.mxu0 0.0
      %1813 = vmatmul.mubr.f32.gmra.mrb[0].mxu0 %v1626
      %v1814 = vpop.f32.mrb[0].mxu0
      %v1815 = vadd.f32 0.0, %v1814
      %v1816 = vpop.f32.mrb[0].mxu0
      %1817 = vmatprep.mubr.f32.mxu0 0.0
      %1818 = vmatmul.mubr.f32.gmra.mrb[0].mxu0 %v1629
      %v1819 = vpop.f32.mrb[0].mxu0
      %v1820 = vadd.f32 0.0, %v1819
      %v1821 = vpop.f32.mrb[0].mxu0
      %1822 = vmatprep.mubr.f32.mxu0 0.0
      %1823 = vmatmul.mubr.f32.gmra.mrb[0].mxu0 %v1632
      %v1824 = vpop.f32.mrb[0].mxu0
      %v1825 = vadd.f32 0.0, %v1824
      %v1826 = vpop.f32.mrb[0].mxu0
      %1827 = vmatprep.mubr.f32.mxu0 0.0
      %1828 = vmatmul.mubr.f32.gmra.mrb[0].mxu0 %v1635
      %v1829 = vpop.f32.mrb[0].mxu0
      %v1830 = vadd.f32 0.0, %v1829
      %v1831 = vpop.f32.mrb[0].mxu0
      %1832 = vmatprep.mubr.f32.mxu0 0.0
      %1833 = vmatmul.mubr.f32.gmra.mrb[0].mxu0 %v1638
      %v1834 = vpop.f32.mrb[0].mxu0
      %v1835 = vadd.f32 0.0, %v1834
      %v1836 = vpop.f32.mrb[0].mxu0
      %1837 = vmatprep.mubr.f32.mxu0 0.0
      %1838 = vmatmul.mubr.f32.gmra.mrb[0].mxu0 %v1641
      %v1839 = vpop.f32.mrb[0].mxu0
      %v1840 = vadd.f32 0.0, %v1839
      %v1841 = vpop.f32.mrb[0].mxu0
      %1842 = vmatprep.mubr.f32.mxu0 0.0
      %1843 = vmatmul.mubr.f32.gmra.mrb[0].mxu0 %v1644
      %v1844 = vpop.f32.mrb[0].mxu0
      %v1845 = vadd.f32 0.0, %v1844
      %v1846 = vpop.f32.mrb[0].mxu0
      %1847 = vmatprep.mubr.f32.mxu0 0.0
      %1848 = vmatmul.mubr.f32.gmra.mrb[0].mxu0 %v1647
      %v1849 = vpop.f32.mrb[0].mxu0
      %v1850 = vadd.f32 0.0, %v1849
      %v1851 = vpop.f32.mrb[0].mxu0
      %1852 = vmatprep.mubr.f32.mxu0 0.0
      %1853 = vmatmul.mubr.f32.gmra.mrb[0].mxu0 %v1650
      %v1854 = vpop.f32.mrb[0].mxu0
      %v1855 = vadd.f32 0.0, %v1854
      %v1856 = vpop.f32.mrb[0].mxu0
      %1857 = vmatprep.mubr.f32.mxu0 0.0
      %1858 = vmatmul.mubr.f32.gmra.mrb[0].mxu0 %v1653
      %v1859 = vpop.f32.mrb[0].mxu0
      %v1860 = vadd.f32 0.0, %v1859
      %v1861 = vpop.f32.mrb[0].mxu0
      %1862 = vmatprep.mubr.f32.mxu0 0.0
      %1863 = vmatmul.mubr.f32.gmra.mrb[0].mxu0 %v1656
      %v1864 = vpop.f32.mrb[0].mxu0
      %v1865 = vadd.f32 0.0, %v1864
      %v1866 = vpop.f32.mrb[0].mxu0
      %1867 = vmatprep.mubr.f32.mxu0 0.0
      %1868 = vmatmul.mubr.f32.gmra.mrb[0].mxu0 %v1659
      %v1869 = vpop.f32.mrb[0].mxu0
      %v1870 = vadd.f32 0.0, %v1869
      %v1871 = vpop.f32.mrb[0].mxu0
      %1872 = vmatprep.mubr.f32.mxu0 0.0
      %1873 = vmatmul.mubr.f32.gmra.mrb[0].mxu0 %v1662
      %v1874 = vpop.f32.mrb[0].mxu0
      %v1875 = vadd.f32 0.0, %v1874
      %v1876 = vpop.f32.mrb[0].mxu0
      %1877 = vmatprep.mubr.f32.mxu0 0.0
      %1878 = vmatmul.mubr.f32.gmra.mrb[0].mxu0 %v1665
      %v1879 = vpop.f32.mrb[0].mxu0
      %v1880 = vadd.f32 0.0, %v1879
      %v1881 = vpop.f32.mrb[0].mxu0
      %1882 = vmatprep.mubr.f32.mxu0 0.0
      %1883 = vmatmul.mubr.f32.gmra.mrb[0].mxu0 %v1668
      %v1884 = vpop.f32.mrb[0].mxu0
      %v1885 = vadd.f32 0.0, %v1884
      %v1886 = vpop.f32.mrb[0].mxu0
      %1887 = vmatprep.mubr.f32.mxu0 0.0
      %1888 = vmatmul.mubr.f32.gmra.mrb[0].mxu0 %v1671
      %v1889 = vpop.f32.mrb[0].mxu0
      %v1890 = vadd.f32 0.0, %v1889
      %v1891 = vpop.f32.mrb[0].mxu0
      %1892 = vmatprep.mubr.f32.mxu0 0.0
      %1893 = vmatmul.mubr.f32.gmra.mrb[0].mxu0 %v1674
      %v1894 = vpop.f32.mrb[0].mxu0
      %v1895 = vadd.f32 0.0, %v1894
      %v1896 = vpop.f32.mrb[0].mxu0
      %1897 = vmatprep.mubr.f32.mxu0 0.0
      %1898 = vmatmul.mubr.f32.gmra.mrb[0].mxu0 %v1677
      %v1899 = vpop.f32.mrb[0].mxu0
      %v1900 = vadd.f32 0.0, %v1899
      %v1901 = vpop.f32.mrb[0].mxu0
      %1902 = vmatprep.mubr.f32.mxu0 0.0
      %1903 = vmatmul.mubr.f32.gmra.mrb[0].mxu0 %v1680
      %v1904 = vpop.f32.mrb[0].mxu0
      %v1905 = vadd.f32 0.0, %v1904
      %v1906 = vpop.f32.mrb[0].mxu0
      %1907 = vmatprep.mubr.f32.mxu0 0.0
      %1908 = vmatmul.mubr.f32.gmra.mrb[0].mxu0 %v1683
      %v1909 = vpop.f32.mrb[0].mxu0
      %v1910 = vadd.f32 0.0, %v1909
      %v1911 = vpop.f32.mrb[0].mxu0
      %1912 = vdwg.mxu0
      %v1913 = vadd.f32 %v1523, %v1755
      %v1914 = vadd.f32 %v1524, %v1760
      %v1915 = vadd.f32 %v1525, %v1765
      %v1916 = vadd.f32 %v1526, %v1770
      %v1917 = vadd.f32 %v1527, %v1775
      %v1918 = vadd.f32 %v1528, %v1780
      %v1919 = vadd.f32 %v1529, %v1785
      %v1920 = vadd.f32 %v1530, %v1790
      %v1921 = vadd.f32 %v1531, %v1795
      %v1922 = vadd.f32 %v1532, %v1800
      %v1923 = vadd.f32 %v1533, %v1805
      %v1924 = vadd.f32 %v1534, %v1810
      %v1925 = vadd.f32 %v1535, %v1815
      %v1926 = vadd.f32 %v1536, %v1820
      %v1927 = vadd.f32 %v1537, %v1825
      %v1928 = vadd.f32 %v1538, %v1830
      %v1929 = vadd.f32 %v1539, %v1835
      %v1930 = vadd.f32 %v1540, %v1840
      %v1931 = vadd.f32 %v1541, %v1845
      %v1932 = vadd.f32 %v1542, %v1850
      %v1933 = vadd.f32 %v1543, %v1855
      %v1934 = vadd.f32 %v1544, %v1860
      %v1935 = vadd.f32 %v1545, %v1865
      %v1936 = vadd.f32 %v1546, %v1870
      %v1937 = vadd.f32 %v1547, %v1875
      %v1938 = vadd.f32 %v1548, %v1880
      %v1939 = vadd.f32 %v1549, %v1885
      %v1940 = vadd.f32 %v1550, %v1890
      %v1941 = vadd.f32 %v1551, %v1895
      %v1942 = vadd.f32 %v1552, %v1900
      %v1943 = vadd.f32 %v1553, %v1905
      %v1944 = vadd.f32 %v1554, %v1910
      %v1945 = vld [vmem:[%s345 + $0x1] sm:$0xff]
      %v1946 = vld [vmem:[%s345 + $0x9] sm:$0xff]
      %v1947 = vld [vmem:[%s345 + $0x19] sm:$0xff]
      %v1948 = vld [vmem:[%s345 + $0x21] sm:$0xff]
      %v1949 = vld [vmem:[%s345 + $0x31] sm:$0xff]
      %v1950 = vld [vmem:[%s345 + $0x39] sm:$0xff]
      %v1951 = vld [vmem:[%s345 + $0x49] sm:$0xff]
      %v1952 = vld [vmem:[%s345 + $0x51] sm:$0xff]
      %v1953 = vld [vmem:[%s345 + $0x61] sm:$0xff]
      %v1954 = vld [vmem:[%s345 + $0x69] sm:$0xff]
      %v1955 = vld [vmem:[%s345 + $0x79] sm:$0xff]
      %v1956 = vld [vmem:[%s345 + $0x81] sm:$0xff]
      %v1957 = vld [vmem:[%s345 + $0x91] sm:$0xff]
      %v1958 = vld [vmem:[%s345 + $0x99] sm:$0xff]
      %v1959 = vld [vmem:[%s345 + $0xa9] sm:$0xff]
      %v1960 = vld [vmem:[%s345 + $0xb1] sm:$0xff]
      %v1961 = vld [vmem:[%s345 + $0xc1] sm:$0xff]
      %v1962 = vld [vmem:[%s345 + $0xc9] sm:$0xff]
      %v1963 = vld [vmem:[%s345 + $0xd9] sm:$0xff]
      %v1964 = vld [vmem:[%s345 + $0xe1] sm:$0xff]
      %v1965 = vld [vmem:[%s345 + $0xf1] sm:$0xff]
      %v1966 = vld [vmem:[%s345 + $0xf9] sm:$0xff]
      %v1967 = vld [vmem:[%s345 + $0x109] sm:$0xff]
      %v1968 = vld [vmem:[%s345 + $0x111] sm:$0xff]
      %v1969 = vld [vmem:[%s345 + $0x121] sm:$0xff]
      %v1970 = vld [vmem:[%s345 + $0x129] sm:$0xff]
      %v1971 = vld [vmem:[%s345 + $0x139] sm:$0xff]
      %v1972 = vld [vmem:[%s345 + $0x141] sm:$0xff]
      %v1973 = vld [vmem:[%s345 + $0x151] sm:$0xff]
      %v1974 = vld [vmem:[%s345 + $0x159] sm:$0xff]
      %v1975 = vld [vmem:[%s345 + $0x169] sm:$0xff]
      %v1976 = vld [vmem:[%s345 + $0x171] sm:$0xff]
      %s1977 = scalar_lea.vmem %s1, 16
      %v1978 = vld [vmem:[%s1977] sm:$0xf]
      %v1980 = vsel %vm225, %v1945, 0
      %v1983 = vsel %vm225, %v1946, 0
      %v1986 = vsel %vm225, %v1947, 0
      %v1989 = vsel %vm225, %v1948, 0
      %v1992 = vsel %vm225, %v1949, 0
      %v1995 = vsel %vm225, %v1950, 0
      %v1998 = vsel %vm225, %v1951, 0
      %v2001 = vsel %vm225, %v1952, 0
      %v2004 = vsel %vm225, %v1953, 0
      %v2007 = vsel %vm225, %v1954, 0
      %v2010 = vsel %vm225, %v1955, 0
      %v2013 = vsel %vm225, %v1956, 0
      %v2016 = vsel %vm225, %v1957, 0
      %v2019 = vsel %vm225, %v1958, 0
      %v2022 = vsel %vm225, %v1959, 0
      %v2025 = vsel %vm225, %v1960, 0
      %v2028 = vsel %vm225, %v1961, 0
      %v2031 = vsel %vm225, %v1962, 0
      %v2034 = vsel %vm225, %v1963, 0
      %v2037 = vsel %vm225, %v1964, 0
      %v2040 = vsel %vm225, %v1965, 0
      %v2043 = vsel %vm225, %v1966, 0
      %v2046 = vsel %vm225, %v1967, 0
      %v2049 = vsel %vm225, %v1968, 0
      %v2052 = vsel %vm225, %v1969, 0
      %v2055 = vsel %vm225, %v1970, 0
      %v2058 = vsel %vm225, %v1971, 0
      %v2061 = vsel %vm225, %v1972, 0
      %v2064 = vsel %vm225, %v1973, 0
      %v2067 = vsel %vm225, %v1974, 0
      %v2070 = vsel %vm225, %v1975, 0
      %v2073 = vsel %vm225, %v1976, 0
      %v2076 = vsel %vm514, %v1978, 0
      %2078 = vmatprep.subr.mxu0 0.0
      %2079 = vmatpush1.msra.mxu0 %v2076
      %2080 = vmatprep.subr.mxu0 0.0
      %2081 = vmatpush1.msra.mxu0 0.0
      %2082 = vmatprep.subr.mxu0 0.0
      %2083 = vmatpush1.msra.mxu0 0.0
      %2084 = vmatprep.subr.mxu0 0.0
      %2085 = vmatpush1.msra.mxu0 0.0
      %2086 = vmatprep.subr.mxu0 0.0
      %2087 = vmatpush1.msra.mxu0 0.0
      %2088 = vmatprep.subr.mxu0 0.0
      %2089 = vmatpush1.msra.mxu0 0.0
      %2090 = vmatprep.subr.mxu0 0.0
      %2091 = vmatpush1.msra.mxu0 0.0
      %2092 = vmatprep.subr.mxu0 0.0
      %2093 = vmatpush1.msra.mxu0 0.0
      %2094 = vmatprep.subr.mxu0 0.0
      %2095 = vmatpush1.msra.mxu0 0.0
      %2096 = vmatprep.subr.mxu0 0.0
      %2097 = vmatpush1.msra.mxu0 0.0
      %2098 = vmatprep.subr.mxu0 0.0
      %2099 = vmatpush1.msra.mxu0 0.0
      %2100 = vmatprep.subr.mxu0 0.0
      %2101 = vmatpush1.msra.mxu0 0.0
      %2102 = vmatprep.subr.mxu0 0.0
      %2103 = vmatpush1.msra.mxu0 0.0
      %2104 = vmatprep.subr.mxu0 0.0
      %2105 = vmatpush1.msra.mxu0 0.0
      %2106 = vmatprep.subr.mxu0 0.0
      %2107 = vmatpush1.msra.mxu0 0.0
      %2108 = vmatprep.subr.mxu0 0.0
      %2109 = vmatpush1.msra.mxu0 0.0
      %2110 = vmatprep.subr.mxu0 0.0
      %2111 = vmatpush1.msra.mxu0 0.0
      %2112 = vmatprep.subr.mxu0 0.0
      %2113 = vmatpush1.msra.mxu0 0.0
      %2114 = vmatprep.subr.mxu0 0.0
      %2115 = vmatpush1.msra.mxu0 0.0
      %2116 = vmatprep.subr.mxu0 0.0
      %2117 = vmatpush1.msra.mxu0 0.0
      %2118 = vmatprep.subr.mxu0 0.0
      %2119 = vmatpush1.msra.mxu0 0.0
      %2120 = vmatprep.subr.mxu0 0.0
      %2121 = vmatpush1.msra.mxu0 0.0
      %2122 = vmatprep.subr.mxu0 0.0
      %2123 = vmatpush1.msra.mxu0 0.0
      %2124 = vmatprep.subr.mxu0 0.0
      %2125 = vmatpush1.msra.mxu0 0.0
      %2126 = vmatprep.subr.mxu0 0.0
      %2127 = vmatpush1.msra.mxu0 0.0
      %2128 = vmatprep.subr.mxu0 0.0
      %2129 = vmatpush1.msra.mxu0 0.0
      %2130 = vmatprep.subr.mxu0 0.0
      %2131 = vmatpush1.msra.mxu0 0.0
      %2132 = vmatprep.subr.mxu0 0.0
      %2133 = vmatpush1.msra.mxu0 0.0
      %2134 = vmatprep.subr.mxu0 0.0
      %2135 = vmatpush1.msra.mxu0 0.0
      %2136 = vmatprep.subr.mxu0 0.0
      %2137 = vmatpush1.msra.mxu0 0.0
      %2138 = vmatprep.subr.mxu0 0.0
      %2139 = vmatpush1.msra.mxu0 0.0
      %2140 = vmatprep.subr.mxu0 0.0
      %2141 = vmatpush1.msra.mxu0 0.0
      %2142 = vmatprep.mubr.f32.mxu0 0.0
      %2143 = vmatmul.mubr.f32.gmra.mrb[0].mxu0 %v1980
      %v2144 = vpop.f32.mrb[0].mxu0
      %v2145 = vadd.f32 0.0, %v2144
      %v2146 = vpop.f32.mrb[0].mxu0
      %2147 = vmatprep.mubr.f32.mxu0 0.0
      %2148 = vmatmul.mubr.f32.gmra.mrb[0].mxu0 %v1983
      %v2149 = vpop.f32.mrb[0].mxu0
      %v2150 = vadd.f32 0.0, %v2149
      %v2151 = vpop.f32.mrb[0].mxu0
      %2152 = vmatprep.mubr.f32.mxu0 0.0
      %2153 = vmatmul.mubr.f32.gmra.mrb[0].mxu0 %v1986
      %v2154 = vpop.f32.mrb[0].mxu0
      %v2155 = vadd.f32 0.0, %v2154
      %v2156 = vpop.f32.mrb[0].mxu0
      %2157 = vmatprep.mubr.f32.mxu0 0.0
      %2158 = vmatmul.mubr.f32.gmra.mrb[0].mxu0 %v1989
      %v2159 = vpop.f32.mrb[0].mxu0
      %v2160 = vadd.f32 0.0, %v2159
      %v2161 = vpop.f32.mrb[0].mxu0
      %2162 = vmatprep.mubr.f32.mxu0 0.0
      %2163 = vmatmul.mubr.f32.gmra.mrb[0].mxu0 %v1992
      %v2164 = vpop.f32.mrb[0].mxu0
      %v2165 = vadd.f32 0.0, %v2164
      %v2166 = vpop.f32.mrb[0].mxu0
      %2167 = vmatprep.mubr.f32.mxu0 0.0
      %2168 = vmatmul.mubr.f32.gmra.mrb[0].mxu0 %v1995
      %v2169 = vpop.f32.mrb[0].mxu0
      %v2170 = vadd.f32 0.0, %v2169
      %v2171 = vpop.f32.mrb[0].mxu0
      %2172 = vmatprep.mubr.f32.mxu0 0.0
      %2173 = vmatmul.mubr.f32.gmra.mrb[0].mxu0 %v1998
      %v2174 = vpop.f32.mrb[0].mxu0
      %v2175 = vadd.f32 0.0, %v2174
      %v2176 = vpop.f32.mrb[0].mxu0
      %2177 = vmatprep.mubr.f32.mxu0 0.0
      %2178 = vmatmul.mubr.f32.gmra.mrb[0].mxu0 %v2001
      %v2179 = vpop.f32.mrb[0].mxu0
      %v2180 = vadd.f32 0.0, %v2179
      %v2181 = vpop.f32.mrb[0].mxu0
      %2182 = vmatprep.mubr.f32.mxu0 0.0
      %2183 = vmatmul.mubr.f32.gmra.mrb[0].mxu0 %v2004
      %v2184 = vpop.f32.mrb[0].mxu0
      %v2185 = vadd.f32 0.0, %v2184
      %v2186 = vpop.f32.mrb[0].mxu0
      %2187 = vmatprep.mubr.f32.mxu0 0.0
      %2188 = vmatmul.mubr.f32.gmra.mrb[0].mxu0 %v2007
      %v2189 = vpop.f32.mrb[0].mxu0
      %v2190 = vadd.f32 0.0, %v2189
      %v2191 = vpop.f32.mrb[0].mxu0
      %2192 = vmatprep.mubr.f32.mxu0 0.0
      %2193 = vmatmul.mubr.f32.gmra.mrb[0].mxu0 %v2010
      %v2194 = vpop.f32.mrb[0].mxu0
      %v2195 = vadd.f32 0.0, %v2194
      %v2196 = vpop.f32.mrb[0].mxu0
      %2197 = vmatprep.mubr.f32.mxu0 0.0
      %2198 = vmatmul.mubr.f32.gmra.mrb[0].mxu0 %v2013
      %v2199 = vpop.f32.mrb[0].mxu0
      %v2200 = vadd.f32 0.0, %v2199
      %v2201 = vpop.f32.mrb[0].mxu0
      %2202 = vmatprep.mubr.f32.mxu0 0.0
      %2203 = vmatmul.mubr.f32.gmra.mrb[0].mxu0 %v2016
      %v2204 = vpop.f32.mrb[0].mxu0
      %v2205 = vadd.f32 0.0, %v2204
      %v2206 = vpop.f32.mrb[0].mxu0
      %2207 = vmatprep.mubr.f32.mxu0 0.0
      %2208 = vmatmul.mubr.f32.gmra.mrb[0].mxu0 %v2019
      %v2209 = vpop.f32.mrb[0].mxu0
      %v2210 = vadd.f32 0.0, %v2209
      %v2211 = vpop.f32.mrb[0].mxu0
      %2212 = vmatprep.mubr.f32.mxu0 0.0
      %2213 = vmatmul.mubr.f32.gmra.mrb[0].mxu0 %v2022
      %v2214 = vpop.f32.mrb[0].mxu0
      %v2215 = vadd.f32 0.0, %v2214
      %v2216 = vpop.f32.mrb[0].mxu0
      %2217 = vmatprep.mubr.f32.mxu0 0.0
      %2218 = vmatmul.mubr.f32.gmra.mrb[0].mxu0 %v2025
      %v2219 = vpop.f32.mrb[0].mxu0
      %v2220 = vadd.f32 0.0, %v2219
      %v2221 = vpop.f32.mrb[0].mxu0
      %2222 = vmatprep.mubr.f32.mxu0 0.0
      %2223 = vmatmul.mubr.f32.gmra.mrb[0].mxu0 %v2028
      %v2224 = vpop.f32.mrb[0].mxu0
      %v2225 = vadd.f32 0.0, %v2224
      %v2226 = vpop.f32.mrb[0].mxu0
      %2227 = vmatprep.mubr.f32.mxu0 0.0
      %2228 = vmatmul.mubr.f32.gmra.mrb[0].mxu0 %v2031
      %v2229 = vpop.f32.mrb[0].mxu0
      %v2230 = vadd.f32 0.0, %v2229
      %v2231 = vpop.f32.mrb[0].mxu0
      %2232 = vmatprep.mubr.f32.mxu0 0.0
      %2233 = vmatmul.mubr.f32.gmra.mrb[0].mxu0 %v2034
      %v2234 = vpop.f32.mrb[0].mxu0
      %v2235 = vadd.f32 0.0, %v2234
      %v2236 = vpop.f32.mrb[0].mxu0
      %2237 = vmatprep.mubr.f32.mxu0 0.0
      %2238 = vmatmul.mubr.f32.gmra.mrb[0].mxu0 %v2037
      %v2239 = vpop.f32.mrb[0].mxu0
      %v2240 = vadd.f32 0.0, %v2239
      %v2241 = vpop.f32.mrb[0].mxu0
      %2242 = vmatprep.mubr.f32.mxu0 0.0
      %2243 = vmatmul.mubr.f32.gmra.mrb[0].mxu0 %v2040
      %v2244 = vpop.f32.mrb[0].mxu0
      %v2245 = vadd.f32 0.0, %v2244
      %v2246 = vpop.f32.mrb[0].mxu0
      %2247 = vmatprep.mubr.f32.mxu0 0.0
      %2248 = vmatmul.mubr.f32.gmra.mrb[0].mxu0 %v2043
      %v2249 = vpop.f32.mrb[0].mxu0
      %v2250 = vadd.f32 0.0, %v2249
      %v2251 = vpop.f32.mrb[0].mxu0
      %2252 = vmatprep.mubr.f32.mxu0 0.0
      %2253 = vmatmul.mubr.f32.gmra.mrb[0].mxu0 %v2046
      %v2254 = vpop.f32.mrb[0].mxu0
      %v2255 = vadd.f32 0.0, %v2254
      %v2256 = vpop.f32.mrb[0].mxu0
      %2257 = vmatprep.mubr.f32.mxu0 0.0
      %2258 = vmatmul.mubr.f32.gmra.mrb[0].mxu0 %v2049
      %v2259 = vpop.f32.mrb[0].mxu0
      %v2260 = vadd.f32 0.0, %v2259
      %v2261 = vpop.f32.mrb[0].mxu0
      %2262 = vmatprep.mubr.f32.mxu0 0.0
      %2263 = vmatmul.mubr.f32.gmra.mrb[0].mxu0 %v2052
      %v2264 = vpop.f32.mrb[0].mxu0
      %v2265 = vadd.f32 0.0, %v2264
      %v2266 = vpop.f32.mrb[0].mxu0
      %2267 = vmatprep.mubr.f32.mxu0 0.0
      %2268 = vmatmul.mubr.f32.gmra.mrb[0].mxu0 %v2055
      %v2269 = vpop.f32.mrb[0].mxu0
      %v2270 = vadd.f32 0.0, %v2269
      %v2271 = vpop.f32.mrb[0].mxu0
      %2272 = vmatprep.mubr.f32.mxu0 0.0
      %2273 = vmatmul.mubr.f32.gmra.mrb[0].mxu0 %v2058
      %v2274 = vpop.f32.mrb[0].mxu0
      %v2275 = vadd.f32 0.0, %v2274
      %v2276 = vpop.f32.mrb[0].mxu0
      %2277 = vmatprep.mubr.f32.mxu0 0.0
      %2278 = vmatmul.mubr.f32.gmra.mrb[0].mxu0 %v2061
      %v2279 = vpop.f32.mrb[0].mxu0
      %v2280 = vadd.f32 0.0, %v2279
      %v2281 = vpop.f32.mrb[0].mxu0
      %2282 = vmatprep.mubr.f32.mxu0 0.0
      %2283 = vmatmul.mubr.f32.gmra.mrb[0].mxu0 %v2064
      %v2284 = vpop.f32.mrb[0].mxu0
      %v2285 = vadd.f32 0.0, %v2284
      %v2286 = vpop.f32.mrb[0].mxu0
      %2287 = vmatprep.mubr.f32.mxu0 0.0
      %2288 = vmatmul.mubr.f32.gmra.mrb[0].mxu0 %v2067
      %v2289 = vpop.f32.mrb[0].mxu0
      %v2290 = vadd.f32 0.0, %v2289
      %v2291 = vpop.f32.mrb[0].mxu0
      %2292 = vmatprep.mubr.f32.mxu0 0.0
      %2293 = vmatmul.mubr.f32.gmra.mrb[0].mxu0 %v2070
      %v2294 = vpop.f32.mrb[0].mxu0
      %v2295 = vadd.f32 0.0, %v2294
      %v2296 = vpop.f32.mrb[0].mxu0
      %2297 = vmatprep.mubr.f32.mxu0 0.0
      %2298 = vmatmul.mubr.f32.gmra.mrb[0].mxu0 %v2073
      %v2299 = vpop.f32.mrb[0].mxu0
      %v2300 = vadd.f32 0.0, %v2299
      %v2301 = vpop.f32.mrb[0].mxu0
      %2302 = vdwg.mxu0
      %v2303 = vadd.f32 %v1913, %v2145
      %v2304 = vadd.f32 %v1914, %v2150
      %v2305 = vadd.f32 %v1915, %v2155
      %v2306 = vadd.f32 %v1916, %v2160
      %v2307 = vadd.f32 %v1917, %v2165
      %v2308 = vadd.f32 %v1918, %v2170
      %v2309 = vadd.f32 %v1919, %v2175
      %v2310 = vadd.f32 %v1920, %v2180
      %v2311 = vadd.f32 %v1921, %v2185
      %v2312 = vadd.f32 %v1922, %v2190
      %v2313 = vadd.f32 %v1923, %v2195
      %v2314 = vadd.f32 %v1924, %v2200
      %v2315 = vadd.f32 %v1925, %v2205
      %v2316 = vadd.f32 %v1926, %v2210
      %v2317 = vadd.f32 %v1927, %v2215
      %v2318 = vadd.f32 %v1928, %v2220
      %v2319 = vadd.f32 %v1929, %v2225
      %v2320 = vadd.f32 %v1930, %v2230
      %v2321 = vadd.f32 %v1931, %v2235
      %v2322 = vadd.f32 %v1932, %v2240
      %v2323 = vadd.f32 %v1933, %v2245
      %v2324 = vadd.f32 %v1934, %v2250
      %v2325 = vadd.f32 %v1935, %v2255
      %v2326 = vadd.f32 %v1936, %v2260
      %v2327 = vadd.f32 %v1937, %v2265
      %v2328 = vadd.f32 %v1938, %v2270
      %v2329 = vadd.f32 %v1939, %v2275
      %v2330 = vadd.f32 %v1940, %v2280
      %v2331 = vadd.f32 %v1941, %v2285
      %v2332 = vadd.f32 %v1942, %v2290
      %v2333 = vadd.f32 %v1943, %v2295
      %v2334 = vadd.f32 %v1944, %v2300
      %v2335 = vld [vmem:[%s345 + $0x2] sm:$0xff]
      %v2336 = vld [vmem:[%s345 + $0xa] sm:$0xff]
      %v2337 = vld [vmem:[%s345 + $0x1a] sm:$0xff]
      %v2338 = vld [vmem:[%s345 + $0x22] sm:$0xff]
      %v2339 = vld [vmem:[%s345 + $0x32] sm:$0xff]
      %v2340 = vld [vmem:[%s345 + $0x3a] sm:$0xff]
      %v2341 = vld [vmem:[%s345 + $0x4a] sm:$0xff]
      %v2342 = vld [vmem:[%s345 + $0x52] sm:$0xff]
      %v2343 = vld [vmem:[%s345 + $0x62] sm:$0xff]
      %v2344 = vld [vmem:[%s345 + $0x6a] sm:$0xff]
      %v2345 = vld [vmem:[%s345 + $0x7a] sm:$0xff]
      %v2346 = vld [vmem:[%s345 + $0x82] sm:$0xff]
      %v2347 = vld [vmem:[%s345 + $0x92] sm:$0xff]
      %v2348 = vld [vmem:[%s345 + $0x9a] sm:$0xff]
      %v2349 = vld [vmem:[%s345 + $0xaa] sm:$0xff]
      %v2350 = vld [vmem:[%s345 + $0xb2] sm:$0xff]
      %v2351 = vld [vmem:[%s345 + $0xc2] sm:$0xff]
      %v2352 = vld [vmem:[%s345 + $0xca] sm:$0xff]
      %v2353 = vld [vmem:[%s345 + $0xda] sm:$0xff]
      %v2354 = vld [vmem:[%s345 + $0xe2] sm:$0xff]
      %v2355 = vld [vmem:[%s345 + $0xf2] sm:$0xff]
      %v2356 = vld [vmem:[%s345 + $0xfa] sm:$0xff]
      %v2357 = vld [vmem:[%s345 + $0x10a] sm:$0xff]
      %v2358 = vld [vmem:[%s345 + $0x112] sm:$0xff]
      %v2359 = vld [vmem:[%s345 + $0x122] sm:$0xff]
      %v2360 = vld [vmem:[%s345 + $0x12a] sm:$0xff]
      %v2361 = vld [vmem:[%s345 + $0x13a] sm:$0xff]
      %v2362 = vld [vmem:[%s345 + $0x142] sm:$0xff]
      %v2363 = vld [vmem:[%s345 + $0x152] sm:$0xff]
      %v2364 = vld [vmem:[%s345 + $0x15a] sm:$0xff]
      %v2365 = vld [vmem:[%s345 + $0x16a] sm:$0xff]
      %v2366 = vld [vmem:[%s345 + $0x172] sm:$0xff]
      %s2367 = scalar_lea.vmem %s1, 20
      %v2368 = vld [vmem:[%s2367] sm:$0xf]
      %v2370 = vsel %vm225, %v2335, 0
      %v2373 = vsel %vm225, %v2336, 0
      %v2376 = vsel %vm225, %v2337, 0
      %v2379 = vsel %vm225, %v2338, 0
      %v2382 = vsel %vm225, %v2339, 0
      %v2385 = vsel %vm225, %v2340, 0
      %v2388 = vsel %vm225, %v2341, 0
      %v2391 = vsel %vm225, %v2342, 0
      %v2394 = vsel %vm225, %v2343, 0
      %v2397 = vsel %vm225, %v2344, 0
      %v2400 = vsel %vm225, %v2345, 0
      %v2403 = vsel %vm225, %v2346, 0
      %v2406 = vsel %vm225, %v2347, 0
      %v2409 = vsel %vm225, %v2348, 0
      %v2412 = vsel %vm225, %v2349, 0
      %v2415 = vsel %vm225, %v2350, 0
      %v2418 = vsel %vm225, %v2351, 0
      %v2421 = vsel %vm225, %v2352, 0
      %v2424 = vsel %vm225, %v2353, 0
      %v2427 = vsel %vm225, %v2354, 0
      %v2430 = vsel %vm225, %v2355, 0
      %v2433 = vsel %vm225, %v2356, 0
      %v2436 = vsel %vm225, %v2357, 0
      %v2439 = vsel %vm225, %v2358, 0
      %v2442 = vsel %vm225, %v2359, 0
      %v2445 = vsel %vm225, %v2360, 0
      %v2448 = vsel %vm225, %v2361, 0
      %v2451 = vsel %vm225, %v2362, 0
      %v2454 = vsel %vm225, %v2363, 0
      %v2457 = vsel %vm225, %v2364, 0
      %v2460 = vsel %vm225, %v2365, 0
      %v2463 = vsel %vm225, %v2366, 0
      %v2466 = vsel %vm514, %v2368, 0
      %2468 = vmatprep.subr.mxu0 0.0
      %2469 = vmatpush1.msra.mxu0 %v2466
      %2470 = vmatprep.subr.mxu0 0.0
      %2471 = vmatpush1.msra.mxu0 0.0
      %2472 = vmatprep.subr.mxu0 0.0
      %2473 = vmatpush1.msra.mxu0 0.0
      %2474 = vmatprep.subr.mxu0 0.0
      %2475 = vmatpush1.msra.mxu0 0.0
      %2476 = vmatprep.subr.mxu0 0.0
      %2477 = vmatpush1.msra.mxu0 0.0
      %2478 = vmatprep.subr.mxu0 0.0
      %2479 = vmatpush1.msra.mxu0 0.0
      %2480 = vmatprep.subr.mxu0 0.0
      %2481 = vmatpush1.msra.mxu0 0.0
      %2482 = vmatprep.subr.mxu0 0.0
      %2483 = vmatpush1.msra.mxu0 0.0
      %2484 = vmatprep.subr.mxu0 0.0
      %2485 = vmatpush1.msra.mxu0 0.0
      %2486 = vmatprep.subr.mxu0 0.0
      %2487 = vmatpush1.msra.mxu0 0.0
      %2488 = vmatprep.subr.mxu0 0.0
      %2489 = vmatpush1.msra.mxu0 0.0
      %2490 = vmatprep.subr.mxu0 0.0
      %2491 = vmatpush1.msra.mxu0 0.0
      %2492 = vmatprep.subr.mxu0 0.0
      %2493 = vmatpush1.msra.mxu0 0.0
      %2494 = vmatprep.subr.mxu0 0.0
      %2495 = vmatpush1.msra.mxu0 0.0
      %2496 = vmatprep.subr.mxu0 0.0
      %2497 = vmatpush1.msra.mxu0 0.0
      %2498 = vmatprep.subr.mxu0 0.0
      %2499 = vmatpush1.msra.mxu0 0.0
      %2500 = vmatprep.subr.mxu0 0.0
      %2501 = vmatpush1.msra.mxu0 0.0
      %2502 = vmatprep.subr.mxu0 0.0
      %2503 = vmatpush1.msra.mxu0 0.0
      %2504 = vmatprep.subr.mxu0 0.0
      %2505 = vmatpush1.msra.mxu0 0.0
      %2506 = vmatprep.subr.mxu0 0.0
      %2507 = vmatpush1.msra.mxu0 0.0
      %2508 = vmatprep.subr.mxu0 0.0
      %2509 = vmatpush1.msra.mxu0 0.0
      %2510 = vmatprep.subr.mxu0 0.0
      %2511 = vmatpush1.msra.mxu0 0.0
      %2512 = vmatprep.subr.mxu0 0.0
      %2513 = vmatpush1.msra.mxu0 0.0
      %2514 = vmatprep.subr.mxu0 0.0
      %2515 = vmatpush1.msra.mxu0 0.0
      %2516 = vmatprep.subr.mxu0 0.0
      %2517 = vmatpush1.msra.mxu0 0.0
      %2518 = vmatprep.subr.mxu0 0.0
      %2519 = vmatpush1.msra.mxu0 0.0
      %2520 = vmatprep.subr.mxu0 0.0
      %2521 = vmatpush1.msra.mxu0 0.0
      %2522 = vmatprep.subr.mxu0 0.0
      %2523 = vmatpush1.msra.mxu0 0.0
      %2524 = vmatprep.subr.mxu0 0.0
      %2525 = vmatpush1.msra.mxu0 0.0
      %2526 = vmatprep.subr.mxu0 0.0
      %2527 = vmatpush1.msra.mxu0 0.0
      %2528 = vmatprep.subr.mxu0 0.0
      %2529 = vmatpush1.msra.mxu0 0.0
      %2530 = vmatprep.subr.mxu0 0.0
      %2531 = vmatpush1.msra.mxu0 0.0
      %2532 = vmatprep.mubr.f32.mxu0 0.0
      %2533 = vmatmul.mubr.f32.gmra.mrb[0].mxu0 %v2370
      %v2534 = vpop.f32.mrb[0].mxu0
      %v2535 = vadd.f32 0.0, %v2534
      %v2536 = vpop.f32.mrb[0].mxu0
      %2537 = vmatprep.mubr.f32.mxu0 0.0
      %2538 = vmatmul.mubr.f32.gmra.mrb[0].mxu0 %v2373
      %v2539 = vpop.f32.mrb[0].mxu0
      %v2540 = vadd.f32 0.0, %v2539
      %v2541 = vpop.f32.mrb[0].mxu0
      %2542 = vmatprep.mubr.f32.mxu0 0.0
      %2543 = vmatmul.mubr.f32.gmra.mrb[0].mxu0 %v2376
      %v2544 = vpop.f32.mrb[0].mxu0
      %v2545 = vadd.f32 0.0, %v2544
      %v2546 = vpop.f32.mrb[0].mxu0
      %2547 = vmatprep.mubr.f32.mxu0 0.0
      %2548 = vmatmul.mubr.f32.gmra.mrb[0].mxu0 %v2379
      %v2549 = vpop.f32.mrb[0].mxu0
      %v2550 = vadd.f32 0.0, %v2549
      %v2551 = vpop.f32.mrb[0].mxu0
      %2552 = vmatprep.mubr.f32.mxu0 0.0
      %2553 = vmatmul.mubr.f32.gmra.mrb[0].mxu0 %v2382
      %v2554 = vpop.f32.mrb[0].mxu0
      %v2555 = vadd.f32 0.0, %v2554
      %v2556 = vpop.f32.mrb[0].mxu0
      %2557 = vmatprep.mubr.f32.mxu0 0.0
      %2558 = vmatmul.mubr.f32.gmra.mrb[0].mxu0 %v2385
      %v2559 = vpop.f32.mrb[0].mxu0
      %v2560 = vadd.f32 0.0, %v2559
      %v2561 = vpop.f32.mrb[0].mxu0
      %2562 = vmatprep.mubr.f32.mxu0 0.0
      %2563 = vmatmul.mubr.f32.gmra.mrb[0].mxu0 %v2388
      %v2564 = vpop.f32.mrb[0].mxu0
      %v2565 = vadd.f32 0.0, %v2564
      %v2566 = vpop.f32.mrb[0].mxu0
      %2567 = vmatprep.mubr.f32.mxu0 0.0
      %2568 = vmatmul.mubr.f32.gmra.mrb[0].mxu0 %v2391
      %v2569 = vpop.f32.mrb[0].mxu0
      %v2570 = vadd.f32 0.0, %v2569
      %v2571 = vpop.f32.mrb[0].mxu0
      %2572 = vmatprep.mubr.f32.mxu0 0.0
      %2573 = vmatmul.mubr.f32.gmra.mrb[0].mxu0 %v2394
      %v2574 = vpop.f32.mrb[0].mxu0
      %v2575 = vadd.f32 0.0, %v2574
      %v2576 = vpop.f32.mrb[0].mxu0
      %2577 = vmatprep.mubr.f32.mxu0 0.0
      %2578 = vmatmul.mubr.f32.gmra.mrb[0].mxu0 %v2397
      %v2579 = vpop.f32.mrb[0].mxu0
      %v2580 = vadd.f32 0.0, %v2579
      %v2581 = vpop.f32.mrb[0].mxu0
      %2582 = vmatprep.mubr.f32.mxu0 0.0
      %2583 = vmatmul.mubr.f32.gmra.mrb[0].mxu0 %v2400
      %v2584 = vpop.f32.mrb[0].mxu0
      %v2585 = vadd.f32 0.0, %v2584
      %v2586 = vpop.f32.mrb[0].mxu0
      %2587 = vmatprep.mubr.f32.mxu0 0.0
      %2588 = vmatmul.mubr.f32.gmra.mrb[0].mxu0 %v2403
      %v2589 = vpop.f32.mrb[0].mxu0
      %v2590 = vadd.f32 0.0, %v2589
      %v2591 = vpop.f32.mrb[0].mxu0
      %2592 = vmatprep.mubr.f32.mxu0 0.0
      %2593 = vmatmul.mubr.f32.gmra.mrb[0].mxu0 %v2406
      %v2594 = vpop.f32.mrb[0].mxu0
      %v2595 = vadd.f32 0.0, %v2594
      %v2596 = vpop.f32.mrb[0].mxu0
      %2597 = vmatprep.mubr.f32.mxu0 0.0
      %2598 = vmatmul.mubr.f32.gmra.mrb[0].mxu0 %v2409
      %v2599 = vpop.f32.mrb[0].mxu0
      %v2600 = vadd.f32 0.0, %v2599
      %v2601 = vpop.f32.mrb[0].mxu0
      %2602 = vmatprep.mubr.f32.mxu0 0.0
      %2603 = vmatmul.mubr.f32.gmra.mrb[0].mxu0 %v2412
      %v2604 = vpop.f32.mrb[0].mxu0
      %v2605 = vadd.f32 0.0, %v2604
      %v2606 = vpop.f32.mrb[0].mxu0
      %2607 = vmatprep.mubr.f32.mxu0 0.0
      %2608 = vmatmul.mubr.f32.gmra.mrb[0].mxu0 %v2415
      %v2609 = vpop.f32.mrb[0].mxu0
      %v2610 = vadd.f32 0.0, %v2609
      %v2611 = vpop.f32.mrb[0].mxu0
      %2612 = vmatprep.mubr.f32.mxu0 0.0
      %2613 = vmatmul.mubr.f32.gmra.mrb[0].mxu0 %v2418
      %v2614 = vpop.f32.mrb[0].mxu0
      %v2615 = vadd.f32 0.0, %v2614
      %v2616 = vpop.f32.mrb[0].mxu0
      %2617 = vmatprep.mubr.f32.mxu0 0.0
      %2618 = vmatmul.mubr.f32.gmra.mrb[0].mxu0 %v2421
      %v2619 = vpop.f32.mrb[0].mxu0
      %v2620 = vadd.f32 0.0, %v2619
      %v2621 = vpop.f32.mrb[0].mxu0
      %2622 = vmatprep.mubr.f32.mxu0 0.0
      %2623 = vmatmul.mubr.f32.gmra.mrb[0].mxu0 %v2424
      %v2624 = vpop.f32.mrb[0].mxu0
      %v2625 = vadd.f32 0.0, %v2624
      %v2626 = vpop.f32.mrb[0].mxu0
      %2627 = vmatprep.mubr.f32.mxu0 0.0
      %2628 = vmatmul.mubr.f32.gmra.mrb[0].mxu0 %v2427
      %v2629 = vpop.f32.mrb[0].mxu0
      %v2630 = vadd.f32 0.0, %v2629
      %v2631 = vpop.f32.mrb[0].mxu0
      %2632 = vmatprep.mubr.f32.mxu0 0.0
      %2633 = vmatmul.mubr.f32.gmra.mrb[0].mxu0 %v2430
      %v2634 = vpop.f32.mrb[0].mxu0
      %v2635 = vadd.f32 0.0, %v2634
      %v2636 = vpop.f32.mrb[0].mxu0
      %2637 = vmatprep.mubr.f32.mxu0 0.0
      %2638 = vmatmul.mubr.f32.gmra.mrb[0].mxu0 %v2433
      %v2639 = vpop.f32.mrb[0].mxu0
      %v2640 = vadd.f32 0.0, %v2639
      %v2641 = vpop.f32.mrb[0].mxu0
      %2642 = vmatprep.mubr.f32.mxu0 0.0
      %2643 = vmatmul.mubr.f32.gmra.mrb[0].mxu0 %v2436
      %v2644 = vpop.f32.mrb[0].mxu0
      %v2645 = vadd.f32 0.0, %v2644
      %v2646 = vpop.f32.mrb[0].mxu0
      %2647 = vmatprep.mubr.f32.mxu0 0.0
      %2648 = vmatmul.mubr.f32.gmra.mrb[0].mxu0 %v2439
      %v2649 = vpop.f32.mrb[0].mxu0
      %v2650 = vadd.f32 0.0, %v2649
      %v2651 = vpop.f32.mrb[0].mxu0
      %2652 = vmatprep.mubr.f32.mxu0 0.0
      %2653 = vmatmul.mubr.f32.gmra.mrb[0].mxu0 %v2442
      %v2654 = vpop.f32.mrb[0].mxu0
      %v2655 = vadd.f32 0.0, %v2654
      %v2656 = vpop.f32.mrb[0].mxu0
      %2657 = vmatprep.mubr.f32.mxu0 0.0
      %2658 = vmatmul.mubr.f32.gmra.mrb[0].mxu0 %v2445
      %v2659 = vpop.f32.mrb[0].mxu0
      %v2660 = vadd.f32 0.0, %v2659
      %v2661 = vpop.f32.mrb[0].mxu0
      %2662 = vmatprep.mubr.f32.mxu0 0.0
      %2663 = vmatmul.mubr.f32.gmra.mrb[0].mxu0 %v2448
      %v2664 = vpop.f32.mrb[0].mxu0
      %v2665 = vadd.f32 0.0, %v2664
      %v2666 = vpop.f32.mrb[0].mxu0
      %2667 = vmatprep.mubr.f32.mxu0 0.0
      %2668 = vmatmul.mubr.f32.gmra.mrb[0].mxu0 %v2451
      %v2669 = vpop.f32.mrb[0].mxu0
      %v2670 = vadd.f32 0.0, %v2669
      %v2671 = vpop.f32.mrb[0].mxu0
      %2672 = vmatprep.mubr.f32.mxu0 0.0
      %2673 = vmatmul.mubr.f32.gmra.mrb[0].mxu0 %v2454
      %v2674 = vpop.f32.mrb[0].mxu0
      %v2675 = vadd.f32 0.0, %v2674
      %v2676 = vpop.f32.mrb[0].mxu0
      %2677 = vmatprep.mubr.f32.mxu0 0.0
      %2678 = vmatmul.mubr.f32.gmra.mrb[0].mxu0 %v2457
      %v2679 = vpop.f32.mrb[0].mxu0
      %v2680 = vadd.f32 0.0, %v2679
      %v2681 = vpop.f32.mrb[0].mxu0
      %2682 = vmatprep.mubr.f32.mxu0 0.0
      %2683 = vmatmul.mubr.f32.gmra.mrb[0].mxu0 %v2460
      %v2684 = vpop.f32.mrb[0].mxu0
      %v2685 = vadd.f32 0.0, %v2684
      %v2686 = vpop.f32.mrb[0].mxu0
      %2687 = vmatprep.mubr.f32.mxu0 0.0
      %2688 = vmatmul.mubr.f32.gmra.mrb[0].mxu0 %v2463
      %v2689 = vpop.f32.mrb[0].mxu0
      %v2690 = vadd.f32 0.0, %v2689
      %v2691 = vpop.f32.mrb[0].mxu0
      %2692 = vdwg.mxu0
      %v2693 = vadd.f32 %v2303, %v2535
      %v2694 = vadd.f32 %v2304, %v2540
      %v2695 = vadd.f32 %v2305, %v2545
      %v2696 = vadd.f32 %v2306, %v2550
      %v2697 = vadd.f32 %v2307, %v2555
      %v2698 = vadd.f32 %v2308, %v2560
      %v2699 = vadd.f32 %v2309, %v2565
      %v2700 = vadd.f32 %v2310, %v2570
      %v2701 = vadd.f32 %v2311, %v2575
      %v2702 = vadd.f32 %v2312, %v2580
      %v2703 = vadd.f32 %v2313, %v2585
      %v2704 = vadd.f32 %v2314, %v2590
      %v2705 = vadd.f32 %v2315, %v2595
      %v2706 = vadd.f32 %v2316, %v2600
      %v2707 = vadd.f32 %v2317, %v2605
      %v2708 = vadd.f32 %v2318, %v2610
      %v2709 = vadd.f32 %v2319, %v2615
      %v2710 = vadd.f32 %v2320, %v2620
      %v2711 = vadd.f32 %v2321, %v2625
      %v2712 = vadd.f32 %v2322, %v2630
      %v2713 = vadd.f32 %v2323, %v2635
      %v2714 = vadd.f32 %v2324, %v2640
      %v2715 = vadd.f32 %v2325, %v2645
      %v2716 = vadd.f32 %v2326, %v2650
      %v2717 = vadd.f32 %v2327, %v2655
      %v2718 = vadd.f32 %v2328, %v2660
      %v2719 = vadd.f32 %v2329, %v2665
      %v2720 = vadd.f32 %v2330, %v2670
      %v2721 = vadd.f32 %v2331, %v2675
      %v2722 = vadd.f32 %v2332, %v2680
      %v2723 = vadd.f32 %v2333, %v2685
      %v2724 = vadd.f32 %v2334, %v2690
      %s2725 = scalar_lea.vmem [#allocation2], 48
      %v2726 = vld [vmem:[%s2725] sm:$0xff]
      %v2727 = vld [vmem:[%s2725 + $0x8] sm:$0xff]
      %v2728 = vld [vmem:[%s2725 + $0x18] sm:$0xff]
      %v2729 = vld [vmem:[%s2725 + $0x20] sm:$0xff]
      %v2730 = vld [vmem:[%s2725 + $0x30] sm:$0xff]
      %v2731 = vld [vmem:[%s2725 + $0x38] sm:$0xff]
      %v2732 = vld [vmem:[%s2725 + $0x48] sm:$0xff]
      %v2733 = vld [vmem:[%s2725 + $0x50] sm:$0xff]
      %v2734 = vld [vmem:[%s2725 + $0x60] sm:$0xff]
      %v2735 = vld [vmem:[%s2725 + $0x68] sm:$0xff]
      %v2736 = vld [vmem:[%s2725 + $0x78] sm:$0xff]
      %v2737 = vld [vmem:[%s2725 + $0x80] sm:$0xff]
      %v2738 = vld [vmem:[%s2725 + $0x90] sm:$0xff]
      %v2739 = vld [vmem:[%s2725 + $0x98] sm:$0xff]
      %v2740 = vld [vmem:[%s2725 + $0xa8] sm:$0xff]
      %v2741 = vld [vmem:[%s2725 + $0xb0] sm:$0xff]
      %v2742 = vld [vmem:[%s2725 + $0xc0] sm:$0xff]
      %v2743 = vld [vmem:[%s2725 + $0xc8] sm:$0xff]
      %v2744 = vld [vmem:[%s2725 + $0xd8] sm:$0xff]
      %v2745 = vld [vmem:[%s2725 + $0xe0] sm:$0xff]
      %v2746 = vld [vmem:[%s2725 + $0xf0] sm:$0xff]
      %v2747 = vld [vmem:[%s2725 + $0xf8] sm:$0xff]
      %v2748 = vld [vmem:[%s2725 + $0x108] sm:$0xff]
      %v2749 = vld [vmem:[%s2725 + $0x110] sm:$0xff]
      %v2750 = vld [vmem:[%s2725 + $0x120] sm:$0xff]
      %v2751 = vld [vmem:[%s2725 + $0x128] sm:$0xff]
      %v2752 = vld [vmem:[%s2725 + $0x138] sm:$0xff]
      %v2753 = vld [vmem:[%s2725 + $0x140] sm:$0xff]
      %v2754 = vld [vmem:[%s2725 + $0x150] sm:$0xff]
      %v2755 = vld [vmem:[%s2725 + $0x158] sm:$0xff]
      %v2756 = vld [vmem:[%s2725 + $0x168] sm:$0xff]
      %v2757 = vld [vmem:[%s2725 + $0x170] sm:$0xff]
      %s2758 = scalar_lea.vmem %s1, 24
      %v2759 = vld [vmem:[%s2758] sm:$0xf]
      %v2761 = vsel %vm225, %v2726, 0
      %v2764 = vsel %vm225, %v2727, 0
      %v2767 = vsel %vm225, %v2728, 0
      %v2770 = vsel %vm225, %v2729, 0
      %v2773 = vsel %vm225, %v2730, 0
      %v2776 = vsel %vm225, %v2731, 0
      %v2779 = vsel %vm225, %v2732, 0
      %v2782 = vsel %vm225, %v2733, 0
      %v2785 = vsel %vm225, %v2734, 0
      %v2788 = vsel %vm225, %v2735, 0
      %v2791 = vsel %vm225, %v2736, 0
      %v2794 = vsel %vm225, %v2737, 0
      %v2797 = vsel %vm225, %v2738, 0
      %v2800 = vsel %vm225, %v2739, 0
      %v2803 = vsel %vm225, %v2740, 0
      %v2806 = vsel %vm225, %v2741, 0
      %v2809 = vsel %vm225, %v2742, 0
      %v2812 = vsel %vm225, %v2743, 0
      %v2815 = vsel %vm225, %v2744, 0
      %v2818 = vsel %vm225, %v2745, 0
      %v2821 = vsel %vm225, %v2746, 0
      %v2824 = vsel %vm225, %v2747, 0
      %v2827 = vsel %vm225, %v2748, 0
      %v2830 = vsel %vm225, %v2749, 0
      %v2833 = vsel %vm225, %v2750, 0
      %v2836 = vsel %vm225, %v2751, 0
      %v2839 = vsel %vm225, %v2752, 0
      %v2842 = vsel %vm225, %v2753, 0
      %v2845 = vsel %vm225, %v2754, 0
      %v2848 = vsel %vm225, %v2755, 0
      %v2851 = vsel %vm225, %v2756, 0
      %v2854 = vsel %vm225, %v2757, 0
      %v2857 = vsel %vm514, %v2759, 0
      %2859 = vmatprep.subr.mxu0 0.0
      %2860 = vmatpush1.msra.mxu0 %v2857
      %2861 = vmatprep.subr.mxu0 0.0
      %2862 = vmatpush1.msra.mxu0 0.0
      %2863 = vmatprep.subr.mxu0 0.0
      %2864 = vmatpush1.msra.mxu0 0.0
      %2865 = vmatprep.subr.mxu0 0.0
      %2866 = vmatpush1.msra.mxu0 0.0
      %2867 = vmatprep.subr.mxu0 0.0
      %2868 = vmatpush1.msra.mxu0 0.0
      %2869 = vmatprep.subr.mxu0 0.0
      %2870 = vmatpush1.msra.mxu0 0.0
      %2871 = vmatprep.subr.mxu0 0.0
      %2872 = vmatpush1.msra.mxu0 0.0
      %2873 = vmatprep.subr.mxu0 0.0
      %2874 = vmatpush1.msra.mxu0 0.0
      %2875 = vmatprep.subr.mxu0 0.0
      %2876 = vmatpush1.msra.mxu0 0.0
      %2877 = vmatprep.subr.mxu0 0.0
      %2878 = vmatpush1.msra.mxu0 0.0
      %2879 = vmatprep.subr.mxu0 0.0
      %2880 = vmatpush1.msra.mxu0 0.0
      %2881 = vmatprep.subr.mxu0 0.0
      %2882 = vmatpush1.msra.mxu0 0.0
      %2883 = vmatprep.subr.mxu0 0.0
      %2884 = vmatpush1.msra.mxu0 0.0
      %2885 = vmatprep.subr.mxu0 0.0
      %2886 = vmatpush1.msra.mxu0 0.0
      %2887 = vmatprep.subr.mxu0 0.0
      %2888 = vmatpush1.msra.mxu0 0.0
      %2889 = vmatprep.subr.mxu0 0.0
      %2890 = vmatpush1.msra.mxu0 0.0
      %2891 = vmatprep.subr.mxu0 0.0
      %2892 = vmatpush1.msra.mxu0 0.0
      %2893 = vmatprep.subr.mxu0 0.0
      %2894 = vmatpush1.msra.mxu0 0.0
      %2895 = vmatprep.subr.mxu0 0.0
      %2896 = vmatpush1.msra.mxu0 0.0
      %2897 = vmatprep.subr.mxu0 0.0
      %2898 = vmatpush1.msra.mxu0 0.0
      %2899 = vmatprep.subr.mxu0 0.0
      %2900 = vmatpush1.msra.mxu0 0.0
      %2901 = vmatprep.subr.mxu0 0.0
      %2902 = vmatpush1.msra.mxu0 0.0
      %2903 = vmatprep.subr.mxu0 0.0
      %2904 = vmatpush1.msra.mxu0 0.0
      %2905 = vmatprep.subr.mxu0 0.0
      %2906 = vmatpush1.msra.mxu0 0.0
      %2907 = vmatprep.subr.mxu0 0.0
      %2908 = vmatpush1.msra.mxu0 0.0
      %2909 = vmatprep.subr.mxu0 0.0
      %2910 = vmatpush1.msra.mxu0 0.0
      %2911 = vmatprep.subr.mxu0 0.0
      %2912 = vmatpush1.msra.mxu0 0.0
      %2913 = vmatprep.subr.mxu0 0.0
      %2914 = vmatpush1.msra.mxu0 0.0
      %2915 = vmatprep.subr.mxu0 0.0
      %2916 = vmatpush1.msra.mxu0 0.0
      %2917 = vmatprep.subr.mxu0 0.0
      %2918 = vmatpush1.msra.mxu0 0.0
      %2919 = vmatprep.subr.mxu0 0.0
      %2920 = vmatpush1.msra.mxu0 0.0
      %2921 = vmatprep.subr.mxu0 0.0
      %2922 = vmatpush1.msra.mxu0 0.0
      %2923 = vmatprep.mubr.f32.mxu0 0.0
      %2924 = vmatmul.mubr.f32.gmra.mrb[0].mxu0 %v2761
      %v2925 = vpop.f32.mrb[0].mxu0
      %v2926 = vadd.f32 0.0, %v2925
      %v2927 = vpop.f32.mrb[0].mxu0
      %2928 = vmatprep.mubr.f32.mxu0 0.0
      %2929 = vmatmul.mubr.f32.gmra.mrb[0].mxu0 %v2764
      %v2930 = vpop.f32.mrb[0].mxu0
      %v2931 = vadd.f32 0.0, %v2930
      %v2932 = vpop.f32.mrb[0].mxu0
      %2933 = vmatprep.mubr.f32.mxu0 0.0
      %2934 = vmatmul.mubr.f32.gmra.mrb[0].mxu0 %v2767
      %v2935 = vpop.f32.mrb[0].mxu0
      %v2936 = vadd.f32 0.0, %v2935
      %v2937 = vpop.f32.mrb[0].mxu0
      %2938 = vmatprep.mubr.f32.mxu0 0.0
      %2939 = vmatmul.mubr.f32.gmra.mrb[0].mxu0 %v2770
      %v2940 = vpop.f32.mrb[0].mxu0
      %v2941 = vadd.f32 0.0, %v2940
      %v2942 = vpop.f32.mrb[0].mxu0
      %2943 = vmatprep.mubr.f32.mxu0 0.0
      %2944 = vmatmul.mubr.f32.gmra.mrb[0].mxu0 %v2773
      %v2945 = vpop.f32.mrb[0].mxu0
      %v2946 = vadd.f32 0.0, %v2945
      %v2947 = vpop.f32.mrb[0].mxu0
      %2948 = vmatprep.mubr.f32.mxu0 0.0
      %2949 = vmatmul.mubr.f32.gmra.mrb[0].mxu0 %v2776
      %v2950 = vpop.f32.mrb[0].mxu0
      %v2951 = vadd.f32 0.0, %v2950
      %v2952 = vpop.f32.mrb[0].mxu0
      %2953 = vmatprep.mubr.f32.mxu0 0.0
      %2954 = vmatmul.mubr.f32.gmra.mrb[0].mxu0 %v2779
      %v2955 = vpop.f32.mrb[0].mxu0
      %v2956 = vadd.f32 0.0, %v2955
      %v2957 = vpop.f32.mrb[0].mxu0
      %2958 = vmatprep.mubr.f32.mxu0 0.0
      %2959 = vmatmul.mubr.f32.gmra.mrb[0].mxu0 %v2782
      %v2960 = vpop.f32.mrb[0].mxu0
      %v2961 = vadd.f32 0.0, %v2960
      %v2962 = vpop.f32.mrb[0].mxu0
      %2963 = vmatprep.mubr.f32.mxu0 0.0
      %2964 = vmatmul.mubr.f32.gmra.mrb[0].mxu0 %v2785
      %v2965 = vpop.f32.mrb[0].mxu0
      %v2966 = vadd.f32 0.0, %v2965
      %v2967 = vpop.f32.mrb[0].mxu0
      %2968 = vmatprep.mubr.f32.mxu0 0.0
      %2969 = vmatmul.mubr.f32.gmra.mrb[0].mxu0 %v2788
      %v2970 = vpop.f32.mrb[0].mxu0
      %v2971 = vadd.f32 0.0, %v2970
      %v2972 = vpop.f32.mrb[0].mxu0
      %2973 = vmatprep.mubr.f32.mxu0 0.0
      %2974 = vmatmul.mubr.f32.gmra.mrb[0].mxu0 %v2791
      %v2975 = vpop.f32.mrb[0].mxu0
      %v2976 = vadd.f32 0.0, %v2975
      %v2977 = vpop.f32.mrb[0].mxu0
      %2978 = vmatprep.mubr.f32.mxu0 0.0
      %2979 = vmatmul.mubr.f32.gmra.mrb[0].mxu0 %v2794
      %v2980 = vpop.f32.mrb[0].mxu0
      %v2981 = vadd.f32 0.0, %v2980
      %v2982 = vpop.f32.mrb[0].mxu0
      %2983 = vmatprep.mubr.f32.mxu0 0.0
      %2984 = vmatmul.mubr.f32.gmra.mrb[0].mxu0 %v2797
      %v2985 = vpop.f32.mrb[0].mxu0
      %v2986 = vadd.f32 0.0, %v2985
      %v2987 = vpop.f32.mrb[0].mxu0
      %2988 = vmatprep.mubr.f32.mxu0 0.0
      %2989 = vmatmul.mubr.f32.gmra.mrb[0].mxu0 %v2800
      %v2990 = vpop.f32.mrb[0].mxu0
      %v2991 = vadd.f32 0.0, %v2990
      %v2992 = vpop.f32.mrb[0].mxu0
      %2993 = vmatprep.mubr.f32.mxu0 0.0
      %2994 = vmatmul.mubr.f32.gmra.mrb[0].mxu0 %v2803
      %v2995 = vpop.f32.mrb[0].mxu0
      %v2996 = vadd.f32 0.0, %v2995
      %v2997 = vpop.f32.mrb[0].mxu0
      %2998 = vmatprep.mubr.f32.mxu0 0.0
      %2999 = vmatmul.mubr.f32.gmra.mrb[0].mxu0 %v2806
      %v3000 = vpop.f32.mrb[0].mxu0
      %v3001 = vadd.f32 0.0, %v3000
      %v3002 = vpop.f32.mrb[0].mxu0
      %3003 = vmatprep.mubr.f32.mxu0 0.0
      %3004 = vmatmul.mubr.f32.gmra.mrb[0].mxu0 %v2809
      %v3005 = vpop.f32.mrb[0].mxu0
      %v3006 = vadd.f32 0.0, %v3005
      %v3007 = vpop.f32.mrb[0].mxu0
      %3008 = vmatprep.mubr.f32.mxu0 0.0
      %3009 = vmatmul.mubr.f32.gmra.mrb[0].mxu0 %v2812
      %v3010 = vpop.f32.mrb[0].mxu0
      %v3011 = vadd.f32 0.0, %v3010
      %v3012 = vpop.f32.mrb[0].mxu0
      %3013 = vmatprep.mubr.f32.mxu0 0.0
      %3014 = vmatmul.mubr.f32.gmra.mrb[0].mxu0 %v2815
      %v3015 = vpop.f32.mrb[0].mxu0
      %v3016 = vadd.f32 0.0, %v3015
      %v3017 = vpop.f32.mrb[0].mxu0
      %3018 = vmatprep.mubr.f32.mxu0 0.0
      %3019 = vmatmul.mubr.f32.gmra.mrb[0].mxu0 %v2818
      %v3020 = vpop.f32.mrb[0].mxu0
      %v3021 = vadd.f32 0.0, %v3020
      %v3022 = vpop.f32.mrb[0].mxu0
      %3023 = vmatprep.mubr.f32.mxu0 0.0
      %3024 = vmatmul.mubr.f32.gmra.mrb[0].mxu0 %v2821
      %v3025 = vpop.f32.mrb[0].mxu0
      %v3026 = vadd.f32 0.0, %v3025
      %v3027 = vpop.f32.mrb[0].mxu0
      %3028 = vmatprep.mubr.f32.mxu0 0.0
      %3029 = vmatmul.mubr.f32.gmra.mrb[0].mxu0 %v2824
      %v3030 = vpop.f32.mrb[0].mxu0
      %v3031 = vadd.f32 0.0, %v3030
      %v3032 = vpop.f32.mrb[0].mxu0
      %3033 = vmatprep.mubr.f32.mxu0 0.0
      %3034 = vmatmul.mubr.f32.gmra.mrb[0].mxu0 %v2827
      %v3035 = vpop.f32.mrb[0].mxu0
      %v3036 = vadd.f32 0.0, %v3035
      %v3037 = vpop.f32.mrb[0].mxu0
      %3038 = vmatprep.mubr.f32.mxu0 0.0
      %3039 = vmatmul.mubr.f32.gmra.mrb[0].mxu0 %v2830
      %v3040 = vpop.f32.mrb[0].mxu0
      %v3041 = vadd.f32 0.0, %v3040
      %v3042 = vpop.f32.mrb[0].mxu0
      %3043 = vmatprep.mubr.f32.mxu0 0.0
      %3044 = vmatmul.mubr.f32.gmra.mrb[0].mxu0 %v2833
      %v3045 = vpop.f32.mrb[0].mxu0
      %v3046 = vadd.f32 0.0, %v3045
      %v3047 = vpop.f32.mrb[0].mxu0
      %3048 = vmatprep.mubr.f32.mxu0 0.0
      %3049 = vmatmul.mubr.f32.gmra.mrb[0].mxu0 %v2836
      %v3050 = vpop.f32.mrb[0].mxu0
      %v3051 = vadd.f32 0.0, %v3050
      %v3052 = vpop.f32.mrb[0].mxu0
      %3053 = vmatprep.mubr.f32.mxu0 0.0
      %3054 = vmatmul.mubr.f32.gmra.mrb[0].mxu0 %v2839
      %v3055 = vpop.f32.mrb[0].mxu0
      %v3056 = vadd.f32 0.0, %v3055
      %v3057 = vpop.f32.mrb[0].mxu0
      %3058 = vmatprep.mubr.f32.mxu0 0.0
      %3059 = vmatmul.mubr.f32.gmra.mrb[0].mxu0 %v2842
      %v3060 = vpop.f32.mrb[0].mxu0
      %v3061 = vadd.f32 0.0, %v3060
      %v3062 = vpop.f32.mrb[0].mxu0
      %3063 = vmatprep.mubr.f32.mxu0 0.0
      %3064 = vmatmul.mubr.f32.gmra.mrb[0].mxu0 %v2845
      %v3065 = vpop.f32.mrb[0].mxu0
      %v3066 = vadd.f32 0.0, %v3065
      %v3067 = vpop.f32.mrb[0].mxu0
      %3068 = vmatprep.mubr.f32.mxu0 0.0
      %3069 = vmatmul.mubr.f32.gmra.mrb[0].mxu0 %v2848
      %v3070 = vpop.f32.mrb[0].mxu0
      %v3071 = vadd.f32 0.0, %v3070
      %v3072 = vpop.f32.mrb[0].mxu0
      %3073 = vmatprep.mubr.f32.mxu0 0.0
      %3074 = vmatmul.mubr.f32.gmra.mrb[0].mxu0 %v2851
      %v3075 = vpop.f32.mrb[0].mxu0
      %v3076 = vadd.f32 0.0, %v3075
      %v3077 = vpop.f32.mrb[0].mxu0
      %3078 = vmatprep.mubr.f32.mxu0 0.0
      %3079 = vmatmul.mubr.f32.gmra.mrb[0].mxu0 %v2854
      %v3080 = vpop.f32.mrb[0].mxu0
      %v3081 = vadd.f32 0.0, %v3080
      %v3082 = vpop.f32.mrb[0].mxu0
      %3083 = vdwg.mxu0
      %v3084 = vadd.f32 %v2693, %v2926
      %v3085 = vadd.f32 %v2694, %v2931
      %v3086 = vadd.f32 %v2695, %v2936
      %v3087 = vadd.f32 %v2696, %v2941
      %v3088 = vadd.f32 %v2697, %v2946
      %v3089 = vadd.f32 %v2698, %v2951
      %v3090 = vadd.f32 %v2699, %v2956
      %v3091 = vadd.f32 %v2700, %v2961
      %v3092 = vadd.f32 %v2701, %v2966
      %v3093 = vadd.f32 %v2702, %v2971
      %v3094 = vadd.f32 %v2703, %v2976
      %v3095 = vadd.f32 %v2704, %v2981
      %v3096 = vadd.f32 %v2705, %v2986
      %v3097 = vadd.f32 %v2706, %v2991
      %v3098 = vadd.f32 %v2707, %v2996
      %v3099 = vadd.f32 %v2708, %v3001
      %v3100 = vadd.f32 %v2709, %v3006
      %v3101 = vadd.f32 %v2710, %v3011
      %v3102 = vadd.f32 %v2711, %v3016
      %v3103 = vadd.f32 %v2712, %v3021
      %v3104 = vadd.f32 %v2713, %v3026
      %v3105 = vadd.f32 %v2714, %v3031
      %v3106 = vadd.f32 %v2715, %v3036
      %v3107 = vadd.f32 %v2716, %v3041
      %v3108 = vadd.f32 %v2717, %v3046
      %v3109 = vadd.f32 %v2718, %v3051
      %v3110 = vadd.f32 %v2719, %v3056
      %v3111 = vadd.f32 %v2720, %v3061
      %v3112 = vadd.f32 %v2721, %v3066
      %v3113 = vadd.f32 %v2722, %v3071
      %v3114 = vadd.f32 %v2723, %v3076
      %v3115 = vadd.f32 %v2724, %v3081
      %v3116 = vld [vmem:[%s2725 + $0x1] sm:$0xff]
      %v3117 = vld [vmem:[%s2725 + $0x9] sm:$0xff]
      %v3118 = vld [vmem:[%s2725 + $0x19] sm:$0xff]
      %v3119 = vld [vmem:[%s2725 + $0x21] sm:$0xff]
      %v3120 = vld [vmem:[%s2725 + $0x31] sm:$0xff]
      %v3121 = vld [vmem:[%s2725 + $0x39] sm:$0xff]
      %v3122 = vld [vmem:[%s2725 + $0x49] sm:$0xff]
      %v3123 = vld [vmem:[%s2725 + $0x51] sm:$0xff]
      %v3124 = vld [vmem:[%s2725 + $0x61] sm:$0xff]
      %v3125 = vld [vmem:[%s2725 + $0x69] sm:$0xff]
      %v3126 = vld [vmem:[%s2725 + $0x79] sm:$0xff]
      %v3127 = vld [vmem:[%s2725 + $0x81] sm:$0xff]
      %v3128 = vld [vmem:[%s2725 + $0x91] sm:$0xff]
      %v3129 = vld [vmem:[%s2725 + $0x99] sm:$0xff]
      %v3130 = vld [vmem:[%s2725 + $0xa9] sm:$0xff]
      %v3131 = vld [vmem:[%s2725 + $0xb1] sm:$0xff]
      %v3132 = vld [vmem:[%s2725 + $0xc1] sm:$0xff]
      %v3133 = vld [vmem:[%s2725 + $0xc9] sm:$0xff]
      %v3134 = vld [vmem:[%s2725 + $0xd9] sm:$0xff]
      %v3135 = vld [vmem:[%s2725 + $0xe1] sm:$0xff]
      %v3136 = vld [vmem:[%s2725 + $0xf1] sm:$0xff]
      %v3137 = vld [vmem:[%s2725 + $0xf9] sm:$0xff]
      %v3138 = vld [vmem:[%s2725 + $0x109] sm:$0xff]
      %v3139 = vld [vmem:[%s2725 + $0x111] sm:$0xff]
      %v3140 = vld [vmem:[%s2725 + $0x121] sm:$0xff]
      %v3141 = vld [vmem:[%s2725 + $0x129] sm:$0xff]
      %v3142 = vld [vmem:[%s2725 + $0x139] sm:$0xff]
      %v3143 = vld [vmem:[%s2725 + $0x141] sm:$0xff]
      %v3144 = vld [vmem:[%s2725 + $0x151] sm:$0xff]
      %v3145 = vld [vmem:[%s2725 + $0x159] sm:$0xff]
      %v3146 = vld [vmem:[%s2725 + $0x169] sm:$0xff]
      %v3147 = vld [vmem:[%s2725 + $0x171] sm:$0xff]
      %s3148 = scalar_lea.vmem %s1, 28
      %v3149 = vld [vmem:[%s3148] sm:$0xf]
      %v3151 = vsel %vm225, %v3116, 0
      %v3154 = vsel %vm225, %v3117, 0
      %v3157 = vsel %vm225, %v3118, 0
      %v3160 = vsel %vm225, %v3119, 0
      %v3163 = vsel %vm225, %v3120, 0
      %v3166 = vsel %vm225, %v3121, 0
      %v3169 = vsel %vm225, %v3122, 0
      %v3172 = vsel %vm225, %v3123, 0
      %v3175 = vsel %vm225, %v3124, 0
      %v3178 = vsel %vm225, %v3125, 0
      %v3181 = vsel %vm225, %v3126, 0
      %v3184 = vsel %vm225, %v3127, 0
      %v3187 = vsel %vm225, %v3128, 0
      %v3190 = vsel %vm225, %v3129, 0
      %v3193 = vsel %vm225, %v3130, 0
      %v3196 = vsel %vm225, %v3131, 0
      %v3199 = vsel %vm225, %v3132, 0
      %v3202 = vsel %vm225, %v3133, 0
      %v3205 = vsel %vm225, %v3134, 0
      %v3208 = vsel %vm225, %v3135, 0
      %v3211 = vsel %vm225, %v3136, 0
      %v3214 = vsel %vm225, %v3137, 0
      %v3217 = vsel %vm225, %v3138, 0
      %v3220 = vsel %vm225, %v3139, 0
      %v3223 = vsel %vm225, %v3140, 0
      %v3226 = vsel %vm225, %v3141, 0
      %v3229 = vsel %vm225, %v3142, 0
      %v3232 = vsel %vm225, %v3143, 0
      %v3235 = vsel %vm225, %v3144, 0
      %v3238 = vsel %vm225, %v3145, 0
      %v3241 = vsel %vm225, %v3146, 0
      %v3244 = vsel %vm225, %v3147, 0
      %v3247 = vsel %vm514, %v3149, 0
      %3249 = vmatprep.subr.mxu0 0.0
      %3250 = vmatpush1.msra.mxu0 %v3247
      %3251 = vmatprep.subr.mxu0 0.0
      %3252 = vmatpush1.msra.mxu0 0.0
      %3253 = vmatprep.subr.mxu0 0.0
      %3254 = vmatpush1.msra.mxu0 0.0
      %3255 = vmatprep.subr.mxu0 0.0
      %3256 = vmatpush1.msra.mxu0 0.0
      %3257 = vmatprep.subr.mxu0 0.0
      %3258 = vmatpush1.msra.mxu0 0.0
      %3259 = vmatprep.subr.mxu0 0.0
      %3260 = vmatpush1.msra.mxu0 0.0
      %3261 = vmatprep.subr.mxu0 0.0
      %3262 = vmatpush1.msra.mxu0 0.0
      %3263 = vmatprep.subr.mxu0 0.0
      %3264 = vmatpush1.msra.mxu0 0.0
      %3265 = vmatprep.subr.mxu0 0.0
      %3266 = vmatpush1.msra.mxu0 0.0
      %3267 = vmatprep.subr.mxu0 0.0
      %3268 = vmatpush1.msra.mxu0 0.0
      %3269 = vmatprep.subr.mxu0 0.0
      %3270 = vmatpush1.msra.mxu0 0.0
      %3271 = vmatprep.subr.mxu0 0.0
      %3272 = vmatpush1.msra.mxu0 0.0
      %3273 = vmatprep.subr.mxu0 0.0
      %3274 = vmatpush1.msra.mxu0 0.0
      %3275 = vmatprep.subr.mxu0 0.0
      %3276 = vmatpush1.msra.mxu0 0.0
      %3277 = vmatprep.subr.mxu0 0.0
      %3278 = vmatpush1.msra.mxu0 0.0
      %3279 = vmatprep.subr.mxu0 0.0
      %3280 = vmatpush1.msra.mxu0 0.0
      %3281 = vmatprep.subr.mxu0 0.0
      %3282 = vmatpush1.msra.mxu0 0.0
      %3283 = vmatprep.subr.mxu0 0.0
      %3284 = vmatpush1.msra.mxu0 0.0
      %3285 = vmatprep.subr.mxu0 0.0
      %3286 = vmatpush1.msra.mxu0 0.0
      %3287 = vmatprep.subr.mxu0 0.0
      %3288 = vmatpush1.msra.mxu0 0.0
      %3289 = vmatprep.subr.mxu0 0.0
      %3290 = vmatpush1.msra.mxu0 0.0
      %3291 = vmatprep.subr.mxu0 0.0
      %3292 = vmatpush1.msra.mxu0 0.0
      %3293 = vmatprep.subr.mxu0 0.0
      %3294 = vmatpush1.msra.mxu0 0.0
      %3295 = vmatprep.subr.mxu0 0.0
      %3296 = vmatpush1.msra.mxu0 0.0
      %3297 = vmatprep.subr.mxu0 0.0
      %3298 = vmatpush1.msra.mxu0 0.0
      %3299 = vmatprep.subr.mxu0 0.0
      %3300 = vmatpush1.msra.mxu0 0.0
      %3301 = vmatprep.subr.mxu0 0.0
      %3302 = vmatpush1.msra.mxu0 0.0
      %3303 = vmatprep.subr.mxu0 0.0
      %3304 = vmatpush1.msra.mxu0 0.0
      %3305 = vmatprep.subr.mxu0 0.0
      %3306 = vmatpush1.msra.mxu0 0.0
      %3307 = vmatprep.subr.mxu0 0.0
      %3308 = vmatpush1.msra.mxu0 0.0
      %3309 = vmatprep.subr.mxu0 0.0
      %3310 = vmatpush1.msra.mxu0 0.0
      %3311 = vmatprep.subr.mxu0 0.0
      %3312 = vmatpush1.msra.mxu0 0.0
      %3313 = vmatprep.mubr.f32.mxu0 0.0
      %3314 = vmatmul.mubr.f32.gmra.mrb[0].mxu0 %v3151
      %v3315 = vpop.f32.mrb[0].mxu0
      %v3316 = vadd.f32 0.0, %v3315
      %v3317 = vpop.f32.mrb[0].mxu0
      %3318 = vmatprep.mubr.f32.mxu0 0.0
      %3319 = vmatmul.mubr.f32.gmra.mrb[0].mxu0 %v3154
      %v3320 = vpop.f32.mrb[0].mxu0
      %v3321 = vadd.f32 0.0, %v3320
      %v3322 = vpop.f32.mrb[0].mxu0
      %3323 = vmatprep.mubr.f32.mxu0 0.0
      %3324 = vmatmul.mubr.f32.gmra.mrb[0].mxu0 %v3157
      %v3325 = vpop.f32.mrb[0].mxu0
      %v3326 = vadd.f32 0.0, %v3325
      %v3327 = vpop.f32.mrb[0].mxu0
      %3328 = vmatprep.mubr.f32.mxu0 0.0
      %3329 = vmatmul.mubr.f32.gmra.mrb[0].mxu0 %v3160
      %v3330 = vpop.f32.mrb[0].mxu0
      %v3331 = vadd.f32 0.0, %v3330
      %v3332 = vpop.f32.mrb[0].mxu0
      %3333 = vmatprep.mubr.f32.mxu0 0.0
      %3334 = vmatmul.mubr.f32.gmra.mrb[0].mxu0 %v3163
      %v3335 = vpop.f32.mrb[0].mxu0
      %v3336 = vadd.f32 0.0, %v3335
      %v3337 = vpop.f32.mrb[0].mxu0
      %3338 = vmatprep.mubr.f32.mxu0 0.0
      %3339 = vmatmul.mubr.f32.gmra.mrb[0].mxu0 %v3166
      %v3340 = vpop.f32.mrb[0].mxu0
      %v3341 = vadd.f32 0.0, %v3340
      %v3342 = vpop.f32.mrb[0].mxu0
      %3343 = vmatprep.mubr.f32.mxu0 0.0
      %3344 = vmatmul.mubr.f32.gmra.mrb[0].mxu0 %v3169
      %v3345 = vpop.f32.mrb[0].mxu0
      %v3346 = vadd.f32 0.0, %v3345
      %v3347 = vpop.f32.mrb[0].mxu0
      %3348 = vmatprep.mubr.f32.mxu0 0.0
      %3349 = vmatmul.mubr.f32.gmra.mrb[0].mxu0 %v3172
      %v3350 = vpop.f32.mrb[0].mxu0
      %v3351 = vadd.f32 0.0, %v3350
      %v3352 = vpop.f32.mrb[0].mxu0
      %3353 = vmatprep.mubr.f32.mxu0 0.0
      %3354 = vmatmul.mubr.f32.gmra.mrb[0].mxu0 %v3175
      %v3355 = vpop.f32.mrb[0].mxu0
      %v3356 = vadd.f32 0.0, %v3355
      %v3357 = vpop.f32.mrb[0].mxu0
      %3358 = vmatprep.mubr.f32.mxu0 0.0
      %3359 = vmatmul.mubr.f32.gmra.mrb[0].mxu0 %v3178
      %v3360 = vpop.f32.mrb[0].mxu0
      %v3361 = vadd.f32 0.0, %v3360
      %v3362 = vpop.f32.mrb[0].mxu0
      %3363 = vmatprep.mubr.f32.mxu0 0.0
      %3364 = vmatmul.mubr.f32.gmra.mrb[0].mxu0 %v3181
      %v3365 = vpop.f32.mrb[0].mxu0
      %v3366 = vadd.f32 0.0, %v3365
      %v3367 = vpop.f32.mrb[0].mxu0
      %3368 = vmatprep.mubr.f32.mxu0 0.0
      %3369 = vmatmul.mubr.f32.gmra.mrb[0].mxu0 %v3184
      %v3370 = vpop.f32.mrb[0].mxu0
      %v3371 = vadd.f32 0.0, %v3370
      %v3372 = vpop.f32.mrb[0].mxu0
      %3373 = vmatprep.mubr.f32.mxu0 0.0
      %3374 = vmatmul.mubr.f32.gmra.mrb[0].mxu0 %v3187
      %v3375 = vpop.f32.mrb[0].mxu0
      %v3376 = vadd.f32 0.0, %v3375
      %v3377 = vpop.f32.mrb[0].mxu0
      %3378 = vmatprep.mubr.f32.mxu0 0.0
      %3379 = vmatmul.mubr.f32.gmra.mrb[0].mxu0 %v3190
      %v3380 = vpop.f32.mrb[0].mxu0
      %v3381 = vadd.f32 0.0, %v3380
      %v3382 = vpop.f32.mrb[0].mxu0
      %3383 = vmatprep.mubr.f32.mxu0 0.0
      %3384 = vmatmul.mubr.f32.gmra.mrb[0].mxu0 %v3193
      %v3385 = vpop.f32.mrb[0].mxu0
      %v3386 = vadd.f32 0.0, %v3385
      %v3387 = vpop.f32.mrb[0].mxu0
      %3388 = vmatprep.mubr.f32.mxu0 0.0
      %3389 = vmatmul.mubr.f32.gmra.mrb[0].mxu0 %v3196
      %v3390 = vpop.f32.mrb[0].mxu0
      %v3391 = vadd.f32 0.0, %v3390
      %v3392 = vpop.f32.mrb[0].mxu0
      %3393 = vmatprep.mubr.f32.mxu0 0.0
      %3394 = vmatmul.mubr.f32.gmra.mrb[0].mxu0 %v3199
      %v3395 = vpop.f32.mrb[0].mxu0
      %v3396 = vadd.f32 0.0, %v3395
      %v3397 = vpop.f32.mrb[0].mxu0
      %3398 = vmatprep.mubr.f32.mxu0 0.0
      %3399 = vmatmul.mubr.f32.gmra.mrb[0].mxu0 %v3202
      %v3400 = vpop.f32.mrb[0].mxu0
      %v3401 = vadd.f32 0.0, %v3400
      %v3402 = vpop.f32.mrb[0].mxu0
      %3403 = vmatprep.mubr.f32.mxu0 0.0
      %3404 = vmatmul.mubr.f32.gmra.mrb[0].mxu0 %v3205
      %v3405 = vpop.f32.mrb[0].mxu0
      %v3406 = vadd.f32 0.0, %v3405
      %v3407 = vpop.f32.mrb[0].mxu0
      %3408 = vmatprep.mubr.f32.mxu0 0.0
      %3409 = vmatmul.mubr.f32.gmra.mrb[0].mxu0 %v3208
      %v3410 = vpop.f32.mrb[0].mxu0
      %v3411 = vadd.f32 0.0, %v3410
      %v3412 = vpop.f32.mrb[0].mxu0
      %3413 = vmatprep.mubr.f32.mxu0 0.0
      %3414 = vmatmul.mubr.f32.gmra.mrb[0].mxu0 %v3211
      %v3415 = vpop.f32.mrb[0].mxu0
      %v3416 = vadd.f32 0.0, %v3415
      %v3417 = vpop.f32.mrb[0].mxu0
      %3418 = vmatprep.mubr.f32.mxu0 0.0
      %3419 = vmatmul.mubr.f32.gmra.mrb[0].mxu0 %v3214
      %v3420 = vpop.f32.mrb[0].mxu0
      %v3421 = vadd.f32 0.0, %v3420
      %v3422 = vpop.f32.mrb[0].mxu0
      %3423 = vmatprep.mubr.f32.mxu0 0.0
      %3424 = vmatmul.mubr.f32.gmra.mrb[0].mxu0 %v3217
      %v3425 = vpop.f32.mrb[0].mxu0
      %v3426 = vadd.f32 0.0, %v3425
      %v3427 = vpop.f32.mrb[0].mxu0
      %3428 = vmatprep.mubr.f32.mxu0 0.0
      %3429 = vmatmul.mubr.f32.gmra.mrb[0].mxu0 %v3220
      %v3430 = vpop.f32.mrb[0].mxu0
      %v3431 = vadd.f32 0.0, %v3430
      %v3432 = vpop.f32.mrb[0].mxu0
      %3433 = vmatprep.mubr.f32.mxu0 0.0
      %3434 = vmatmul.mubr.f32.gmra.mrb[0].mxu0 %v3223
      %v3435 = vpop.f32.mrb[0].mxu0
      %v3436 = vadd.f32 0.0, %v3435
      %v3437 = vpop.f32.mrb[0].mxu0
      %3438 = vmatprep.mubr.f32.mxu0 0.0
      %3439 = vmatmul.mubr.f32.gmra.mrb[0].mxu0 %v3226
      %v3440 = vpop.f32.mrb[0].mxu0
      %v3441 = vadd.f32 0.0, %v3440
      %v3442 = vpop.f32.mrb[0].mxu0
      %3443 = vmatprep.mubr.f32.mxu0 0.0
      %3444 = vmatmul.mubr.f32.gmra.mrb[0].mxu0 %v3229
      %v3445 = vpop.f32.mrb[0].mxu0
      %v3446 = vadd.f32 0.0, %v3445
      %v3447 = vpop.f32.mrb[0].mxu0
      %3448 = vmatprep.mubr.f32.mxu0 0.0
      %3449 = vmatmul.mubr.f32.gmra.mrb[0].mxu0 %v3232
      %v3450 = vpop.f32.mrb[0].mxu0
      %v3451 = vadd.f32 0.0, %v3450
      %v3452 = vpop.f32.mrb[0].mxu0
      %3453 = vmatprep.mubr.f32.mxu0 0.0
      %3454 = vmatmul.mubr.f32.gmra.mrb[0].mxu0 %v3235
      %v3455 = vpop.f32.mrb[0].mxu0
      %v3456 = vadd.f32 0.0, %v3455
      %v3457 = vpop.f32.mrb[0].mxu0
      %3458 = vmatprep.mubr.f32.mxu0 0.0
      %3459 = vmatmul.mubr.f32.gmra.mrb[0].mxu0 %v3238
      %v3460 = vpop.f32.mrb[0].mxu0
      %v3461 = vadd.f32 0.0, %v3460
      %v3462 = vpop.f32.mrb[0].mxu0
      %3463 = vmatprep.mubr.f32.mxu0 0.0
      %3464 = vmatmul.mubr.f32.gmra.mrb[0].mxu0 %v3241
      %v3465 = vpop.f32.mrb[0].mxu0
      %v3466 = vadd.f32 0.0, %v3465
      %v3467 = vpop.f32.mrb[0].mxu0
      %3468 = vmatprep.mubr.f32.mxu0 0.0
      %3469 = vmatmul.mubr.f32.gmra.mrb[0].mxu0 %v3244
      %v3470 = vpop.f32.mrb[0].mxu0
      %v3471 = vadd.f32 0.0, %v3470
      %v3472 = vpop.f32.mrb[0].mxu0
      %3473 = vdwg.mxu0
      %v3474 = vadd.f32 %v3084, %v3316
      %v3475 = vadd.f32 %v3085, %v3321
      %v3476 = vadd.f32 %v3086, %v3326
      %v3477 = vadd.f32 %v3087, %v3331
      %v3478 = vadd.f32 %v3088, %v3336
      %v3479 = vadd.f32 %v3089, %v3341
      %v3480 = vadd.f32 %v3090, %v3346
      %v3481 = vadd.f32 %v3091, %v3351
      %v3482 = vadd.f32 %v3092, %v3356
      %v3483 = vadd.f32 %v3093, %v3361
      %v3484 = vadd.f32 %v3094, %v3366
      %v3485 = vadd.f32 %v3095, %v3371
      %v3486 = vadd.f32 %v3096, %v3376
      %v3487 = vadd.f32 %v3097, %v3381
      %v3488 = vadd.f32 %v3098, %v3386
      %v3489 = vadd.f32 %v3099, %v3391
      %v3490 = vadd.f32 %v3100, %v3396
      %v3491 = vadd.f32 %v3101, %v3401
      %v3492 = vadd.f32 %v3102, %v3406
      %v3493 = vadd.f32 %v3103, %v3411
      %v3494 = vadd.f32 %v3104, %v3416
      %v3495 = vadd.f32 %v3105, %v3421
      %v3496 = vadd.f32 %v3106, %v3426
      %v3497 = vadd.f32 %v3107, %v3431
      %v3498 = vadd.f32 %v3108, %v3436
      %v3499 = vadd.f32 %v3109, %v3441
      %v3500 = vadd.f32 %v3110, %v3446
      %v3501 = vadd.f32 %v3111, %v3451
      %v3502 = vadd.f32 %v3112, %v3456
      %v3503 = vadd.f32 %v3113, %v3461
      %v3504 = vadd.f32 %v3114, %v3466
      %v3505 = vadd.f32 %v3115, %v3471
      %v3506 = vld [vmem:[%s2725 + $0x2] sm:$0xff]
      %v3507 = vld [vmem:[%s2725 + $0xa] sm:$0xff]
      %v3508 = vld [vmem:[%s2725 + $0x1a] sm:$0xff]
      %v3509 = vld [vmem:[%s2725 + $0x22] sm:$0xff]
      %v3510 = vld [vmem:[%s2725 + $0x32] sm:$0xff]
      %v3511 = vld [vmem:[%s2725 + $0x3a] sm:$0xff]
      %v3512 = vld [vmem:[%s2725 + $0x4a] sm:$0xff]
      %v3513 = vld [vmem:[%s2725 + $0x52] sm:$0xff]
      %v3514 = vld [vmem:[%s2725 + $0x62] sm:$0xff]
      %v3515 = vld [vmem:[%s2725 + $0x6a] sm:$0xff]
      %v3516 = vld [vmem:[%s2725 + $0x7a] sm:$0xff]
      %v3517 = vld [vmem:[%s2725 + $0x82] sm:$0xff]
      %v3518 = vld [vmem:[%s2725 + $0x92] sm:$0xff]
      %v3519 = vld [vmem:[%s2725 + $0x9a] sm:$0xff]
      %v3520 = vld [vmem:[%s2725 + $0xaa] sm:$0xff]
      %v3521 = vld [vmem:[%s2725 + $0xb2] sm:$0xff]
      %v3522 = vld [vmem:[%s2725 + $0xc2] sm:$0xff]
      %v3523 = vld [vmem:[%s2725 + $0xca] sm:$0xff]
      %v3524 = vld [vmem:[%s2725 + $0xda] sm:$0xff]
      %v3525 = vld [vmem:[%s2725 + $0xe2] sm:$0xff]
      %v3526 = vld [vmem:[%s2725 + $0xf2] sm:$0xff]
      %v3527 = vld [vmem:[%s2725 + $0xfa] sm:$0xff]
      %v3528 = vld [vmem:[%s2725 + $0x10a] sm:$0xff]
      %v3529 = vld [vmem:[%s2725 + $0x112] sm:$0xff]
      %v3530 = vld [vmem:[%s2725 + $0x122] sm:$0xff]
      %v3531 = vld [vmem:[%s2725 + $0x12a] sm:$0xff]
      %v3532 = vld [vmem:[%s2725 + $0x13a] sm:$0xff]
      %v3533 = vld [vmem:[%s2725 + $0x142] sm:$0xff]
      %v3534 = vld [vmem:[%s2725 + $0x152] sm:$0xff]
      %v3535 = vld [vmem:[%s2725 + $0x15a] sm:$0xff]
      %v3536 = vld [vmem:[%s2725 + $0x16a] sm:$0xff]
      %v3537 = vld [vmem:[%s2725 + $0x172] sm:$0xff]
      %s3538 = scalar_lea.vmem %s1, 32
      %v3539 = vld [vmem:[%s3538] sm:$0xf]
      %v3541 = vsel %vm225, %v3506, 0
      %v3544 = vsel %vm225, %v3507, 0
      %v3547 = vsel %vm225, %v3508, 0
      %v3550 = vsel %vm225, %v3509, 0
      %v3553 = vsel %vm225, %v3510, 0
      %v3556 = vsel %vm225, %v3511, 0
      %v3559 = vsel %vm225, %v3512, 0
      %v3562 = vsel %vm225, %v3513, 0
      %v3565 = vsel %vm225, %v3514, 0
      %v3568 = vsel %vm225, %v3515, 0
      %v3571 = vsel %vm225, %v3516, 0
      %v3574 = vsel %vm225, %v3517, 0
      %v3577 = vsel %vm225, %v3518, 0
      %v3580 = vsel %vm225, %v3519, 0
      %v3583 = vsel %vm225, %v3520, 0
      %v3586 = vsel %vm225, %v3521, 0
      %v3589 = vsel %vm225, %v3522, 0
      %v3592 = vsel %vm225, %v3523, 0
      %v3595 = vsel %vm225, %v3524, 0
      %v3598 = vsel %vm225, %v3525, 0
      %v3601 = vsel %vm225, %v3526, 0
      %v3604 = vsel %vm225, %v3527, 0
      %v3607 = vsel %vm225, %v3528, 0
      %v3610 = vsel %vm225, %v3529, 0
      %v3613 = vsel %vm225, %v3530, 0
      %v3616 = vsel %vm225, %v3531, 0
      %v3619 = vsel %vm225, %v3532, 0
      %v3622 = vsel %vm225, %v3533, 0
      %v3625 = vsel %vm225, %v3534, 0
      %v3628 = vsel %vm225, %v3535, 0
      %v3631 = vsel %vm225, %v3536, 0
      %v3634 = vsel %vm225, %v3537, 0
      %v3637 = vsel %vm514, %v3539, 0
      %3639 = vmatprep.subr.mxu0 0.0
      %3640 = vmatpush1.msra.mxu0 %v3637
      %3641 = vmatprep.subr.mxu0 0.0
      %3642 = vmatpush1.msra.mxu0 0.0
      %3643 = vmatprep.subr.mxu0 0.0
      %3644 = vmatpush1.msra.mxu0 0.0
      %3645 = vmatprep.subr.mxu0 0.0
      %3646 = vmatpush1.msra.mxu0 0.0
      %3647 = vmatprep.subr.mxu0 0.0
      %3648 = vmatpush1.msra.mxu0 0.0
      %3649 = vmatprep.subr.mxu0 0.0
      %3650 = vmatpush1.msra.mxu0 0.0
      %3651 = vmatprep.subr.mxu0 0.0
      %3652 = vmatpush1.msra.mxu0 0.0
      %3653 = vmatprep.subr.mxu0 0.0
      %3654 = vmatpush1.msra.mxu0 0.0
      %3655 = vmatprep.subr.mxu0 0.0
      %3656 = vmatpush1.msra.mxu0 0.0
      %3657 = vmatprep.subr.mxu0 0.0
      %3658 = vmatpush1.msra.mxu0 0.0
      %3659 = vmatprep.subr.mxu0 0.0
      %3660 = vmatpush1.msra.mxu0 0.0
      %3661 = vmatprep.subr.mxu0 0.0
      %3662 = vmatpush1.msra.mxu0 0.0
      %3663 = vmatprep.subr.mxu0 0.0
      %3664 = vmatpush1.msra.mxu0 0.0
      %3665 = vmatprep.subr.mxu0 0.0
      %3666 = vmatpush1.msra.mxu0 0.0
      %3667 = vmatprep.subr.mxu0 0.0
      %3668 = vmatpush1.msra.mxu0 0.0
      %3669 = vmatprep.subr.mxu0 0.0
      %3670 = vmatpush1.msra.mxu0 0.0
      %3671 = vmatprep.subr.mxu0 0.0
      %3672 = vmatpush1.msra.mxu0 0.0
      %3673 = vmatprep.subr.mxu0 0.0
      %3674 = vmatpush1.msra.mxu0 0.0
      %3675 = vmatprep.subr.mxu0 0.0
      %3676 = vmatpush1.msra.mxu0 0.0
      %3677 = vmatprep.subr.mxu0 0.0
      %3678 = vmatpush1.msra.mxu0 0.0
      %3679 = vmatprep.subr.mxu0 0.0
      %3680 = vmatpush1.msra.mxu0 0.0
      %3681 = vmatprep.subr.mxu0 0.0
      %3682 = vmatpush1.msra.mxu0 0.0
      %3683 = vmatprep.subr.mxu0 0.0
      %3684 = vmatpush1.msra.mxu0 0.0
      %3685 = vmatprep.subr.mxu0 0.0
      %3686 = vmatpush1.msra.mxu0 0.0
      %3687 = vmatprep.subr.mxu0 0.0
      %3688 = vmatpush1.msra.mxu0 0.0
      %3689 = vmatprep.subr.mxu0 0.0
      %3690 = vmatpush1.msra.mxu0 0.0
      %3691 = vmatprep.subr.mxu0 0.0
      %3692 = vmatpush1.msra.mxu0 0.0
      %3693 = vmatprep.subr.mxu0 0.0
      %3694 = vmatpush1.msra.mxu0 0.0
      %3695 = vmatprep.subr.mxu0 0.0
      %3696 = vmatpush1.msra.mxu0 0.0
      %3697 = vmatprep.subr.mxu0 0.0
      %3698 = vmatpush1.msra.mxu0 0.0
      %3699 = vmatprep.subr.mxu0 0.0
      %3700 = vmatpush1.msra.mxu0 0.0
      %3701 = vmatprep.subr.mxu0 0.0
      %3702 = vmatpush1.msra.mxu0 0.0
      %3703 = vmatprep.mubr.f32.mxu0 0.0
      %3704 = vmatmul.mubr.f32.gmra.mrb[0].mxu0 %v3541
      %v3705 = vpop.f32.mrb[0].mxu0
      %v3706 = vadd.f32 0.0, %v3705
      %v3707 = vpop.f32.mrb[0].mxu0
      %3708 = vmatprep.mubr.f32.mxu0 0.0
      %3709 = vmatmul.mubr.f32.gmra.mrb[0].mxu0 %v3544
      %v3710 = vpop.f32.mrb[0].mxu0
      %v3711 = vadd.f32 0.0, %v3710
      %v3712 = vpop.f32.mrb[0].mxu0
      %3713 = vmatprep.mubr.f32.mxu0 0.0
      %3714 = vmatmul.mubr.f32.gmra.mrb[0].mxu0 %v3547
      %v3715 = vpop.f32.mrb[0].mxu0
      %v3716 = vadd.f32 0.0, %v3715
      %v3717 = vpop.f32.mrb[0].mxu0
      %3718 = vmatprep.mubr.f32.mxu0 0.0
      %3719 = vmatmul.mubr.f32.gmra.mrb[0].mxu0 %v3550
      %v3720 = vpop.f32.mrb[0].mxu0
      %v3721 = vadd.f32 0.0, %v3720
      %v3722 = vpop.f32.mrb[0].mxu0
      %3723 = vmatprep.mubr.f32.mxu0 0.0
      %3724 = vmatmul.mubr.f32.gmra.mrb[0].mxu0 %v3553
      %v3725 = vpop.f32.mrb[0].mxu0
      %v3726 = vadd.f32 0.0, %v3725
      %v3727 = vpop.f32.mrb[0].mxu0
      %3728 = vmatprep.mubr.f32.mxu0 0.0
      %3729 = vmatmul.mubr.f32.gmra.mrb[0].mxu0 %v3556
      %v3730 = vpop.f32.mrb[0].mxu0
      %v3731 = vadd.f32 0.0, %v3730
      %v3732 = vpop.f32.mrb[0].mxu0
      %3733 = vmatprep.mubr.f32.mxu0 0.0
      %3734 = vmatmul.mubr.f32.gmra.mrb[0].mxu0 %v3559
      %v3735 = vpop.f32.mrb[0].mxu0
      %v3736 = vadd.f32 0.0, %v3735
      %v3737 = vpop.f32.mrb[0].mxu0
      %3738 = vmatprep.mubr.f32.mxu0 0.0
      %3739 = vmatmul.mubr.f32.gmra.mrb[0].mxu0 %v3562
      %v3740 = vpop.f32.mrb[0].mxu0
      %v3741 = vadd.f32 0.0, %v3740
      %v3742 = vpop.f32.mrb[0].mxu0
      %3743 = vmatprep.mubr.f32.mxu0 0.0
      %3744 = vmatmul.mubr.f32.gmra.mrb[0].mxu0 %v3565
      %v3745 = vpop.f32.mrb[0].mxu0
      %v3746 = vadd.f32 0.0, %v3745
      %v3747 = vpop.f32.mrb[0].mxu0
      %3748 = vmatprep.mubr.f32.mxu0 0.0
      %3749 = vmatmul.mubr.f32.gmra.mrb[0].mxu0 %v3568
      %v3750 = vpop.f32.mrb[0].mxu0
      %v3751 = vadd.f32 0.0, %v3750
      %v3752 = vpop.f32.mrb[0].mxu0
      %3753 = vmatprep.mubr.f32.mxu0 0.0
      %3754 = vmatmul.mubr.f32.gmra.mrb[0].mxu0 %v3571
      %v3755 = vpop.f32.mrb[0].mxu0
      %v3756 = vadd.f32 0.0, %v3755
      %v3757 = vpop.f32.mrb[0].mxu0
      %3758 = vmatprep.mubr.f32.mxu0 0.0
      %3759 = vmatmul.mubr.f32.gmra.mrb[0].mxu0 %v3574
      %v3760 = vpop.f32.mrb[0].mxu0
      %v3761 = vadd.f32 0.0, %v3760
      %v3762 = vpop.f32.mrb[0].mxu0
      %3763 = vmatprep.mubr.f32.mxu0 0.0
      %3764 = vmatmul.mubr.f32.gmra.mrb[0].mxu0 %v3577
      %v3765 = vpop.f32.mrb[0].mxu0
      %v3766 = vadd.f32 0.0, %v3765
      %v3767 = vpop.f32.mrb[0].mxu0
      %3768 = vmatprep.mubr.f32.mxu0 0.0
      %3769 = vmatmul.mubr.f32.gmra.mrb[0].mxu0 %v3580
      %v3770 = vpop.f32.mrb[0].mxu0
      %v3771 = vadd.f32 0.0, %v3770
      %v3772 = vpop.f32.mrb[0].mxu0
      %3773 = vmatprep.mubr.f32.mxu0 0.0
      %3774 = vmatmul.mubr.f32.gmra.mrb[0].mxu0 %v3583
      %v3775 = vpop.f32.mrb[0].mxu0
      %v3776 = vadd.f32 0.0, %v3775
      %v3777 = vpop.f32.mrb[0].mxu0
      %3778 = vmatprep.mubr.f32.mxu0 0.0
      %3779 = vmatmul.mubr.f32.gmra.mrb[0].mxu0 %v3586
      %v3780 = vpop.f32.mrb[0].mxu0
      %v3781 = vadd.f32 0.0, %v3780
      %v3782 = vpop.f32.mrb[0].mxu0
      %3783 = vmatprep.mubr.f32.mxu0 0.0
      %3784 = vmatmul.mubr.f32.gmra.mrb[0].mxu0 %v3589
      %v3785 = vpop.f32.mrb[0].mxu0
      %v3786 = vadd.f32 0.0, %v3785
      %v3787 = vpop.f32.mrb[0].mxu0
      %3788 = vmatprep.mubr.f32.mxu0 0.0
      %3789 = vmatmul.mubr.f32.gmra.mrb[0].mxu0 %v3592
      %v3790 = vpop.f32.mrb[0].mxu0
      %v3791 = vadd.f32 0.0, %v3790
      %v3792 = vpop.f32.mrb[0].mxu0
      %3793 = vmatprep.mubr.f32.mxu0 0.0
      %3794 = vmatmul.mubr.f32.gmra.mrb[0].mxu0 %v3595
      %v3795 = vpop.f32.mrb[0].mxu0
      %v3796 = vadd.f32 0.0, %v3795
      %v3797 = vpop.f32.mrb[0].mxu0
      %3798 = vmatprep.mubr.f32.mxu0 0.0
      %3799 = vmatmul.mubr.f32.gmra.mrb[0].mxu0 %v3598
      %v3800 = vpop.f32.mrb[0].mxu0
      %v3801 = vadd.f32 0.0, %v3800
      %v3802 = vpop.f32.mrb[0].mxu0
      %3803 = vmatprep.mubr.f32.mxu0 0.0
      %3804 = vmatmul.mubr.f32.gmra.mrb[0].mxu0 %v3601
      %v3805 = vpop.f32.mrb[0].mxu0
      %v3806 = vadd.f32 0.0, %v3805
      %v3807 = vpop.f32.mrb[0].mxu0
      %3808 = vmatprep.mubr.f32.mxu0 0.0
      %3809 = vmatmul.mubr.f32.gmra.mrb[0].mxu0 %v3604
      %v3810 = vpop.f32.mrb[0].mxu0
      %v3811 = vadd.f32 0.0, %v3810
      %v3812 = vpop.f32.mrb[0].mxu0
      %3813 = vmatprep.mubr.f32.mxu0 0.0
      %3814 = vmatmul.mubr.f32.gmra.mrb[0].mxu0 %v3607
      %v3815 = vpop.f32.mrb[0].mxu0
      %v3816 = vadd.f32 0.0, %v3815
      %v3817 = vpop.f32.mrb[0].mxu0
      %3818 = vmatprep.mubr.f32.mxu0 0.0
      %3819 = vmatmul.mubr.f32.gmra.mrb[0].mxu0 %v3610
      %v3820 = vpop.f32.mrb[0].mxu0
      %v3821 = vadd.f32 0.0, %v3820
      %v3822 = vpop.f32.mrb[0].mxu0
      %3823 = vmatprep.mubr.f32.mxu0 0.0
      %3824 = vmatmul.mubr.f32.gmra.mrb[0].mxu0 %v3613
      %v3825 = vpop.f32.mrb[0].mxu0
      %v3826 = vadd.f32 0.0, %v3825
      %v3827 = vpop.f32.mrb[0].mxu0
      %3828 = vmatprep.mubr.f32.mxu0 0.0
      %3829 = vmatmul.mubr.f32.gmra.mrb[0].mxu0 %v3616
      %v3830 = vpop.f32.mrb[0].mxu0
      %v3831 = vadd.f32 0.0, %v3830
      %v3832 = vpop.f32.mrb[0].mxu0
      %3833 = vmatprep.mubr.f32.mxu0 0.0
      %3834 = vmatmul.mubr.f32.gmra.mrb[0].mxu0 %v3619
      %v3835 = vpop.f32.mrb[0].mxu0
      %v3836 = vadd.f32 0.0, %v3835
      %v3837 = vpop.f32.mrb[0].mxu0
      %3838 = vmatprep.mubr.f32.mxu0 0.0
      %3839 = vmatmul.mubr.f32.gmra.mrb[0].mxu0 %v3622
      %v3840 = vpop.f32.mrb[0].mxu0
      %v3841 = vadd.f32 0.0, %v3840
      %v3842 = vpop.f32.mrb[0].mxu0
      %3843 = vmatprep.mubr.f32.mxu0 0.0
      %3844 = vmatmul.mubr.f32.gmra.mrb[0].mxu0 %v3625
      %v3845 = vpop.f32.mrb[0].mxu0
      %v3846 = vadd.f32 0.0, %v3845
      %v3847 = vpop.f32.mrb[0].mxu0
      %3848 = vmatprep.mubr.f32.mxu0 0.0
      %3849 = vmatmul.mubr.f32.gmra.mrb[0].mxu0 %v3628
      %v3850 = vpop.f32.mrb[0].mxu0
      %v3851 = vadd.f32 0.0, %v3850
      %v3852 = vpop.f32.mrb[0].mxu0
      %3853 = vmatprep.mubr.f32.mxu0 0.0
      %3854 = vmatmul.mubr.f32.gmra.mrb[0].mxu0 %v3631
      %v3855 = vpop.f32.mrb[0].mxu0
      %v3856 = vadd.f32 0.0, %v3855
      %v3857 = vpop.f32.mrb[0].mxu0
      %3858 = vmatprep.mubr.f32.mxu0 0.0
      %3859 = vmatmul.mubr.f32.gmra.mrb[0].mxu0 %v3634
      %v3860 = vpop.f32.mrb[0].mxu0
      %v3861 = vadd.f32 0.0, %v3860
      %v3862 = vpop.f32.mrb[0].mxu0
      %3863 = vdwg.mxu0
      %v3864 = vadd.f32 %v3474, %v3706
      %v3865 = vadd.f32 %v3475, %v3711
      %v3866 = vadd.f32 %v3476, %v3716
      %v3867 = vadd.f32 %v3477, %v3721
      %v3868 = vadd.f32 %v3478, %v3726
      %v3869 = vadd.f32 %v3479, %v3731
      %v3870 = vadd.f32 %v3480, %v3736
      %v3871 = vadd.f32 %v3481, %v3741
      %v3872 = vadd.f32 %v3482, %v3746
      %v3873 = vadd.f32 %v3483, %v3751
      %v3874 = vadd.f32 %v3484, %v3756
      %v3875 = vadd.f32 %v3485, %v3761
      %v3876 = vadd.f32 %v3486, %v3766
      %v3877 = vadd.f32 %v3487, %v3771
      %v3878 = vadd.f32 %v3488, %v3776
      %v3879 = vadd.f32 %v3489, %v3781
      %v3880 = vadd.f32 %v3490, %v3786
      %v3881 = vadd.f32 %v3491, %v3791
      %v3882 = vadd.f32 %v3492, %v3796
      %v3883 = vadd.f32 %v3493, %v3801
      %v3884 = vadd.f32 %v3494, %v3806
      %v3885 = vadd.f32 %v3495, %v3811
      %v3886 = vadd.f32 %v3496, %v3816
      %v3887 = vadd.f32 %v3497, %v3821
      %v3888 = vadd.f32 %v3498, %v3826
      %v3889 = vadd.f32 %v3499, %v3831
      %v3890 = vadd.f32 %v3500, %v3836
      %v3891 = vadd.f32 %v3501, %v3841
      %v3892 = vadd.f32 %v3502, %v3846
      %v3893 = vadd.f32 %v3503, %v3851
      %v3894 = vadd.f32 %v3504, %v3856
      %v3895 = vadd.f32 %v3505, %v3861
      %v3896 = vmax.f32 %v3864, 0.0
      %v3897 = vmax.f32 %v3865, 0.0
      %v3898 = vmax.f32 %v3866, 0.0
      %v3899 = vmax.f32 %v3867, 0.0
      %v3900 = vmax.f32 %v3868, 0.0
      %v3901 = vmax.f32 %v3869, 0.0
      %v3902 = vmax.f32 %v3870, 0.0
      %v3903 = vmax.f32 %v3871, 0.0
      %v3904 = vmax.f32 %v3872, 0.0
      %v3905 = vmax.f32 %v3873, 0.0
      %v3906 = vmax.f32 %v3874, 0.0
      %v3907 = vmax.f32 %v3875, 0.0
      %v3908 = vmax.f32 %v3876, 0.0
      %v3909 = vmax.f32 %v3877, 0.0
      %v3910 = vmax.f32 %v3878, 0.0
      %v3911 = vmax.f32 %v3879, 0.0
      %v3912 = vmax.f32 %v3880, 0.0
      %v3913 = vmax.f32 %v3881, 0.0
      %v3914 = vmax.f32 %v3882, 0.0
      %v3915 = vmax.f32 %v3883, 0.0
      %v3916 = vmax.f32 %v3884, 0.0
      %v3917 = vmax.f32 %v3885, 0.0
      %v3918 = vmax.f32 %v3886, 0.0
      %v3919 = vmax.f32 %v3887, 0.0
      %v3920 = vmax.f32 %v3888, 0.0
      %v3921 = vmax.f32 %v3889, 0.0
      %v3922 = vmax.f32 %v3890, 0.0
      %v3923 = vmax.f32 %v3891, 0.0
      %v3924 = vmax.f32 %v3892, 0.0
      %v3925 = vmax.f32 %v3893, 0.0
      %v3926 = vmax.f32 %v3894, 0.0
      %v3927 = vmax.f32 %v3895, 0.0
      %3928 = vst.msk [vmem:[%s345 + $0x1] sm:$0xff] %vm225, %v3896
      %3929 = vst.msk [vmem:[%s345 + $0x9] sm:$0xff] %vm225, %v3897
      %3930 = vst.msk [vmem:[%s345 + $0x19] sm:$0xff] %vm225, %v3898
      %3931 = vst.msk [vmem:[%s345 + $0x21] sm:$0xff] %vm225, %v3899
      %3932 = vst.msk [vmem:[%s345 + $0x31] sm:$0xff] %vm225, %v3900
      %3933 = vst.msk [vmem:[%s345 + $0x39] sm:$0xff] %vm225, %v3901
      %3934 = vst.msk [vmem:[%s345 + $0x49] sm:$0xff] %vm225, %v3902
      %3935 = vst.msk [vmem:[%s345 + $0x51] sm:$0xff] %vm225, %v3903
      %3936 = vst.msk [vmem:[%s345 + $0x61] sm:$0xff] %vm225, %v3904
      %3937 = vst.msk [vmem:[%s345 + $0x69] sm:$0xff] %vm225, %v3905
      %3938 = vst.msk [vmem:[%s345 + $0x79] sm:$0xff] %vm225, %v3906
      %3939 = vst.msk [vmem:[%s345 + $0x81] sm:$0xff] %vm225, %v3907
      %3940 = vst.msk [vmem:[%s345 + $0x91] sm:$0xff] %vm225, %v3908
      %3941 = vst.msk [vmem:[%s345 + $0x99] sm:$0xff] %vm225, %v3909
      %3942 = vst.msk [vmem:[%s345 + $0xa9] sm:$0xff] %vm225, %v3910
      %3943 = vst.msk [vmem:[%s345 + $0xb1] sm:$0xff] %vm225, %v3911
      %3944 = vst.msk [vmem:[%s345 + $0xc1] sm:$0xff] %vm225, %v3912
      %3945 = vst.msk [vmem:[%s345 + $0xc9] sm:$0xff] %vm225, %v3913
      %3946 = vst.msk [vmem:[%s345 + $0xd9] sm:$0xff] %vm225, %v3914
      %3947 = vst.msk [vmem:[%s345 + $0xe1] sm:$0xff] %vm225, %v3915
      %3948 = vst.msk [vmem:[%s345 + $0xf1] sm:$0xff] %vm225, %v3916
      %3949 = vst.msk [vmem:[%s345 + $0xf9] sm:$0xff] %vm225, %v3917
      %3950 = vst.msk [vmem:[%s345 + $0x109] sm:$0xff] %vm225, %v3918
      %3951 = vst.msk [vmem:[%s345 + $0x111] sm:$0xff] %vm225, %v3919
      %3952 = vst.msk [vmem:[%s345 + $0x121] sm:$0xff] %vm225, %v3920
      %3953 = vst.msk [vmem:[%s345 + $0x129] sm:$0xff] %vm225, %v3921
      %3954 = vst.msk [vmem:[%s345 + $0x139] sm:$0xff] %vm225, %v3922
      %3955 = vst.msk [vmem:[%s345 + $0x141] sm:$0xff] %vm225, %v3923
      %3956 = vst.msk [vmem:[%s345 + $0x151] sm:$0xff] %vm225, %v3924
      %3957 = vst.msk [vmem:[%s345 + $0x159] sm:$0xff] %vm225, %v3925
      %3958 = vst.msk [vmem:[%s345 + $0x169] sm:$0xff] %vm225, %v3926
      %3959 = vst.msk [vmem:[%s345 + $0x171] sm:$0xff] %vm225, %v3927
      %v3960 = vld [vmem:[%s4] sm:$0x1]
      %v3962 = vlaneseq
      %v3963 = vshrl.u32 %v3962, 7
      %v3964 = vsub.s32 0, %v3963
      %v3965 = vrot.slane %v3960, %v3964
      %v3967 = vld [vmem:[#allocation2] sm:$0xff]
      %v3968 = vld [vmem:[#allocation2 + $0x8] sm:$0xff]
      %v3969 = vld [vmem:[#allocation2 + $0x18] sm:$0xff]
      %v3970 = vld [vmem:[#allocation2 + $0x20] sm:$0xff]
      %v3971 = vld [vmem:[#allocation2 + $0x30] sm:$0xff]
      %v3972 = vld [vmem:[#allocation2 + $0x38] sm:$0xff]
      %v3973 = vld [vmem:[#allocation2 + $0x48] sm:$0xff]
      %v3974 = vld [vmem:[#allocation2 + $0x50] sm:$0xff]
      %v3975 = vld [vmem:[#allocation2 + $0x60] sm:$0xff]
      %v3976 = vld [vmem:[#allocation2 + $0x68] sm:$0xff]
      %v3977 = vld [vmem:[#allocation2 + $0x78] sm:$0xff]
      %v3978 = vld [vmem:[#allocation2 + $0x80] sm:$0xff]
      %v3979 = vld [vmem:[#allocation2 + $0x90] sm:$0xff]
      %v3980 = vld [vmem:[#allocation2 + $0x98] sm:$0xff]
      %v3981 = vld [vmem:[#allocation2 + $0xa8] sm:$0xff]
      %v3982 = vld [vmem:[#allocation2 + $0xb0] sm:$0xff]
      %v3983 = vld [vmem:[#allocation2 + $0xc0] sm:$0xff]
      %v3984 = vld [vmem:[#allocation2 + $0xc8] sm:$0xff]
      %v3985 = vld [vmem:[#allocation2 + $0xd8] sm:$0xff]
      %v3986 = vld [vmem:[#allocation2 + $0xe0] sm:$0xff]
      %v3987 = vld [vmem:[#allocation2 + $0xf0] sm:$0xff]
      %v3988 = vld [vmem:[#allocation2 + $0xf8] sm:$0xff]
      %v3989 = vld [vmem:[#allocation2 + $0x108] sm:$0xff]
      %v3990 = vld [vmem:[#allocation2 + $0x110] sm:$0xff]
      %v3991 = vld [vmem:[#allocation2 + $0x120] sm:$0xff]
      %v3992 = vld [vmem:[#allocation2 + $0x128] sm:$0xff]
      %v3993 = vld [vmem:[#allocation2 + $0x138] sm:$0xff]
      %v3994 = vld [vmem:[#allocation2 + $0x140] sm:$0xff]
      %v3995 = vld [vmem:[#allocation2 + $0x150] sm:$0xff]
      %v3996 = vld [vmem:[#allocation2 + $0x158] sm:$0xff]
      %v3997 = vld [vmem:[#allocation2 + $0x168] sm:$0xff]
      %v3998 = vld [vmem:[#allocation2 + $0x170] sm:$0xff]
      %v3999 = vld [vmem:[%s3] sm:$0xf]
      %v4001 = vsel %vm225, %v3967, 0
      %v4004 = vsel %vm225, %v3968, 0
      %v4007 = vsel %vm225, %v3969, 0
      %v4010 = vsel %vm225, %v3970, 0
      %v4013 = vsel %vm225, %v3971, 0
      %v4016 = vsel %vm225, %v3972, 0
      %v4019 = vsel %vm225, %v3973, 0
      %v4022 = vsel %vm225, %v3974, 0
      %v4025 = vsel %vm225, %v3975, 0
      %v4028 = vsel %vm225, %v3976, 0
      %v4031 = vsel %vm225, %v3977, 0
      %v4034 = vsel %vm225, %v3978, 0
      %v4037 = vsel %vm225, %v3979, 0
      %v4040 = vsel %vm225, %v3980, 0
      %v4043 = vsel %vm225, %v3981, 0
      %v4046 = vsel %vm225, %v3982, 0
      %v4049 = vsel %vm225, %v3983, 0
      %v4052 = vsel %vm225, %v3984, 0
      %v4055 = vsel %vm225, %v3985, 0
      %v4058 = vsel %vm225, %v3986, 0
      %v4061 = vsel %vm225, %v3987, 0
      %v4064 = vsel %vm225, %v3988, 0
      %v4067 = vsel %vm225, %v3989, 0
      %v4070 = vsel %vm225, %v3990, 0
      %v4073 = vsel %vm225, %v3991, 0
      %v4076 = vsel %vm225, %v3992, 0
      %v4079 = vsel %vm225, %v3993, 0
      %v4082 = vsel %vm225, %v3994, 0
      %v4085 = vsel %vm225, %v3995, 0
      %v4088 = vsel %vm225, %v3996, 0
      %v4091 = vsel %vm225, %v3997, 0
      %v4094 = vsel %vm225, %v3998, 0
      %v4097 = vsel %vm514, %v3999, 0
      %4099 = vmatprep.subr.mxu0 0.0
      %4100 = vmatpush1.msra.mxu0 %v4097
      %4101 = vmatprep.subr.mxu0 0.0
      %4102 = vmatpush1.msra.mxu0 0.0
      %4103 = vmatprep.subr.mxu0 0.0
      %4104 = vmatpush1.msra.mxu0 0.0
      %4105 = vmatprep.subr.mxu0 0.0
      %4106 = vmatpush1.msra.mxu0 0.0
      %4107 = vmatprep.subr.mxu0 0.0
      %4108 = vmatpush1.msra.mxu0 0.0
      %4109 = vmatprep.subr.mxu0 0.0
      %4110 = vmatpush1.msra.mxu0 0.0
      %4111 = vmatprep.subr.mxu0 0.0
      %4112 = vmatpush1.msra.mxu0 0.0
      %4113 = vmatprep.subr.mxu0 0.0
      %4114 = vmatpush1.msra.mxu0 0.0
      %4115 = vmatprep.subr.mxu0 0.0
      %4116 = vmatpush1.msra.mxu0 0.0
      %4117 = vmatprep.subr.mxu0 0.0
      %4118 = vmatpush1.msra.mxu0 0.0
      %4119 = vmatprep.subr.mxu0 0.0
      %4120 = vmatpush1.msra.mxu0 0.0
      %4121 = vmatprep.subr.mxu0 0.0
      %4122 = vmatpush1.msra.mxu0 0.0
      %4123 = vmatprep.subr.mxu0 0.0
      %4124 = vmatpush1.msra.mxu0 0.0
      %4125 = vmatprep.subr.mxu0 0.0
      %4126 = vmatpush1.msra.mxu0 0.0
      %4127 = vmatprep.subr.mxu0 0.0
      %4128 = vmatpush1.msra.mxu0 0.0
      %4129 = vmatprep.subr.mxu0 0.0
      %4130 = vmatpush1.msra.mxu0 0.0
      %4131 = vmatprep.subr.mxu0 0.0
      %4132 = vmatpush1.msra.mxu0 0.0
      %4133 = vmatprep.subr.mxu0 0.0
      %4134 = vmatpush1.msra.mxu0 0.0
      %4135 = vmatprep.subr.mxu0 0.0
      %4136 = vmatpush1.msra.mxu0 0.0
      %4137 = vmatprep.subr.mxu0 0.0
      %4138 = vmatpush1.msra.mxu0 0.0
      %4139 = vmatprep.subr.mxu0 0.0
      %4140 = vmatpush1.msra.mxu0 0.0
      %4141 = vmatprep.subr.mxu0 0.0
      %4142 = vmatpush1.msra.mxu0 0.0
      %4143 = vmatprep.subr.mxu0 0.0
      %4144 = vmatpush1.msra.mxu0 0.0
      %4145 = vmatprep.subr.mxu0 0.0
      %4146 = vmatpush1.msra.mxu0 0.0
      %4147 = vmatprep.subr.mxu0 0.0
      %4148 = vmatpush1.msra.mxu0 0.0
      %4149 = vmatprep.subr.mxu0 0.0
      %4150 = vmatpush1.msra.mxu0 0.0
      %4151 = vmatprep.subr.mxu0 0.0
      %4152 = vmatpush1.msra.mxu0 0.0
      %4153 = vmatprep.subr.mxu0 0.0
      %4154 = vmatpush1.msra.mxu0 0.0
      %4155 = vmatprep.subr.mxu0 0.0
      %4156 = vmatpush1.msra.mxu0 0.0
      %4157 = vmatprep.subr.mxu0 0.0
      %4158 = vmatpush1.msra.mxu0 0.0
      %4159 = vmatprep.subr.mxu0 0.0
      %4160 = vmatpush1.msra.mxu0 0.0
      %4161 = vmatprep.subr.mxu0 0.0
      %4162 = vmatpush1.msra.mxu0 0.0
      %4163 = vmatprep.mubr.f32.mxu0 0.0
      %4164 = vmatmul.mubr.f32.gmra.mrb[0].mxu0 %v4001
      %v4165 = vpop.f32.mrb[0].mxu0
      %v4166 = vadd.f32 0.0, %v4165
      %v4167 = vpop.f32.mrb[0].mxu0
      %4168 = vmatprep.mubr.f32.mxu0 0.0
      %4169 = vmatmul.mubr.f32.gmra.mrb[0].mxu0 %v4004
      %v4170 = vpop.f32.mrb[0].mxu0
      %v4171 = vadd.f32 0.0, %v4170
      %v4172 = vpop.f32.mrb[0].mxu0
      %4173 = vmatprep.mubr.f32.mxu0 0.0
      %4174 = vmatmul.mubr.f32.gmra.mrb[0].mxu0 %v4007
      %v4175 = vpop.f32.mrb[0].mxu0
      %v4176 = vadd.f32 0.0, %v4175
      %v4177 = vpop.f32.mrb[0].mxu0
      %4178 = vmatprep.mubr.f32.mxu0 0.0
      %4179 = vmatmul.mubr.f32.gmra.mrb[0].mxu0 %v4010
      %v4180 = vpop.f32.mrb[0].mxu0
      %v4181 = vadd.f32 0.0, %v4180
      %v4182 = vpop.f32.mrb[0].mxu0
      %4183 = vmatprep.mubr.f32.mxu0 0.0
      %4184 = vmatmul.mubr.f32.gmra.mrb[0].mxu0 %v4013
      %v4185 = vpop.f32.mrb[0].mxu0
      %v4186 = vadd.f32 0.0, %v4185
      %v4187 = vpop.f32.mrb[0].mxu0
      %4188 = vmatprep.mubr.f32.mxu0 0.0
      %4189 = vmatmul.mubr.f32.gmra.mrb[0].mxu0 %v4016
      %v4190 = vpop.f32.mrb[0].mxu0
      %v4191 = vadd.f32 0.0, %v4190
      %v4192 = vpop.f32.mrb[0].mxu0
      %4193 = vmatprep.mubr.f32.mxu0 0.0
      %4194 = vmatmul.mubr.f32.gmra.mrb[0].mxu0 %v4019
      %v4195 = vpop.f32.mrb[0].mxu0
      %v4196 = vadd.f32 0.0, %v4195
      %v4197 = vpop.f32.mrb[0].mxu0
      %4198 = vmatprep.mubr.f32.mxu0 0.0
      %4199 = vmatmul.mubr.f32.gmra.mrb[0].mxu0 %v4022
      %v4200 = vpop.f32.mrb[0].mxu0
      %v4201 = vadd.f32 0.0, %v4200
      %v4202 = vpop.f32.mrb[0].mxu0
      %4203 = vmatprep.mubr.f32.mxu0 0.0
      %4204 = vmatmul.mubr.f32.gmra.mrb[0].mxu0 %v4025
      %v4205 = vpop.f32.mrb[0].mxu0
      %v4206 = vadd.f32 0.0, %v4205
      %v4207 = vpop.f32.mrb[0].mxu0
      %4208 = vmatprep.mubr.f32.mxu0 0.0
      %4209 = vmatmul.mubr.f32.gmra.mrb[0].mxu0 %v4028
      %v4210 = vpop.f32.mrb[0].mxu0
      %v4211 = vadd.f32 0.0, %v4210
      %v4212 = vpop.f32.mrb[0].mxu0
      %4213 = vmatprep.mubr.f32.mxu0 0.0
      %4214 = vmatmul.mubr.f32.gmra.mrb[0].mxu0 %v4031
      %v4215 = vpop.f32.mrb[0].mxu0
      %v4216 = vadd.f32 0.0, %v4215
      %v4217 = vpop.f32.mrb[0].mxu0
      %4218 = vmatprep.mubr.f32.mxu0 0.0
      %4219 = vmatmul.mubr.f32.gmra.mrb[0].mxu0 %v4034
      %v4220 = vpop.f32.mrb[0].mxu0
      %v4221 = vadd.f32 0.0, %v4220
      %v4222 = vpop.f32.mrb[0].mxu0
      %4223 = vmatprep.mubr.f32.mxu0 0.0
      %4224 = vmatmul.mubr.f32.gmra.mrb[0].mxu0 %v4037
      %v4225 = vpop.f32.mrb[0].mxu0
      %v4226 = vadd.f32 0.0, %v4225
      %v4227 = vpop.f32.mrb[0].mxu0
      %4228 = vmatprep.mubr.f32.mxu0 0.0
      %4229 = vmatmul.mubr.f32.gmra.mrb[0].mxu0 %v4040
      %v4230 = vpop.f32.mrb[0].mxu0
      %v4231 = vadd.f32 0.0, %v4230
      %v4232 = vpop.f32.mrb[0].mxu0
      %4233 = vmatprep.mubr.f32.mxu0 0.0
      %4234 = vmatmul.mubr.f32.gmra.mrb[0].mxu0 %v4043
      %v4235 = vpop.f32.mrb[0].mxu0
      %v4236 = vadd.f32 0.0, %v4235
      %v4237 = vpop.f32.mrb[0].mxu0
      %4238 = vmatprep.mubr.f32.mxu0 0.0
      %4239 = vmatmul.mubr.f32.gmra.mrb[0].mxu0 %v4046
      %v4240 = vpop.f32.mrb[0].mxu0
      %v4241 = vadd.f32 0.0, %v4240
      %v4242 = vpop.f32.mrb[0].mxu0
      %4243 = vmatprep.mubr.f32.mxu0 0.0
      %4244 = vmatmul.mubr.f32.gmra.mrb[0].mxu0 %v4049
      %v4245 = vpop.f32.mrb[0].mxu0
      %v4246 = vadd.f32 0.0, %v4245
      %v4247 = vpop.f32.mrb[0].mxu0
      %4248 = vmatprep.mubr.f32.mxu0 0.0
      %4249 = vmatmul.mubr.f32.gmra.mrb[0].mxu0 %v4052
      %v4250 = vpop.f32.mrb[0].mxu0
      %v4251 = vadd.f32 0.0, %v4250
      %v4252 = vpop.f32.mrb[0].mxu0
      %4253 = vmatprep.mubr.f32.mxu0 0.0
      %4254 = vmatmul.mubr.f32.gmra.mrb[0].mxu0 %v4055
      %v4255 = vpop.f32.mrb[0].mxu0
      %v4256 = vadd.f32 0.0, %v4255
      %v4257 = vpop.f32.mrb[0].mxu0
      %4258 = vmatprep.mubr.f32.mxu0 0.0
      %4259 = vmatmul.mubr.f32.gmra.mrb[0].mxu0 %v4058
      %v4260 = vpop.f32.mrb[0].mxu0
      %v4261 = vadd.f32 0.0, %v4260
      %v4262 = vpop.f32.mrb[0].mxu0
      %4263 = vmatprep.mubr.f32.mxu0 0.0
      %4264 = vmatmul.mubr.f32.gmra.mrb[0].mxu0 %v4061
      %v4265 = vpop.f32.mrb[0].mxu0
      %v4266 = vadd.f32 0.0, %v4265
      %v4267 = vpop.f32.mrb[0].mxu0
      %4268 = vmatprep.mubr.f32.mxu0 0.0
      %4269 = vmatmul.mubr.f32.gmra.mrb[0].mxu0 %v4064
      %v4270 = vpop.f32.mrb[0].mxu0
      %v4271 = vadd.f32 0.0, %v4270
      %v4272 = vpop.f32.mrb[0].mxu0
      %4273 = vmatprep.mubr.f32.mxu0 0.0
      %4274 = vmatmul.mubr.f32.gmra.mrb[0].mxu0 %v4067
      %v4275 = vpop.f32.mrb[0].mxu0
      %v4276 = vadd.f32 0.0, %v4275
      %v4277 = vpop.f32.mrb[0].mxu0
      %4278 = vmatprep.mubr.f32.mxu0 0.0
      %4279 = vmatmul.mubr.f32.gmra.mrb[0].mxu0 %v4070
      %v4280 = vpop.f32.mrb[0].mxu0
      %v4281 = vadd.f32 0.0, %v4280
      %v4282 = vpop.f32.mrb[0].mxu0
      %4283 = vmatprep.mubr.f32.mxu0 0.0
      %4284 = vmatmul.mubr.f32.gmra.mrb[0].mxu0 %v4073
      %v4285 = vpop.f32.mrb[0].mxu0
      %v4286 = vadd.f32 0.0, %v4285
      %v4287 = vpop.f32.mrb[0].mxu0
      %4288 = vmatprep.mubr.f32.mxu0 0.0
      %4289 = vmatmul.mubr.f32.gmra.mrb[0].mxu0 %v4076
      %v4290 = vpop.f32.mrb[0].mxu0
      %v4291 = vadd.f32 0.0, %v4290
      %v4292 = vpop.f32.mrb[0].mxu0
      %4293 = vmatprep.mubr.f32.mxu0 0.0
      %4294 = vmatmul.mubr.f32.gmra.mrb[0].mxu0 %v4079
      %v4295 = vpop.f32.mrb[0].mxu0
      %v4296 = vadd.f32 0.0, %v4295
      %v4297 = vpop.f32.mrb[0].mxu0
      %4298 = vmatprep.mubr.f32.mxu0 0.0
      %4299 = vmatmul.mubr.f32.gmra.mrb[0].mxu0 %v4082
      %v4300 = vpop.f32.mrb[0].mxu0
      %v4301 = vadd.f32 0.0, %v4300
      %v4302 = vpop.f32.mrb[0].mxu0
      %4303 = vmatprep.mubr.f32.mxu0 0.0
      %4304 = vmatmul.mubr.f32.gmra.mrb[0].mxu0 %v4085
      %v4305 = vpop.f32.mrb[0].mxu0
      %v4306 = vadd.f32 0.0, %v4305
      %v4307 = vpop.f32.mrb[0].mxu0
      %4308 = vmatprep.mubr.f32.mxu0 0.0
      %4309 = vmatmul.mubr.f32.gmra.mrb[0].mxu0 %v4088
      %v4310 = vpop.f32.mrb[0].mxu0
      %v4311 = vadd.f32 0.0, %v4310
      %v4312 = vpop.f32.mrb[0].mxu0
      %4313 = vmatprep.mubr.f32.mxu0 0.0
      %4314 = vmatmul.mubr.f32.gmra.mrb[0].mxu0 %v4091
      %v4315 = vpop.f32.mrb[0].mxu0
      %v4316 = vadd.f32 0.0, %v4315
      %v4317 = vpop.f32.mrb[0].mxu0
      %4318 = vmatprep.mubr.f32.mxu0 0.0
      %4319 = vmatmul.mubr.f32.gmra.mrb[0].mxu0 %v4094
      %v4320 = vpop.f32.mrb[0].mxu0
      %v4321 = vadd.f32 0.0, %v4320
      %v4322 = vpop.f32.mrb[0].mxu0
      %4323 = vdwg.mxu0
      %v4324 = vadd.f32 %v3965, %v4166
      %v4325 = vadd.f32 %v3965, %v4171
      %v4326 = vadd.f32 %v3965, %v4176
      %v4327 = vadd.f32 %v3965, %v4181
      %v4328 = vadd.f32 %v3965, %v4186
      %v4329 = vadd.f32 %v3965, %v4191
      %v4330 = vadd.f32 %v3965, %v4196
      %v4331 = vadd.f32 %v3965, %v4201
      %v4332 = vadd.f32 %v3965, %v4206
      %v4333 = vadd.f32 %v3965, %v4211
      %v4334 = vadd.f32 %v3965, %v4216
      %v4335 = vadd.f32 %v3965, %v4221
      %v4336 = vadd.f32 %v3965, %v4226
      %v4337 = vadd.f32 %v3965, %v4231
      %v4338 = vadd.f32 %v3965, %v4236
      %v4339 = vadd.f32 %v3965, %v4241
      %v4340 = vadd.f32 %v3965, %v4246
      %v4341 = vadd.f32 %v3965, %v4251
      %v4342 = vadd.f32 %v3965, %v4256
      %v4343 = vadd.f32 %v3965, %v4261
      %v4344 = vadd.f32 %v3965, %v4266
      %v4345 = vadd.f32 %v3965, %v4271
      %v4346 = vadd.f32 %v3965, %v4276
      %v4347 = vadd.f32 %v3965, %v4281
      %v4348 = vadd.f32 %v3965, %v4286
      %v4349 = vadd.f32 %v3965, %v4291
      %v4350 = vadd.f32 %v3965, %v4296
      %v4351 = vadd.f32 %v3965, %v4301
      %v4352 = vadd.f32 %v3965, %v4306
      %v4353 = vadd.f32 %v3965, %v4311
      %v4354 = vadd.f32 %v3965, %v4316
      %v4355 = vadd.f32 %v3965, %v4321
      %v4356 = vld [vmem:[#allocation2 + $0x1] sm:$0xff]
      %v4357 = vld [vmem:[#allocation2 + $0x9] sm:$0xff]
      %v4358 = vld [vmem:[#allocation2 + $0x19] sm:$0xff]
      %v4359 = vld [vmem:[#allocation2 + $0x21] sm:$0xff]
      %v4360 = vld [vmem:[#allocation2 + $0x31] sm:$0xff]
      %v4361 = vld [vmem:[#allocation2 + $0x39] sm:$0xff]
      %v4362 = vld [vmem:[#allocation2 + $0x49] sm:$0xff]
      %v4363 = vld [vmem:[#allocation2 + $0x51] sm:$0xff]
      %v4364 = vld [vmem:[#allocation2 + $0x61] sm:$0xff]
      %v4365 = vld [vmem:[#allocation2 + $0x69] sm:$0xff]
      %v4366 = vld [vmem:[#allocation2 + $0x79] sm:$0xff]
      %v4367 = vld [vmem:[#allocation2 + $0x81] sm:$0xff]
      %v4368 = vld [vmem:[#allocation2 + $0x91] sm:$0xff]
      %v4369 = vld [vmem:[#allocation2 + $0x99] sm:$0xff]
      %v4370 = vld [vmem:[#allocation2 + $0xa9] sm:$0xff]
      %v4371 = vld [vmem:[#allocation2 + $0xb1] sm:$0xff]
      %v4372 = vld [vmem:[#allocation2 + $0xc1] sm:$0xff]
      %v4373 = vld [vmem:[#allocation2 + $0xc9] sm:$0xff]
      %v4374 = vld [vmem:[#allocation2 + $0xd9] sm:$0xff]
      %v4375 = vld [vmem:[#allocation2 + $0xe1] sm:$0xff]
      %v4376 = vld [vmem:[#allocation2 + $0xf1] sm:$0xff]
      %v4377 = vld [vmem:[#allocation2 + $0xf9] sm:$0xff]
      %v4378 = vld [vmem:[#allocation2 + $0x109] sm:$0xff]
      %v4379 = vld [vmem:[#allocation2 + $0x111] sm:$0xff]
      %v4380 = vld [vmem:[#allocation2 + $0x121] sm:$0xff]
      %v4381 = vld [vmem:[#allocation2 + $0x129] sm:$0xff]
      %v4382 = vld [vmem:[#allocation2 + $0x139] sm:$0xff]
      %v4383 = vld [vmem:[#allocation2 + $0x141] sm:$0xff]
      %v4384 = vld [vmem:[#allocation2 + $0x151] sm:$0xff]
      %v4385 = vld [vmem:[#allocation2 + $0x159] sm:$0xff]
      %v4386 = vld [vmem:[#allocation2 + $0x169] sm:$0xff]
      %v4387 = vld [vmem:[#allocation2 + $0x171] sm:$0xff]
      %s4388 = scalar_lea.vmem %s3, 4
      %v4389 = vld [vmem:[%s4388] sm:$0xf]
      %v4391 = vsel %vm225, %v4356, 0
      %v4394 = vsel %vm225, %v4357, 0
      %v4397 = vsel %vm225, %v4358, 0
      %v4400 = vsel %vm225, %v4359, 0
      %v4403 = vsel %vm225, %v4360, 0
      %v4406 = vsel %vm225, %v4361, 0
      %v4409 = vsel %vm225, %v4362, 0
      %v4412 = vsel %vm225, %v4363, 0
      %v4415 = vsel %vm225, %v4364, 0
      %v4418 = vsel %vm225, %v4365, 0
      %v4421 = vsel %vm225, %v4366, 0
      %v4424 = vsel %vm225, %v4367, 0
      %v4427 = vsel %vm225, %v4368, 0
      %v4430 = vsel %vm225, %v4369, 0
      %v4433 = vsel %vm225, %v4370, 0
      %v4436 = vsel %vm225, %v4371, 0
      %v4439 = vsel %vm225, %v4372, 0
      %v4442 = vsel %vm225, %v4373, 0
      %v4445 = vsel %vm225, %v4374, 0
      %v4448 = vsel %vm225, %v4375, 0
      %v4451 = vsel %vm225, %v4376, 0
      %v4454 = vsel %vm225, %v4377, 0
      %v4457 = vsel %vm225, %v4378, 0
      %v4460 = vsel %vm225, %v4379, 0
      %v4463 = vsel %vm225, %v4380, 0
      %v4466 = vsel %vm225, %v4381, 0
      %v4469 = vsel %vm225, %v4382, 0
      %v4472 = vsel %vm225, %v4383, 0
      %v4475 = vsel %vm225, %v4384, 0
      %v4478 = vsel %vm225, %v4385, 0
      %v4481 = vsel %vm225, %v4386, 0
      %v4484 = vsel %vm225, %v4387, 0
      %v4487 = vsel %vm514, %v4389, 0
      %4489 = vmatprep.subr.mxu0 0.0
      %4490 = vmatpush1.msra.mxu0 %v4487
      %4491 = vmatprep.subr.mxu0 0.0
      %4492 = vmatpush1.msra.mxu0 0.0
      %4493 = vmatprep.subr.mxu0 0.0
      %4494 = vmatpush1.msra.mxu0 0.0
      %4495 = vmatprep.subr.mxu0 0.0
      %4496 = vmatpush1.msra.mxu0 0.0
      %4497 = vmatprep.subr.mxu0 0.0
      %4498 = vmatpush1.msra.mxu0 0.0
      %4499 = vmatprep.subr.mxu0 0.0
      %4500 = vmatpush1.msra.mxu0 0.0
      %4501 = vmatprep.subr.mxu0 0.0
      %4502 = vmatpush1.msra.mxu0 0.0
      %4503 = vmatprep.subr.mxu0 0.0
      %4504 = vmatpush1.msra.mxu0 0.0
      %4505 = vmatprep.subr.mxu0 0.0
      %4506 = vmatpush1.msra.mxu0 0.0
      %4507 = vmatprep.subr.mxu0 0.0
      %4508 = vmatpush1.msra.mxu0 0.0
      %4509 = vmatprep.subr.mxu0 0.0
      %4510 = vmatpush1.msra.mxu0 0.0
      %4511 = vmatprep.subr.mxu0 0.0
      %4512 = vmatpush1.msra.mxu0 0.0
      %4513 = vmatprep.subr.mxu0 0.0
      %4514 = vmatpush1.msra.mxu0 0.0
      %4515 = vmatprep.subr.mxu0 0.0
      %4516 = vmatpush1.msra.mxu0 0.0
      %4517 = vmatprep.subr.mxu0 0.0
      %4518 = vmatpush1.msra.mxu0 0.0
      %4519 = vmatprep.subr.mxu0 0.0
      %4520 = vmatpush1.msra.mxu0 0.0
      %4521 = vmatprep.subr.mxu0 0.0
      %4522 = vmatpush1.msra.mxu0 0.0
      %4523 = vmatprep.subr.mxu0 0.0
      %4524 = vmatpush1.msra.mxu0 0.0
      %4525 = vmatprep.subr.mxu0 0.0
      %4526 = vmatpush1.msra.mxu0 0.0
      %4527 = vmatprep.subr.mxu0 0.0
      %4528 = vmatpush1.msra.mxu0 0.0
      %4529 = vmatprep.subr.mxu0 0.0
      %4530 = vmatpush1.msra.mxu0 0.0
      %4531 = vmatprep.subr.mxu0 0.0
      %4532 = vmatpush1.msra.mxu0 0.0
      %4533 = vmatprep.subr.mxu0 0.0
      %4534 = vmatpush1.msra.mxu0 0.0
      %4535 = vmatprep.subr.mxu0 0.0
      %4536 = vmatpush1.msra.mxu0 0.0
      %4537 = vmatprep.subr.mxu0 0.0
      %4538 = vmatpush1.msra.mxu0 0.0
      %4539 = vmatprep.subr.mxu0 0.0
      %4540 = vmatpush1.msra.mxu0 0.0
      %4541 = vmatprep.subr.mxu0 0.0
      %4542 = vmatpush1.msra.mxu0 0.0
      %4543 = vmatprep.subr.mxu0 0.0
      %4544 = vmatpush1.msra.mxu0 0.0
      %4545 = vmatprep.subr.mxu0 0.0
      %4546 = vmatpush1.msra.mxu0 0.0
      %4547 = vmatprep.subr.mxu0 0.0
      %4548 = vmatpush1.msra.mxu0 0.0
      %4549 = vmatprep.subr.mxu0 0.0
      %4550 = vmatpush1.msra.mxu0 0.0
      %4551 = vmatprep.subr.mxu0 0.0
      %4552 = vmatpush1.msra.mxu0 0.0
      %4553 = vmatprep.mubr.f32.mxu0 0.0
      %4554 = vmatmul.mubr.f32.gmra.mrb[0].mxu0 %v4391
      %v4555 = vpop.f32.mrb[0].mxu0
      %v4556 = vadd.f32 0.0, %v4555
      %v4557 = vpop.f32.mrb[0].mxu0
      %4558 = vmatprep.mubr.f32.mxu0 0.0
      %4559 = vmatmul.mubr.f32.gmra.mrb[0].mxu0 %v4394
      %v4560 = vpop.f32.mrb[0].mxu0
      %v4561 = vadd.f32 0.0, %v4560
      %v4562 = vpop.f32.mrb[0].mxu0
      %4563 = vmatprep.mubr.f32.mxu0 0.0
      %4564 = vmatmul.mubr.f32.gmra.mrb[0].mxu0 %v4397
      %v4565 = vpop.f32.mrb[0].mxu0
      %v4566 = vadd.f32 0.0, %v4565
      %v4567 = vpop.f32.mrb[0].mxu0
      %4568 = vmatprep.mubr.f32.mxu0 0.0
      %4569 = vmatmul.mubr.f32.gmra.mrb[0].mxu0 %v4400
      %v4570 = vpop.f32.mrb[0].mxu0
      %v4571 = vadd.f32 0.0, %v4570
      %v4572 = vpop.f32.mrb[0].mxu0
      %4573 = vmatprep.mubr.f32.mxu0 0.0
      %4574 = vmatmul.mubr.f32.gmra.mrb[0].mxu0 %v4403
      %v4575 = vpop.f32.mrb[0].mxu0
      %v4576 = vadd.f32 0.0, %v4575
      %v4577 = vpop.f32.mrb[0].mxu0
      %4578 = vmatprep.mubr.f32.mxu0 0.0
      %4579 = vmatmul.mubr.f32.gmra.mrb[0].mxu0 %v4406
      %v4580 = vpop.f32.mrb[0].mxu0
      %v4581 = vadd.f32 0.0, %v4580
      %v4582 = vpop.f32.mrb[0].mxu0
      %4583 = vmatprep.mubr.f32.mxu0 0.0
      %4584 = vmatmul.mubr.f32.gmra.mrb[0].mxu0 %v4409
      %v4585 = vpop.f32.mrb[0].mxu0
      %v4586 = vadd.f32 0.0, %v4585
      %v4587 = vpop.f32.mrb[0].mxu0
      %4588 = vmatprep.mubr.f32.mxu0 0.0
      %4589 = vmatmul.mubr.f32.gmra.mrb[0].mxu0 %v4412
      %v4590 = vpop.f32.mrb[0].mxu0
      %v4591 = vadd.f32 0.0, %v4590
      %v4592 = vpop.f32.mrb[0].mxu0
      %4593 = vmatprep.mubr.f32.mxu0 0.0
      %4594 = vmatmul.mubr.f32.gmra.mrb[0].mxu0 %v4415
      %v4595 = vpop.f32.mrb[0].mxu0
      %v4596 = vadd.f32 0.0, %v4595
      %v4597 = vpop.f32.mrb[0].mxu0
      %4598 = vmatprep.mubr.f32.mxu0 0.0
      %4599 = vmatmul.mubr.f32.gmra.mrb[0].mxu0 %v4418
      %v4600 = vpop.f32.mrb[0].mxu0
      %v4601 = vadd.f32 0.0, %v4600
      %v4602 = vpop.f32.mrb[0].mxu0
      %4603 = vmatprep.mubr.f32.mxu0 0.0
      %4604 = vmatmul.mubr.f32.gmra.mrb[0].mxu0 %v4421
      %v4605 = vpop.f32.mrb[0].mxu0
      %v4606 = vadd.f32 0.0, %v4605
      %v4607 = vpop.f32.mrb[0].mxu0
      %4608 = vmatprep.mubr.f32.mxu0 0.0
      %4609 = vmatmul.mubr.f32.gmra.mrb[0].mxu0 %v4424
      %v4610 = vpop.f32.mrb[0].mxu0
      %v4611 = vadd.f32 0.0, %v4610
      %v4612 = vpop.f32.mrb[0].mxu0
      %4613 = vmatprep.mubr.f32.mxu0 0.0
      %4614 = vmatmul.mubr.f32.gmra.mrb[0].mxu0 %v4427
      %v4615 = vpop.f32.mrb[0].mxu0
      %v4616 = vadd.f32 0.0, %v4615
      %v4617 = vpop.f32.mrb[0].mxu0
      %4618 = vmatprep.mubr.f32.mxu0 0.0
      %4619 = vmatmul.mubr.f32.gmra.mrb[0].mxu0 %v4430
      %v4620 = vpop.f32.mrb[0].mxu0
      %v4621 = vadd.f32 0.0, %v4620
      %v4622 = vpop.f32.mrb[0].mxu0
      %4623 = vmatprep.mubr.f32.mxu0 0.0
      %4624 = vmatmul.mubr.f32.gmra.mrb[0].mxu0 %v4433
      %v4625 = vpop.f32.mrb[0].mxu0
      %v4626 = vadd.f32 0.0, %v4625
      %v4627 = vpop.f32.mrb[0].mxu0
      %4628 = vmatprep.mubr.f32.mxu0 0.0
      %4629 = vmatmul.mubr.f32.gmra.mrb[0].mxu0 %v4436
      %v4630 = vpop.f32.mrb[0].mxu0
      %v4631 = vadd.f32 0.0, %v4630
      %v4632 = vpop.f32.mrb[0].mxu0
      %4633 = vmatprep.mubr.f32.mxu0 0.0
      %4634 = vmatmul.mubr.f32.gmra.mrb[0].mxu0 %v4439
      %v4635 = vpop.f32.mrb[0].mxu0
      %v4636 = vadd.f32 0.0, %v4635
      %v4637 = vpop.f32.mrb[0].mxu0
      %4638 = vmatprep.mubr.f32.mxu0 0.0
      %4639 = vmatmul.mubr.f32.gmra.mrb[0].mxu0 %v4442
      %v4640 = vpop.f32.mrb[0].mxu0
      %v4641 = vadd.f32 0.0, %v4640
      %v4642 = vpop.f32.mrb[0].mxu0
      %4643 = vmatprep.mubr.f32.mxu0 0.0
      %4644 = vmatmul.mubr.f32.gmra.mrb[0].mxu0 %v4445
      %v4645 = vpop.f32.mrb[0].mxu0
      %v4646 = vadd.f32 0.0, %v4645
      %v4647 = vpop.f32.mrb[0].mxu0
      %4648 = vmatprep.mubr.f32.mxu0 0.0
      %4649 = vmatmul.mubr.f32.gmra.mrb[0].mxu0 %v4448
      %v4650 = vpop.f32.mrb[0].mxu0
      %v4651 = vadd.f32 0.0, %v4650
      %v4652 = vpop.f32.mrb[0].mxu0
      %4653 = vmatprep.mubr.f32.mxu0 0.0
      %4654 = vmatmul.mubr.f32.gmra.mrb[0].mxu0 %v4451
      %v4655 = vpop.f32.mrb[0].mxu0
      %v4656 = vadd.f32 0.0, %v4655
      %v4657 = vpop.f32.mrb[0].mxu0
      %4658 = vmatprep.mubr.f32.mxu0 0.0
      %4659 = vmatmul.mubr.f32.gmra.mrb[0].mxu0 %v4454
      %v4660 = vpop.f32.mrb[0].mxu0
      %v4661 = vadd.f32 0.0, %v4660
      %v4662 = vpop.f32.mrb[0].mxu0
      %4663 = vmatprep.mubr.f32.mxu0 0.0
      %4664 = vmatmul.mubr.f32.gmra.mrb[0].mxu0 %v4457
      %v4665 = vpop.f32.mrb[0].mxu0
      %v4666 = vadd.f32 0.0, %v4665
      %v4667 = vpop.f32.mrb[0].mxu0
      %4668 = vmatprep.mubr.f32.mxu0 0.0
      %4669 = vmatmul.mubr.f32.gmra.mrb[0].mxu0 %v4460
      %v4670 = vpop.f32.mrb[0].mxu0
      %v4671 = vadd.f32 0.0, %v4670
      %v4672 = vpop.f32.mrb[0].mxu0
      %4673 = vmatprep.mubr.f32.mxu0 0.0
      %4674 = vmatmul.mubr.f32.gmra.mrb[0].mxu0 %v4463
      %v4675 = vpop.f32.mrb[0].mxu0
      %v4676 = vadd.f32 0.0, %v4675
      %v4677 = vpop.f32.mrb[0].mxu0
      %4678 = vmatprep.mubr.f32.mxu0 0.0
      %4679 = vmatmul.mubr.f32.gmra.mrb[0].mxu0 %v4466
      %v4680 = vpop.f32.mrb[0].mxu0
      %v4681 = vadd.f32 0.0, %v4680
      %v4682 = vpop.f32.mrb[0].mxu0
      %4683 = vmatprep.mubr.f32.mxu0 0.0
      %4684 = vmatmul.mubr.f32.gmra.mrb[0].mxu0 %v4469
      %v4685 = vpop.f32.mrb[0].mxu0
      %v4686 = vadd.f32 0.0, %v4685
      %v4687 = vpop.f32.mrb[0].mxu0
      %4688 = vmatprep.mubr.f32.mxu0 0.0
      %4689 = vmatmul.mubr.f32.gmra.mrb[0].mxu0 %v4472
      %v4690 = vpop.f32.mrb[0].mxu0
      %v4691 = vadd.f32 0.0, %v4690
      %v4692 = vpop.f32.mrb[0].mxu0
      %4693 = vmatprep.mubr.f32.mxu0 0.0
      %4694 = vmatmul.mubr.f32.gmra.mrb[0].mxu0 %v4475
      %v4695 = vpop.f32.mrb[0].mxu0
      %v4696 = vadd.f32 0.0, %v4695
      %v4697 = vpop.f32.mrb[0].mxu0
      %4698 = vmatprep.mubr.f32.mxu0 0.0
      %4699 = vmatmul.mubr.f32.gmra.mrb[0].mxu0 %v4478
      %v4700 = vpop.f32.mrb[0].mxu0
      %v4701 = vadd.f32 0.0, %v4700
      %v4702 = vpop.f32.mrb[0].mxu0
      %4703 = vmatprep.mubr.f32.mxu0 0.0
      %4704 = vmatmul.mubr.f32.gmra.mrb[0].mxu0 %v4481
      %v4705 = vpop.f32.mrb[0].mxu0
      %v4706 = vadd.f32 0.0, %v4705
      %v4707 = vpop.f32.mrb[0].mxu0
      %4708 = vmatprep.mubr.f32.mxu0 0.0
      %4709 = vmatmul.mubr.f32.gmra.mrb[0].mxu0 %v4484
      %v4710 = vpop.f32.mrb[0].mxu0
      %v4711 = vadd.f32 0.0, %v4710
      %v4712 = vpop.f32.mrb[0].mxu0
      %4713 = vdwg.mxu0
      %v4714 = vadd.f32 %v4324, %v4556
      %v4715 = vadd.f32 %v4325, %v4561
      %v4716 = vadd.f32 %v4326, %v4566
      %v4717 = vadd.f32 %v4327, %v4571
      %v4718 = vadd.f32 %v4328, %v4576
      %v4719 = vadd.f32 %v4329, %v4581
      %v4720 = vadd.f32 %v4330, %v4586
      %v4721 = vadd.f32 %v4331, %v4591
      %v4722 = vadd.f32 %v4332, %v4596
      %v4723 = vadd.f32 %v4333, %v4601
      %v4724 = vadd.f32 %v4334, %v4606
      %v4725 = vadd.f32 %v4335, %v4611
      %v4726 = vadd.f32 %v4336, %v4616
      %v4727 = vadd.f32 %v4337, %v4621
      %v4728 = vadd.f32 %v4338, %v4626
      %v4729 = vadd.f32 %v4339, %v4631
      %v4730 = vadd.f32 %v4340, %v4636
      %v4731 = vadd.f32 %v4341, %v4641
      %v4732 = vadd.f32 %v4342, %v4646
      %v4733 = vadd.f32 %v4343, %v4651
      %v4734 = vadd.f32 %v4344, %v4656
      %v4735 = vadd.f32 %v4345, %v4661
      %v4736 = vadd.f32 %v4346, %v4666
      %v4737 = vadd.f32 %v4347, %v4671
      %v4738 = vadd.f32 %v4348, %v4676
      %v4739 = vadd.f32 %v4349, %v4681
      %v4740 = vadd.f32 %v4350, %v4686
      %v4741 = vadd.f32 %v4351, %v4691
      %v4742 = vadd.f32 %v4352, %v4696
      %v4743 = vadd.f32 %v4353, %v4701
      %v4744 = vadd.f32 %v4354, %v4706
      %v4745 = vadd.f32 %v4355, %v4711
      %v4746 = vld [vmem:[#allocation2 + $0x2] sm:$0xff]
      %v4747 = vld [vmem:[#allocation2 + $0xa] sm:$0xff]
      %v4748 = vld [vmem:[#allocation2 + $0x1a] sm:$0xff]
      %v4749 = vld [vmem:[#allocation2 + $0x22] sm:$0xff]
      %v4750 = vld [vmem:[#allocation2 + $0x32] sm:$0xff]
      %v4751 = vld [vmem:[#allocation2 + $0x3a] sm:$0xff]
      %v4752 = vld [vmem:[#allocation2 + $0x4a] sm:$0xff]
      %v4753 = vld [vmem:[#allocation2 + $0x52] sm:$0xff]
      %v4754 = vld [vmem:[#allocation2 + $0x62] sm:$0xff]
      %v4755 = vld [vmem:[#allocation2 + $0x6a] sm:$0xff]
      %v4756 = vld [vmem:[#allocation2 + $0x7a] sm:$0xff]
      %v4757 = vld [vmem:[#allocation2 + $0x82] sm:$0xff]
      %v4758 = vld [vmem:[#allocation2 + $0x92] sm:$0xff]
      %v4759 = vld [vmem:[#allocation2 + $0x9a] sm:$0xff]
      %v4760 = vld [vmem:[#allocation2 + $0xaa] sm:$0xff]
      %v4761 = vld [vmem:[#allocation2 + $0xb2] sm:$0xff]
      %v4762 = vld [vmem:[#allocation2 + $0xc2] sm:$0xff]
      %v4763 = vld [vmem:[#allocation2 + $0xca] sm:$0xff]
      %v4764 = vld [vmem:[#allocation2 + $0xda] sm:$0xff]
      %v4765 = vld [vmem:[#allocation2 + $0xe2] sm:$0xff]
      %v4766 = vld [vmem:[#allocation2 + $0xf2] sm:$0xff]
      %v4767 = vld [vmem:[#allocation2 + $0xfa] sm:$0xff]
      %v4768 = vld [vmem:[#allocation2 + $0x10a] sm:$0xff]
      %v4769 = vld [vmem:[#allocation2 + $0x112] sm:$0xff]
      %v4770 = vld [vmem:[#allocation2 + $0x122] sm:$0xff]
      %v4771 = vld [vmem:[#allocation2 + $0x12a] sm:$0xff]
      %v4772 = vld [vmem:[#allocation2 + $0x13a] sm:$0xff]
      %v4773 = vld [vmem:[#allocation2 + $0x142] sm:$0xff]
      %v4774 = vld [vmem:[#allocation2 + $0x152] sm:$0xff]
      %v4775 = vld [vmem:[#allocation2 + $0x15a] sm:$0xff]
      %v4776 = vld [vmem:[#allocation2 + $0x16a] sm:$0xff]
      %v4777 = vld [vmem:[#allocation2 + $0x172] sm:$0xff]
      %s4778 = scalar_lea.vmem %s3, 8
      %v4779 = vld [vmem:[%s4778] sm:$0xf]
      %v4781 = vsel %vm225, %v4746, 0
      %v4784 = vsel %vm225, %v4747, 0
      %v4787 = vsel %vm225, %v4748, 0
      %v4790 = vsel %vm225, %v4749, 0
      %v4793 = vsel %vm225, %v4750, 0
      %v4796 = vsel %vm225, %v4751, 0
      %v4799 = vsel %vm225, %v4752, 0
      %v4802 = vsel %vm225, %v4753, 0
      %v4805 = vsel %vm225, %v4754, 0
      %v4808 = vsel %vm225, %v4755, 0
      %v4811 = vsel %vm225, %v4756, 0
      %v4814 = vsel %vm225, %v4757, 0
      %v4817 = vsel %vm225, %v4758, 0
      %v4820 = vsel %vm225, %v4759, 0
      %v4823 = vsel %vm225, %v4760, 0
      %v4826 = vsel %vm225, %v4761, 0
      %v4829 = vsel %vm225, %v4762, 0
      %v4832 = vsel %vm225, %v4763, 0
      %v4835 = vsel %vm225, %v4764, 0
      %v4838 = vsel %vm225, %v4765, 0
      %v4841 = vsel %vm225, %v4766, 0
      %v4844 = vsel %vm225, %v4767, 0
      %v4847 = vsel %vm225, %v4768, 0
      %v4850 = vsel %vm225, %v4769, 0
      %v4853 = vsel %vm225, %v4770, 0
      %v4856 = vsel %vm225, %v4771, 0
      %v4859 = vsel %vm225, %v4772, 0
      %v4862 = vsel %vm225, %v4773, 0
      %v4865 = vsel %vm225, %v4774, 0
      %v4868 = vsel %vm225, %v4775, 0
      %v4871 = vsel %vm225, %v4776, 0
      %v4874 = vsel %vm225, %v4777, 0
      %v4877 = vsel %vm514, %v4779, 0
      %4879 = vmatprep.subr.mxu0 0.0
      %4880 = vmatpush1.msra.mxu0 %v4877
      %4881 = vmatprep.subr.mxu0 0.0
      %4882 = vmatpush1.msra.mxu0 0.0
      %4883 = vmatprep.subr.mxu0 0.0
      %4884 = vmatpush1.msra.mxu0 0.0
      %4885 = vmatprep.subr.mxu0 0.0
      %4886 = vmatpush1.msra.mxu0 0.0
      %4887 = vmatprep.subr.mxu0 0.0
      %4888 = vmatpush1.msra.mxu0 0.0
      %4889 = vmatprep.subr.mxu0 0.0
      %4890 = vmatpush1.msra.mxu0 0.0
      %4891 = vmatprep.subr.mxu0 0.0
      %4892 = vmatpush1.msra.mxu0 0.0
      %4893 = vmatprep.subr.mxu0 0.0
      %4894 = vmatpush1.msra.mxu0 0.0
      %4895 = vmatprep.subr.mxu0 0.0
      %4896 = vmatpush1.msra.mxu0 0.0
      %4897 = vmatprep.subr.mxu0 0.0
      %4898 = vmatpush1.msra.mxu0 0.0
      %4899 = vmatprep.subr.mxu0 0.0
      %4900 = vmatpush1.msra.mxu0 0.0
      %4901 = vmatprep.subr.mxu0 0.0
      %4902 = vmatpush1.msra.mxu0 0.0
      %4903 = vmatprep.subr.mxu0 0.0
      %4904 = vmatpush1.msra.mxu0 0.0
      %4905 = vmatprep.subr.mxu0 0.0
      %4906 = vmatpush1.msra.mxu0 0.0
      %4907 = vmatprep.subr.mxu0 0.0
      %4908 = vmatpush1.msra.mxu0 0.0
      %4909 = vmatprep.subr.mxu0 0.0
      %4910 = vmatpush1.msra.mxu0 0.0
      %4911 = vmatprep.subr.mxu0 0.0
      %4912 = vmatpush1.msra.mxu0 0.0
      %4913 = vmatprep.subr.mxu0 0.0
      %4914 = vmatpush1.msra.mxu0 0.0
      %4915 = vmatprep.subr.mxu0 0.0
      %4916 = vmatpush1.msra.mxu0 0.0
      %4917 = vmatprep.subr.mxu0 0.0
      %4918 = vmatpush1.msra.mxu0 0.0
      %4919 = vmatprep.subr.mxu0 0.0
      %4920 = vmatpush1.msra.mxu0 0.0
      %4921 = vmatprep.subr.mxu0 0.0
      %4922 = vmatpush1.msra.mxu0 0.0
      %4923 = vmatprep.subr.mxu0 0.0
      %4924 = vmatpush1.msra.mxu0 0.0
      %4925 = vmatprep.subr.mxu0 0.0
      %4926 = vmatpush1.msra.mxu0 0.0
      %4927 = vmatprep.subr.mxu0 0.0
      %4928 = vmatpush1.msra.mxu0 0.0
      %4929 = vmatprep.subr.mxu0 0.0
      %4930 = vmatpush1.msra.mxu0 0.0
      %4931 = vmatprep.subr.mxu0 0.0
      %4932 = vmatpush1.msra.mxu0 0.0
      %4933 = vmatprep.subr.mxu0 0.0
      %4934 = vmatpush1.msra.mxu0 0.0
      %4935 = vmatprep.subr.mxu0 0.0
      %4936 = vmatpush1.msra.mxu0 0.0
      %4937 = vmatprep.subr.mxu0 0.0
      %4938 = vmatpush1.msra.mxu0 0.0
      %4939 = vmatprep.subr.mxu0 0.0
      %4940 = vmatpush1.msra.mxu0 0.0
      %4941 = vmatprep.subr.mxu0 0.0
      %4942 = vmatpush1.msra.mxu0 0.0
      %4943 = vmatprep.mubr.f32.mxu0 0.0
      %4944 = vmatmul.mubr.f32.gmra.mrb[0].mxu0 %v4781
      %v4945 = vpop.f32.mrb[0].mxu0
      %v4946 = vadd.f32 0.0, %v4945
      %v4947 = vpop.f32.mrb[0].mxu0
      %4948 = vmatprep.mubr.f32.mxu0 0.0
      %4949 = vmatmul.mubr.f32.gmra.mrb[0].mxu0 %v4784
      %v4950 = vpop.f32.mrb[0].mxu0
      %v4951 = vadd.f32 0.0, %v4950
      %v4952 = vpop.f32.mrb[0].mxu0
      %4953 = vmatprep.mubr.f32.mxu0 0.0
      %4954 = vmatmul.mubr.f32.gmra.mrb[0].mxu0 %v4787
      %v4955 = vpop.f32.mrb[0].mxu0
      %v4956 = vadd.f32 0.0, %v4955
      %v4957 = vpop.f32.mrb[0].mxu0
      %4958 = vmatprep.mubr.f32.mxu0 0.0
      %4959 = vmatmul.mubr.f32.gmra.mrb[0].mxu0 %v4790
      %v4960 = vpop.f32.mrb[0].mxu0
      %v4961 = vadd.f32 0.0, %v4960
      %v4962 = vpop.f32.mrb[0].mxu0
      %4963 = vmatprep.mubr.f32.mxu0 0.0
      %4964 = vmatmul.mubr.f32.gmra.mrb[0].mxu0 %v4793
      %v4965 = vpop.f32.mrb[0].mxu0
      %v4966 = vadd.f32 0.0, %v4965
      %v4967 = vpop.f32.mrb[0].mxu0
      %4968 = vmatprep.mubr.f32.mxu0 0.0
      %4969 = vmatmul.mubr.f32.gmra.mrb[0].mxu0 %v4796
      %v4970 = vpop.f32.mrb[0].mxu0
      %v4971 = vadd.f32 0.0, %v4970
      %v4972 = vpop.f32.mrb[0].mxu0
      %4973 = vmatprep.mubr.f32.mxu0 0.0
      %4974 = vmatmul.mubr.f32.gmra.mrb[0].mxu0 %v4799
      %v4975 = vpop.f32.mrb[0].mxu0
      %v4976 = vadd.f32 0.0, %v4975
      %v4977 = vpop.f32.mrb[0].mxu0
      %4978 = vmatprep.mubr.f32.mxu0 0.0
      %4979 = vmatmul.mubr.f32.gmra.mrb[0].mxu0 %v4802
      %v4980 = vpop.f32.mrb[0].mxu0
      %v4981 = vadd.f32 0.0, %v4980
      %v4982 = vpop.f32.mrb[0].mxu0
      %4983 = vmatprep.mubr.f32.mxu0 0.0
      %4984 = vmatmul.mubr.f32.gmra.mrb[0].mxu0 %v4805
      %v4985 = vpop.f32.mrb[0].mxu0
      %v4986 = vadd.f32 0.0, %v4985
      %v4987 = vpop.f32.mrb[0].mxu0
      %4988 = vmatprep.mubr.f32.mxu0 0.0
      %4989 = vmatmul.mubr.f32.gmra.mrb[0].mxu0 %v4808
      %v4990 = vpop.f32.mrb[0].mxu0
      %v4991 = vadd.f32 0.0, %v4990
      %v4992 = vpop.f32.mrb[0].mxu0
      %4993 = vmatprep.mubr.f32.mxu0 0.0
      %4994 = vmatmul.mubr.f32.gmra.mrb[0].mxu0 %v4811
      %v4995 = vpop.f32.mrb[0].mxu0
      %v4996 = vadd.f32 0.0, %v4995
      %v4997 = vpop.f32.mrb[0].mxu0
      %4998 = vmatprep.mubr.f32.mxu0 0.0
      %4999 = vmatmul.mubr.f32.gmra.mrb[0].mxu0 %v4814
      %v5000 = vpop.f32.mrb[0].mxu0
      %v5001 = vadd.f32 0.0, %v5000
      %v5002 = vpop.f32.mrb[0].mxu0
      %5003 = vmatprep.mubr.f32.mxu0 0.0
      %5004 = vmatmul.mubr.f32.gmra.mrb[0].mxu0 %v4817
      %v5005 = vpop.f32.mrb[0].mxu0
      %v5006 = vadd.f32 0.0, %v5005
      %v5007 = vpop.f32.mrb[0].mxu0
      %5008 = vmatprep.mubr.f32.mxu0 0.0
      %5009 = vmatmul.mubr.f32.gmra.mrb[0].mxu0 %v4820
      %v5010 = vpop.f32.mrb[0].mxu0
      %v5011 = vadd.f32 0.0, %v5010
      %v5012 = vpop.f32.mrb[0].mxu0
      %5013 = vmatprep.mubr.f32.mxu0 0.0
      %5014 = vmatmul.mubr.f32.gmra.mrb[0].mxu0 %v4823
      %v5015 = vpop.f32.mrb[0].mxu0
      %v5016 = vadd.f32 0.0, %v5015
      %v5017 = vpop.f32.mrb[0].mxu0
      %5018 = vmatprep.mubr.f32.mxu0 0.0
      %5019 = vmatmul.mubr.f32.gmra.mrb[0].mxu0 %v4826
      %v5020 = vpop.f32.mrb[0].mxu0
      %v5021 = vadd.f32 0.0, %v5020
      %v5022 = vpop.f32.mrb[0].mxu0
      %5023 = vmatprep.mubr.f32.mxu0 0.0
      %5024 = vmatmul.mubr.f32.gmra.mrb[0].mxu0 %v4829
      %v5025 = vpop.f32.mrb[0].mxu0
      %v5026 = vadd.f32 0.0, %v5025
      %v5027 = vpop.f32.mrb[0].mxu0
      %5028 = vmatprep.mubr.f32.mxu0 0.0
      %5029 = vmatmul.mubr.f32.gmra.mrb[0].mxu0 %v4832
      %v5030 = vpop.f32.mrb[0].mxu0
      %v5031 = vadd.f32 0.0, %v5030
      %v5032 = vpop.f32.mrb[0].mxu0
      %5033 = vmatprep.mubr.f32.mxu0 0.0
      %5034 = vmatmul.mubr.f32.gmra.mrb[0].mxu0 %v4835
      %v5035 = vpop.f32.mrb[0].mxu0
      %v5036 = vadd.f32 0.0, %v5035
      %v5037 = vpop.f32.mrb[0].mxu0
      %5038 = vmatprep.mubr.f32.mxu0 0.0
      %5039 = vmatmul.mubr.f32.gmra.mrb[0].mxu0 %v4838
      %v5040 = vpop.f32.mrb[0].mxu0
      %v5041 = vadd.f32 0.0, %v5040
      %v5042 = vpop.f32.mrb[0].mxu0
      %5043 = vmatprep.mubr.f32.mxu0 0.0
      %5044 = vmatmul.mubr.f32.gmra.mrb[0].mxu0 %v4841
      %v5045 = vpop.f32.mrb[0].mxu0
      %v5046 = vadd.f32 0.0, %v5045
      %v5047 = vpop.f32.mrb[0].mxu0
      %5048 = vmatprep.mubr.f32.mxu0 0.0
      %5049 = vmatmul.mubr.f32.gmra.mrb[0].mxu0 %v4844
      %v5050 = vpop.f32.mrb[0].mxu0
      %v5051 = vadd.f32 0.0, %v5050
      %v5052 = vpop.f32.mrb[0].mxu0
      %5053 = vmatprep.mubr.f32.mxu0 0.0
      %5054 = vmatmul.mubr.f32.gmra.mrb[0].mxu0 %v4847
      %v5055 = vpop.f32.mrb[0].mxu0
      %v5056 = vadd.f32 0.0, %v5055
      %v5057 = vpop.f32.mrb[0].mxu0
      %5058 = vmatprep.mubr.f32.mxu0 0.0
      %5059 = vmatmul.mubr.f32.gmra.mrb[0].mxu0 %v4850
      %v5060 = vpop.f32.mrb[0].mxu0
      %v5061 = vadd.f32 0.0, %v5060
      %v5062 = vpop.f32.mrb[0].mxu0
      %5063 = vmatprep.mubr.f32.mxu0 0.0
      %5064 = vmatmul.mubr.f32.gmra.mrb[0].mxu0 %v4853
      %v5065 = vpop.f32.mrb[0].mxu0
      %v5066 = vadd.f32 0.0, %v5065
      %v5067 = vpop.f32.mrb[0].mxu0
      %5068 = vmatprep.mubr.f32.mxu0 0.0
      %5069 = vmatmul.mubr.f32.gmra.mrb[0].mxu0 %v4856
      %v5070 = vpop.f32.mrb[0].mxu0
      %v5071 = vadd.f32 0.0, %v5070
      %v5072 = vpop.f32.mrb[0].mxu0
      %5073 = vmatprep.mubr.f32.mxu0 0.0
      %5074 = vmatmul.mubr.f32.gmra.mrb[0].mxu0 %v4859
      %v5075 = vpop.f32.mrb[0].mxu0
      %v5076 = vadd.f32 0.0, %v5075
      %v5077 = vpop.f32.mrb[0].mxu0
      %5078 = vmatprep.mubr.f32.mxu0 0.0
      %5079 = vmatmul.mubr.f32.gmra.mrb[0].mxu0 %v4862
      %v5080 = vpop.f32.mrb[0].mxu0
      %v5081 = vadd.f32 0.0, %v5080
      %v5082 = vpop.f32.mrb[0].mxu0
      %5083 = vmatprep.mubr.f32.mxu0 0.0
      %5084 = vmatmul.mubr.f32.gmra.mrb[0].mxu0 %v4865
      %v5085 = vpop.f32.mrb[0].mxu0
      %v5086 = vadd.f32 0.0, %v5085
      %v5087 = vpop.f32.mrb[0].mxu0
      %5088 = vmatprep.mubr.f32.mxu0 0.0
      %5089 = vmatmul.mubr.f32.gmra.mrb[0].mxu0 %v4868
      %v5090 = vpop.f32.mrb[0].mxu0
      %v5091 = vadd.f32 0.0, %v5090
      %v5092 = vpop.f32.mrb[0].mxu0
      %5093 = vmatprep.mubr.f32.mxu0 0.0
      %5094 = vmatmul.mubr.f32.gmra.mrb[0].mxu0 %v4871
      %v5095 = vpop.f32.mrb[0].mxu0
      %v5096 = vadd.f32 0.0, %v5095
      %v5097 = vpop.f32.mrb[0].mxu0
      %5098 = vmatprep.mubr.f32.mxu0 0.0
      %5099 = vmatmul.mubr.f32.gmra.mrb[0].mxu0 %v4874
      %v5100 = vpop.f32.mrb[0].mxu0
      %v5101 = vadd.f32 0.0, %v5100
      %v5102 = vpop.f32.mrb[0].mxu0
      %5103 = vdwg.mxu0
      %v5104 = vadd.f32 %v4714, %v4946
      %v5105 = vadd.f32 %v4715, %v4951
      %v5106 = vadd.f32 %v4716, %v4956
      %v5107 = vadd.f32 %v4717, %v4961
      %v5108 = vadd.f32 %v4718, %v4966
      %v5109 = vadd.f32 %v4719, %v4971
      %v5110 = vadd.f32 %v4720, %v4976
      %v5111 = vadd.f32 %v4721, %v4981
      %v5112 = vadd.f32 %v4722, %v4986
      %v5113 = vadd.f32 %v4723, %v4991
      %v5114 = vadd.f32 %v4724, %v4996
      %v5115 = vadd.f32 %v4725, %v5001
      %v5116 = vadd.f32 %v4726, %v5006
      %v5117 = vadd.f32 %v4727, %v5011
      %v5118 = vadd.f32 %v4728, %v5016
      %v5119 = vadd.f32 %v4729, %v5021
      %v5120 = vadd.f32 %v4730, %v5026
      %v5121 = vadd.f32 %v4731, %v5031
      %v5122 = vadd.f32 %v4732, %v5036
      %v5123 = vadd.f32 %v4733, %v5041
      %v5124 = vadd.f32 %v4734, %v5046
      %v5125 = vadd.f32 %v4735, %v5051
      %v5126 = vadd.f32 %v4736, %v5056
      %v5127 = vadd.f32 %v4737, %v5061
      %v5128 = vadd.f32 %v4738, %v5066
      %v5129 = vadd.f32 %v4739, %v5071
      %v5130 = vadd.f32 %v4740, %v5076
      %v5131 = vadd.f32 %v4741, %v5081
      %v5132 = vadd.f32 %v4742, %v5086
      %v5133 = vadd.f32 %v4743, %v5091
      %v5134 = vadd.f32 %v4744, %v5096
      %v5135 = vadd.f32 %v4745, %v5101
      %v5136 = vld [vmem:[%s345] sm:$0xff]
      %v5137 = vld [vmem:[%s345 + $0x8] sm:$0xff]
      %v5138 = vld [vmem:[%s345 + $0x18] sm:$0xff]
      %v5139 = vld [vmem:[%s345 + $0x20] sm:$0xff]
      %v5140 = vld [vmem:[%s345 + $0x30] sm:$0xff]
      %v5141 = vld [vmem:[%s345 + $0x38] sm:$0xff]
      %v5142 = vld [vmem:[%s345 + $0x48] sm:$0xff]
      %v5143 = vld [vmem:[%s345 + $0x50] sm:$0xff]
      %v5144 = vld [vmem:[%s345 + $0x60] sm:$0xff]
      %v5145 = vld [vmem:[%s345 + $0x68] sm:$0xff]
      %v5146 = vld [vmem:[%s345 + $0x78] sm:$0xff]
      %v5147 = vld [vmem:[%s345 + $0x80] sm:$0xff]
      %v5148 = vld [vmem:[%s345 + $0x90] sm:$0xff]
      %v5149 = vld [vmem:[%s345 + $0x98] sm:$0xff]
      %v5150 = vld [vmem:[%s345 + $0xa8] sm:$0xff]
      %v5151 = vld [vmem:[%s345 + $0xb0] sm:$0xff]
      %v5152 = vld [vmem:[%s345 + $0xc0] sm:$0xff]
      %v5153 = vld [vmem:[%s345 + $0xc8] sm:$0xff]
      %v5154 = vld [vmem:[%s345 + $0xd8] sm:$0xff]
      %v5155 = vld [vmem:[%s345 + $0xe0] sm:$0xff]
      %v5156 = vld [vmem:[%s345 + $0xf0] sm:$0xff]
      %v5157 = vld [vmem:[%s345 + $0xf8] sm:$0xff]
      %v5158 = vld [vmem:[%s345 + $0x108] sm:$0xff]
      %v5159 = vld [vmem:[%s345 + $0x110] sm:$0xff]
      %v5160 = vld [vmem:[%s345 + $0x120] sm:$0xff]
      %v5161 = vld [vmem:[%s345 + $0x128] sm:$0xff]
      %v5162 = vld [vmem:[%s345 + $0x138] sm:$0xff]
      %v5163 = vld [vmem:[%s345 + $0x140] sm:$0xff]
      %v5164 = vld [vmem:[%s345 + $0x150] sm:$0xff]
      %v5165 = vld [vmem:[%s345 + $0x158] sm:$0xff]
      %v5166 = vld [vmem:[%s345 + $0x168] sm:$0xff]
      %v5167 = vld [vmem:[%s345 + $0x170] sm:$0xff]
      %s5168 = scalar_lea.vmem %s3, 12
      %v5169 = vld [vmem:[%s5168] sm:$0xf]
      %v5171 = vsel %vm225, %v5136, 0
      %v5174 = vsel %vm225, %v5137, 0
      %v5177 = vsel %vm225, %v5138, 0
      %v5180 = vsel %vm225, %v5139, 0
      %v5183 = vsel %vm225, %v5140, 0
      %v5186 = vsel %vm225, %v5141, 0
      %v5189 = vsel %vm225, %v5142, 0
      %v5192 = vsel %vm225, %v5143, 0
      %v5195 = vsel %vm225, %v5144, 0
      %v5198 = vsel %vm225, %v5145, 0
      %v5201 = vsel %vm225, %v5146, 0
      %v5204 = vsel %vm225, %v5147, 0
      %v5207 = vsel %vm225, %v5148, 0
      %v5210 = vsel %vm225, %v5149, 0
      %v5213 = vsel %vm225, %v5150, 0
      %v5216 = vsel %vm225, %v5151, 0
      %v5219 = vsel %vm225, %v5152, 0
      %v5222 = vsel %vm225, %v5153, 0
      %v5225 = vsel %vm225, %v5154, 0
      %v5228 = vsel %vm225, %v5155, 0
      %v5231 = vsel %vm225, %v5156, 0
      %v5234 = vsel %vm225, %v5157, 0
      %v5237 = vsel %vm225, %v5158, 0
      %v5240 = vsel %vm225, %v5159, 0
      %v5243 = vsel %vm225, %v5160, 0
      %v5246 = vsel %vm225, %v5161, 0
      %v5249 = vsel %vm225, %v5162, 0
      %v5252 = vsel %vm225, %v5163, 0
      %v5255 = vsel %vm225, %v5164, 0
      %v5258 = vsel %vm225, %v5165, 0
      %v5261 = vsel %vm225, %v5166, 0
      %v5264 = vsel %vm225, %v5167, 0
      %v5267 = vsel %vm514, %v5169, 0
      %5269 = vmatprep.subr.mxu0 0.0
      %5270 = vmatpush1.msra.mxu0 %v5267
      %5271 = vmatprep.subr.mxu0 0.0
      %5272 = vmatpush1.msra.mxu0 0.0
      %5273 = vmatprep.subr.mxu0 0.0
      %5274 = vmatpush1.msra.mxu0 0.0
      %5275 = vmatprep.subr.mxu0 0.0
      %5276 = vmatpush1.msra.mxu0 0.0
      %5277 = vmatprep.subr.mxu0 0.0
      %5278 = vmatpush1.msra.mxu0 0.0
      %5279 = vmatprep.subr.mxu0 0.0
      %5280 = vmatpush1.msra.mxu0 0.0
      %5281 = vmatprep.subr.mxu0 0.0
      %5282 = vmatpush1.msra.mxu0 0.0
      %5283 = vmatprep.subr.mxu0 0.0
      %5284 = vmatpush1.msra.mxu0 0.0
      %5285 = vmatprep.subr.mxu0 0.0
      %5286 = vmatpush1.msra.mxu0 0.0
      %5287 = vmatprep.subr.mxu0 0.0
      %5288 = vmatpush1.msra.mxu0 0.0
      %5289 = vmatprep.subr.mxu0 0.0
      %5290 = vmatpush1.msra.mxu0 0.0
      %5291 = vmatprep.subr.mxu0 0.0
      %5292 = vmatpush1.msra.mxu0 0.0
      %5293 = vmatprep.subr.mxu0 0.0
      %5294 = vmatpush1.msra.mxu0 0.0
      %5295 = vmatprep.subr.mxu0 0.0
      %5296 = vmatpush1.msra.mxu0 0.0
      %5297 = vmatprep.subr.mxu0 0.0
      %5298 = vmatpush1.msra.mxu0 0.0
      %5299 = vmatprep.subr.mxu0 0.0
      %5300 = vmatpush1.msra.mxu0 0.0
      %5301 = vmatprep.subr.mxu0 0.0
      %5302 = vmatpush1.msra.mxu0 0.0
      %5303 = vmatprep.subr.mxu0 0.0
      %5304 = vmatpush1.msra.mxu0 0.0
      %5305 = vmatprep.subr.mxu0 0.0
      %5306 = vmatpush1.msra.mxu0 0.0
      %5307 = vmatprep.subr.mxu0 0.0
      %5308 = vmatpush1.msra.mxu0 0.0
      %5309 = vmatprep.subr.mxu0 0.0
      %5310 = vmatpush1.msra.mxu0 0.0
      %5311 = vmatprep.subr.mxu0 0.0
      %5312 = vmatpush1.msra.mxu0 0.0
      %5313 = vmatprep.subr.mxu0 0.0
      %5314 = vmatpush1.msra.mxu0 0.0
      %5315 = vmatprep.subr.mxu0 0.0
      %5316 = vmatpush1.msra.mxu0 0.0
      %5317 = vmatprep.subr.mxu0 0.0
      %5318 = vmatpush1.msra.mxu0 0.0
      %5319 = vmatprep.subr.mxu0 0.0
      %5320 = vmatpush1.msra.mxu0 0.0
      %5321 = vmatprep.subr.mxu0 0.0
      %5322 = vmatpush1.msra.mxu0 0.0
      %5323 = vmatprep.subr.mxu0 0.0
      %5324 = vmatpush1.msra.mxu0 0.0
      %5325 = vmatprep.subr.mxu0 0.0
      %5326 = vmatpush1.msra.mxu0 0.0
      %5327 = vmatprep.subr.mxu0 0.0
      %5328 = vmatpush1.msra.mxu0 0.0
      %5329 = vmatprep.subr.mxu0 0.0
      %5330 = vmatpush1.msra.mxu0 0.0
      %5331 = vmatprep.subr.mxu0 0.0
      %5332 = vmatpush1.msra.mxu0 0.0
      %5333 = vmatprep.mubr.f32.mxu0 0.0
      %5334 = vmatmul.mubr.f32.gmra.mrb[0].mxu0 %v5171
      %v5335 = vpop.f32.mrb[0].mxu0
      %v5336 = vadd.f32 0.0, %v5335
      %v5337 = vpop.f32.mrb[0].mxu0
      %5338 = vmatprep.mubr.f32.mxu0 0.0
      %5339 = vmatmul.mubr.f32.gmra.mrb[0].mxu0 %v5174
      %v5340 = vpop.f32.mrb[0].mxu0
      %v5341 = vadd.f32 0.0, %v5340
      %v5342 = vpop.f32.mrb[0].mxu0
      %5343 = vmatprep.mubr.f32.mxu0 0.0
      %5344 = vmatmul.mubr.f32.gmra.mrb[0].mxu0 %v5177
      %v5345 = vpop.f32.mrb[0].mxu0
      %v5346 = vadd.f32 0.0, %v5345
      %v5347 = vpop.f32.mrb[0].mxu0
      %5348 = vmatprep.mubr.f32.mxu0 0.0
      %5349 = vmatmul.mubr.f32.gmra.mrb[0].mxu0 %v5180
      %v5350 = vpop.f32.mrb[0].mxu0
      %v5351 = vadd.f32 0.0, %v5350
      %v5352 = vpop.f32.mrb[0].mxu0
      %5353 = vmatprep.mubr.f32.mxu0 0.0
      %5354 = vmatmul.mubr.f32.gmra.mrb[0].mxu0 %v5183
      %v5355 = vpop.f32.mrb[0].mxu0
      %v5356 = vadd.f32 0.0, %v5355
      %v5357 = vpop.f32.mrb[0].mxu0
      %5358 = vmatprep.mubr.f32.mxu0 0.0
      %5359 = vmatmul.mubr.f32.gmra.mrb[0].mxu0 %v5186
      %v5360 = vpop.f32.mrb[0].mxu0
      %v5361 = vadd.f32 0.0, %v5360
      %v5362 = vpop.f32.mrb[0].mxu0
      %5363 = vmatprep.mubr.f32.mxu0 0.0
      %5364 = vmatmul.mubr.f32.gmra.mrb[0].mxu0 %v5189
      %v5365 = vpop.f32.mrb[0].mxu0
      %v5366 = vadd.f32 0.0, %v5365
      %v5367 = vpop.f32.mrb[0].mxu0
      %5368 = vmatprep.mubr.f32.mxu0 0.0
      %5369 = vmatmul.mubr.f32.gmra.mrb[0].mxu0 %v5192
      %v5370 = vpop.f32.mrb[0].mxu0
      %v5371 = vadd.f32 0.0, %v5370
      %v5372 = vpop.f32.mrb[0].mxu0
      %5373 = vmatprep.mubr.f32.mxu0 0.0
      %5374 = vmatmul.mubr.f32.gmra.mrb[0].mxu0 %v5195
      %v5375 = vpop.f32.mrb[0].mxu0
      %v5376 = vadd.f32 0.0, %v5375
      %v5377 = vpop.f32.mrb[0].mxu0
      %5378 = vmatprep.mubr.f32.mxu0 0.0
      %5379 = vmatmul.mubr.f32.gmra.mrb[0].mxu0 %v5198
      %v5380 = vpop.f32.mrb[0].mxu0
      %v5381 = vadd.f32 0.0, %v5380
      %v5382 = vpop.f32.mrb[0].mxu0
      %5383 = vmatprep.mubr.f32.mxu0 0.0
      %5384 = vmatmul.mubr.f32.gmra.mrb[0].mxu0 %v5201
      %v5385 = vpop.f32.mrb[0].mxu0
      %v5386 = vadd.f32 0.0, %v5385
      %v5387 = vpop.f32.mrb[0].mxu0
      %5388 = vmatprep.mubr.f32.mxu0 0.0
      %5389 = vmatmul.mubr.f32.gmra.mrb[0].mxu0 %v5204
      %v5390 = vpop.f32.mrb[0].mxu0
      %v5391 = vadd.f32 0.0, %v5390
      %v5392 = vpop.f32.mrb[0].mxu0
      %5393 = vmatprep.mubr.f32.mxu0 0.0
      %5394 = vmatmul.mubr.f32.gmra.mrb[0].mxu0 %v5207
      %v5395 = vpop.f32.mrb[0].mxu0
      %v5396 = vadd.f32 0.0, %v5395
      %v5397 = vpop.f32.mrb[0].mxu0
      %5398 = vmatprep.mubr.f32.mxu0 0.0
      %5399 = vmatmul.mubr.f32.gmra.mrb[0].mxu0 %v5210
      %v5400 = vpop.f32.mrb[0].mxu0
      %v5401 = vadd.f32 0.0, %v5400
      %v5402 = vpop.f32.mrb[0].mxu0
      %5403 = vmatprep.mubr.f32.mxu0 0.0
      %5404 = vmatmul.mubr.f32.gmra.mrb[0].mxu0 %v5213
      %v5405 = vpop.f32.mrb[0].mxu0
      %v5406 = vadd.f32 0.0, %v5405
      %v5407 = vpop.f32.mrb[0].mxu0
      %5408 = vmatprep.mubr.f32.mxu0 0.0
      %5409 = vmatmul.mubr.f32.gmra.mrb[0].mxu0 %v5216
      %v5410 = vpop.f32.mrb[0].mxu0
      %v5411 = vadd.f32 0.0, %v5410
      %v5412 = vpop.f32.mrb[0].mxu0
      %5413 = vmatprep.mubr.f32.mxu0 0.0
      %5414 = vmatmul.mubr.f32.gmra.mrb[0].mxu0 %v5219
      %v5415 = vpop.f32.mrb[0].mxu0
      %v5416 = vadd.f32 0.0, %v5415
      %v5417 = vpop.f32.mrb[0].mxu0
      %5418 = vmatprep.mubr.f32.mxu0 0.0
      %5419 = vmatmul.mubr.f32.gmra.mrb[0].mxu0 %v5222
      %v5420 = vpop.f32.mrb[0].mxu0
      %v5421 = vadd.f32 0.0, %v5420
      %v5422 = vpop.f32.mrb[0].mxu0
      %5423 = vmatprep.mubr.f32.mxu0 0.0
      %5424 = vmatmul.mubr.f32.gmra.mrb[0].mxu0 %v5225
      %v5425 = vpop.f32.mrb[0].mxu0
      %v5426 = vadd.f32 0.0, %v5425
      %v5427 = vpop.f32.mrb[0].mxu0
      %5428 = vmatprep.mubr.f32.mxu0 0.0
      %5429 = vmatmul.mubr.f32.gmra.mrb[0].mxu0 %v5228
      %v5430 = vpop.f32.mrb[0].mxu0
      %v5431 = vadd.f32 0.0, %v5430
      %v5432 = vpop.f32.mrb[0].mxu0
      %5433 = vmatprep.mubr.f32.mxu0 0.0
      %5434 = vmatmul.mubr.f32.gmra.mrb[0].mxu0 %v5231
      %v5435 = vpop.f32.mrb[0].mxu0
      %v5436 = vadd.f32 0.0, %v5435
      %v5437 = vpop.f32.mrb[0].mxu0
      %5438 = vmatprep.mubr.f32.mxu0 0.0
      %5439 = vmatmul.mubr.f32.gmra.mrb[0].mxu0 %v5234
      %v5440 = vpop.f32.mrb[0].mxu0
      %v5441 = vadd.f32 0.0, %v5440
      %v5442 = vpop.f32.mrb[0].mxu0
      %5443 = vmatprep.mubr.f32.mxu0 0.0
      %5444 = vmatmul.mubr.f32.gmra.mrb[0].mxu0 %v5237
      %v5445 = vpop.f32.mrb[0].mxu0
      %v5446 = vadd.f32 0.0, %v5445
      %v5447 = vpop.f32.mrb[0].mxu0
      %5448 = vmatprep.mubr.f32.mxu0 0.0
      %5449 = vmatmul.mubr.f32.gmra.mrb[0].mxu0 %v5240
      %v5450 = vpop.f32.mrb[0].mxu0
      %v5451 = vadd.f32 0.0, %v5450
      %v5452 = vpop.f32.mrb[0].mxu0
      %5453 = vmatprep.mubr.f32.mxu0 0.0
      %5454 = vmatmul.mubr.f32.gmra.mrb[0].mxu0 %v5243
      %v5455 = vpop.f32.mrb[0].mxu0
      %v5456 = vadd.f32 0.0, %v5455
      %v5457 = vpop.f32.mrb[0].mxu0
      %5458 = vmatprep.mubr.f32.mxu0 0.0
      %5459 = vmatmul.mubr.f32.gmra.mrb[0].mxu0 %v5246
      %v5460 = vpop.f32.mrb[0].mxu0
      %v5461 = vadd.f32 0.0, %v5460
      %v5462 = vpop.f32.mrb[0].mxu0
      %5463 = vmatprep.mubr.f32.mxu0 0.0
      %5464 = vmatmul.mubr.f32.gmra.mrb[0].mxu0 %v5249
      %v5465 = vpop.f32.mrb[0].mxu0
      %v5466 = vadd.f32 0.0, %v5465
      %v5467 = vpop.f32.mrb[0].mxu0
      %5468 = vmatprep.mubr.f32.mxu0 0.0
      %5469 = vmatmul.mubr.f32.gmra.mrb[0].mxu0 %v5252
      %v5470 = vpop.f32.mrb[0].mxu0
      %v5471 = vadd.f32 0.0, %v5470
      %v5472 = vpop.f32.mrb[0].mxu0
      %5473 = vmatprep.mubr.f32.mxu0 0.0
      %5474 = vmatmul.mubr.f32.gmra.mrb[0].mxu0 %v5255
      %v5475 = vpop.f32.mrb[0].mxu0
      %v5476 = vadd.f32 0.0, %v5475
      %v5477 = vpop.f32.mrb[0].mxu0
      %5478 = vmatprep.mubr.f32.mxu0 0.0
      %5479 = vmatmul.mubr.f32.gmra.mrb[0].mxu0 %v5258
      %v5480 = vpop.f32.mrb[0].mxu0
      %v5481 = vadd.f32 0.0, %v5480
      %v5482 = vpop.f32.mrb[0].mxu0
      %5483 = vmatprep.mubr.f32.mxu0 0.0
      %5484 = vmatmul.mubr.f32.gmra.mrb[0].mxu0 %v5261
      %v5485 = vpop.f32.mrb[0].mxu0
      %v5486 = vadd.f32 0.0, %v5485
      %v5487 = vpop.f32.mrb[0].mxu0
      %5488 = vmatprep.mubr.f32.mxu0 0.0
      %5489 = vmatmul.mubr.f32.gmra.mrb[0].mxu0 %v5264
      %v5490 = vpop.f32.mrb[0].mxu0
      %v5491 = vadd.f32 0.0, %v5490
      %v5492 = vpop.f32.mrb[0].mxu0
      %5493 = vdwg.mxu0
      %v5494 = vadd.f32 %v5104, %v5336
      %v5495 = vadd.f32 %v5105, %v5341
      %v5496 = vadd.f32 %v5106, %v5346
      %v5497 = vadd.f32 %v5107, %v5351
      %v5498 = vadd.f32 %v5108, %v5356
      %v5499 = vadd.f32 %v5109, %v5361
      %v5500 = vadd.f32 %v5110, %v5366
      %v5501 = vadd.f32 %v5111, %v5371
      %v5502 = vadd.f32 %v5112, %v5376
      %v5503 = vadd.f32 %v5113, %v5381
      %v5504 = vadd.f32 %v5114, %v5386
      %v5505 = vadd.f32 %v5115, %v5391
      %v5506 = vadd.f32 %v5116, %v5396
      %v5507 = vadd.f32 %v5117, %v5401
      %v5508 = vadd.f32 %v5118, %v5406
      %v5509 = vadd.f32 %v5119, %v5411
      %v5510 = vadd.f32 %v5120, %v5416
      %v5511 = vadd.f32 %v5121, %v5421
      %v5512 = vadd.f32 %v5122, %v5426
      %v5513 = vadd.f32 %v5123, %v5431
      %v5514 = vadd.f32 %v5124, %v5436
      %v5515 = vadd.f32 %v5125, %v5441
      %v5516 = vadd.f32 %v5126, %v5446
      %v5517 = vadd.f32 %v5127, %v5451
      %v5518 = vadd.f32 %v5128, %v5456
      %v5519 = vadd.f32 %v5129, %v5461
      %v5520 = vadd.f32 %v5130, %v5466
      %v5521 = vadd.f32 %v5131, %v5471
      %v5522 = vadd.f32 %v5132, %v5476
      %v5523 = vadd.f32 %v5133, %v5481
      %v5524 = vadd.f32 %v5134, %v5486
      %v5525 = vadd.f32 %v5135, %v5491
      %v5526 = vld [vmem:[%s345 + $0x1] sm:$0xff]
      %v5527 = vld [vmem:[%s345 + $0x9] sm:$0xff]
      %v5528 = vld [vmem:[%s345 + $0x19] sm:$0xff]
      %v5529 = vld [vmem:[%s345 + $0x21] sm:$0xff]
      %v5530 = vld [vmem:[%s345 + $0x31] sm:$0xff]
      %v5531 = vld [vmem:[%s345 + $0x39] sm:$0xff]
      %v5532 = vld [vmem:[%s345 + $0x49] sm:$0xff]
      %v5533 = vld [vmem:[%s345 + $0x51] sm:$0xff]
      %v5534 = vld [vmem:[%s345 + $0x61] sm:$0xff]
      %v5535 = vld [vmem:[%s345 + $0x69] sm:$0xff]
      %v5536 = vld [vmem:[%s345 + $0x79] sm:$0xff]
      %v5537 = vld [vmem:[%s345 + $0x81] sm:$0xff]
      %v5538 = vld [vmem:[%s345 + $0x91] sm:$0xff]
      %v5539 = vld [vmem:[%s345 + $0x99] sm:$0xff]
      %v5540 = vld [vmem:[%s345 + $0xa9] sm:$0xff]
      %v5541 = vld [vmem:[%s345 + $0xb1] sm:$0xff]
      %v5542 = vld [vmem:[%s345 + $0xc1] sm:$0xff]
      %v5543 = vld [vmem:[%s345 + $0xc9] sm:$0xff]
      %v5544 = vld [vmem:[%s345 + $0xd9] sm:$0xff]
      %v5545 = vld [vmem:[%s345 + $0xe1] sm:$0xff]
      %v5546 = vld [vmem:[%s345 + $0xf1] sm:$0xff]
      %v5547 = vld [vmem:[%s345 + $0xf9] sm:$0xff]
      %v5548 = vld [vmem:[%s345 + $0x109] sm:$0xff]
      %v5549 = vld [vmem:[%s345 + $0x111] sm:$0xff]
      %v5550 = vld [vmem:[%s345 + $0x121] sm:$0xff]
      %v5551 = vld [vmem:[%s345 + $0x129] sm:$0xff]
      %v5552 = vld [vmem:[%s345 + $0x139] sm:$0xff]
      %v5553 = vld [vmem:[%s345 + $0x141] sm:$0xff]
      %v5554 = vld [vmem:[%s345 + $0x151] sm:$0xff]
      %v5555 = vld [vmem:[%s345 + $0x159] sm:$0xff]
      %v5556 = vld [vmem:[%s345 + $0x169] sm:$0xff]
      %v5557 = vld [vmem:[%s345 + $0x171] sm:$0xff]
      %s5558 = scalar_lea.vmem %s3, 16
      %v5559 = vld [vmem:[%s5558] sm:$0xf]
      %v5561 = vsel %vm225, %v5526, 0
      %v5564 = vsel %vm225, %v5527, 0
      %v5567 = vsel %vm225, %v5528, 0
      %v5570 = vsel %vm225, %v5529, 0
      %v5573 = vsel %vm225, %v5530, 0
      %v5576 = vsel %vm225, %v5531, 0
      %v5579 = vsel %vm225, %v5532, 0
      %v5582 = vsel %vm225, %v5533, 0
      %v5585 = vsel %vm225, %v5534, 0
      %v5588 = vsel %vm225, %v5535, 0
      %v5591 = vsel %vm225, %v5536, 0
      %v5594 = vsel %vm225, %v5537, 0
      %v5597 = vsel %vm225, %v5538, 0
      %v5600 = vsel %vm225, %v5539, 0
      %v5603 = vsel %vm225, %v5540, 0
      %v5606 = vsel %vm225, %v5541, 0
      %v5609 = vsel %vm225, %v5542, 0
      %v5612 = vsel %vm225, %v5543, 0
      %v5615 = vsel %vm225, %v5544, 0
      %v5618 = vsel %vm225, %v5545, 0
      %v5621 = vsel %vm225, %v5546, 0
      %v5624 = vsel %vm225, %v5547, 0
      %v5627 = vsel %vm225, %v5548, 0
      %v5630 = vsel %vm225, %v5549, 0
      %v5633 = vsel %vm225, %v5550, 0
      %v5636 = vsel %vm225, %v5551, 0
      %v5639 = vsel %vm225, %v5552, 0
      %v5642 = vsel %vm225, %v5553, 0
      %v5645 = vsel %vm225, %v5554, 0
      %v5648 = vsel %vm225, %v5555, 0
      %v5651 = vsel %vm225, %v5556, 0
      %v5654 = vsel %vm225, %v5557, 0
      %v5657 = vsel %vm514, %v5559, 0
      %5659 = vmatprep.subr.mxu0 0.0
      %5660 = vmatpush1.msra.mxu0 %v5657
      %5661 = vmatprep.subr.mxu0 0.0
      %5662 = vmatpush1.msra.mxu0 0.0
      %5663 = vmatprep.subr.mxu0 0.0
      %5664 = vmatpush1.msra.mxu0 0.0
      %5665 = vmatprep.subr.mxu0 0.0
      %5666 = vmatpush1.msra.mxu0 0.0
      %5667 = vmatprep.subr.mxu0 0.0
      %5668 = vmatpush1.msra.mxu0 0.0
      %5669 = vmatprep.subr.mxu0 0.0
      %5670 = vmatpush1.msra.mxu0 0.0
      %5671 = vmatprep.subr.mxu0 0.0
      %5672 = vmatpush1.msra.mxu0 0.0
      %5673 = vmatprep.subr.mxu0 0.0
      %5674 = vmatpush1.msra.mxu0 0.0
      %5675 = vmatprep.subr.mxu0 0.0
      %5676 = vmatpush1.msra.mxu0 0.0
      %5677 = vmatprep.subr.mxu0 0.0
      %5678 = vmatpush1.msra.mxu0 0.0
      %5679 = vmatprep.subr.mxu0 0.0
      %5680 = vmatpush1.msra.mxu0 0.0
      %5681 = vmatprep.subr.mxu0 0.0
      %5682 = vmatpush1.msra.mxu0 0.0
      %5683 = vmatprep.subr.mxu0 0.0
      %5684 = vmatpush1.msra.mxu0 0.0
      %5685 = vmatprep.subr.mxu0 0.0
      %5686 = vmatpush1.msra.mxu0 0.0
      %5687 = vmatprep.subr.mxu0 0.0
      %5688 = vmatpush1.msra.mxu0 0.0
      %5689 = vmatprep.subr.mxu0 0.0
      %5690 = vmatpush1.msra.mxu0 0.0
      %5691 = vmatprep.subr.mxu0 0.0
      %5692 = vmatpush1.msra.mxu0 0.0
      %5693 = vmatprep.subr.mxu0 0.0
      %5694 = vmatpush1.msra.mxu0 0.0
      %5695 = vmatprep.subr.mxu0 0.0
      %5696 = vmatpush1.msra.mxu0 0.0
      %5697 = vmatprep.subr.mxu0 0.0
      %5698 = vmatpush1.msra.mxu0 0.0
      %5699 = vmatprep.subr.mxu0 0.0
      %5700 = vmatpush1.msra.mxu0 0.0
      %5701 = vmatprep.subr.mxu0 0.0
      %5702 = vmatpush1.msra.mxu0 0.0
      %5703 = vmatprep.subr.mxu0 0.0
      %5704 = vmatpush1.msra.mxu0 0.0
      %5705 = vmatprep.subr.mxu0 0.0
      %5706 = vmatpush1.msra.mxu0 0.0
      %5707 = vmatprep.subr.mxu0 0.0
      %5708 = vmatpush1.msra.mxu0 0.0
      %5709 = vmatprep.subr.mxu0 0.0
      %5710 = vmatpush1.msra.mxu0 0.0
      %5711 = vmatprep.subr.mxu0 0.0
      %5712 = vmatpush1.msra.mxu0 0.0
      %5713 = vmatprep.subr.mxu0 0.0
      %5714 = vmatpush1.msra.mxu0 0.0
      %5715 = vmatprep.subr.mxu0 0.0
      %5716 = vmatpush1.msra.mxu0 0.0
      %5717 = vmatprep.subr.mxu0 0.0
      %5718 = vmatpush1.msra.mxu0 0.0
      %5719 = vmatprep.subr.mxu0 0.0
      %5720 = vmatpush1.msra.mxu0 0.0
      %5721 = vmatprep.subr.mxu0 0.0
      %5722 = vmatpush1.msra.mxu0 0.0
      %5723 = vmatprep.mubr.f32.mxu0 0.0
      %5724 = vmatmul.mubr.f32.gmra.mrb[0].mxu0 %v5561
      %v5725 = vpop.f32.mrb[0].mxu0
      %v5726 = vadd.f32 0.0, %v5725
      %v5727 = vpop.f32.mrb[0].mxu0
      %5728 = vmatprep.mubr.f32.mxu0 0.0
      %5729 = vmatmul.mubr.f32.gmra.mrb[0].mxu0 %v5564
      %v5730 = vpop.f32.mrb[0].mxu0
      %v5731 = vadd.f32 0.0, %v5730
      %v5732 = vpop.f32.mrb[0].mxu0
      %5733 = vmatprep.mubr.f32.mxu0 0.0
      %5734 = vmatmul.mubr.f32.gmra.mrb[0].mxu0 %v5567
      %v5735 = vpop.f32.mrb[0].mxu0
      %v5736 = vadd.f32 0.0, %v5735
      %v5737 = vpop.f32.mrb[0].mxu0
      %5738 = vmatprep.mubr.f32.mxu0 0.0
      %5739 = vmatmul.mubr.f32.gmra.mrb[0].mxu0 %v5570
      %v5740 = vpop.f32.mrb[0].mxu0
      %v5741 = vadd.f32 0.0, %v5740
      %v5742 = vpop.f32.mrb[0].mxu0
      %5743 = vmatprep.mubr.f32.mxu0 0.0
      %5744 = vmatmul.mubr.f32.gmra.mrb[0].mxu0 %v5573
      %v5745 = vpop.f32.mrb[0].mxu0
      %v5746 = vadd.f32 0.0, %v5745
      %v5747 = vpop.f32.mrb[0].mxu0
      %5748 = vmatprep.mubr.f32.mxu0 0.0
      %5749 = vmatmul.mubr.f32.gmra.mrb[0].mxu0 %v5576
      %v5750 = vpop.f32.mrb[0].mxu0
      %v5751 = vadd.f32 0.0, %v5750
      %v5752 = vpop.f32.mrb[0].mxu0
      %5753 = vmatprep.mubr.f32.mxu0 0.0
      %5754 = vmatmul.mubr.f32.gmra.mrb[0].mxu0 %v5579
      %v5755 = vpop.f32.mrb[0].mxu0
      %v5756 = vadd.f32 0.0, %v5755
      %v5757 = vpop.f32.mrb[0].mxu0
      %5758 = vmatprep.mubr.f32.mxu0 0.0
      %5759 = vmatmul.mubr.f32.gmra.mrb[0].mxu0 %v5582
      %v5760 = vpop.f32.mrb[0].mxu0
      %v5761 = vadd.f32 0.0, %v5760
      %v5762 = vpop.f32.mrb[0].mxu0
      %5763 = vmatprep.mubr.f32.mxu0 0.0
      %5764 = vmatmul.mubr.f32.gmra.mrb[0].mxu0 %v5585
      %v5765 = vpop.f32.mrb[0].mxu0
      %v5766 = vadd.f32 0.0, %v5765
      %v5767 = vpop.f32.mrb[0].mxu0
      %5768 = vmatprep.mubr.f32.mxu0 0.0
      %5769 = vmatmul.mubr.f32.gmra.mrb[0].mxu0 %v5588
      %v5770 = vpop.f32.mrb[0].mxu0
      %v5771 = vadd.f32 0.0, %v5770
      %v5772 = vpop.f32.mrb[0].mxu0
      %5773 = vmatprep.mubr.f32.mxu0 0.0
      %5774 = vmatmul.mubr.f32.gmra.mrb[0].mxu0 %v5591
      %v5775 = vpop.f32.mrb[0].mxu0
      %v5776 = vadd.f32 0.0, %v5775
      %v5777 = vpop.f32.mrb[0].mxu0
      %5778 = vmatprep.mubr.f32.mxu0 0.0
      %5779 = vmatmul.mubr.f32.gmra.mrb[0].mxu0 %v5594
      %v5780 = vpop.f32.mrb[0].mxu0
      %v5781 = vadd.f32 0.0, %v5780
      %v5782 = vpop.f32.mrb[0].mxu0
      %5783 = vmatprep.mubr.f32.mxu0 0.0
      %5784 = vmatmul.mubr.f32.gmra.mrb[0].mxu0 %v5597
      %v5785 = vpop.f32.mrb[0].mxu0
      %v5786 = vadd.f32 0.0, %v5785
      %v5787 = vpop.f32.mrb[0].mxu0
      %5788 = vmatprep.mubr.f32.mxu0 0.0
      %5789 = vmatmul.mubr.f32.gmra.mrb[0].mxu0 %v5600
      %v5790 = vpop.f32.mrb[0].mxu0
      %v5791 = vadd.f32 0.0, %v5790
      %v5792 = vpop.f32.mrb[0].mxu0
      %5793 = vmatprep.mubr.f32.mxu0 0.0
      %5794 = vmatmul.mubr.f32.gmra.mrb[0].mxu0 %v5603
      %v5795 = vpop.f32.mrb[0].mxu0
      %v5796 = vadd.f32 0.0, %v5795
      %v5797 = vpop.f32.mrb[0].mxu0
      %5798 = vmatprep.mubr.f32.mxu0 0.0
      %5799 = vmatmul.mubr.f32.gmra.mrb[0].mxu0 %v5606
      %v5800 = vpop.f32.mrb[0].mxu0
      %v5801 = vadd.f32 0.0, %v5800
      %v5802 = vpop.f32.mrb[0].mxu0
      %5803 = vmatprep.mubr.f32.mxu0 0.0
      %5804 = vmatmul.mubr.f32.gmra.mrb[0].mxu0 %v5609
      %v5805 = vpop.f32.mrb[0].mxu0
      %v5806 = vadd.f32 0.0, %v5805
      %v5807 = vpop.f32.mrb[0].mxu0
      %5808 = vmatprep.mubr.f32.mxu0 0.0
      %5809 = vmatmul.mubr.f32.gmra.mrb[0].mxu0 %v5612
      %v5810 = vpop.f32.mrb[0].mxu0
      %v5811 = vadd.f32 0.0, %v5810
      %v5812 = vpop.f32.mrb[0].mxu0
      %5813 = vmatprep.mubr.f32.mxu0 0.0
      %5814 = vmatmul.mubr.f32.gmra.mrb[0].mxu0 %v5615
      %v5815 = vpop.f32.mrb[0].mxu0
      %v5816 = vadd.f32 0.0, %v5815
      %v5817 = vpop.f32.mrb[0].mxu0
      %5818 = vmatprep.mubr.f32.mxu0 0.0
      %5819 = vmatmul.mubr.f32.gmra.mrb[0].mxu0 %v5618
      %v5820 = vpop.f32.mrb[0].mxu0
      %v5821 = vadd.f32 0.0, %v5820
      %v5822 = vpop.f32.mrb[0].mxu0
      %5823 = vmatprep.mubr.f32.mxu0 0.0
      %5824 = vmatmul.mubr.f32.gmra.mrb[0].mxu0 %v5621
      %v5825 = vpop.f32.mrb[0].mxu0
      %v5826 = vadd.f32 0.0, %v5825
      %v5827 = vpop.f32.mrb[0].mxu0
      %5828 = vmatprep.mubr.f32.mxu0 0.0
      %5829 = vmatmul.mubr.f32.gmra.mrb[0].mxu0 %v5624
      %v5830 = vpop.f32.mrb[0].mxu0
      %v5831 = vadd.f32 0.0, %v5830
      %v5832 = vpop.f32.mrb[0].mxu0
      %5833 = vmatprep.mubr.f32.mxu0 0.0
      %5834 = vmatmul.mubr.f32.gmra.mrb[0].mxu0 %v5627
      %v5835 = vpop.f32.mrb[0].mxu0
      %v5836 = vadd.f32 0.0, %v5835
      %v5837 = vpop.f32.mrb[0].mxu0
      %5838 = vmatprep.mubr.f32.mxu0 0.0
      %5839 = vmatmul.mubr.f32.gmra.mrb[0].mxu0 %v5630
      %v5840 = vpop.f32.mrb[0].mxu0
      %v5841 = vadd.f32 0.0, %v5840
      %v5842 = vpop.f32.mrb[0].mxu0
      %5843 = vmatprep.mubr.f32.mxu0 0.0
      %5844 = vmatmul.mubr.f32.gmra.mrb[0].mxu0 %v5633
      %v5845 = vpop.f32.mrb[0].mxu0
      %v5846 = vadd.f32 0.0, %v5845
      %v5847 = vpop.f32.mrb[0].mxu0
      %5848 = vmatprep.mubr.f32.mxu0 0.0
      %5849 = vmatmul.mubr.f32.gmra.mrb[0].mxu0 %v5636
      %v5850 = vpop.f32.mrb[0].mxu0
      %v5851 = vadd.f32 0.0, %v5850
      %v5852 = vpop.f32.mrb[0].mxu0
      %5853 = vmatprep.mubr.f32.mxu0 0.0
      %5854 = vmatmul.mubr.f32.gmra.mrb[0].mxu0 %v5639
      %v5855 = vpop.f32.mrb[0].mxu0
      %v5856 = vadd.f32 0.0, %v5855
      %v5857 = vpop.f32.mrb[0].mxu0
      %5858 = vmatprep.mubr.f32.mxu0 0.0
      %5859 = vmatmul.mubr.f32.gmra.mrb[0].mxu0 %v5642
      %v5860 = vpop.f32.mrb[0].mxu0
      %v5861 = vadd.f32 0.0, %v5860
      %v5862 = vpop.f32.mrb[0].mxu0
      %5863 = vmatprep.mubr.f32.mxu0 0.0
      %5864 = vmatmul.mubr.f32.gmra.mrb[0].mxu0 %v5645
      %v5865 = vpop.f32.mrb[0].mxu0
      %v5866 = vadd.f32 0.0, %v5865
      %v5867 = vpop.f32.mrb[0].mxu0
      %5868 = vmatprep.mubr.f32.mxu0 0.0
      %5869 = vmatmul.mubr.f32.gmra.mrb[0].mxu0 %v5648
      %v5870 = vpop.f32.mrb[0].mxu0
      %v5871 = vadd.f32 0.0, %v5870
      %v5872 = vpop.f32.mrb[0].mxu0
      %5873 = vmatprep.mubr.f32.mxu0 0.0
      %5874 = vmatmul.mubr.f32.gmra.mrb[0].mxu0 %v5651
      %v5875 = vpop.f32.mrb[0].mxu0
      %v5876 = vadd.f32 0.0, %v5875
      %v5877 = vpop.f32.mrb[0].mxu0
      %5878 = vmatprep.mubr.f32.mxu0 0.0
      %5879 = vmatmul.mubr.f32.gmra.mrb[0].mxu0 %v5654
      %v5880 = vpop.f32.mrb[0].mxu0
      %v5881 = vadd.f32 0.0, %v5880
      %v5882 = vpop.f32.mrb[0].mxu0
      %5883 = vdwg.mxu0
      %v5884 = vadd.f32 %v5494, %v5726
      %v5885 = vadd.f32 %v5495, %v5731
      %v5886 = vadd.f32 %v5496, %v5736
      %v5887 = vadd.f32 %v5497, %v5741
      %v5888 = vadd.f32 %v5498, %v5746
      %v5889 = vadd.f32 %v5499, %v5751
      %v5890 = vadd.f32 %v5500, %v5756
      %v5891 = vadd.f32 %v5501, %v5761
      %v5892 = vadd.f32 %v5502, %v5766
      %v5893 = vadd.f32 %v5503, %v5771
      %v5894 = vadd.f32 %v5504, %v5776
      %v5895 = vadd.f32 %v5505, %v5781
      %v5896 = vadd.f32 %v5506, %v5786
      %v5897 = vadd.f32 %v5507, %v5791
      %v5898 = vadd.f32 %v5508, %v5796
      %v5899 = vadd.f32 %v5509, %v5801
      %v5900 = vadd.f32 %v5510, %v5806
      %v5901 = vadd.f32 %v5511, %v5811
      %v5902 = vadd.f32 %v5512, %v5816
      %v5903 = vadd.f32 %v5513, %v5821
      %v5904 = vadd.f32 %v5514, %v5826
      %v5905 = vadd.f32 %v5515, %v5831
      %v5906 = vadd.f32 %v5516, %v5836
      %v5907 = vadd.f32 %v5517, %v5841
      %v5908 = vadd.f32 %v5518, %v5846
      %v5909 = vadd.f32 %v5519, %v5851
      %v5910 = vadd.f32 %v5520, %v5856
      %v5911 = vadd.f32 %v5521, %v5861
      %v5912 = vadd.f32 %v5522, %v5866
      %v5913 = vadd.f32 %v5523, %v5871
      %v5914 = vadd.f32 %v5524, %v5876
      %v5915 = vadd.f32 %v5525, %v5881
      %v5916 = vld [vmem:[%s345 + $0x2] sm:$0xff]
      %v5917 = vld [vmem:[%s345 + $0xa] sm:$0xff]
      %v5918 = vld [vmem:[%s345 + $0x1a] sm:$0xff]
      %v5919 = vld [vmem:[%s345 + $0x22] sm:$0xff]
      %v5920 = vld [vmem:[%s345 + $0x32] sm:$0xff]
      %v5921 = vld [vmem:[%s345 + $0x3a] sm:$0xff]
      %v5922 = vld [vmem:[%s345 + $0x4a] sm:$0xff]
      %v5923 = vld [vmem:[%s345 + $0x52] sm:$0xff]
      %v5924 = vld [vmem:[%s345 + $0x62] sm:$0xff]
      %v5925 = vld [vmem:[%s345 + $0x6a] sm:$0xff]
      %v5926 = vld [vmem:[%s345 + $0x7a] sm:$0xff]
      %v5927 = vld [vmem:[%s345 + $0x82] sm:$0xff]
      %v5928 = vld [vmem:[%s345 + $0x92] sm:$0xff]
      %v5929 = vld [vmem:[%s345 + $0x9a] sm:$0xff]
      %v5930 = vld [vmem:[%s345 + $0xaa] sm:$0xff]
      %v5931 = vld [vmem:[%s345 + $0xb2] sm:$0xff]
      %v5932 = vld [vmem:[%s345 + $0xc2] sm:$0xff]
      %v5933 = vld [vmem:[%s345 + $0xca] sm:$0xff]
      %v5934 = vld [vmem:[%s345 + $0xda] sm:$0xff]
      %v5935 = vld [vmem:[%s345 + $0xe2] sm:$0xff]
      %v5936 = vld [vmem:[%s345 + $0xf2] sm:$0xff]
      %v5937 = vld [vmem:[%s345 + $0xfa] sm:$0xff]
      %v5938 = vld [vmem:[%s345 + $0x10a] sm:$0xff]
      %v5939 = vld [vmem:[%s345 + $0x112] sm:$0xff]
      %v5940 = vld [vmem:[%s345 + $0x122] sm:$0xff]
      %v5941 = vld [vmem:[%s345 + $0x12a] sm:$0xff]
      %v5942 = vld [vmem:[%s345 + $0x13a] sm:$0xff]
      %v5943 = vld [vmem:[%s345 + $0x142] sm:$0xff]
      %v5944 = vld [vmem:[%s345 + $0x152] sm:$0xff]
      %v5945 = vld [vmem:[%s345 + $0x15a] sm:$0xff]
      %v5946 = vld [vmem:[%s345 + $0x16a] sm:$0xff]
      %v5947 = vld [vmem:[%s345 + $0x172] sm:$0xff]
      %s5948 = scalar_lea.vmem %s3, 20
      %v5949 = vld [vmem:[%s5948] sm:$0xf]
      %v5951 = vsel %vm225, %v5916, 0
      %v5954 = vsel %vm225, %v5917, 0
      %v5957 = vsel %vm225, %v5918, 0
      %v5960 = vsel %vm225, %v5919, 0
      %v5963 = vsel %vm225, %v5920, 0
      %v5966 = vsel %vm225, %v5921, 0
      %v5969 = vsel %vm225, %v5922, 0
      %v5972 = vsel %vm225, %v5923, 0
      %v5975 = vsel %vm225, %v5924, 0
      %v5978 = vsel %vm225, %v5925, 0
      %v5981 = vsel %vm225, %v5926, 0
      %v5984 = vsel %vm225, %v5927, 0
      %v5987 = vsel %vm225, %v5928, 0
      %v5990 = vsel %vm225, %v5929, 0
      %v5993 = vsel %vm225, %v5930, 0
      %v5996 = vsel %vm225, %v5931, 0
      %v5999 = vsel %vm225, %v5932, 0
      %v6002 = vsel %vm225, %v5933, 0
      %v6005 = vsel %vm225, %v5934, 0
      %v6008 = vsel %vm225, %v5935, 0
      %v6011 = vsel %vm225, %v5936, 0
      %v6014 = vsel %vm225, %v5937, 0
      %v6017 = vsel %vm225, %v5938, 0
      %v6020 = vsel %vm225, %v5939, 0
      %v6023 = vsel %vm225, %v5940, 0
      %v6026 = vsel %vm225, %v5941, 0
      %v6029 = vsel %vm225, %v5942, 0
      %v6032 = vsel %vm225, %v5943, 0
      %v6035 = vsel %vm225, %v5944, 0
      %v6038 = vsel %vm225, %v5945, 0
      %v6041 = vsel %vm225, %v5946, 0
      %v6044 = vsel %vm225, %v5947, 0
      %v6047 = vsel %vm514, %v5949, 0
      %6049 = vmatprep.subr.mxu0 0.0
      %6050 = vmatpush1.msra.mxu0 %v6047
      %6051 = vmatprep.subr.mxu0 0.0
      %6052 = vmatpush1.msra.mxu0 0.0
      %6053 = vmatprep.subr.mxu0 0.0
      %6054 = vmatpush1.msra.mxu0 0.0
      %6055 = vmatprep.subr.mxu0 0.0
      %6056 = vmatpush1.msra.mxu0 0.0
      %6057 = vmatprep.subr.mxu0 0.0
      %6058 = vmatpush1.msra.mxu0 0.0
      %6059 = vmatprep.subr.mxu0 0.0
      %6060 = vmatpush1.msra.mxu0 0.0
      %6061 = vmatprep.subr.mxu0 0.0
      %6062 = vmatpush1.msra.mxu0 0.0
      %6063 = vmatprep.subr.mxu0 0.0
      %6064 = vmatpush1.msra.mxu0 0.0
      %6065 = vmatprep.subr.mxu0 0.0
      %6066 = vmatpush1.msra.mxu0 0.0
      %6067 = vmatprep.subr.mxu0 0.0
      %6068 = vmatpush1.msra.mxu0 0.0
      %6069 = vmatprep.subr.mxu0 0.0
      %6070 = vmatpush1.msra.mxu0 0.0
      %6071 = vmatprep.subr.mxu0 0.0
      %6072 = vmatpush1.msra.mxu0 0.0
      %6073 = vmatprep.subr.mxu0 0.0
      %6074 = vmatpush1.msra.mxu0 0.0
      %6075 = vmatprep.subr.mxu0 0.0
      %6076 = vmatpush1.msra.mxu0 0.0
      %6077 = vmatprep.subr.mxu0 0.0
      %6078 = vmatpush1.msra.mxu0 0.0
      %6079 = vmatprep.subr.mxu0 0.0
      %6080 = vmatpush1.msra.mxu0 0.0
      %6081 = vmatprep.subr.mxu0 0.0
      %6082 = vmatpush1.msra.mxu0 0.0
      %6083 = vmatprep.subr.mxu0 0.0
      %6084 = vmatpush1.msra.mxu0 0.0
      %6085 = vmatprep.subr.mxu0 0.0
      %6086 = vmatpush1.msra.mxu0 0.0
      %6087 = vmatprep.subr.mxu0 0.0
      %6088 = vmatpush1.msra.mxu0 0.0
      %6089 = vmatprep.subr.mxu0 0.0
      %6090 = vmatpush1.msra.mxu0 0.0
      %6091 = vmatprep.subr.mxu0 0.0
      %6092 = vmatpush1.msra.mxu0 0.0
      %6093 = vmatprep.subr.mxu0 0.0
      %6094 = vmatpush1.msra.mxu0 0.0
      %6095 = vmatprep.subr.mxu0 0.0
      %6096 = vmatpush1.msra.mxu0 0.0
      %6097 = vmatprep.subr.mxu0 0.0
      %6098 = vmatpush1.msra.mxu0 0.0
      %6099 = vmatprep.subr.mxu0 0.0
      %6100 = vmatpush1.msra.mxu0 0.0
      %6101 = vmatprep.subr.mxu0 0.0
      %6102 = vmatpush1.msra.mxu0 0.0
      %6103 = vmatprep.subr.mxu0 0.0
      %6104 = vmatpush1.msra.mxu0 0.0
      %6105 = vmatprep.subr.mxu0 0.0
      %6106 = vmatpush1.msra.mxu0 0.0
      %6107 = vmatprep.subr.mxu0 0.0
      %6108 = vmatpush1.msra.mxu0 0.0
      %6109 = vmatprep.subr.mxu0 0.0
      %6110 = vmatpush1.msra.mxu0 0.0
      %6111 = vmatprep.subr.mxu0 0.0
      %6112 = vmatpush1.msra.mxu0 0.0
      %6113 = vmatprep.mubr.f32.mxu0 0.0
      %6114 = vmatmul.mubr.f32.gmra.mrb[0].mxu0 %v5951
      %v6115 = vpop.f32.mrb[0].mxu0
      %v6116 = vadd.f32 0.0, %v6115
      %v6117 = vpop.f32.mrb[0].mxu0
      %6118 = vmatprep.mubr.f32.mxu0 0.0
      %6119 = vmatmul.mubr.f32.gmra.mrb[0].mxu0 %v5954
      %v6120 = vpop.f32.mrb[0].mxu0
      %v6121 = vadd.f32 0.0, %v6120
      %v6122 = vpop.f32.mrb[0].mxu0
      %6123 = vmatprep.mubr.f32.mxu0 0.0
      %6124 = vmatmul.mubr.f32.gmra.mrb[0].mxu0 %v5957
      %v6125 = vpop.f32.mrb[0].mxu0
      %v6126 = vadd.f32 0.0, %v6125
      %v6127 = vpop.f32.mrb[0].mxu0
      %6128 = vmatprep.mubr.f32.mxu0 0.0
      %6129 = vmatmul.mubr.f32.gmra.mrb[0].mxu0 %v5960
      %v6130 = vpop.f32.mrb[0].mxu0
      %v6131 = vadd.f32 0.0, %v6130
      %v6132 = vpop.f32.mrb[0].mxu0
      %6133 = vmatprep.mubr.f32.mxu0 0.0
      %6134 = vmatmul.mubr.f32.gmra.mrb[0].mxu0 %v5963
      %v6135 = vpop.f32.mrb[0].mxu0
      %v6136 = vadd.f32 0.0, %v6135
      %v6137 = vpop.f32.mrb[0].mxu0
      %6138 = vmatprep.mubr.f32.mxu0 0.0
      %6139 = vmatmul.mubr.f32.gmra.mrb[0].mxu0 %v5966
      %v6140 = vpop.f32.mrb[0].mxu0
      %v6141 = vadd.f32 0.0, %v6140
      %v6142 = vpop.f32.mrb[0].mxu0
      %6143 = vmatprep.mubr.f32.mxu0 0.0
      %6144 = vmatmul.mubr.f32.gmra.mrb[0].mxu0 %v5969
      %v6145 = vpop.f32.mrb[0].mxu0
      %v6146 = vadd.f32 0.0, %v6145
      %v6147 = vpop.f32.mrb[0].mxu0
      %6148 = vmatprep.mubr.f32.mxu0 0.0
      %6149 = vmatmul.mubr.f32.gmra.mrb[0].mxu0 %v5972
      %v6150 = vpop.f32.mrb[0].mxu0
      %v6151 = vadd.f32 0.0, %v6150
      %v6152 = vpop.f32.mrb[0].mxu0
      %6153 = vmatprep.mubr.f32.mxu0 0.0
      %6154 = vmatmul.mubr.f32.gmra.mrb[0].mxu0 %v5975
      %v6155 = vpop.f32.mrb[0].mxu0
      %v6156 = vadd.f32 0.0, %v6155
      %v6157 = vpop.f32.mrb[0].mxu0
      %6158 = vmatprep.mubr.f32.mxu0 0.0
      %6159 = vmatmul.mubr.f32.gmra.mrb[0].mxu0 %v5978
      %v6160 = vpop.f32.mrb[0].mxu0
      %v6161 = vadd.f32 0.0, %v6160
      %v6162 = vpop.f32.mrb[0].mxu0
      %6163 = vmatprep.mubr.f32.mxu0 0.0
      %6164 = vmatmul.mubr.f32.gmra.mrb[0].mxu0 %v5981
      %v6165 = vpop.f32.mrb[0].mxu0
      %v6166 = vadd.f32 0.0, %v6165
      %v6167 = vpop.f32.mrb[0].mxu0
      %6168 = vmatprep.mubr.f32.mxu0 0.0
      %6169 = vmatmul.mubr.f32.gmra.mrb[0].mxu0 %v5984
      %v6170 = vpop.f32.mrb[0].mxu0
      %v6171 = vadd.f32 0.0, %v6170
      %v6172 = vpop.f32.mrb[0].mxu0
      %6173 = vmatprep.mubr.f32.mxu0 0.0
      %6174 = vmatmul.mubr.f32.gmra.mrb[0].mxu0 %v5987
      %v6175 = vpop.f32.mrb[0].mxu0
      %v6176 = vadd.f32 0.0, %v6175
      %v6177 = vpop.f32.mrb[0].mxu0
      %6178 = vmatprep.mubr.f32.mxu0 0.0
      %6179 = vmatmul.mubr.f32.gmra.mrb[0].mxu0 %v5990
      %v6180 = vpop.f32.mrb[0].mxu0
      %v6181 = vadd.f32 0.0, %v6180
      %v6182 = vpop.f32.mrb[0].mxu0
      %6183 = vmatprep.mubr.f32.mxu0 0.0
      %6184 = vmatmul.mubr.f32.gmra.mrb[0].mxu0 %v5993
      %v6185 = vpop.f32.mrb[0].mxu0
      %v6186 = vadd.f32 0.0, %v6185
      %v6187 = vpop.f32.mrb[0].mxu0
      %6188 = vmatprep.mubr.f32.mxu0 0.0
      %6189 = vmatmul.mubr.f32.gmra.mrb[0].mxu0 %v5996
      %v6190 = vpop.f32.mrb[0].mxu0
      %v6191 = vadd.f32 0.0, %v6190
      %v6192 = vpop.f32.mrb[0].mxu0
      %6193 = vmatprep.mubr.f32.mxu0 0.0
      %6194 = vmatmul.mubr.f32.gmra.mrb[0].mxu0 %v5999
      %v6195 = vpop.f32.mrb[0].mxu0
      %v6196 = vadd.f32 0.0, %v6195
      %v6197 = vpop.f32.mrb[0].mxu0
      %6198 = vmatprep.mubr.f32.mxu0 0.0
      %6199 = vmatmul.mubr.f32.gmra.mrb[0].mxu0 %v6002
      %v6200 = vpop.f32.mrb[0].mxu0
      %v6201 = vadd.f32 0.0, %v6200
      %v6202 = vpop.f32.mrb[0].mxu0
      %6203 = vmatprep.mubr.f32.mxu0 0.0
      %6204 = vmatmul.mubr.f32.gmra.mrb[0].mxu0 %v6005
      %v6205 = vpop.f32.mrb[0].mxu0
      %v6206 = vadd.f32 0.0, %v6205
      %v6207 = vpop.f32.mrb[0].mxu0
      %6208 = vmatprep.mubr.f32.mxu0 0.0
      %6209 = vmatmul.mubr.f32.gmra.mrb[0].mxu0 %v6008
      %v6210 = vpop.f32.mrb[0].mxu0
      %v6211 = vadd.f32 0.0, %v6210
      %v6212 = vpop.f32.mrb[0].mxu0
      %6213 = vmatprep.mubr.f32.mxu0 0.0
      %6214 = vmatmul.mubr.f32.gmra.mrb[0].mxu0 %v6011
      %v6215 = vpop.f32.mrb[0].mxu0
      %v6216 = vadd.f32 0.0, %v6215
      %v6217 = vpop.f32.mrb[0].mxu0
      %6218 = vmatprep.mubr.f32.mxu0 0.0
      %6219 = vmatmul.mubr.f32.gmra.mrb[0].mxu0 %v6014
      %v6220 = vpop.f32.mrb[0].mxu0
      %v6221 = vadd.f32 0.0, %v6220
      %v6222 = vpop.f32.mrb[0].mxu0
      %6223 = vmatprep.mubr.f32.mxu0 0.0
      %6224 = vmatmul.mubr.f32.gmra.mrb[0].mxu0 %v6017
      %v6225 = vpop.f32.mrb[0].mxu0
      %v6226 = vadd.f32 0.0, %v6225
      %v6227 = vpop.f32.mrb[0].mxu0
      %6228 = vmatprep.mubr.f32.mxu0 0.0
      %6229 = vmatmul.mubr.f32.gmra.mrb[0].mxu0 %v6020
      %v6230 = vpop.f32.mrb[0].mxu0
      %v6231 = vadd.f32 0.0, %v6230
      %v6232 = vpop.f32.mrb[0].mxu0
      %6233 = vmatprep.mubr.f32.mxu0 0.0
      %6234 = vmatmul.mubr.f32.gmra.mrb[0].mxu0 %v6023
      %v6235 = vpop.f32.mrb[0].mxu0
      %v6236 = vadd.f32 0.0, %v6235
      %v6237 = vpop.f32.mrb[0].mxu0
      %6238 = vmatprep.mubr.f32.mxu0 0.0
      %6239 = vmatmul.mubr.f32.gmra.mrb[0].mxu0 %v6026
      %v6240 = vpop.f32.mrb[0].mxu0
      %v6241 = vadd.f32 0.0, %v6240
      %v6242 = vpop.f32.mrb[0].mxu0
      %6243 = vmatprep.mubr.f32.mxu0 0.0
      %6244 = vmatmul.mubr.f32.gmra.mrb[0].mxu0 %v6029
      %v6245 = vpop.f32.mrb[0].mxu0
      %v6246 = vadd.f32 0.0, %v6245
      %v6247 = vpop.f32.mrb[0].mxu0
      %6248 = vmatprep.mubr.f32.mxu0 0.0
      %6249 = vmatmul.mubr.f32.gmra.mrb[0].mxu0 %v6032
      %v6250 = vpop.f32.mrb[0].mxu0
      %v6251 = vadd.f32 0.0, %v6250
      %v6252 = vpop.f32.mrb[0].mxu0
      %6253 = vmatprep.mubr.f32.mxu0 0.0
      %6254 = vmatmul.mubr.f32.gmra.mrb[0].mxu0 %v6035
      %v6255 = vpop.f32.mrb[0].mxu0
      %v6256 = vadd.f32 0.0, %v6255
      %v6257 = vpop.f32.mrb[0].mxu0
      %6258 = vmatprep.mubr.f32.mxu0 0.0
      %6259 = vmatmul.mubr.f32.gmra.mrb[0].mxu0 %v6038
      %v6260 = vpop.f32.mrb[0].mxu0
      %v6261 = vadd.f32 0.0, %v6260
      %v6262 = vpop.f32.mrb[0].mxu0
      %6263 = vmatprep.mubr.f32.mxu0 0.0
      %6264 = vmatmul.mubr.f32.gmra.mrb[0].mxu0 %v6041
      %v6265 = vpop.f32.mrb[0].mxu0
      %v6266 = vadd.f32 0.0, %v6265
      %v6267 = vpop.f32.mrb[0].mxu0
      %6268 = vmatprep.mubr.f32.mxu0 0.0
      %6269 = vmatmul.mubr.f32.gmra.mrb[0].mxu0 %v6044
      %v6270 = vpop.f32.mrb[0].mxu0
      %v6271 = vadd.f32 0.0, %v6270
      %v6272 = vpop.f32.mrb[0].mxu0
      %6273 = vdwg.mxu0
      %v6274 = vadd.f32 %v5884, %v6116
      %v6275 = vadd.f32 %v5885, %v6121
      %v6276 = vadd.f32 %v5886, %v6126
      %v6277 = vadd.f32 %v5887, %v6131
      %v6278 = vadd.f32 %v5888, %v6136
      %v6279 = vadd.f32 %v5889, %v6141
      %v6280 = vadd.f32 %v5890, %v6146
      %v6281 = vadd.f32 %v5891, %v6151
      %v6282 = vadd.f32 %v5892, %v6156
      %v6283 = vadd.f32 %v5893, %v6161
      %v6284 = vadd.f32 %v5894, %v6166
      %v6285 = vadd.f32 %v5895, %v6171
      %v6286 = vadd.f32 %v5896, %v6176
      %v6287 = vadd.f32 %v5897, %v6181
      %v6288 = vadd.f32 %v5898, %v6186
      %v6289 = vadd.f32 %v5899, %v6191
      %v6290 = vadd.f32 %v5900, %v6196
      %v6291 = vadd.f32 %v5901, %v6201
      %v6292 = vadd.f32 %v5902, %v6206
      %v6293 = vadd.f32 %v5903, %v6211
      %v6294 = vadd.f32 %v5904, %v6216
      %v6295 = vadd.f32 %v5905, %v6221
      %v6296 = vadd.f32 %v5906, %v6226
      %v6297 = vadd.f32 %v5907, %v6231
      %v6298 = vadd.f32 %v5908, %v6236
      %v6299 = vadd.f32 %v5909, %v6241
      %v6300 = vadd.f32 %v5910, %v6246
      %v6301 = vadd.f32 %v5911, %v6251
      %v6302 = vadd.f32 %v5912, %v6256
      %v6303 = vadd.f32 %v5913, %v6261
      %v6304 = vadd.f32 %v5914, %v6266
      %v6305 = vadd.f32 %v5915, %v6271
      %v6306 = vld [vmem:[%s2725] sm:$0xff]
      %v6307 = vld [vmem:[%s2725 + $0x8] sm:$0xff]
      %v6308 = vld [vmem:[%s2725 + $0x18] sm:$0xff]
      %v6309 = vld [vmem:[%s2725 + $0x20] sm:$0xff]
      %v6310 = vld [vmem:[%s2725 + $0x30] sm:$0xff]
      %v6311 = vld [vmem:[%s2725 + $0x38] sm:$0xff]
      %v6312 = vld [vmem:[%s2725 + $0x48] sm:$0xff]
      %v6313 = vld [vmem:[%s2725 + $0x50] sm:$0xff]
      %v6314 = vld [vmem:[%s2725 + $0x60] sm:$0xff]
      %v6315 = vld [vmem:[%s2725 + $0x68] sm:$0xff]
      %v6316 = vld [vmem:[%s2725 + $0x78] sm:$0xff]
      %v6317 = vld [vmem:[%s2725 + $0x80] sm:$0xff]
      %v6318 = vld [vmem:[%s2725 + $0x90] sm:$0xff]
      %v6319 = vld [vmem:[%s2725 + $0x98] sm:$0xff]
      %v6320 = vld [vmem:[%s2725 + $0xa8] sm:$0xff]
      %v6321 = vld [vmem:[%s2725 + $0xb0] sm:$0xff]
      %v6322 = vld [vmem:[%s2725 + $0xc0] sm:$0xff]
      %v6323 = vld [vmem:[%s2725 + $0xc8] sm:$0xff]
      %v6324 = vld [vmem:[%s2725 + $0xd8] sm:$0xff]
      %v6325 = vld [vmem:[%s2725 + $0xe0] sm:$0xff]
      %v6326 = vld [vmem:[%s2725 + $0xf0] sm:$0xff]
      %v6327 = vld [vmem:[%s2725 + $0xf8] sm:$0xff]
      %v6328 = vld [vmem:[%s2725 + $0x108] sm:$0xff]
      %v6329 = vld [vmem:[%s2725 + $0x110] sm:$0xff]
      %v6330 = vld [vmem:[%s2725 + $0x120] sm:$0xff]
      %v6331 = vld [vmem:[%s2725 + $0x128] sm:$0xff]
      %v6332 = vld [vmem:[%s2725 + $0x138] sm:$0xff]
      %v6333 = vld [vmem:[%s2725 + $0x140] sm:$0xff]
      %v6334 = vld [vmem:[%s2725 + $0x150] sm:$0xff]
      %v6335 = vld [vmem:[%s2725 + $0x158] sm:$0xff]
      %v6336 = vld [vmem:[%s2725 + $0x168] sm:$0xff]
      %v6337 = vld [vmem:[%s2725 + $0x170] sm:$0xff]
      %s6338 = scalar_lea.vmem %s3, 24
      %v6339 = vld [vmem:[%s6338] sm:$0xf]
      %v6341 = vsel %vm225, %v6306, 0
      %v6344 = vsel %vm225, %v6307, 0
      %v6347 = vsel %vm225, %v6308, 0
      %v6350 = vsel %vm225, %v6309, 0
      %v6353 = vsel %vm225, %v6310, 0
      %v6356 = vsel %vm225, %v6311, 0
      %v6359 = vsel %vm225, %v6312, 0
      %v6362 = vsel %vm225, %v6313, 0
      %v6365 = vsel %vm225, %v6314, 0
      %v6368 = vsel %vm225, %v6315, 0
      %v6371 = vsel %vm225, %v6316, 0
      %v6374 = vsel %vm225, %v6317, 0
      %v6377 = vsel %vm225, %v6318, 0
      %v6380 = vsel %vm225, %v6319, 0
      %v6383 = vsel %vm225, %v6320, 0
      %v6386 = vsel %vm225, %v6321, 0
      %v6389 = vsel %vm225, %v6322, 0
      %v6392 = vsel %vm225, %v6323, 0
      %v6395 = vsel %vm225, %v6324, 0
      %v6398 = vsel %vm225, %v6325, 0
      %v6401 = vsel %vm225, %v6326, 0
      %v6404 = vsel %vm225, %v6327, 0
      %v6407 = vsel %vm225, %v6328, 0
      %v6410 = vsel %vm225, %v6329, 0
      %v6413 = vsel %vm225, %v6330, 0
      %v6416 = vsel %vm225, %v6331, 0
      %v6419 = vsel %vm225, %v6332, 0
      %v6422 = vsel %vm225, %v6333, 0
      %v6425 = vsel %vm225, %v6334, 0
      %v6428 = vsel %vm225, %v6335, 0
      %v6431 = vsel %vm225, %v6336, 0
      %v6434 = vsel %vm225, %v6337, 0
      %v6437 = vsel %vm514, %v6339, 0
      %6439 = vmatprep.subr.mxu0 0.0
      %6440 = vmatpush1.msra.mxu0 %v6437
      %6441 = vmatprep.subr.mxu0 0.0
      %6442 = vmatpush1.msra.mxu0 0.0
      %6443 = vmatprep.subr.mxu0 0.0
      %6444 = vmatpush1.msra.mxu0 0.0
      %6445 = vmatprep.subr.mxu0 0.0
      %6446 = vmatpush1.msra.mxu0 0.0
      %6447 = vmatprep.subr.mxu0 0.0
      %6448 = vmatpush1.msra.mxu0 0.0
      %6449 = vmatprep.subr.mxu0 0.0
      %6450 = vmatpush1.msra.mxu0 0.0
      %6451 = vmatprep.subr.mxu0 0.0
      %6452 = vmatpush1.msra.mxu0 0.0
      %6453 = vmatprep.subr.mxu0 0.0
      %6454 = vmatpush1.msra.mxu0 0.0
      %6455 = vmatprep.subr.mxu0 0.0
      %6456 = vmatpush1.msra.mxu0 0.0
      %6457 = vmatprep.subr.mxu0 0.0
      %6458 = vmatpush1.msra.mxu0 0.0
      %6459 = vmatprep.subr.mxu0 0.0
      %6460 = vmatpush1.msra.mxu0 0.0
      %6461 = vmatprep.subr.mxu0 0.0
      %6462 = vmatpush1.msra.mxu0 0.0
      %6463 = vmatprep.subr.mxu0 0.0
      %6464 = vmatpush1.msra.mxu0 0.0
      %6465 = vmatprep.subr.mxu0 0.0
      %6466 = vmatpush1.msra.mxu0 0.0
      %6467 = vmatprep.subr.mxu0 0.0
      %6468 = vmatpush1.msra.mxu0 0.0
      %6469 = vmatprep.subr.mxu0 0.0
      %6470 = vmatpush1.msra.mxu0 0.0
      %6471 = vmatprep.subr.mxu0 0.0
      %6472 = vmatpush1.msra.mxu0 0.0
      %6473 = vmatprep.subr.mxu0 0.0
      %6474 = vmatpush1.msra.mxu0 0.0
      %6475 = vmatprep.subr.mxu0 0.0
      %6476 = vmatpush1.msra.mxu0 0.0
      %6477 = vmatprep.subr.mxu0 0.0
      %6478 = vmatpush1.msra.mxu0 0.0
      %6479 = vmatprep.subr.mxu0 0.0
      %6480 = vmatpush1.msra.mxu0 0.0
      %6481 = vmatprep.subr.mxu0 0.0
      %6482 = vmatpush1.msra.mxu0 0.0
      %6483 = vmatprep.subr.mxu0 0.0
      %6484 = vmatpush1.msra.mxu0 0.0
      %6485 = vmatprep.subr.mxu0 0.0
      %6486 = vmatpush1.msra.mxu0 0.0
      %6487 = vmatprep.subr.mxu0 0.0
      %6488 = vmatpush1.msra.mxu0 0.0
      %6489 = vmatprep.subr.mxu0 0.0
      %6490 = vmatpush1.msra.mxu0 0.0
      %6491 = vmatprep.subr.mxu0 0.0
      %6492 = vmatpush1.msra.mxu0 0.0
      %6493 = vmatprep.subr.mxu0 0.0
      %6494 = vmatpush1.msra.mxu0 0.0
      %6495 = vmatprep.subr.mxu0 0.0
      %6496 = vmatpush1.msra.mxu0 0.0
      %6497 = vmatprep.subr.mxu0 0.0
      %6498 = vmatpush1.msra.mxu0 0.0
      %6499 = vmatprep.subr.mxu0 0.0
      %6500 = vmatpush1.msra.mxu0 0.0
      %6501 = vmatprep.subr.mxu0 0.0
      %6502 = vmatpush1.msra.mxu0 0.0
      %6503 = vmatprep.mubr.f32.mxu0 0.0
      %6504 = vmatmul.mubr.f32.gmra.mrb[0].mxu0 %v6341
      %v6505 = vpop.f32.mrb[0].mxu0
      %v6506 = vadd.f32 0.0, %v6505
      %v6507 = vpop.f32.mrb[0].mxu0
      %6508 = vmatprep.mubr.f32.mxu0 0.0
      %6509 = vmatmul.mubr.f32.gmra.mrb[0].mxu0 %v6344
      %v6510 = vpop.f32.mrb[0].mxu0
      %v6511 = vadd.f32 0.0, %v6510
      %v6512 = vpop.f32.mrb[0].mxu0
      %6513 = vmatprep.mubr.f32.mxu0 0.0
      %6514 = vmatmul.mubr.f32.gmra.mrb[0].mxu0 %v6347
      %v6515 = vpop.f32.mrb[0].mxu0
      %v6516 = vadd.f32 0.0, %v6515
      %v6517 = vpop.f32.mrb[0].mxu0
      %6518 = vmatprep.mubr.f32.mxu0 0.0
      %6519 = vmatmul.mubr.f32.gmra.mrb[0].mxu0 %v6350
      %v6520 = vpop.f32.mrb[0].mxu0
      %v6521 = vadd.f32 0.0, %v6520
      %v6522 = vpop.f32.mrb[0].mxu0
      %6523 = vmatprep.mubr.f32.mxu0 0.0
      %6524 = vmatmul.mubr.f32.gmra.mrb[0].mxu0 %v6353
      %v6525 = vpop.f32.mrb[0].mxu0
      %v6526 = vadd.f32 0.0, %v6525
      %v6527 = vpop.f32.mrb[0].mxu0
      %6528 = vmatprep.mubr.f32.mxu0 0.0
      %6529 = vmatmul.mubr.f32.gmra.mrb[0].mxu0 %v6356
      %v6530 = vpop.f32.mrb[0].mxu0
      %v6531 = vadd.f32 0.0, %v6530
      %v6532 = vpop.f32.mrb[0].mxu0
      %6533 = vmatprep.mubr.f32.mxu0 0.0
      %6534 = vmatmul.mubr.f32.gmra.mrb[0].mxu0 %v6359
      %v6535 = vpop.f32.mrb[0].mxu0
      %v6536 = vadd.f32 0.0, %v6535
      %v6537 = vpop.f32.mrb[0].mxu0
      %6538 = vmatprep.mubr.f32.mxu0 0.0
      %6539 = vmatmul.mubr.f32.gmra.mrb[0].mxu0 %v6362
      %v6540 = vpop.f32.mrb[0].mxu0
      %v6541 = vadd.f32 0.0, %v6540
      %v6542 = vpop.f32.mrb[0].mxu0
      %6543 = vmatprep.mubr.f32.mxu0 0.0
      %6544 = vmatmul.mubr.f32.gmra.mrb[0].mxu0 %v6365
      %v6545 = vpop.f32.mrb[0].mxu0
      %v6546 = vadd.f32 0.0, %v6545
      %v6547 = vpop.f32.mrb[0].mxu0
      %6548 = vmatprep.mubr.f32.mxu0 0.0
      %6549 = vmatmul.mubr.f32.gmra.mrb[0].mxu0 %v6368
      %v6550 = vpop.f32.mrb[0].mxu0
      %v6551 = vadd.f32 0.0, %v6550
      %v6552 = vpop.f32.mrb[0].mxu0
      %6553 = vmatprep.mubr.f32.mxu0 0.0
      %6554 = vmatmul.mubr.f32.gmra.mrb[0].mxu0 %v6371
      %v6555 = vpop.f32.mrb[0].mxu0
      %v6556 = vadd.f32 0.0, %v6555
      %v6557 = vpop.f32.mrb[0].mxu0
      %6558 = vmatprep.mubr.f32.mxu0 0.0
      %6559 = vmatmul.mubr.f32.gmra.mrb[0].mxu0 %v6374
      %v6560 = vpop.f32.mrb[0].mxu0
      %v6561 = vadd.f32 0.0, %v6560
      %v6562 = vpop.f32.mrb[0].mxu0
      %6563 = vmatprep.mubr.f32.mxu0 0.0
      %6564 = vmatmul.mubr.f32.gmra.mrb[0].mxu0 %v6377
      %v6565 = vpop.f32.mrb[0].mxu0
      %v6566 = vadd.f32 0.0, %v6565
      %v6567 = vpop.f32.mrb[0].mxu0
      %6568 = vmatprep.mubr.f32.mxu0 0.0
      %6569 = vmatmul.mubr.f32.gmra.mrb[0].mxu0 %v6380
      %v6570 = vpop.f32.mrb[0].mxu0
      %v6571 = vadd.f32 0.0, %v6570
      %v6572 = vpop.f32.mrb[0].mxu0
      %6573 = vmatprep.mubr.f32.mxu0 0.0
      %6574 = vmatmul.mubr.f32.gmra.mrb[0].mxu0 %v6383
      %v6575 = vpop.f32.mrb[0].mxu0
      %v6576 = vadd.f32 0.0, %v6575
      %v6577 = vpop.f32.mrb[0].mxu0
      %6578 = vmatprep.mubr.f32.mxu0 0.0
      %6579 = vmatmul.mubr.f32.gmra.mrb[0].mxu0 %v6386
      %v6580 = vpop.f32.mrb[0].mxu0
      %v6581 = vadd.f32 0.0, %v6580
      %v6582 = vpop.f32.mrb[0].mxu0
      %6583 = vmatprep.mubr.f32.mxu0 0.0
      %6584 = vmatmul.mubr.f32.gmra.mrb[0].mxu0 %v6389
      %v6585 = vpop.f32.mrb[0].mxu0
      %v6586 = vadd.f32 0.0, %v6585
      %v6587 = vpop.f32.mrb[0].mxu0
      %6588 = vmatprep.mubr.f32.mxu0 0.0
      %6589 = vmatmul.mubr.f32.gmra.mrb[0].mxu0 %v6392
      %v6590 = vpop.f32.mrb[0].mxu0
      %v6591 = vadd.f32 0.0, %v6590
      %v6592 = vpop.f32.mrb[0].mxu0
      %6593 = vmatprep.mubr.f32.mxu0 0.0
      %6594 = vmatmul.mubr.f32.gmra.mrb[0].mxu0 %v6395
      %v6595 = vpop.f32.mrb[0].mxu0
      %v6596 = vadd.f32 0.0, %v6595
      %v6597 = vpop.f32.mrb[0].mxu0
      %6598 = vmatprep.mubr.f32.mxu0 0.0
      %6599 = vmatmul.mubr.f32.gmra.mrb[0].mxu0 %v6398
      %v6600 = vpop.f32.mrb[0].mxu0
      %v6601 = vadd.f32 0.0, %v6600
      %v6602 = vpop.f32.mrb[0].mxu0
      %6603 = vmatprep.mubr.f32.mxu0 0.0
      %6604 = vmatmul.mubr.f32.gmra.mrb[0].mxu0 %v6401
      %v6605 = vpop.f32.mrb[0].mxu0
      %v6606 = vadd.f32 0.0, %v6605
      %v6607 = vpop.f32.mrb[0].mxu0
      %6608 = vmatprep.mubr.f32.mxu0 0.0
      %6609 = vmatmul.mubr.f32.gmra.mrb[0].mxu0 %v6404
      %v6610 = vpop.f32.mrb[0].mxu0
      %v6611 = vadd.f32 0.0, %v6610
      %v6612 = vpop.f32.mrb[0].mxu0
      %6613 = vmatprep.mubr.f32.mxu0 0.0
      %6614 = vmatmul.mubr.f32.gmra.mrb[0].mxu0 %v6407
      %v6615 = vpop.f32.mrb[0].mxu0
      %v6616 = vadd.f32 0.0, %v6615
      %v6617 = vpop.f32.mrb[0].mxu0
      %6618 = vmatprep.mubr.f32.mxu0 0.0
      %6619 = vmatmul.mubr.f32.gmra.mrb[0].mxu0 %v6410
      %v6620 = vpop.f32.mrb[0].mxu0
      %v6621 = vadd.f32 0.0, %v6620
      %v6622 = vpop.f32.mrb[0].mxu0
      %6623 = vmatprep.mubr.f32.mxu0 0.0
      %6624 = vmatmul.mubr.f32.gmra.mrb[0].mxu0 %v6413
      %v6625 = vpop.f32.mrb[0].mxu0
      %v6626 = vadd.f32 0.0, %v6625
      %v6627 = vpop.f32.mrb[0].mxu0
      %6628 = vmatprep.mubr.f32.mxu0 0.0
      %6629 = vmatmul.mubr.f32.gmra.mrb[0].mxu0 %v6416
      %v6630 = vpop.f32.mrb[0].mxu0
      %v6631 = vadd.f32 0.0, %v6630
      %v6632 = vpop.f32.mrb[0].mxu0
      %6633 = vmatprep.mubr.f32.mxu0 0.0
      %6634 = vmatmul.mubr.f32.gmra.mrb[0].mxu0 %v6419
      %v6635 = vpop.f32.mrb[0].mxu0
      %v6636 = vadd.f32 0.0, %v6635
      %v6637 = vpop.f32.mrb[0].mxu0
      %6638 = vmatprep.mubr.f32.mxu0 0.0
      %6639 = vmatmul.mubr.f32.gmra.mrb[0].mxu0 %v6422
      %v6640 = vpop.f32.mrb[0].mxu0
      %v6641 = vadd.f32 0.0, %v6640
      %v6642 = vpop.f32.mrb[0].mxu0
      %6643 = vmatprep.mubr.f32.mxu0 0.0
      %6644 = vmatmul.mubr.f32.gmra.mrb[0].mxu0 %v6425
      %v6645 = vpop.f32.mrb[0].mxu0
      %v6646 = vadd.f32 0.0, %v6645
      %v6647 = vpop.f32.mrb[0].mxu0
      %6648 = vmatprep.mubr.f32.mxu0 0.0
      %6649 = vmatmul.mubr.f32.gmra.mrb[0].mxu0 %v6428
      %v6650 = vpop.f32.mrb[0].mxu0
      %v6651 = vadd.f32 0.0, %v6650
      %v6652 = vpop.f32.mrb[0].mxu0
      %6653 = vmatprep.mubr.f32.mxu0 0.0
      %6654 = vmatmul.mubr.f32.gmra.mrb[0].mxu0 %v6431
      %v6655 = vpop.f32.mrb[0].mxu0
      %v6656 = vadd.f32 0.0, %v6655
      %v6657 = vpop.f32.mrb[0].mxu0
      %6658 = vmatprep.mubr.f32.mxu0 0.0
      %6659 = vmatmul.mubr.f32.gmra.mrb[0].mxu0 %v6434
      %v6660 = vpop.f32.mrb[0].mxu0
      %v6661 = vadd.f32 0.0, %v6660
      %v6662 = vpop.f32.mrb[0].mxu0
      %6663 = vdwg.mxu0
      %v6664 = vadd.f32 %v6274, %v6506
      %v6665 = vadd.f32 %v6275, %v6511
      %v6666 = vadd.f32 %v6276, %v6516
      %v6667 = vadd.f32 %v6277, %v6521
      %v6668 = vadd.f32 %v6278, %v6526
      %v6669 = vadd.f32 %v6279, %v6531
      %v6670 = vadd.f32 %v6280, %v6536
      %v6671 = vadd.f32 %v6281, %v6541
      %v6672 = vadd.f32 %v6282, %v6546
      %v6673 = vadd.f32 %v6283, %v6551
      %v6674 = vadd.f32 %v6284, %v6556
      %v6675 = vadd.f32 %v6285, %v6561
      %v6676 = vadd.f32 %v6286, %v6566
      %v6677 = vadd.f32 %v6287, %v6571
      %v6678 = vadd.f32 %v6288, %v6576
      %v6679 = vadd.f32 %v6289, %v6581
      %v6680 = vadd.f32 %v6290, %v6586
      %v6681 = vadd.f32 %v6291, %v6591
      %v6682 = vadd.f32 %v6292, %v6596
      %v6683 = vadd.f32 %v6293, %v6601
      %v6684 = vadd.f32 %v6294, %v6606
      %v6685 = vadd.f32 %v6295, %v6611
      %v6686 = vadd.f32 %v6296, %v6616
      %v6687 = vadd.f32 %v6297, %v6621
      %v6688 = vadd.f32 %v6298, %v6626
      %v6689 = vadd.f32 %v6299, %v6631
      %v6690 = vadd.f32 %v6300, %v6636
      %v6691 = vadd.f32 %v6301, %v6641
      %v6692 = vadd.f32 %v6302, %v6646
      %v6693 = vadd.f32 %v6303, %v6651
      %v6694 = vadd.f32 %v6304, %v6656
      %v6695 = vadd.f32 %v6305, %v6661
      %v6696 = vld [vmem:[%s2725 + $0x1] sm:$0xff]
      %v6697 = vld [vmem:[%s2725 + $0x9] sm:$0xff]
      %v6698 = vld [vmem:[%s2725 + $0x19] sm:$0xff]
      %v6699 = vld [vmem:[%s2725 + $0x21] sm:$0xff]
      %v6700 = vld [vmem:[%s2725 + $0x31] sm:$0xff]
      %v6701 = vld [vmem:[%s2725 + $0x39] sm:$0xff]
      %v6702 = vld [vmem:[%s2725 + $0x49] sm:$0xff]
      %v6703 = vld [vmem:[%s2725 + $0x51] sm:$0xff]
      %v6704 = vld [vmem:[%s2725 + $0x61] sm:$0xff]
      %v6705 = vld [vmem:[%s2725 + $0x69] sm:$0xff]
      %v6706 = vld [vmem:[%s2725 + $0x79] sm:$0xff]
      %v6707 = vld [vmem:[%s2725 + $0x81] sm:$0xff]
      %v6708 = vld [vmem:[%s2725 + $0x91] sm:$0xff]
      %v6709 = vld [vmem:[%s2725 + $0x99] sm:$0xff]
      %v6710 = vld [vmem:[%s2725 + $0xa9] sm:$0xff]
      %v6711 = vld [vmem:[%s2725 + $0xb1] sm:$0xff]
      %v6712 = vld [vmem:[%s2725 + $0xc1] sm:$0xff]
      %v6713 = vld [vmem:[%s2725 + $0xc9] sm:$0xff]
      %v6714 = vld [vmem:[%s2725 + $0xd9] sm:$0xff]
      %v6715 = vld [vmem:[%s2725 + $0xe1] sm:$0xff]
      %v6716 = vld [vmem:[%s2725 + $0xf1] sm:$0xff]
      %v6717 = vld [vmem:[%s2725 + $0xf9] sm:$0xff]
      %v6718 = vld [vmem:[%s2725 + $0x109] sm:$0xff]
      %v6719 = vld [vmem:[%s2725 + $0x111] sm:$0xff]
      %v6720 = vld [vmem:[%s2725 + $0x121] sm:$0xff]
      %v6721 = vld [vmem:[%s2725 + $0x129] sm:$0xff]
      %v6722 = vld [vmem:[%s2725 + $0x139] sm:$0xff]
      %v6723 = vld [vmem:[%s2725 + $0x141] sm:$0xff]
      %v6724 = vld [vmem:[%s2725 + $0x151] sm:$0xff]
      %v6725 = vld [vmem:[%s2725 + $0x159] sm:$0xff]
      %v6726 = vld [vmem:[%s2725 + $0x169] sm:$0xff]
      %v6727 = vld [vmem:[%s2725 + $0x171] sm:$0xff]
      %s6728 = scalar_lea.vmem %s3, 28
      %v6729 = vld [vmem:[%s6728] sm:$0xf]
      %v6731 = vsel %vm225, %v6696, 0
      %v6734 = vsel %vm225, %v6697, 0
      %v6737 = vsel %vm225, %v6698, 0
      %v6740 = vsel %vm225, %v6699, 0
      %v6743 = vsel %vm225, %v6700, 0
      %v6746 = vsel %vm225, %v6701, 0
      %v6749 = vsel %vm225, %v6702, 0
      %v6752 = vsel %vm225, %v6703, 0
      %v6755 = vsel %vm225, %v6704, 0
      %v6758 = vsel %vm225, %v6705, 0
      %v6761 = vsel %vm225, %v6706, 0
      %v6764 = vsel %vm225, %v6707, 0
      %v6767 = vsel %vm225, %v6708, 0
      %v6770 = vsel %vm225, %v6709, 0
      %v6773 = vsel %vm225, %v6710, 0
      %v6776 = vsel %vm225, %v6711, 0
      %v6779 = vsel %vm225, %v6712, 0
      %v6782 = vsel %vm225, %v6713, 0
      %v6785 = vsel %vm225, %v6714, 0
      %v6788 = vsel %vm225, %v6715, 0
      %v6791 = vsel %vm225, %v6716, 0
      %v6794 = vsel %vm225, %v6717, 0
      %v6797 = vsel %vm225, %v6718, 0
      %v6800 = vsel %vm225, %v6719, 0
      %v6803 = vsel %vm225, %v6720, 0
      %v6806 = vsel %vm225, %v6721, 0
      %v6809 = vsel %vm225, %v6722, 0
      %v6812 = vsel %vm225, %v6723, 0
      %v6815 = vsel %vm225, %v6724, 0
      %v6818 = vsel %vm225, %v6725, 0
      %v6821 = vsel %vm225, %v6726, 0
      %v6824 = vsel %vm225, %v6727, 0
      %v6827 = vsel %vm514, %v6729, 0
      %6829 = vmatprep.subr.mxu0 0.0
      %6830 = vmatpush1.msra.mxu0 %v6827
      %6831 = vmatprep.subr.mxu0 0.0
      %6832 = vmatpush1.msra.mxu0 0.0
      %6833 = vmatprep.subr.mxu0 0.0
      %6834 = vmatpush1.msra.mxu0 0.0
      %6835 = vmatprep.subr.mxu0 0.0
      %6836 = vmatpush1.msra.mxu0 0.0
      %6837 = vmatprep.subr.mxu0 0.0
      %6838 = vmatpush1.msra.mxu0 0.0
      %6839 = vmatprep.subr.mxu0 0.0
      %6840 = vmatpush1.msra.mxu0 0.0
      %6841 = vmatprep.subr.mxu0 0.0
      %6842 = vmatpush1.msra.mxu0 0.0
      %6843 = vmatprep.subr.mxu0 0.0
      %6844 = vmatpush1.msra.mxu0 0.0
      %6845 = vmatprep.subr.mxu0 0.0
      %6846 = vmatpush1.msra.mxu0 0.0
      %6847 = vmatprep.subr.mxu0 0.0
      %6848 = vmatpush1.msra.mxu0 0.0
      %6849 = vmatprep.subr.mxu0 0.0
      %6850 = vmatpush1.msra.mxu0 0.0
      %6851 = vmatprep.subr.mxu0 0.0
      %6852 = vmatpush1.msra.mxu0 0.0
      %6853 = vmatprep.subr.mxu0 0.0
      %6854 = vmatpush1.msra.mxu0 0.0
      %6855 = vmatprep.subr.mxu0 0.0
      %6856 = vmatpush1.msra.mxu0 0.0
      %6857 = vmatprep.subr.mxu0 0.0
      %6858 = vmatpush1.msra.mxu0 0.0
      %6859 = vmatprep.subr.mxu0 0.0
      %6860 = vmatpush1.msra.mxu0 0.0
      %6861 = vmatprep.subr.mxu0 0.0
      %6862 = vmatpush1.msra.mxu0 0.0
      %6863 = vmatprep.subr.mxu0 0.0
      %6864 = vmatpush1.msra.mxu0 0.0
      %6865 = vmatprep.subr.mxu0 0.0
      %6866 = vmatpush1.msra.mxu0 0.0
      %6867 = vmatprep.subr.mxu0 0.0
      %6868 = vmatpush1.msra.mxu0 0.0
      %6869 = vmatprep.subr.mxu0 0.0
      %6870 = vmatpush1.msra.mxu0 0.0
      %6871 = vmatprep.subr.mxu0 0.0
      %6872 = vmatpush1.msra.mxu0 0.0
      %6873 = vmatprep.subr.mxu0 0.0
      %6874 = vmatpush1.msra.mxu0 0.0
      %6875 = vmatprep.subr.mxu0 0.0
      %6876 = vmatpush1.msra.mxu0 0.0
      %6877 = vmatprep.subr.mxu0 0.0
      %6878 = vmatpush1.msra.mxu0 0.0
      %6879 = vmatprep.subr.mxu0 0.0
      %6880 = vmatpush1.msra.mxu0 0.0
      %6881 = vmatprep.subr.mxu0 0.0
      %6882 = vmatpush1.msra.mxu0 0.0
      %6883 = vmatprep.subr.mxu0 0.0
      %6884 = vmatpush1.msra.mxu0 0.0
      %6885 = vmatprep.subr.mxu0 0.0
      %6886 = vmatpush1.msra.mxu0 0.0
      %6887 = vmatprep.subr.mxu0 0.0
      %6888 = vmatpush1.msra.mxu0 0.0
      %6889 = vmatprep.subr.mxu0 0.0
      %6890 = vmatpush1.msra.mxu0 0.0
      %6891 = vmatprep.subr.mxu0 0.0
      %6892 = vmatpush1.msra.mxu0 0.0
      %6893 = vmatprep.mubr.f32.mxu0 0.0
      %6894 = vmatmul.mubr.f32.gmra.mrb[0].mxu0 %v6731
      %v6895 = vpop.f32.mrb[0].mxu0
      %v6896 = vadd.f32 0.0, %v6895
      %v6897 = vpop.f32.mrb[0].mxu0
      %6898 = vmatprep.mubr.f32.mxu0 0.0
      %6899 = vmatmul.mubr.f32.gmra.mrb[0].mxu0 %v6734
      %v6900 = vpop.f32.mrb[0].mxu0
      %v6901 = vadd.f32 0.0, %v6900
      %v6902 = vpop.f32.mrb[0].mxu0
      %6903 = vmatprep.mubr.f32.mxu0 0.0
      %6904 = vmatmul.mubr.f32.gmra.mrb[0].mxu0 %v6737
      %v6905 = vpop.f32.mrb[0].mxu0
      %v6906 = vadd.f32 0.0, %v6905
      %v6907 = vpop.f32.mrb[0].mxu0
      %6908 = vmatprep.mubr.f32.mxu0 0.0
      %6909 = vmatmul.mubr.f32.gmra.mrb[0].mxu0 %v6740
      %v6910 = vpop.f32.mrb[0].mxu0
      %v6911 = vadd.f32 0.0, %v6910
      %v6912 = vpop.f32.mrb[0].mxu0
      %6913 = vmatprep.mubr.f32.mxu0 0.0
      %6914 = vmatmul.mubr.f32.gmra.mrb[0].mxu0 %v6743
      %v6915 = vpop.f32.mrb[0].mxu0
      %v6916 = vadd.f32 0.0, %v6915
      %v6917 = vpop.f32.mrb[0].mxu0
      %6918 = vmatprep.mubr.f32.mxu0 0.0
      %6919 = vmatmul.mubr.f32.gmra.mrb[0].mxu0 %v6746
      %v6920 = vpop.f32.mrb[0].mxu0
      %v6921 = vadd.f32 0.0, %v6920
      %v6922 = vpop.f32.mrb[0].mxu0
      %6923 = vmatprep.mubr.f32.mxu0 0.0
      %6924 = vmatmul.mubr.f32.gmra.mrb[0].mxu0 %v6749
      %v6925 = vpop.f32.mrb[0].mxu0
      %v6926 = vadd.f32 0.0, %v6925
      %v6927 = vpop.f32.mrb[0].mxu0
      %6928 = vmatprep.mubr.f32.mxu0 0.0
      %6929 = vmatmul.mubr.f32.gmra.mrb[0].mxu0 %v6752
      %v6930 = vpop.f32.mrb[0].mxu0
      %v6931 = vadd.f32 0.0, %v6930
      %v6932 = vpop.f32.mrb[0].mxu0
      %6933 = vmatprep.mubr.f32.mxu0 0.0
      %6934 = vmatmul.mubr.f32.gmra.mrb[0].mxu0 %v6755
      %v6935 = vpop.f32.mrb[0].mxu0
      %v6936 = vadd.f32 0.0, %v6935
      %v6937 = vpop.f32.mrb[0].mxu0
      %6938 = vmatprep.mubr.f32.mxu0 0.0
      %6939 = vmatmul.mubr.f32.gmra.mrb[0].mxu0 %v6758
      %v6940 = vpop.f32.mrb[0].mxu0
      %v6941 = vadd.f32 0.0, %v6940
      %v6942 = vpop.f32.mrb[0].mxu0
      %6943 = vmatprep.mubr.f32.mxu0 0.0
      %6944 = vmatmul.mubr.f32.gmra.mrb[0].mxu0 %v6761
      %v6945 = vpop.f32.mrb[0].mxu0
      %v6946 = vadd.f32 0.0, %v6945
      %v6947 = vpop.f32.mrb[0].mxu0
      %6948 = vmatprep.mubr.f32.mxu0 0.0
      %6949 = vmatmul.mubr.f32.gmra.mrb[0].mxu0 %v6764
      %v6950 = vpop.f32.mrb[0].mxu0
      %v6951 = vadd.f32 0.0, %v6950
      %v6952 = vpop.f32.mrb[0].mxu0
      %6953 = vmatprep.mubr.f32.mxu0 0.0
      %6954 = vmatmul.mubr.f32.gmra.mrb[0].mxu0 %v6767
      %v6955 = vpop.f32.mrb[0].mxu0
      %v6956 = vadd.f32 0.0, %v6955
      %v6957 = vpop.f32.mrb[0].mxu0
      %6958 = vmatprep.mubr.f32.mxu0 0.0
      %6959 = vmatmul.mubr.f32.gmra.mrb[0].mxu0 %v6770
      %v6960 = vpop.f32.mrb[0].mxu0
      %v6961 = vadd.f32 0.0, %v6960
      %v6962 = vpop.f32.mrb[0].mxu0
      %6963 = vmatprep.mubr.f32.mxu0 0.0
      %6964 = vmatmul.mubr.f32.gmra.mrb[0].mxu0 %v6773
      %v6965 = vpop.f32.mrb[0].mxu0
      %v6966 = vadd.f32 0.0, %v6965
      %v6967 = vpop.f32.mrb[0].mxu0
      %6968 = vmatprep.mubr.f32.mxu0 0.0
      %6969 = vmatmul.mubr.f32.gmra.mrb[0].mxu0 %v6776
      %v6970 = vpop.f32.mrb[0].mxu0
      %v6971 = vadd.f32 0.0, %v6970
      %v6972 = vpop.f32.mrb[0].mxu0
      %6973 = vmatprep.mubr.f32.mxu0 0.0
      %6974 = vmatmul.mubr.f32.gmra.mrb[0].mxu0 %v6779
      %v6975 = vpop.f32.mrb[0].mxu0
      %v6976 = vadd.f32 0.0, %v6975
      %v6977 = vpop.f32.mrb[0].mxu0
      %6978 = vmatprep.mubr.f32.mxu0 0.0
      %6979 = vmatmul.mubr.f32.gmra.mrb[0].mxu0 %v6782
      %v6980 = vpop.f32.mrb[0].mxu0
      %v6981 = vadd.f32 0.0, %v6980
      %v6982 = vpop.f32.mrb[0].mxu0
      %6983 = vmatprep.mubr.f32.mxu0 0.0
      %6984 = vmatmul.mubr.f32.gmra.mrb[0].mxu0 %v6785
      %v6985 = vpop.f32.mrb[0].mxu0
      %v6986 = vadd.f32 0.0, %v6985
      %v6987 = vpop.f32.mrb[0].mxu0
      %6988 = vmatprep.mubr.f32.mxu0 0.0
      %6989 = vmatmul.mubr.f32.gmra.mrb[0].mxu0 %v6788
      %v6990 = vpop.f32.mrb[0].mxu0
      %v6991 = vadd.f32 0.0, %v6990
      %v6992 = vpop.f32.mrb[0].mxu0
      %6993 = vmatprep.mubr.f32.mxu0 0.0
      %6994 = vmatmul.mubr.f32.gmra.mrb[0].mxu0 %v6791
      %v6995 = vpop.f32.mrb[0].mxu0
      %v6996 = vadd.f32 0.0, %v6995
      %v6997 = vpop.f32.mrb[0].mxu0
      %6998 = vmatprep.mubr.f32.mxu0 0.0
      %6999 = vmatmul.mubr.f32.gmra.mrb[0].mxu0 %v6794
      %v7000 = vpop.f32.mrb[0].mxu0
      %v7001 = vadd.f32 0.0, %v7000
      %v7002 = vpop.f32.mrb[0].mxu0
      %7003 = vmatprep.mubr.f32.mxu0 0.0
      %7004 = vmatmul.mubr.f32.gmra.mrb[0].mxu0 %v6797
      %v7005 = vpop.f32.mrb[0].mxu0
      %v7006 = vadd.f32 0.0, %v7005
      %v7007 = vpop.f32.mrb[0].mxu0
      %7008 = vmatprep.mubr.f32.mxu0 0.0
      %7009 = vmatmul.mubr.f32.gmra.mrb[0].mxu0 %v6800
      %v7010 = vpop.f32.mrb[0].mxu0
      %v7011 = vadd.f32 0.0, %v7010
      %v7012 = vpop.f32.mrb[0].mxu0
      %7013 = vmatprep.mubr.f32.mxu0 0.0
      %7014 = vmatmul.mubr.f32.gmra.mrb[0].mxu0 %v6803
      %v7015 = vpop.f32.mrb[0].mxu0
      %v7016 = vadd.f32 0.0, %v7015
      %v7017 = vpop.f32.mrb[0].mxu0
      %7018 = vmatprep.mubr.f32.mxu0 0.0
      %7019 = vmatmul.mubr.f32.gmra.mrb[0].mxu0 %v6806
      %v7020 = vpop.f32.mrb[0].mxu0
      %v7021 = vadd.f32 0.0, %v7020
      %v7022 = vpop.f32.mrb[0].mxu0
      %7023 = vmatprep.mubr.f32.mxu0 0.0
      %7024 = vmatmul.mubr.f32.gmra.mrb[0].mxu0 %v6809
      %v7025 = vpop.f32.mrb[0].mxu0
      %v7026 = vadd.f32 0.0, %v7025
      %v7027 = vpop.f32.mrb[0].mxu0
      %7028 = vmatprep.mubr.f32.mxu0 0.0
      %7029 = vmatmul.mubr.f32.gmra.mrb[0].mxu0 %v6812
      %v7030 = vpop.f32.mrb[0].mxu0
      %v7031 = vadd.f32 0.0, %v7030
      %v7032 = vpop.f32.mrb[0].mxu0
      %7033 = vmatprep.mubr.f32.mxu0 0.0
      %7034 = vmatmul.mubr.f32.gmra.mrb[0].mxu0 %v6815
      %v7035 = vpop.f32.mrb[0].mxu0
      %v7036 = vadd.f32 0.0, %v7035
      %v7037 = vpop.f32.mrb[0].mxu0
      %7038 = vmatprep.mubr.f32.mxu0 0.0
      %7039 = vmatmul.mubr.f32.gmra.mrb[0].mxu0 %v6818
      %v7040 = vpop.f32.mrb[0].mxu0
      %v7041 = vadd.f32 0.0, %v7040
      %v7042 = vpop.f32.mrb[0].mxu0
      %7043 = vmatprep.mubr.f32.mxu0 0.0
      %7044 = vmatmul.mubr.f32.gmra.mrb[0].mxu0 %v6821
      %v7045 = vpop.f32.mrb[0].mxu0
      %v7046 = vadd.f32 0.0, %v7045
      %v7047 = vpop.f32.mrb[0].mxu0
      %7048 = vmatprep.mubr.f32.mxu0 0.0
      %7049 = vmatmul.mubr.f32.gmra.mrb[0].mxu0 %v6824
      %v7050 = vpop.f32.mrb[0].mxu0
      %v7051 = vadd.f32 0.0, %v7050
      %v7052 = vpop.f32.mrb[0].mxu0
      %7053 = vdwg.mxu0
      %v7054 = vadd.f32 %v6664, %v6896
      %v7055 = vadd.f32 %v6665, %v6901
      %v7056 = vadd.f32 %v6666, %v6906
      %v7057 = vadd.f32 %v6667, %v6911
      %v7058 = vadd.f32 %v6668, %v6916
      %v7059 = vadd.f32 %v6669, %v6921
      %v7060 = vadd.f32 %v6670, %v6926
      %v7061 = vadd.f32 %v6671, %v6931
      %v7062 = vadd.f32 %v6672, %v6936
      %v7063 = vadd.f32 %v6673, %v6941
      %v7064 = vadd.f32 %v6674, %v6946
      %v7065 = vadd.f32 %v6675, %v6951
      %v7066 = vadd.f32 %v6676, %v6956
      %v7067 = vadd.f32 %v6677, %v6961
      %v7068 = vadd.f32 %v6678, %v6966
      %v7069 = vadd.f32 %v6679, %v6971
      %v7070 = vadd.f32 %v6680, %v6976
      %v7071 = vadd.f32 %v6681, %v6981
      %v7072 = vadd.f32 %v6682, %v6986
      %v7073 = vadd.f32 %v6683, %v6991
      %v7074 = vadd.f32 %v6684, %v6996
      %v7075 = vadd.f32 %v6685, %v7001
      %v7076 = vadd.f32 %v6686, %v7006
      %v7077 = vadd.f32 %v6687, %v7011
      %v7078 = vadd.f32 %v6688, %v7016
      %v7079 = vadd.f32 %v6689, %v7021
      %v7080 = vadd.f32 %v6690, %v7026
      %v7081 = vadd.f32 %v6691, %v7031
      %v7082 = vadd.f32 %v6692, %v7036
      %v7083 = vadd.f32 %v6693, %v7041
      %v7084 = vadd.f32 %v6694, %v7046
      %v7085 = vadd.f32 %v6695, %v7051
      %v7086 = vld [vmem:[%s2725 + $0x2] sm:$0xff]
      %v7087 = vld [vmem:[%s2725 + $0xa] sm:$0xff]
      %v7088 = vld [vmem:[%s2725 + $0x1a] sm:$0xff]
      %v7089 = vld [vmem:[%s2725 + $0x22] sm:$0xff]
      %v7090 = vld [vmem:[%s2725 + $0x32] sm:$0xff]
      %v7091 = vld [vmem:[%s2725 + $0x3a] sm:$0xff]
      %v7092 = vld [vmem:[%s2725 + $0x4a] sm:$0xff]
      %v7093 = vld [vmem:[%s2725 + $0x52] sm:$0xff]
      %v7094 = vld [vmem:[%s2725 + $0x62] sm:$0xff]
      %v7095 = vld [vmem:[%s2725 + $0x6a] sm:$0xff]
      %v7096 = vld [vmem:[%s2725 + $0x7a] sm:$0xff]
      %v7097 = vld [vmem:[%s2725 + $0x82] sm:$0xff]
      %v7098 = vld [vmem:[%s2725 + $0x92] sm:$0xff]
      %v7099 = vld [vmem:[%s2725 + $0x9a] sm:$0xff]
      %v7100 = vld [vmem:[%s2725 + $0xaa] sm:$0xff]
      %v7101 = vld [vmem:[%s2725 + $0xb2] sm:$0xff]
      %v7102 = vld [vmem:[%s2725 + $0xc2] sm:$0xff]
      %v7103 = vld [vmem:[%s2725 + $0xca] sm:$0xff]
      %v7104 = vld [vmem:[%s2725 + $0xda] sm:$0xff]
      %v7105 = vld [vmem:[%s2725 + $0xe2] sm:$0xff]
      %v7106 = vld [vmem:[%s2725 + $0xf2] sm:$0xff]
      %v7107 = vld [vmem:[%s2725 + $0xfa] sm:$0xff]
      %v7108 = vld [vmem:[%s2725 + $0x10a] sm:$0xff]
      %v7109 = vld [vmem:[%s2725 + $0x112] sm:$0xff]
      %v7110 = vld [vmem:[%s2725 + $0x122] sm:$0xff]
      %v7111 = vld [vmem:[%s2725 + $0x12a] sm:$0xff]
      %v7112 = vld [vmem:[%s2725 + $0x13a] sm:$0xff]
      %v7113 = vld [vmem:[%s2725 + $0x142] sm:$0xff]
      %v7114 = vld [vmem:[%s2725 + $0x152] sm:$0xff]
      %v7115 = vld [vmem:[%s2725 + $0x15a] sm:$0xff]
      %v7116 = vld [vmem:[%s2725 + $0x16a] sm:$0xff]
      %v7117 = vld [vmem:[%s2725 + $0x172] sm:$0xff]
      %s7118 = scalar_lea.vmem %s3, 32
      %v7119 = vld [vmem:[%s7118] sm:$0xf]
      %v7121 = vsel %vm225, %v7086, 0
      %v7124 = vsel %vm225, %v7087, 0
      %v7127 = vsel %vm225, %v7088, 0
      %v7130 = vsel %vm225, %v7089, 0
      %v7133 = vsel %vm225, %v7090, 0
      %v7136 = vsel %vm225, %v7091, 0
      %v7139 = vsel %vm225, %v7092, 0
      %v7142 = vsel %vm225, %v7093, 0
      %v7145 = vsel %vm225, %v7094, 0
      %v7148 = vsel %vm225, %v7095, 0
      %v7151 = vsel %vm225, %v7096, 0
      %v7154 = vsel %vm225, %v7097, 0
      %v7157 = vsel %vm225, %v7098, 0
      %v7160 = vsel %vm225, %v7099, 0
      %v7163 = vsel %vm225, %v7100, 0
      %v7166 = vsel %vm225, %v7101, 0
      %v7169 = vsel %vm225, %v7102, 0
      %v7172 = vsel %vm225, %v7103, 0
      %v7175 = vsel %vm225, %v7104, 0
      %v7178 = vsel %vm225, %v7105, 0
      %v7181 = vsel %vm225, %v7106, 0
      %v7184 = vsel %vm225, %v7107, 0
      %v7187 = vsel %vm225, %v7108, 0
      %v7190 = vsel %vm225, %v7109, 0
      %v7193 = vsel %vm225, %v7110, 0
      %v7196 = vsel %vm225, %v7111, 0
      %v7199 = vsel %vm225, %v7112, 0
      %v7202 = vsel %vm225, %v7113, 0
      %v7205 = vsel %vm225, %v7114, 0
      %v7208 = vsel %vm225, %v7115, 0
      %v7211 = vsel %vm225, %v7116, 0
      %v7214 = vsel %vm225, %v7117, 0
      %v7217 = vsel %vm514, %v7119, 0
      %7219 = vmatprep.subr.mxu0 0.0
      %7220 = vmatpush1.msra.mxu0 %v7217
      %7221 = vmatprep.subr.mxu0 0.0
      %7222 = vmatpush1.msra.mxu0 0.0
      %7223 = vmatprep.subr.mxu0 0.0
      %7224 = vmatpush1.msra.mxu0 0.0
      %7225 = vmatprep.subr.mxu0 0.0
      %7226 = vmatpush1.msra.mxu0 0.0
      %7227 = vmatprep.subr.mxu0 0.0
      %7228 = vmatpush1.msra.mxu0 0.0
      %7229 = vmatprep.subr.mxu0 0.0
      %7230 = vmatpush1.msra.mxu0 0.0
      %7231 = vmatprep.subr.mxu0 0.0
      %7232 = vmatpush1.msra.mxu0 0.0
      %7233 = vmatprep.subr.mxu0 0.0
      %7234 = vmatpush1.msra.mxu0 0.0
      %7235 = vmatprep.subr.mxu0 0.0
      %7236 = vmatpush1.msra.mxu0 0.0
      %7237 = vmatprep.subr.mxu0 0.0
      %7238 = vmatpush1.msra.mxu0 0.0
      %7239 = vmatprep.subr.mxu0 0.0
      %7240 = vmatpush1.msra.mxu0 0.0
      %7241 = vmatprep.subr.mxu0 0.0
      %7242 = vmatpush1.msra.mxu0 0.0
      %7243 = vmatprep.subr.mxu0 0.0
      %7244 = vmatpush1.msra.mxu0 0.0
      %7245 = vmatprep.subr.mxu0 0.0
      %7246 = vmatpush1.msra.mxu0 0.0
      %7247 = vmatprep.subr.mxu0 0.0
      %7248 = vmatpush1.msra.mxu0 0.0
      %7249 = vmatprep.subr.mxu0 0.0
      %7250 = vmatpush1.msra.mxu0 0.0
      %7251 = vmatprep.subr.mxu0 0.0
      %7252 = vmatpush1.msra.mxu0 0.0
      %7253 = vmatprep.subr.mxu0 0.0
      %7254 = vmatpush1.msra.mxu0 0.0
      %7255 = vmatprep.subr.mxu0 0.0
      %7256 = vmatpush1.msra.mxu0 0.0
      %7257 = vmatprep.subr.mxu0 0.0
      %7258 = vmatpush1.msra.mxu0 0.0
      %7259 = vmatprep.subr.mxu0 0.0
      %7260 = vmatpush1.msra.mxu0 0.0
      %7261 = vmatprep.subr.mxu0 0.0
      %7262 = vmatpush1.msra.mxu0 0.0
      %7263 = vmatprep.subr.mxu0 0.0
      %7264 = vmatpush1.msra.mxu0 0.0
      %7265 = vmatprep.subr.mxu0 0.0
      %7266 = vmatpush1.msra.mxu0 0.0
      %7267 = vmatprep.subr.mxu0 0.0
      %7268 = vmatpush1.msra.mxu0 0.0
      %7269 = vmatprep.subr.mxu0 0.0
      %7270 = vmatpush1.msra.mxu0 0.0
      %7271 = vmatprep.subr.mxu0 0.0
      %7272 = vmatpush1.msra.mxu0 0.0
      %7273 = vmatprep.subr.mxu0 0.0
      %7274 = vmatpush1.msra.mxu0 0.0
      %7275 = vmatprep.subr.mxu0 0.0
      %7276 = vmatpush1.msra.mxu0 0.0
      %7277 = vmatprep.subr.mxu0 0.0
      %7278 = vmatpush1.msra.mxu0 0.0
      %7279 = vmatprep.subr.mxu0 0.0
      %7280 = vmatpush1.msra.mxu0 0.0
      %7281 = vmatprep.subr.mxu0 0.0
      %7282 = vmatpush1.msra.mxu0 0.0
      %7283 = vmatprep.mubr.f32.mxu0 0.0
      %7284 = vmatmul.mubr.f32.gmra.mrb[0].mxu0 %v7121
      %v7285 = vpop.f32.mrb[0].mxu0
      %v7286 = vadd.f32 0.0, %v7285
      %v7287 = vpop.f32.mrb[0].mxu0
      %7288 = vmatprep.mubr.f32.mxu0 0.0
      %7289 = vmatmul.mubr.f32.gmra.mrb[0].mxu0 %v7124
      %v7290 = vpop.f32.mrb[0].mxu0
      %v7291 = vadd.f32 0.0, %v7290
      %v7292 = vpop.f32.mrb[0].mxu0
      %7293 = vmatprep.mubr.f32.mxu0 0.0
      %7294 = vmatmul.mubr.f32.gmra.mrb[0].mxu0 %v7127
      %v7295 = vpop.f32.mrb[0].mxu0
      %v7296 = vadd.f32 0.0, %v7295
      %v7297 = vpop.f32.mrb[0].mxu0
      %7298 = vmatprep.mubr.f32.mxu0 0.0
      %7299 = vmatmul.mubr.f32.gmra.mrb[0].mxu0 %v7130
      %v7300 = vpop.f32.mrb[0].mxu0
      %v7301 = vadd.f32 0.0, %v7300
      %v7302 = vpop.f32.mrb[0].mxu0
      %7303 = vmatprep.mubr.f32.mxu0 0.0
      %7304 = vmatmul.mubr.f32.gmra.mrb[0].mxu0 %v7133
      %v7305 = vpop.f32.mrb[0].mxu0
      %v7306 = vadd.f32 0.0, %v7305
      %v7307 = vpop.f32.mrb[0].mxu0
      %7308 = vmatprep.mubr.f32.mxu0 0.0
      %7309 = vmatmul.mubr.f32.gmra.mrb[0].mxu0 %v7136
      %v7310 = vpop.f32.mrb[0].mxu0
      %v7311 = vadd.f32 0.0, %v7310
      %v7312 = vpop.f32.mrb[0].mxu0
      %7313 = vmatprep.mubr.f32.mxu0 0.0
      %7314 = vmatmul.mubr.f32.gmra.mrb[0].mxu0 %v7139
      %v7315 = vpop.f32.mrb[0].mxu0
      %v7316 = vadd.f32 0.0, %v7315
      %v7317 = vpop.f32.mrb[0].mxu0
      %7318 = vmatprep.mubr.f32.mxu0 0.0
      %7319 = vmatmul.mubr.f32.gmra.mrb[0].mxu0 %v7142
      %v7320 = vpop.f32.mrb[0].mxu0
      %v7321 = vadd.f32 0.0, %v7320
      %v7322 = vpop.f32.mrb[0].mxu0
      %7323 = vmatprep.mubr.f32.mxu0 0.0
      %7324 = vmatmul.mubr.f32.gmra.mrb[0].mxu0 %v7145
      %v7325 = vpop.f32.mrb[0].mxu0
      %v7326 = vadd.f32 0.0, %v7325
      %v7327 = vpop.f32.mrb[0].mxu0
      %7328 = vmatprep.mubr.f32.mxu0 0.0
      %7329 = vmatmul.mubr.f32.gmra.mrb[0].mxu0 %v7148
      %v7330 = vpop.f32.mrb[0].mxu0
      %v7331 = vadd.f32 0.0, %v7330
      %v7332 = vpop.f32.mrb[0].mxu0
      %7333 = vmatprep.mubr.f32.mxu0 0.0
      %7334 = vmatmul.mubr.f32.gmra.mrb[0].mxu0 %v7151
      %v7335 = vpop.f32.mrb[0].mxu0
      %v7336 = vadd.f32 0.0, %v7335
      %v7337 = vpop.f32.mrb[0].mxu0
      %7338 = vmatprep.mubr.f32.mxu0 0.0
      %7339 = vmatmul.mubr.f32.gmra.mrb[0].mxu0 %v7154
      %v7340 = vpop.f32.mrb[0].mxu0
      %v7341 = vadd.f32 0.0, %v7340
      %v7342 = vpop.f32.mrb[0].mxu0
      %7343 = vmatprep.mubr.f32.mxu0 0.0
      %7344 = vmatmul.mubr.f32.gmra.mrb[0].mxu0 %v7157
      %v7345 = vpop.f32.mrb[0].mxu0
      %v7346 = vadd.f32 0.0, %v7345
      %v7347 = vpop.f32.mrb[0].mxu0
      %7348 = vmatprep.mubr.f32.mxu0 0.0
      %7349 = vmatmul.mubr.f32.gmra.mrb[0].mxu0 %v7160
      %v7350 = vpop.f32.mrb[0].mxu0
      %v7351 = vadd.f32 0.0, %v7350
      %v7352 = vpop.f32.mrb[0].mxu0
      %7353 = vmatprep.mubr.f32.mxu0 0.0
      %7354 = vmatmul.mubr.f32.gmra.mrb[0].mxu0 %v7163
      %v7355 = vpop.f32.mrb[0].mxu0
      %v7356 = vadd.f32 0.0, %v7355
      %v7357 = vpop.f32.mrb[0].mxu0
      %7358 = vmatprep.mubr.f32.mxu0 0.0
      %7359 = vmatmul.mubr.f32.gmra.mrb[0].mxu0 %v7166
      %v7360 = vpop.f32.mrb[0].mxu0
      %v7361 = vadd.f32 0.0, %v7360
      %v7362 = vpop.f32.mrb[0].mxu0
      %7363 = vmatprep.mubr.f32.mxu0 0.0
      %7364 = vmatmul.mubr.f32.gmra.mrb[0].mxu0 %v7169
      %v7365 = vpop.f32.mrb[0].mxu0
      %v7366 = vadd.f32 0.0, %v7365
      %v7367 = vpop.f32.mrb[0].mxu0
      %7368 = vmatprep.mubr.f32.mxu0 0.0
      %7369 = vmatmul.mubr.f32.gmra.mrb[0].mxu0 %v7172
      %v7370 = vpop.f32.mrb[0].mxu0
      %v7371 = vadd.f32 0.0, %v7370
      %v7372 = vpop.f32.mrb[0].mxu0
      %7373 = vmatprep.mubr.f32.mxu0 0.0
      %7374 = vmatmul.mubr.f32.gmra.mrb[0].mxu0 %v7175
      %v7375 = vpop.f32.mrb[0].mxu0
      %v7376 = vadd.f32 0.0, %v7375
      %v7377 = vpop.f32.mrb[0].mxu0
      %7378 = vmatprep.mubr.f32.mxu0 0.0
      %7379 = vmatmul.mubr.f32.gmra.mrb[0].mxu0 %v7178
      %v7380 = vpop.f32.mrb[0].mxu0
      %v7381 = vadd.f32 0.0, %v7380
      %v7382 = vpop.f32.mrb[0].mxu0
      %7383 = vmatprep.mubr.f32.mxu0 0.0
      %7384 = vmatmul.mubr.f32.gmra.mrb[0].mxu0 %v7181
      %v7385 = vpop.f32.mrb[0].mxu0
      %v7386 = vadd.f32 0.0, %v7385
      %v7387 = vpop.f32.mrb[0].mxu0
      %7388 = vmatprep.mubr.f32.mxu0 0.0
      %7389 = vmatmul.mubr.f32.gmra.mrb[0].mxu0 %v7184
      %v7390 = vpop.f32.mrb[0].mxu0
      %v7391 = vadd.f32 0.0, %v7390
      %v7392 = vpop.f32.mrb[0].mxu0
      %7393 = vmatprep.mubr.f32.mxu0 0.0
      %7394 = vmatmul.mubr.f32.gmra.mrb[0].mxu0 %v7187
      %v7395 = vpop.f32.mrb[0].mxu0
      %v7396 = vadd.f32 0.0, %v7395
      %v7397 = vpop.f32.mrb[0].mxu0
      %7398 = vmatprep.mubr.f32.mxu0 0.0
      %7399 = vmatmul.mubr.f32.gmra.mrb[0].mxu0 %v7190
      %v7400 = vpop.f32.mrb[0].mxu0
      %v7401 = vadd.f32 0.0, %v7400
      %v7402 = vpop.f32.mrb[0].mxu0
      %7403 = vmatprep.mubr.f32.mxu0 0.0
      %7404 = vmatmul.mubr.f32.gmra.mrb[0].mxu0 %v7193
      %v7405 = vpop.f32.mrb[0].mxu0
      %v7406 = vadd.f32 0.0, %v7405
      %v7407 = vpop.f32.mrb[0].mxu0
      %7408 = vmatprep.mubr.f32.mxu0 0.0
      %7409 = vmatmul.mubr.f32.gmra.mrb[0].mxu0 %v7196
      %v7410 = vpop.f32.mrb[0].mxu0
      %v7411 = vadd.f32 0.0, %v7410
      %v7412 = vpop.f32.mrb[0].mxu0
      %7413 = vmatprep.mubr.f32.mxu0 0.0
      %7414 = vmatmul.mubr.f32.gmra.mrb[0].mxu0 %v7199
      %v7415 = vpop.f32.mrb[0].mxu0
      %v7416 = vadd.f32 0.0, %v7415
      %v7417 = vpop.f32.mrb[0].mxu0
      %7418 = vmatprep.mubr.f32.mxu0 0.0
      %7419 = vmatmul.mubr.f32.gmra.mrb[0].mxu0 %v7202
      %v7420 = vpop.f32.mrb[0].mxu0
      %v7421 = vadd.f32 0.0, %v7420
      %v7422 = vpop.f32.mrb[0].mxu0
      %7423 = vmatprep.mubr.f32.mxu0 0.0
      %7424 = vmatmul.mubr.f32.gmra.mrb[0].mxu0 %v7205
      %v7425 = vpop.f32.mrb[0].mxu0
      %v7426 = vadd.f32 0.0, %v7425
      %v7427 = vpop.f32.mrb[0].mxu0
      %7428 = vmatprep.mubr.f32.mxu0 0.0
      %7429 = vmatmul.mubr.f32.gmra.mrb[0].mxu0 %v7208
      %v7430 = vpop.f32.mrb[0].mxu0
      %v7431 = vadd.f32 0.0, %v7430
      %v7432 = vpop.f32.mrb[0].mxu0
      %7433 = vmatprep.mubr.f32.mxu0 0.0
      %7434 = vmatmul.mubr.f32.gmra.mrb[0].mxu0 %v7211
      %v7435 = vpop.f32.mrb[0].mxu0
      %v7436 = vadd.f32 0.0, %v7435
      %v7437 = vpop.f32.mrb[0].mxu0
      %7438 = vmatprep.mubr.f32.mxu0 0.0
      %7439 = vmatmul.mubr.f32.gmra.mrb[0].mxu0 %v7214
      %v7440 = vpop.f32.mrb[0].mxu0
      %v7441 = vadd.f32 0.0, %v7440
      %v7442 = vpop.f32.mrb[0].mxu0
      %7443 = vdwg.mxu0
      %v7444 = vadd.f32 %v7054, %v7286
      %v7445 = vadd.f32 %v7055, %v7291
      %v7446 = vadd.f32 %v7056, %v7296
      %v7447 = vadd.f32 %v7057, %v7301
      %v7448 = vadd.f32 %v7058, %v7306
      %v7449 = vadd.f32 %v7059, %v7311
      %v7450 = vadd.f32 %v7060, %v7316
      %v7451 = vadd.f32 %v7061, %v7321
      %v7452 = vadd.f32 %v7062, %v7326
      %v7453 = vadd.f32 %v7063, %v7331
      %v7454 = vadd.f32 %v7064, %v7336
      %v7455 = vadd.f32 %v7065, %v7341
      %v7456 = vadd.f32 %v7066, %v7346
      %v7457 = vadd.f32 %v7067, %v7351
      %v7458 = vadd.f32 %v7068, %v7356
      %v7459 = vadd.f32 %v7069, %v7361
      %v7460 = vadd.f32 %v7070, %v7366
      %v7461 = vadd.f32 %v7071, %v7371
      %v7462 = vadd.f32 %v7072, %v7376
      %v7463 = vadd.f32 %v7073, %v7381
      %v7464 = vadd.f32 %v7074, %v7386
      %v7465 = vadd.f32 %v7075, %v7391
      %v7466 = vadd.f32 %v7076, %v7396
      %v7467 = vadd.f32 %v7077, %v7401
      %v7468 = vadd.f32 %v7078, %v7406
      %v7469 = vadd.f32 %v7079, %v7411
      %v7470 = vadd.f32 %v7080, %v7416
      %v7471 = vadd.f32 %v7081, %v7421
      %v7472 = vadd.f32 %v7082, %v7426
      %v7473 = vadd.f32 %v7083, %v7431
      %v7474 = vadd.f32 %v7084, %v7436
      %v7475 = vadd.f32 %v7085, %v7441
      %v7476 = vadd.f32 %v7444, %v281
      %v7477 = vadd.f32 %v7445, %v282
      %v7478 = vadd.f32 %v7446, %v283
      %v7479 = vadd.f32 %v7447, %v284
      %v7480 = vadd.f32 %v7448, %v285
      %v7481 = vadd.f32 %v7449, %v286
      %v7482 = vadd.f32 %v7450, %v287
      %v7483 = vadd.f32 %v7451, %v288
      %v7484 = vadd.f32 %v7452, %v289
      %v7485 = vadd.f32 %v7453, %v290
      %v7486 = vadd.f32 %v7454, %v291
      %v7487 = vadd.f32 %v7455, %v292
      %v7488 = vadd.f32 %v7456, %v293
      %v7489 = vadd.f32 %v7457, %v294
      %v7490 = vadd.f32 %v7458, %v295
      %v7491 = vadd.f32 %v7459, %v296
      %v7492 = vadd.f32 %v7460, %v297
      %v7493 = vadd.f32 %v7461, %v298
      %v7494 = vadd.f32 %v7462, %v299
      %v7495 = vadd.f32 %v7463, %v300
      %v7496 = vadd.f32 %v7464, %v301
      %v7497 = vadd.f32 %v7465, %v302
      %v7498 = vadd.f32 %v7466, %v303
      %v7499 = vadd.f32 %v7467, %v304
      %v7500 = vadd.f32 %v7468, %v305
      %v7501 = vadd.f32 %v7469, %v306
      %v7502 = vadd.f32 %v7470, %v307
      %v7503 = vadd.f32 %v7471, %v308
      %v7504 = vadd.f32 %v7472, %v309
      %v7505 = vadd.f32 %v7473, %v310
      %v7506 = vadd.f32 %v7474, %v311
      %v7507 = vadd.f32 %v7475, %v312
      %7508 = vst.msk [vmem:[%s224] sm:$0xff] %vm225, %v7476
      %7509 = vst.msk [vmem:[%s224 + $0x8] sm:$0xff] %vm225, %v7477
      %7510 = vst.msk [vmem:[%s224 + $0x10] sm:$0xff] %vm225, %v7478
      %7511 = vst.msk [vmem:[%s224 + $0x18] sm:$0xff] %vm225, %v7479
      %7512 = vst.msk [vmem:[%s224 + $0x20] sm:$0xff] %vm225, %v7480
      %7513 = vst.msk [vmem:[%s224 + $0x28] sm:$0xff] %vm225, %v7481
      %7514 = vst.msk [vmem:[%s224 + $0x30] sm:$0xff] %vm225, %v7482
      %7515 = vst.msk [vmem:[%s224 + $0x38] sm:$0xff] %vm225, %v7483
      %7516 = vst.msk [vmem:[%s224 + $0x40] sm:$0xff] %vm225, %v7484
      %7517 = vst.msk [vmem:[%s224 + $0x48] sm:$0xff] %vm225, %v7485
      %7518 = vst.msk [vmem:[%s224 + $0x50] sm:$0xff] %vm225, %v7486
      %7519 = vst.msk [vmem:[%s224 + $0x58] sm:$0xff] %vm225, %v7487
      %7520 = vst.msk [vmem:[%s224 + $0x60] sm:$0xff] %vm225, %v7488
      %7521 = vst.msk [vmem:[%s224 + $0x68] sm:$0xff] %vm225, %v7489
      %7522 = vst.msk [vmem:[%s224 + $0x70] sm:$0xff] %vm225, %v7490
      %7523 = vst.msk [vmem:[%s224 + $0x78] sm:$0xff] %vm225, %v7491
      %7524 = vst.msk [vmem:[%s224 + $0x80] sm:$0xff] %vm225, %v7492
      %7525 = vst.msk [vmem:[%s224 + $0x88] sm:$0xff] %vm225, %v7493
      %7526 = vst.msk [vmem:[%s224 + $0x90] sm:$0xff] %vm225, %v7494
      %7527 = vst.msk [vmem:[%s224 + $0x98] sm:$0xff] %vm225, %v7495
      %7528 = vst.msk [vmem:[%s224 + $0xa0] sm:$0xff] %vm225, %v7496
      %7529 = vst.msk [vmem:[%s224 + $0xa8] sm:$0xff] %vm225, %v7497
      %7530 = vst.msk [vmem:[%s224 + $0xb0] sm:$0xff] %vm225, %v7498
      %7531 = vst.msk [vmem:[%s224 + $0xb8] sm:$0xff] %vm225, %v7499
      %7532 = vst.msk [vmem:[%s224 + $0xc0] sm:$0xff] %vm225, %v7500
      %7533 = vst.msk [vmem:[%s224 + $0xc8] sm:$0xff] %vm225, %v7501
      %7534 = vst.msk [vmem:[%s224 + $0xd0] sm:$0xff] %vm225, %v7502
      %7535 = vst.msk [vmem:[%s224 + $0xd8] sm:$0xff] %vm225, %v7503
      %7536 = vst.msk [vmem:[%s224 + $0xe0] sm:$0xff] %vm225, %v7504
      %7537 = vst.msk [vmem:[%s224 + $0xe8] sm:$0xff] %vm225, %v7505
      %7538 = vst.msk [vmem:[%s224 + $0xf0] sm:$0xff] %vm225, %v7506
      %7539 = vst.msk [vmem:[%s224 + $0xf8] sm:$0xff] %vm225, %v7507
      %p7540 = scmp.lt.s32.totalorder %s16, 1
      %s7541 = scalar_select %p7540, %s16, 1
      %s7542 = smul.addr %s7541, 32
      %s7543 = smul.addr %s7542, 8
      %s7544 = scalar_lea.vmem %s5, %s7543
      // Predicated region
      $region41: #{tpu_custom_call.1} parent=39 // pred_check
        %p7545 = pneg %p144
      $region42: #{tpu_custom_call.1} parent=39 // pred_check_branch
        %7547 = sbr.rel (%p7545) target = $region44
      $region43: #{tpu_custom_call.1} parent=39 // pred_region
        _
      $region44: #{tpu_custom_call.1} parent=39 // pred_fallthru
        _
    $region40: #{tpu_custom_call.1} parent=5 // pred_fallthru
      _
    %p7548 = scmp.le.s32.totalorder 2, %s11
    // Predicated region
    $region45: #{tpu_custom_call.1} parent=5 // pred_check
      %p7549 = pneg %p7548
    $region46: #{tpu_custom_call.1} parent=5 // pred_check_branch
      %7551 = sbr.rel (%p7549) target = $region48
    $region47: #{tpu_custom_call.1} parent=5 // pred_region
      %s7552 = ssub.s32 %s11, 2
      // Predicated region
      $region49: #{tpu_custom_call.1} parent=47 // pred_check
        %p7553 = pneg %p150
      $region50: #{tpu_custom_call.1} parent=47 // pred_check_branch
        %7555 = sbr.rel (%p7553) target = $region52
      $region51: #{tpu_custom_call.1} parent=47 // pred_region
        %p7556 = scmp.lt.s32.totalorder %s17, 1
        %s7557 = scalar_select %p7556, %s17, 1
        %s7558 = smul.addr %s7557, 32
        %s7559 = smul.addr %s7558, 8
        %s7560 = scalar_lea.vmem %s5, %s7559
      $region52: #{tpu_custom_call.1} parent=47 // pred_fallthru
        _
    $region48: #{tpu_custom_call.1} parent=5 // pred_fallthru
      _
  $region6: #{tpu_custom_call.1} parent=0 // loop_footer
    %s15 = sadd.s32 1, %s11
  $region7: #{tpu_custom_call.1} parent=0 // loop_footer_branch
    %10 = sbr.rel target = $region3
  $region8: #{tpu_custom_call.1} parent=0 // loop_exit
    _

</llo_original>
